<compile_context>
chip_gen: v5e
topology: v5e:2x2
jax: 0.10.0
libtpu: 0.0.40
codegen_flags: <defaults>
</compile_context>

<pallas_src>
import functools
import math

import jax
import jax.numpy as jnp
from jax import lax
from jax.experimental import pallas as pl
from jax.experimental.pallas import tpu as pltpu

D_MODEL = 256
NHEAD = 8
DHEAD = D_MODEL // NHEAD
DIM_FF = 1024
NUM_LAYERS = 4
LN_EPS = 1e-5
BN_EPS = 1e-5
NEG_INF = -1e30


# ---------------------------------------------------------------------------
# One grid step = one encoder layer applied to one image's paired (feat1, feat2)
# token block of shape (2S, E).  At the last layer the fused 1x1-conv + folded
# BatchNorm + ReLU "fusion" head is applied and the (S, E) correlation written.
# ---------------------------------------------------------------------------
def _matcher_kernel(x_ref, mask_ref,
                    wqkv_ref, bqkv_ref, wo_ref, bo_ref,
                    ln1_g_ref, ln1_b_ref, w1_ref, b1_ref,
                    w2_ref, b2_ref, ln2_g_ref, ln2_b_ref,
                    fw1_ref, fw2_ref, fb_ref,
                    o_ref, act_ref,
                    *, seq_len, nhead, dhead, eps):
    layer = pl.program_id(1)
    last_layer = pl.num_programs(1) - 1

    # First layer of each image pair: pull the (2S, E) tokens into the resident
    # VMEM activation buffer (stays live across the whole layer axis).
    @pl.when(layer == 0)
    def _():
        act_ref[...] = x_ref[0]

    x = act_ref[...]                                         # (2S, E) f32
    n_tok, e = x.shape

    # ---- fused QKV projection (bf16 MXU operands, f32 accumulation).
    #      1/sqrt(dhead) is already folded into the Q columns at param prep.
    qkv = jnp.dot(x.astype(jnp.bfloat16), wqkv_ref[0],
                  preferred_element_type=jnp.float32) + bqkv_ref[0]

    # ---- head split without lane-narrow slicing: one 2-D transpose to
    #      feature-major, sublane-aligned row slices, leading-dim reshapes.
    qkv_t = jnp.transpose(qkv)                               # (3E, 2S)
    q3 = qkv_t[0:e].reshape(nhead, dhead, n_tok)             # (H, Dh, 2S)
    k3 = qkv_t[e:2 * e].reshape(nhead, dhead, n_tok)         # (H, Dh, 2S)
    v3 = qkv_t[2 * e:3 * e].reshape(nhead, dhead, n_tok)     # (H, Dh, 2S)
    q3 = jnp.transpose(q3, (0, 2, 1))                        # (H, 2S, Dh)

    # ---- attention: one batched dot_general per contraction (heads = batch dim)
    s = lax.dot_general(q3.astype(jnp.bfloat16), k3.astype(jnp.bfloat16),
                        (((2,), (1,)), ((0,), (0,))),
                        preferred_element_type=jnp.float32)  # (H, 2S, 2S)
    s = s + mask_ref[...]            # keep the paired feat1 / feat2 sequences apart
    s = s - jnp.max(s, axis=-1, keepdims=True)               # f32 softmax (stable)
    p = jnp.exp(s)
    ctx = lax.dot_general(p.astype(jnp.bfloat16), v3.astype(jnp.bfloat16),
                          (((2,), (2,)), ((0,), (0,))),
                          preferred_element_type=jnp.float32)  # (H, 2S, Dh)
    # deferred softmax normalisation: (H, 2S, 1) reciprocal on the EUP.
    ctx = ctx * pl.reciprocal(jnp.sum(p, axis=-1, keepdims=True), approx=True)

    # ---- out-projection with the head merge folded in: per-head (Dh, E) weight
    #      slabs, batched dot, then a cheap sum over the head axis.
    attn = lax.dot_general(ctx.astype(jnp.bfloat16), wo_ref[0],
                           (((2,), (1,)), ((0,), (0,))),
                           preferred_element_type=jnp.float32)  # (H, 2S, E)
    attn = jnp.sum(attn, axis=0) + bo_ref[0]                    # (2S, E)

    # ---- residual + LayerNorm 1 (f32); dropout1 = identity (eval mode)
    y = x + attn
    mu = jnp.mean(y, axis=-1, keepdims=True)
    var = jnp.mean((y - mu) ** 2, axis=-1, keepdims=True)
    y = (y - mu) * lax.rsqrt(var + eps) * ln1_g_ref[0] + ln1_b_ref[0]

    # ---- feed-forward (ReLU); dropouts = identity (eval mode)
    f = jnp.dot(y.astype(jnp.bfloat16), w1_ref[0],
                preferred_element_type=jnp.float32) + b1_ref[0]
    f = jnp.maximum(f, 0.0)
    f = jnp.dot(f.astype(jnp.bfloat16), w2_ref[0],
                preferred_element_type=jnp.float32) + b2_ref[0]

    # ---- residual + LayerNorm 2 (f32)
    z = y + f
    mu2 = jnp.mean(z, axis=-1, keepdims=True)
    var2 = jnp.mean((z - mu2) ** 2, axis=-1, keepdims=True)
    z = (z - mu2) * lax.rsqrt(var2 + eps) * ln2_g_ref[0] + ln2_b_ref[0]
    act_ref[...] = z

    # ---- after the last layer: fusion = 1x1 conv (split by feat1/feat2 channel
    #      halves, so no channel concat) + folded BatchNorm + ReLU.
    @pl.when(layer == last_layer)
    def _():
        m1 = z[:seq_len].astype(jnp.bfloat16)               # matched feat1 tokens
        m2 = z[seq_len:].astype(jnp.bfloat16)                # matched feat2 tokens
        corr = (jnp.dot(m1, fw1_ref[...], preferred_element_type=jnp.float32)
                + jnp.dot(m2, fw2_ref[...], preferred_element_type=jnp.float32)
                + fb_ref[...])
        o_ref[0] = jnp.maximum(corr, 0.0)


# ---------------------------------------------------------------------------
# FeatureMatcher.forward  (NCHW interface, matching the torch module)
# ---------------------------------------------------------------------------
def feature_matcher_forward(params, feat1, feat2):
    """feat1, feat2: (B, C, H, W) float32  ->  correlation (B, C, H, W) float32."""
    b, c, h, w = feat1.shape
    s = h * w
    n_tok = 2 * s

    t1 = jnp.transpose(feat1.reshape(b, c, s), (0, 2, 1))    # (B, S, C)
    t2 = jnp.transpose(feat2.reshape(b, c, s), (0, 2, 1))    # (B, S, C)
    x = jnp.concatenate([t1, t2], axis=1)                    # (B, 2S, C)

    # pair mask: token i attends token j only if both belong to the same
    # feature map (feat1 rows [0, S), feat2 rows [S, 2S)).
    is_f2 = jnp.arange(n_tok) >= s
    mask = jnp.where(is_f2[:, None] == is_f2[None, :], 0.0, NEG_INF)
    mask = mask.astype(jnp.float32)

    def layer_spec(blk):
        return pl.BlockSpec(blk, lambda bi, li, _n=len(blk): (li,) + (0,) * (_n - 1))

    def const_spec(blk):
        return pl.BlockSpec(blk, lambda bi, li, _n=len(blk): (0,) * _n)

    lw = params["layers"]            # stacked (L, ...) per-layer weights
    in_specs = [
        pl.BlockSpec((1, n_tok, c), lambda bi, li: (bi, 0, 0)),        # x tokens
        const_spec((n_tok, n_tok)),                                    # pair mask
        layer_spec((1, c, 3 * c)),                                     # wqkv
        layer_spec((1, 1, 3 * c)),                                     # bqkv
        layer_spec((1, NHEAD, DHEAD, c)),                              # wo (head-split)
        layer_spec((1, 1, c)),                                         # bo
        layer_spec((1, 1, c)), layer_spec((1, 1, c)),                  # ln1 g, b
        layer_spec((1, c, DIM_FF)), layer_spec((1, 1, DIM_FF)),        # w1, b1
        layer_spec((1, DIM_FF, c)), layer_spec((1, 1, c)),             # w2, b2
        layer_spec((1, 1, c)), layer_spec((1, 1, c)),                  # ln2 g, b
        const_spec((c, c)), const_spec((c, c)), const_spec((1, c)),    # fusion conv
    ]
    out_spec = pl.BlockSpec((1, s, c), lambda bi, li: (bi, 0, 0))

    out = pl.pallas_call(
        functools.partial(_matcher_kernel, seq_len=s, nhead=NHEAD,
                          dhead=DHEAD, eps=LN_EPS),
        out_shape=jax.ShapeDtypeStruct((b, s, c), jnp.float32),
        grid_spec=pltpu.PrefetchScalarGridSpec(
            num_scalar_prefetch=0,
            grid=(b, NUM_LAYERS),
            in_specs=in_specs,
            out_specs=out_spec,
            scratch_shapes=[pltpu.VMEM((n_tok, c), jnp.float32)],      # resident acts
        ),
        compiler_params=pltpu.CompilerParams(
            dimension_semantics=("parallel", "arbitrary")),
    )(x, mask,
      lw["wqkv"], lw["bqkv"], lw["wo"], lw["bo"],
      lw["ln1_g"], lw["ln1_b"], lw["w1"], lw["b1"],
      lw["w2"], lw["b2"], lw["ln2_g"], lw["ln2_b"],
      params["fus_w1"], params["fus_w2"], params["fus_b"])

    return jnp.transpose(out, (0, 2, 1)).reshape(b, c, h, w)


# ---------------------------------------------------------------------------
# Deterministic synthetic parameters.
#  - weights pre-cast to bf16, attention scale folded into wqkv's Q columns,
#    wo stored head-split (H, Dh, E), eval-mode BatchNorm folded into the
#    fusion conv, fusion weight split into feat1/feat2 halves.
#  - NOTE: a real PyTorch checkpoint stores in_proj_weight as (3E, E) and
#    out_proj.weight as (E, E), both applied as x @ W^T -> transpose (and for
#    wo also head-reshape) before stacking per layer here.
# ---------------------------------------------------------------------------
def make_params(seed=42):
    key = jax.random.PRNGKey(seed)

    def nxt():
        nonlocal key
        key, sub = jax.random.split(key)
        return sub

    def init(shape, fan_in):
        return jax.random.normal(nxt(), shape, jnp.float32) / jnp.sqrt(float(fan_in))

    zeros = lambda shape: jnp.zeros(shape, jnp.float32)
    ones = lambda shape: jnp.ones(shape, jnp.float32)
    scale_q = 1.0 / math.sqrt(DHEAD)

    layers = []
    for _ in range(NUM_LAYERS):
        wqkv = init((D_MODEL, 3 * D_MODEL), D_MODEL)
        bqkv = zeros((1, 3 * D_MODEL))
        # fold the 1/sqrt(dhead) attention scale into the Q projection
        wqkv = wqkv.at[:, :D_MODEL].multiply(scale_q)
        bqkv = bqkv.at[:, :D_MODEL].multiply(scale_q)
        wo = init((D_MODEL, D_MODEL), D_MODEL)
        layers.append(dict(
            wqkv=wqkv.astype(jnp.bfloat16),
            bqkv=bqkv,
            wo=wo.reshape(NHEAD, DHEAD, D_MODEL).astype(jnp.bfloat16),
            bo=zeros((1, D_MODEL)),
            ln1_g=ones((1, D_MODEL)), ln1_b=zeros((1, D_MODEL)),
            w1=init((D_MODEL, DIM_FF), D_MODEL).astype(jnp.bfloat16),
            b1=zeros((1, DIM_FF)),
            w2=init((DIM_FF, D_MODEL), DIM_FF).astype(jnp.bfloat16),
            b2=zeros((1, D_MODEL)),
            ln2_g=ones((1, D_MODEL)), ln2_b=zeros((1, D_MODEL)),
        ))
    stacked = {k: jnp.stack([lp[k] for lp in layers], axis=0) for k in layers[0]}

    # fusion 1x1 conv with eval-mode BatchNorm (default running stats) folded in
    fus_w = init((2 * D_MODEL, D_MODEL), 2 * D_MODEL)
    fus_b = zeros((D_MODEL,))
    gamma, beta = ones((D_MODEL,)), zeros((D_MODEL,))
    mean, var = zeros((D_MODEL,)), ones((D_MODEL,))
    bn_scale = gamma / jnp.sqrt(var + BN_EPS)
    fus_w = fus_w * bn_scale
    fus_b = (fus_b - mean) * bn_scale + beta

    return dict(
        layers=stacked,
        fus_w1=fus_w[:D_MODEL].astype(jnp.bfloat16),    # acts on matched feat1
        fus_w2=fus_w[D_MODEL:].astype(jnp.bfloat16),    # acts on matched feat2
        fus_b=fus_b.reshape(1, D_MODEL),
    )


# ---------------------------------------------------------------------------
if __name__ == "__main__":
    B, C, H, W = 2, D_MODEL, 4, 4                 # (b, c, h, w) as in the torch module
    k1, k2 = jax.random.split(jax.random.PRNGKey(0))
    feat1 = jax.random.normal(k1, (B, C, H, W), jnp.float32)
    feat2 = jax.random.normal(k2, (B, C, H, W), jnp.float32)

    params = make_params()
    fwd = jax.jit(feature_matcher_forward)
    correlation = fwd(params, feat1, feat2)
    jax.block_until_ready(correlation)

    assert correlation.shape == (B, C, H, W)
    assert bool(jnp.all(jnp.isfinite(correlation)))
    assert bool(jnp.all(correlation >= 0.0))      # ReLU output
    print("KERNEL_OK")
</pallas_src>

<mosaic_0001>
module attributes {stable_mosaic.version = 11 : i64} {
  func.func @_matcher_kernel(%arg0: i32, %arg1: i32, %arg2: memref<1x32x256xf32, #tpu.memory_space<vmem>>, %arg3: memref<32x32xf32, #tpu.memory_space<vmem>>, %arg4: memref<1x256x768xbf16, #tpu.memory_space<vmem>>, %arg5: memref<1x1x768xf32, #tpu.memory_space<vmem>>, %arg6: memref<1x8x32x256xbf16, #tpu.memory_space<vmem>>, %arg7: memref<1x1x256xf32, #tpu.memory_space<vmem>>, %arg8: memref<1x1x256xf32, #tpu.memory_space<vmem>>, %arg9: memref<1x1x256xf32, #tpu.memory_space<vmem>>, %arg10: memref<1x256x1024xbf16, #tpu.memory_space<vmem>>, %arg11: memref<1x1x1024xf32, #tpu.memory_space<vmem>>, %arg12: memref<1x1024x256xbf16, #tpu.memory_space<vmem>>, %arg13: memref<1x1x256xf32, #tpu.memory_space<vmem>>, %arg14: memref<1x1x256xf32, #tpu.memory_space<vmem>>, %arg15: memref<1x1x256xf32, #tpu.memory_space<vmem>>, %arg16: memref<256x256xbf16, #tpu.memory_space<vmem>>, %arg17: memref<256x256xbf16, #tpu.memory_space<vmem>>, %arg18: memref<1x256xf32, #tpu.memory_space<vmem>>, %arg19: memref<1x16x256xf32, #tpu.memory_space<vmem>>, %arg20: memref<32x256xf32, #tpu.memory_space<vmem>>) attributes {dimension_semantics = [#tpu.dimension_semantics<parallel>, #tpu.dimension_semantics<arbitrary>], iteration_bounds = array<i64: 2, 4>, scalar_prefetch = 0 : i64, scratch_operands = 1 : i64, tpu.core_type = #tpu.core_type<tc>, window_params = [{transform_indices = @transform_0, window_bounds = array<i64: 1, 32, 256>}, {pipeline_mode = #tpu.pipeline_mode<synchronous>, transform_indices = @transform_1, window_bounds = array<i64: 32, 32>}, {transform_indices = @transform_2, window_bounds = array<i64: 1, 256, 768>}, {transform_indices = @transform_3, window_bounds = array<i64: 1, 1, 768>}, {transform_indices = @transform_4, window_bounds = array<i64: 1, 8, 32, 256>}, {transform_indices = @transform_5, window_bounds = array<i64: 1, 1, 256>}, {transform_indices = @transform_6, window_bounds = array<i64: 1, 1, 256>}, {transform_indices = @transform_7, window_bounds = array<i64: 1, 1, 256>}, {transform_indices = @transform_8, window_bounds = array<i64: 1, 256, 1024>}, {transform_indices = @transform_9, window_bounds = array<i64: 1, 1, 1024>}, {transform_indices = @transform_10, window_bounds = array<i64: 1, 1024, 256>}, {transform_indices = @transform_11, window_bounds = array<i64: 1, 1, 256>}, {transform_indices = @transform_12, window_bounds = array<i64: 1, 1, 256>}, {transform_indices = @transform_13, window_bounds = array<i64: 1, 1, 256>}, {pipeline_mode = #tpu.pipeline_mode<synchronous>, transform_indices = @transform_14, window_bounds = array<i64: 256, 256>}, {pipeline_mode = #tpu.pipeline_mode<synchronous>, transform_indices = @transform_15, window_bounds = array<i64: 256, 256>}, {pipeline_mode = #tpu.pipeline_mode<synchronous>, transform_indices = @transform_16, window_bounds = array<i64: 1, 256>}, {transform_indices = @transform_17, window_bounds = array<i64: 1, 16, 256>}]} {
    %c0_i32 = arith.constant 0 : i32
    %0 = arith.cmpi eq, %arg1, %c0_i32 : i32
    %1 = arith.extui %0 : i1 to i32
    %c0_i32_0 = arith.constant 0 : i32
    %2 = arith.cmpi ne, %1, %c0_i32_0 : i32
    scf.if %2 {
      %c0_63 = arith.constant 0 : index
      %c0_64 = arith.constant 0 : index
      %c0_65 = arith.constant 0 : index
      %125 = vector.load %arg2[%c0_63, %c0_64, %c0_65] : memref<1x32x256xf32, #tpu.memory_space<vmem>>, vector<1x32x256xf32>
      %126 = vector.shape_cast %125 : vector<1x32x256xf32> to vector<32x256xf32>
      %c0_66 = arith.constant 0 : index
      %c0_67 = arith.constant 0 : index
      %127 = vector.load %arg20[%c0_66, %c0_67] : memref<32x256xf32, #tpu.memory_space<vmem>>, vector<32x256xf32>
      tpu.vector_store %arg20[%c0_66, %c0_67], %126 {strides = array<i32>} : memref<32x256xf32, #tpu.memory_space<vmem>>, vector<32x256xf32>,
    } else {
    }
    %c0 = arith.constant 0 : index
    %c0_1 = arith.constant 0 : index
    %3 = vector.load %arg20[%c0, %c0_1] : memref<32x256xf32, #tpu.memory_space<vmem>>, vector<32x256xf32>
    %4 = arith.truncf %3 : vector<32x256xf32> to vector<32x256xbf16>
    %c0_2 = arith.constant 0 : index
    %c0_3 = arith.constant 0 : index
    %c0_4 = arith.constant 0 : index
    %5 = vector.load %arg4[%c0_2, %c0_3, %c0_4] : memref<1x256x768xbf16, #tpu.memory_space<vmem>>, vector<1x256x768xbf16>
    %6 = vector.shape_cast %5 : vector<1x256x768xbf16> to vector<256x768xbf16>
    %cst = arith.constant dense<0.000000e+00> : vector<32x768xf32>
    %7 = tpu.matmul %4, %6, %cst {dimension_numbers = #tpu.dot_dimension_numbers<[1], [0], [0], [1], [0, 0, 1, 1], [], []>} : vector<32x256xbf16>, vector<256x768xbf16>, vector<32x768xf32> -> vector<32x768xf32>
    %c0_5 = arith.constant 0 : index
    %c0_6 = arith.constant 0 : index
    %c0_7 = arith.constant 0 : index
    %8 = vector.load %arg5[%c0_5, %c0_6, %c0_7] : memref<1x1x768xf32, #tpu.memory_space<vmem>>, vector<1x1x768xf32>
    %9 = vector.shape_cast %8 : vector<1x1x768xf32> to vector<1x768xf32>
    %10 = vector.broadcast %9 : vector<1x768xf32> to vector<32x768xf32>
    %11 = arith.addf %7, %10 : vector<32x768xf32>
    %12 = tpu.transpose %11, [1, 0] : vector<32x768xf32> -> vector<768x32xf32>
    %13 = vector.extract_strided_slice %12 {offsets = [0, 0], sizes = [256, 32], strides = [1, 1]} : vector<768x32xf32> to vector<256x32xf32>
    %14 = vector.shape_cast %13 : vector<256x32xf32> to vector<8x32x32xf32>
    %15 = vector.extract_strided_slice %12 {offsets = [256, 0], sizes = [256, 32], strides = [1, 1]} : vector<768x32xf32> to vector<256x32xf32>
    %16 = vector.shape_cast %15 : vector<256x32xf32> to vector<8x32x32xf32>
    %17 = vector.extract_strided_slice %12 {offsets = [512, 0], sizes = [256, 32], strides = [1, 1]} : vector<768x32xf32> to vector<256x32xf32>
    %18 = vector.shape_cast %17 : vector<256x32xf32> to vector<8x32x32xf32>
    %19 = tpu.transpose %14, [0, 2, 1] : vector<8x32x32xf32> -> vector<8x32x32xf32>
    %20 = arith.truncf %19 : vector<8x32x32xf32> to vector<8x32x32xbf16>
    %21 = arith.truncf %16 : vector<8x32x32xf32> to vector<8x32x32xbf16>
    %cst_8 = arith.constant dense<0.000000e+00> : vector<8x32x32xf32>
    %22 = tpu.matmul %20, %21, %cst_8 {dimension_numbers = #tpu.dot_dimension_numbers<[2], [1], [1], [2], [0, 0, 0, 1, 1, 2], [0], [0]>} : vector<8x32x32xbf16>, vector<8x32x32xbf16>, vector<8x32x32xf32> -> vector<8x32x32xf32>
    %c0_9 = arith.constant 0 : index
    %c0_10 = arith.constant 0 : index
    %23 = vector.load %arg3[%c0_9, %c0_10] : memref<32x32xf32, #tpu.memory_space<vmem>>, vector<32x32xf32>
    %24 = vector.shape_cast %23 : vector<32x32xf32> to vector<1x32x32xf32>
    %25 = vector.broadcast %24 : vector<1x32x32xf32> to vector<8x32x32xf32>
    %26 = arith.addf %22, %25 : vector<8x32x32xf32>
    %cst_11 = arith.constant dense<0xFF800000> : vector<8x32xf32>
    %27 = vector.multi_reduction <maximumf>, %26, %cst_11 [2] : vector<8x32x32xf32> to vector<8x32xf32>
    %28 = vector.shape_cast %27 : vector<8x32xf32> to vector<8x32x1xf32>
    %29 = vector.broadcast %28 : vector<8x32x1xf32> to vector<8x32x32xf32>
    %30 = arith.subf %26, %29 : vector<8x32x32xf32>
    %31 = math.exp %30 : vector<8x32x32xf32>
    %32 = arith.truncf %31 : vector<8x32x32xf32> to vector<8x32x32xbf16>
    %33 = arith.truncf %18 : vector<8x32x32xf32> to vector<8x32x32xbf16>
    %cst_12 = arith.constant dense<0.000000e+00> : vector<8x32x32xf32>
    %34 = tpu.matmul %32, %33, %cst_12 {dimension_numbers = #tpu.dot_dimension_numbers<[2], [2], [1], [1], [0, 0, 0, 1, 1, 1], [0], [0]>} : vector<8x32x32xbf16>, vector<8x32x32xbf16>, vector<8x32x32xf32> -> vector<8x32x32xf32>
    %cst_13 = arith.constant dense<0.000000e+00> : vector<8x32xf32>
    %35 = vector.multi_reduction <add>, %31, %cst_13 [2] : vector<8x32x32xf32> to vector<8x32xf32>
    %36 = vector.shape_cast %35 : vector<8x32xf32> to vector<8x32x1xf32>
    %37 = tpu.reciprocal %36 {approx = true} : vector<8x32x1xf32> -> vector<8x32x1xf32>
    %38 = vector.broadcast %37 : vector<8x32x1xf32> to vector<8x32x32xf32>
    %39 = arith.mulf %34, %38 : vector<8x32x32xf32>
    %40 = arith.truncf %39 : vector<8x32x32xf32> to vector<8x32x32xbf16>
    %c0_14 = arith.constant 0 : index
    %c0_15 = arith.constant 0 : index
    %c0_16 = arith.constant 0 : index
    %c0_17 = arith.constant 0 : index
    %41 = vector.load %arg6[%c0_14, %c0_15, %c0_16, %c0_17] : memref<1x8x32x256xbf16, #tpu.memory_space<vmem>>, vector<1x8x32x256xbf16>
    %42 = vector.shape_cast %41 : vector<1x8x32x256xbf16> to vector<8x32x256xbf16>
    %cst_18 = arith.constant dense<0.000000e+00> : vector<8x32x256xf32>
    %43 = tpu.matmul %40, %42, %cst_18 {dimension_numbers = #tpu.dot_dimension_numbers<[2], [1], [1], [2], [0, 0, 0, 1, 1, 2], [0], [0]>} : vector<8x32x32xbf16>, vector<8x32x256xbf16>, vector<8x32x256xf32> -> vector<8x32x256xf32>
    %cst_19 = arith.constant dense<0.000000e+00> : vector<32x256xf32>
    %44 = vector.multi_reduction <add>, %43, %cst_19 [0] : vector<8x32x256xf32> to vector<32x256xf32>
    %c0_20 = arith.constant 0 : index
    %c0_21 = arith.constant 0 : index
    %c0_22 = arith.constant 0 : index
    %45 = vector.load %arg7[%c0_20, %c0_21, %c0_22] : memref<1x1x256xf32, #tpu.memory_space<vmem>>, vector<1x1x256xf32>
    %46 = vector.shape_cast %45 : vector<1x1x256xf32> to vector<1x256xf32>
    %47 = vector.broadcast %46 : vector<1x256xf32> to vector<32x256xf32>
    %48 = arith.addf %44, %47 : vector<32x256xf32>
    %49 = arith.addf %3, %48 : vector<32x256xf32>
    %cst_23 = arith.constant dense<0.000000e+00> : vector<32xf32>
    %50 = vector.multi_reduction <add>, %49, %cst_23 [1] : vector<32x256xf32> to vector<32xf32>
    %51 = vector.shape_cast %50 : vector<32xf32> to vector<32x1xf32>
    %cst_24 = arith.constant 2.560000e+02 : f32
    %52 = vector.broadcast %cst_24 : f32 to vector<32x1xf32>
    %53 = arith.divf %51, %52 : vector<32x1xf32>
    %54 = vector.broadcast %53 : vector<32x1xf32> to vector<32x256xf32>
    %55 = arith.subf %49, %54 : vector<32x256xf32>
    %56 = arith.mulf %55, %55 : vector<32x256xf32>
    %cst_25 = arith.constant dense<0.000000e+00> : vector<32xf32>
    %57 = vector.multi_reduction <add>, %56, %cst_25 [1] : vector<32x256xf32> to vector<32xf32>
    %58 = vector.shape_cast %57 : vector<32xf32> to vector<32x1xf32>
    %cst_26 = arith.constant 2.560000e+02 : f32
    %59 = vector.broadcast %cst_26 : f32 to vector<32x1xf32>
    %60 = arith.divf %58, %59 : vector<32x1xf32>
    %61 = vector.broadcast %53 : vector<32x1xf32> to vector<32x256xf32>
    %62 = arith.subf %49, %61 : vector<32x256xf32>
    %cst_27 = arith.constant 9.99999974E-6 : f32
    %63 = vector.broadcast %cst_27 : f32 to vector<32x1xf32>
    %64 = arith.addf %60, %63 : vector<32x1xf32>
    %65 = math.rsqrt %64 : vector<32x1xf32>
    %66 = vector.broadcast %65 : vector<32x1xf32> to vector<32x256xf32>
    %67 = arith.mulf %62, %66 : vector<32x256xf32>
    %c0_28 = arith.constant 0 : index
    %c0_29 = arith.constant 0 : index
    %c0_30 = arith.constant 0 : index
    %68 = vector.load %arg8[%c0_28, %c0_29, %c0_30] : memref<1x1x256xf32, #tpu.memory_space<vmem>>, vector<1x1x256xf32>
    %69 = vector.shape_cast %68 : vector<1x1x256xf32> to vector<1x256xf32>
    %70 = vector.broadcast %69 : vector<1x256xf32> to vector<32x256xf32>
    %71 = arith.mulf %67, %70 : vector<32x256xf32>
    %c0_31 = arith.constant 0 : index
    %c0_32 = arith.constant 0 : index
    %c0_33 = arith.constant 0 : index
    %72 = vector.load %arg9[%c0_31, %c0_32, %c0_33] : memref<1x1x256xf32, #tpu.memory_space<vmem>>, vector<1x1x256xf32>
    %73 = vector.shape_cast %72 : vector<1x1x256xf32> to vector<1x256xf32>
    %74 = vector.broadcast %73 : vector<1x256xf32> to vector<32x256xf32>
    %75 = arith.addf %71, %74 : vector<32x256xf32>
    %76 = arith.truncf %75 : vector<32x256xf32> to vector<32x256xbf16>
    %c0_34 = arith.constant 0 : index
    %c0_35 = arith.constant 0 : index
    %c0_36 = arith.constant 0 : index
    %77 = vector.load %arg10[%c0_34, %c0_35, %c0_36] : memref<1x256x1024xbf16, #tpu.memory_space<vmem>>, vector<1x256x1024xbf16>
    %78 = vector.shape_cast %77 : vector<1x256x1024xbf16> to vector<256x1024xbf16>
    %cst_37 = arith.constant dense<0.000000e+00> : vector<32x1024xf32>
    %79 = tpu.matmul %76, %78, %cst_37 {dimension_numbers = #tpu.dot_dimension_numbers<[1], [0], [0], [1], [0, 0, 1, 1], [], []>} : vector<32x256xbf16>, vector<256x1024xbf16>, vector<32x1024xf32> -> vector<32x1024xf32>
    %c0_38 = arith.constant 0 : index
    %c0_39 = arith.constant 0 : index
    %c0_40 = arith.constant 0 : index
    %80 = vector.load %arg11[%c0_38, %c0_39, %c0_40] : memref<1x1x1024xf32, #tpu.memory_space<vmem>>, vector<1x1x1024xf32>
    %81 = vector.shape_cast %80 : vector<1x1x1024xf32> to vector<1x1024xf32>
    %82 = vector.broadcast %81 : vector<1x1024xf32> to vector<32x1024xf32>
    %83 = arith.addf %79, %82 : vector<32x1024xf32>
    %cst_41 = arith.constant 0.000000e+00 : f32
    %84 = vector.broadcast %cst_41 : f32 to vector<32x1024xf32>
    %85 = arith.maximumf %83, %84 : vector<32x1024xf32>
    %86 = arith.truncf %85 : vector<32x1024xf32> to vector<32x1024xbf16>
    %c0_42 = arith.constant 0 : index
    %c0_43 = arith.constant 0 : index
    %c0_44 = arith.constant 0 : index
    %87 = vector.load %arg12[%c0_42, %c0_43, %c0_44] : memref<1x1024x256xbf16, #tpu.memory_space<vmem>>, vector<1x1024x256xbf16>
    %88 = vector.shape_cast %87 : vector<1x1024x256xbf16> to vector<1024x256xbf16>
    %cst_45 = arith.constant dense<0.000000e+00> : vector<32x256xf32>
    %89 = tpu.matmul %86, %88, %cst_45 {dimension_numbers = #tpu.dot_dimension_numbers<[1], [0], [0], [1], [0, 0, 1, 1], [], []>} : vector<32x1024xbf16>, vector<1024x256xbf16>, vector<32x256xf32> -> vector<32x256xf32>
    %c0_46 = arith.constant 0 : index
    %c0_47 = arith.constant 0 : index
    %c0_48 = arith.constant 0 : index
    %90 = vector.load %arg13[%c0_46, %c0_47, %c0_48] : memref<1x1x256xf32, #tpu.memory_space<vmem>>, vector<1x1x256xf32>
    %91 = vector.shape_cast %90 : vector<1x1x256xf32> to vector<1x256xf32>
    %92 = vector.broadcast %91 : vector<1x256xf32> to vector<32x256xf32>
    %93 = arith.addf %89, %92 : vector<32x256xf32>
    %94 = arith.addf %75, %93 : vector<32x256xf32>
    %cst_49 = arith.constant dense<0.000000e+00> : vector<32xf32>
    %95 = vector.multi_reduction <add>, %94, %cst_49 [1] : vector<32x256xf32> to vector<32xf32>
    %96 = vector.shape_cast %95 : vector<32xf32> to vector<32x1xf32>
    %cst_50 = arith.constant 2.560000e+02 : f32
    %97 = vector.broadcast %cst_50 : f32 to vector<32x1xf32>
    %98 = arith.divf %96, %97 : vector<32x1xf32>
    %99 = vector.broadcast %98 : vector<32x1xf32> to vector<32x256xf32>
    %100 = arith.subf %94, %99 : vector<32x256xf32>
    %101 = arith.mulf %100, %100 : vector<32x256xf32>
    %cst_51 = arith.constant dense<0.000000e+00> : vector<32xf32>
    %102 = vector.multi_reduction <add>, %101, %cst_51 [1] : vector<32x256xf32> to vector<32xf32>
    %103 = vector.shape_cast %102 : vector<32xf32> to vector<32x1xf32>
    %cst_52 = arith.constant 2.560000e+02 : f32
    %104 = vector.broadcast %cst_52 : f32 to vector<32x1xf32>
    %105 = arith.divf %103, %104 : vector<32x1xf32>
    %106 = vector.broadcast %98 : vector<32x1xf32> to vector<32x256xf32>
    %107 = arith.subf %94, %106 : vector<32x256xf32>
    %cst_53 = arith.constant 9.99999974E-6 : f32
    %108 = vector.broadcast %cst_53 : f32 to vector<32x1xf32>
    %109 = arith.addf %105, %108 : vector<32x1xf32>
    %110 = math.rsqrt %109 : vector<32x1xf32>
    %111 = vector.broadcast %110 : vector<32x1xf32> to vector<32x256xf32>
    %112 = arith.mulf %107, %111 : vector<32x256xf32>
    %c0_54 = arith.constant 0 : index
    %c0_55 = arith.constant 0 : index
    %c0_56 = arith.constant 0 : index
    %113 = vector.load %arg14[%c0_54, %c0_55, %c0_56] : memref<1x1x256xf32, #tpu.memory_space<vmem>>, vector<1x1x256xf32>
    %114 = vector.shape_cast %113 : vector<1x1x256xf32> to vector<1x256xf32>
    %115 = vector.broadcast %114 : vector<1x256xf32> to vector<32x256xf32>
    %116 = arith.mulf %112, %115 : vector<32x256xf32>
    %c0_57 = arith.constant 0 : index
    %c0_58 = arith.constant 0 : index
    %c0_59 = arith.constant 0 : index
    %117 = vector.load %arg15[%c0_57, %c0_58, %c0_59] : memref<1x1x256xf32, #tpu.memory_space<vmem>>, vector<1x1x256xf32>
    %118 = vector.shape_cast %117 : vector<1x1x256xf32> to vector<1x256xf32>
    %119 = vector.broadcast %118 : vector<1x256xf32> to vector<32x256xf32>
    %120 = arith.addf %116, %119 : vector<32x256xf32>
    %c0_60 = arith.constant 0 : index
    %c0_61 = arith.constant 0 : index
    %121 = vector.load %arg20[%c0_60, %c0_61] : memref<32x256xf32, #tpu.memory_space<vmem>>, vector<32x256xf32>
    tpu.vector_store %arg20[%c0_60, %c0_61], %120 {strides = array<i32>} : memref<32x256xf32, #tpu.memory_space<vmem>>, vector<32x256xf32>,
    %c3_i32 = arith.constant 3 : i32
    %122 = arith.cmpi eq, %arg1, %c3_i32 : i32
    %123 = arith.extui %122 : i1 to i32
    %c0_i32_62 = arith.constant 0 : i32
    %124 = arith.cmpi ne, %123, %c0_i32_62 : i32
    scf.if %124 {
      %125 = vector.extract_strided_slice %120 {offsets = [0, 0], sizes = [16, 256], strides = [1, 1]} : vector<32x256xf32> to vector<16x256xf32>
      %126 = arith.truncf %125 : vector<16x256xf32> to vector<16x256xbf16>
      %127 = vector.extract_strided_slice %120 {offsets = [16, 0], sizes = [16, 256], strides = [1, 1]} : vector<32x256xf32> to vector<16x256xf32>
      %128 = arith.truncf %127 : vector<16x256xf32> to vector<16x256xbf16>
      %c0_63 = arith.constant 0 : index
      %c0_64 = arith.constant 0 : index
      %129 = vector.load %arg16[%c0_63, %c0_64] : memref<256x256xbf16, #tpu.memory_space<vmem>>, vector<256x256xbf16>
      %cst_65 = arith.constant dense<0.000000e+00> : vector<16x256xf32>
      %130 = tpu.matmul %126, %129, %cst_65 {dimension_numbers = #tpu.dot_dimension_numbers<[1], [0], [0], [1], [0, 0, 1, 1], [], []>} : vector<16x256xbf16>, vector<256x256xbf16>, vector<16x256xf32> -> vector<16x256xf32>
      %c0_66 = arith.constant 0 : index
      %c0_67 = arith.constant 0 : index
      %131 = vector.load %arg17[%c0_66, %c0_67] : memref<256x256xbf16, #tpu.memory_space<vmem>>, vector<256x256xbf16>
      %cst_68 = arith.constant dense<0.000000e+00> : vector<16x256xf32>
      %132 = tpu.matmul %128, %131, %cst_68 {dimension_numbers = #tpu.dot_dimension_numbers<[1], [0], [0], [1], [0, 0, 1, 1], [], []>} : vector<16x256xbf16>, vector<256x256xbf16>, vector<16x256xf32> -> vector<16x256xf32>
      %133 = arith.addf %130, %132 : vector<16x256xf32>
      %c0_69 = arith.constant 0 : index
      %c0_70 = arith.constant 0 : index
      %134 = vector.load %arg18[%c0_69, %c0_70] : memref<1x256xf32, #tpu.memory_space<vmem>>, vector<1x256xf32>
      %135 = vector.broadcast %134 : vector<1x256xf32> to vector<16x256xf32>
      %136 = arith.addf %133, %135 : vector<16x256xf32>
      %cst_71 = arith.constant 0.000000e+00 : f32
      %137 = vector.broadcast %cst_71 : f32 to vector<16x256xf32>
      %138 = arith.maximumf %136, %137 : vector<16x256xf32>
      %c0_72 = arith.constant 0 : index
      %c0_73 = arith.constant 0 : index
      %c0_74 = arith.constant 0 : index
      %139 = vector.load %arg19[%c0_72, %c0_73, %c0_74] : memref<1x16x256xf32, #tpu.memory_space<vmem>>, vector<1x16x256xf32>
      %140 = vector.shape_cast %139 : vector<1x16x256xf32> to vector<16x256xf32>
      %141 = vector.shape_cast %138 : vector<16x256xf32> to vector<1x16x256xf32>
      tpu.vector_store %arg19[%c0_72, %c0_73, %c0_74], %141 {strides = array<i32>} : memref<1x16x256xf32, #tpu.memory_space<vmem>>, vector<1x16x256xf32>,
    } else {
    }
    return
  }
  func.func @transform_0(%arg0: i32, %arg1: i32) -> (i32, i32, i32) {
    %c0_i32 = arith.constant 0 : i32
    %c0_i32_0 = arith.constant 0 : i32
    %c0_i32_1 = arith.constant 0 : i32
    return %arg0, %c0_i32, %c0_i32_0 : i32, i32, i32
  }
  func.func @transform_1(%arg0: i32, %arg1: i32) -> (i32, i32) {
    %c0_i32 = arith.constant 0 : i32
    %c0_i32_0 = arith.constant 0 : i32
    %c0_i32_1 = arith.constant 0 : i32
    return %c0_i32, %c0_i32_0 : i32, i32
  }
  func.func @transform_2(%arg0: i32, %arg1: i32) -> (i32, i32, i32) {
    %c0_i32 = arith.constant 0 : i32
    %c0_i32_0 = arith.constant 0 : i32
    %c0_i32_1 = arith.constant 0 : i32
    return %arg1, %c0_i32, %c0_i32_0 : i32, i32, i32
  }
  func.func @transform_3(%arg0: i32, %arg1: i32) -> (i32, i32, i32) {
    %c0_i32 = arith.constant 0 : i32
    %c0_i32_0 = arith.constant 0 : i32
    %c0_i32_1 = arith.constant 0 : i32
    return %arg1, %c0_i32, %c0_i32_0 : i32, i32, i32
  }
  func.func @transform_4(%arg0: i32, %arg1: i32) -> (i32, i32, i32, i32) {
    %c0_i32 = arith.constant 0 : i32
    %c0_i32_0 = arith.constant 0 : i32
    %c0_i32_1 = arith.constant 0 : i32
    %c0_i32_2 = arith.constant 0 : i32
    return %arg1, %c0_i32, %c0_i32_0, %c0_i32_1 : i32, i32, i32, i32
  }
  func.func @transform_5(%arg0: i32, %arg1: i32) -> (i32, i32, i32) {
    %c0_i32 = arith.constant 0 : i32
    %c0_i32_0 = arith.constant 0 : i32
    %c0_i32_1 = arith.constant 0 : i32
    return %arg1, %c0_i32, %c0_i32_0 : i32, i32, i32
  }
  func.func @transform_6(%arg0: i32, %arg1: i32) -> (i32, i32, i32) {
    %c0_i32 = arith.constant 0 : i32
    %c0_i32_0 = arith.constant 0 : i32
    %c0_i32_1 = arith.constant 0 : i32
    return %arg1, %c0_i32, %c0_i32_0 : i32, i32, i32
  }
  func.func @transform_7(%arg0: i32, %arg1: i32) -> (i32, i32, i32) {
    %c0_i32 = arith.constant 0 : i32
    %c0_i32_0 = arith.constant 0 : i32
    %c0_i32_1 = arith.constant 0 : i32
    return %arg1, %c0_i32, %c0_i32_0 : i32, i32, i32
  }
  func.func @transform_8(%arg0: i32, %arg1: i32) -> (i32, i32, i32) {
    %c0_i32 = arith.constant 0 : i32
    %c0_i32_0 = arith.constant 0 : i32
    %c0_i32_1 = arith.constant 0 : i32
    return %arg1, %c0_i32, %c0_i32_0 : i32, i32, i32
  }
  func.func @transform_9(%arg0: i32, %arg1: i32) -> (i32, i32, i32) {
    %c0_i32 = arith.constant 0 : i32
    %c0_i32_0 = arith.constant 0 : i32
    %c0_i32_1 = arith.constant 0 : i32
    return %arg1, %c0_i32, %c0_i32_0 : i32, i32, i32
  }
  func.func @transform_10(%arg0: i32, %arg1: i32) -> (i32, i32, i32) {
    %c0_i32 = arith.constant 0 : i32
    %c0_i32_0 = arith.constant 0 : i32
    %c0_i32_1 = arith.constant 0 : i32
    return %arg1, %c0_i32, %c0_i32_0 : i32, i32, i32
  }
  func.func @transform_11(%arg0: i32, %arg1: i32) -> (i32, i32, i32) {
    %c0_i32 = arith.constant 0 : i32
    %c0_i32_0 = arith.constant 0 : i32
    %c0_i32_1 = arith.constant 0 : i32
    return %arg1, %c0_i32, %c0_i32_0 : i32, i32, i32
  }
  func.func @transform_12(%arg0: i32, %arg1: i32) -> (i32, i32, i32) {
    %c0_i32 = arith.constant 0 : i32
    %c0_i32_0 = arith.constant 0 : i32
    %c0_i32_1 = arith.constant 0 : i32
    return %arg1, %c0_i32, %c0_i32_0 : i32, i32, i32
  }
  func.func @transform_13(%arg0: i32, %arg1: i32) -> (i32, i32, i32) {
    %c0_i32 = arith.constant 0 : i32
    %c0_i32_0 = arith.constant 0 : i32
    %c0_i32_1 = arith.constant 0 : i32
    return %arg1, %c0_i32, %c0_i32_0 : i32, i32, i32
  }
  func.func @transform_14(%arg0: i32, %arg1: i32) -> (i32, i32) {
    %c0_i32 = arith.constant 0 : i32
    %c0_i32_0 = arith.constant 0 : i32
    %c0_i32_1 = arith.constant 0 : i32
    return %c0_i32, %c0_i32_0 : i32, i32
  }
  func.func @transform_15(%arg0: i32, %arg1: i32) -> (i32, i32) {
    %c0_i32 = arith.constant 0 : i32
    %c0_i32_0 = arith.constant 0 : i32
    %c0_i32_1 = arith.constant 0 : i32
    return %c0_i32, %c0_i32_0 : i32, i32
  }
  func.func @transform_16(%arg0: i32, %arg1: i32) -> (i32, i32) {
    %c0_i32 = arith.constant 0 : i32
    %c0_i32_0 = arith.constant 0 : i32
    %c0_i32_1 = arith.constant 0 : i32
    return %c0_i32, %c0_i32_0 : i32, i32
  }
  func.func @transform_17(%arg0: i32, %arg1: i32) -> (i32, i32, i32) {
    %c0_i32 = arith.constant 0 : i32
    %c0_i32_0 = arith.constant 0 : i32
    %c0_i32_1 = arith.constant 0 : i32
    return %arg0, %c0_i32, %c0_i32_0 : i32, i32, i32
  }
}

</mosaic_0001>

<llo_original>
// kernel: feature_matcher_forward.1
$region0: #{feature_matcher_forward.1}
  #allocation0 [shape = 'u32[]', space=smem, size = 0x4, offset = 0x4, fixed_abs, tag = 'smem constant byte address 0x4 - core index']
  #allocation1 [shape = 'u32[72,128]{1,0:T(1,128)}', space=vmem, size = 0x9000, scoped, tag = 'internal scratch']
  #allocation2 [shape = 'f32[32,256]{1,0:T(8,128)}', space=vmem, size = 0x8000, scoped, tag = 'scratch operand']
  %s0 = inlined_call_operand.vmem [shape: f32[2,32,256], index: 0, kind: input, shape index: {}]
  %s1 = inlined_call_operand.vmem [shape: f32[32,32], index: 1, kind: input, shape index: {}]
  %s2 = inlined_call_operand.hbm [shape: bf16[4,256,768], index: 2, kind: input, shape index: {}]
  %s3 = inlined_call_operand.hbm [shape: f32[4,1,768], index: 3, kind: input, shape index: {}]
  %s4 = inlined_call_operand.hbm [shape: bf16[4,8,32,256], index: 4, kind: input, shape index: {}]
  %s5 = inlined_call_operand.hbm [shape: f32[4,1,256], index: 5, kind: input, shape index: {}]
  %s6 = inlined_call_operand.hbm [shape: f32[4,1,256], index: 6, kind: input, shape index: {}]
  %s7 = inlined_call_operand.hbm [shape: f32[4,1,256], index: 7, kind: input, shape index: {}]
  %s8 = inlined_call_operand.hbm [shape: bf16[4,256,1024], index: 8, kind: input, shape index: {}]
  %s9 = inlined_call_operand.hbm [shape: f32[4,1,1024], index: 9, kind: input, shape index: {}]
  %s10 = inlined_call_operand.hbm [shape: bf16[4,1024,256], index: 10, kind: input, shape index: {}]
  %s11 = inlined_call_operand.hbm [shape: f32[4,1,256], index: 11, kind: input, shape index: {}]
  %s12 = inlined_call_operand.hbm [shape: f32[4,1,256], index: 12, kind: input, shape index: {}]
  %s13 = inlined_call_operand.hbm [shape: f32[4,1,256], index: 13, kind: input, shape index: {}]
  %s14 = inlined_call_operand.hbm [shape: bf16[256,256], index: 14, kind: input, shape index: {}]
  %s15 = inlined_call_operand.hbm [shape: bf16[256,256], index: 15, kind: input, shape index: {}]
  %s16 = inlined_call_operand.hbm [shape: f32[1,256], index: 16, kind: input, shape index: {}]
  %s17 = inlined_call_operand.vmem [shape: f32[2,16,256], index: 17, kind: output, shape index: {}]
  %s18 = sld [smem:[#allocation0]]
  $region169: #{feature_matcher_forward.1} parent=0
    _
  %s20 = ssub.s32 1, %s18
  %s21 = scalar_select 0, %s20, %s18
  $region1: #{feature_matcher_forward.1} parent=0
    #allocation3 [shape = 'u8[786432]{0}', space=vmem, size = 0xc0000, scoped, tag = 'input window, operand 2']
    #allocation4 [shape = 's32[2]{0}', space=sflag, size = 0x8, scoped, tag = 'scoped memory for feature_matcher_forward.1']
    #allocation5 [shape = 'u8[6144]{0}', space=vmem, size = 0x1800, scoped, tag = 'input window, operand 3']
    #allocation6 [shape = 's32[2]{0}', space=sflag, size = 0x8, scoped, tag = 'scoped memory for feature_matcher_forward.1']
    #allocation7 [shape = 'u8[262144]{0}', space=vmem, size = 0x40000, scoped, tag = 'input window, operand 4']
    #allocation8 [shape = 'u8[2048]{0}', space=vmem, size = 0x800, scoped, tag = 'input window, operand 5']
    #allocation9 [shape = 's32[2]{0}', space=sflag, size = 0x8, scoped, tag = 'scoped memory for feature_matcher_forward.1']
    #allocation10 [shape = 'u8[2048]{0}', space=vmem, size = 0x800, scoped, tag = 'input window, operand 6']
    #allocation11 [shape = 'u8[2048]{0}', space=vmem, size = 0x800, scoped, tag = 'input window, operand 7']
    #allocation12 [shape = 's32[2]{0}', space=sflag, size = 0x8, scoped, tag = 'scoped memory for feature_matcher_forward.1']
    #allocation13 [shape = 'u8[1048576]{0}', space=vmem, size = 0x100000, scoped, tag = 'input window, operand 8']
    #allocation14 [shape = 'u8[8192]{0}', space=vmem, size = 0x2000, scoped, tag = 'input window, operand 9']
    #allocation15 [shape = 's32[2]{0}', space=sflag, size = 0x8, scoped, tag = 'scoped memory for feature_matcher_forward.1']
    #allocation16 [shape = 'u8[1048576]{0}', space=vmem, size = 0x100000, scoped, tag = 'input window, operand 10']
    #allocation17 [shape = 'u8[2048]{0}', space=vmem, size = 0x800, scoped, tag = 'input window, operand 11']
    #allocation18 [shape = 's32[2]{0}', space=sflag, size = 0x8, scoped, tag = 'scoped memory for feature_matcher_forward.1']
    #allocation19 [shape = 'u8[2048]{0}', space=vmem, size = 0x800, scoped, tag = 'input window, operand 12']
    #allocation20 [shape = 'u8[2048]{0}', space=vmem, size = 0x800, scoped, tag = 'input window, operand 13']
    #allocation21 [shape = 's32[2]{0}', space=sflag, size = 0x8, scoped, tag = 'scoped memory for feature_matcher_forward.1']
    #allocation22 [shape = 'u8[131072]{0}', space=vmem, size = 0x20000, scoped, tag = 'input window, operand 14, single buffered']
    #allocation23 [shape = 'u8[131072]{0}', space=vmem, size = 0x20000, scoped, tag = 'input window, operand 15, single buffered']
    #allocation24 [shape = 's32[1]{0}', space=sflag, size = 0x4, scoped, tag = 'scoped memory for feature_matcher_forward.1']
    #allocation25 [shape = 'u8[1024]{0}', space=vmem, size = 0x400, scoped, tag = 'input window, operand 16, single buffered']
    %22 = vsyncpa [#allocation4], 0
    %s23 = scalar_lea.sflag [#allocation4], 1
    %24 = vsyncpa %s23, 0
    %25 = vsyncpa [#allocation6], 0
    %s26 = scalar_lea.sflag [#allocation6], 1
    %27 = vsyncpa %s26, 0
    %28 = vsyncpa [#allocation9], 0
    %s29 = scalar_lea.sflag [#allocation9], 1
    %30 = vsyncpa %s29, 0
    %31 = vsyncpa [#allocation12], 0
    %s32 = scalar_lea.sflag [#allocation12], 1
    %33 = vsyncpa %s32, 0
    %34 = vsyncpa [#allocation15], 0
    %s35 = scalar_lea.sflag [#allocation15], 1
    %36 = vsyncpa %s35, 0
    %37 = vsyncpa [#allocation18], 0
    %s38 = scalar_lea.sflag [#allocation18], 1
    %39 = vsyncpa %s38, 0
    %40 = vsyncpa [#allocation21], 0
    %s41 = scalar_lea.sflag [#allocation21], 1
    %42 = vsyncpa %s41, 0
    %43 = vsyncpa [#allocation24], 0
    loop: start=0, step=1, limit=10
    $region2: #{feature_matcher_forward.1} parent=1 // loop_pre_header
      _
    $region3: #{feature_matcher_forward.1} parent=1 // loop_header
      %s45 = sphi 0, %s49
      %p46 = scmp.ge.s32.totalorder %s45, 10
      %s52 = sphi 0, %s64
      %s53 = sphi 0, %s60
      %s54 = sphi 0, %s52
      %s55 = sphi 0, %s53
      %s56 = sphi 0, %s54
      %s57 = sphi 0, %s55
      %s67 = sphi 0, %s69
      %s70 = sphi 0, %s67
      %s71 = sphi 0, %s70
      %s87 = sphi 0, %s71
      %s91 = sphi 0, %s91
      %s93 = sphi 0, %s91
      %s94 = sphi 0, %s93
      %s108 = sphi 0, %s94
      %s114 = sphi 0, %s116
      %s117 = sphi 0, %s114
      %s118 = sphi 0, %s117
      %s134 = sphi 0, %s118
      %s140 = sphi 0, %s142
      %s143 = sphi 0, %s140
      %s144 = sphi 0, %s143
      %s160 = sphi 0, %s144
      %s166 = sphi 0, %s168
      %s169 = sphi 0, %s166
      %s170 = sphi 0, %s169
      %s186 = sphi 0, %s170
      %s192 = sphi 0, %s194
      %s195 = sphi 0, %s192
      %s196 = sphi 0, %s195
      %s212 = sphi 0, %s196
      %s218 = sphi 0, %s220
      %s221 = sphi 0, %s218
      %s222 = sphi 0, %s221
      %s238 = sphi 0, %s222
      %s244 = sphi 0, %s246
      %s247 = sphi 0, %s244
      %s248 = sphi 0, %s247
      %s264 = sphi 0, %s248
      %s270 = sphi 0, %s272
      %s273 = sphi 0, %s270
      %s274 = sphi 0, %s273
      %s290 = sphi 0, %s274
      %s296 = sphi 0, %s298
      %s299 = sphi 0, %s296
      %s300 = sphi 0, %s299
      %s316 = sphi 0, %s300
      %s322 = sphi 0, %s324
      %s325 = sphi 0, %s322
      %s326 = sphi 0, %s325
      %s342 = sphi 0, %s326
      %s348 = sphi 0, %s350
      %s351 = sphi 0, %s348
      %s352 = sphi 0, %s351
      %s368 = sphi 0, %s352
      %s374 = sphi 0, %s376
      %s377 = sphi 0, %s374
      %s378 = sphi 0, %s377
      %s394 = sphi 0, %s378
      %s400 = sphi 0, %s402
      %s403 = sphi 0, %s400
      %s404 = sphi 0, %s403
      %s420 = sphi 0, %s404
      %s424 = sphi 0, %s424
      %s426 = sphi 0, %s424
      %s427 = sphi 0, %s426
      %s441 = sphi 0, %s427
      %s445 = sphi 0, %s445
      %s447 = sphi 0, %s445
      %s448 = sphi 0, %s447
      %s462 = sphi 0, %s448
      %s466 = sphi 0, %s466
      %s468 = sphi 0, %s466
      %s469 = sphi 0, %s468
      %s483 = sphi 0, %s469
      %s489 = sphi 0, %s491
      %s492 = sphi 0, %s489
      %s493 = sphi 0, %s492
      %s509 = sphi 0, %s493
    $region4: #{feature_matcher_forward.1} parent=1 // loop_header_branch
      %48 = sbr.rel (%p46) target = $region8
    $region5: #{feature_matcher_forward.1} parent=1 // loop_body
      %s50 = ssub.s32 %s45, 1
      %s51 = ssub.s32 %s45, 2
      %s58 = sadd.s32 1, %s53
      %p59 = scmp.ge.s32.totalorder %s58, 4
      %s60 = scalar_select %p59, 0, %s58
      %s61 = sadd.s32 1, %s52
      %s62 = scalar_select %p59, %s61, %s52
      %p63 = scmp.ge.s32.totalorder %s62, 2
      %s64 = scalar_select %p63, 0, %s62
      %s65 = ssub.s32 %s52, %s64
      %p66 = scmp.eq.s32.totalorder %s65, 0
      %s68 = sadd.s32 %s67, 1
      %s69 = scalar_select %p66, %s67, %s68
      %p72 = pneg %p66
      %p73 = scmp.eq.s32.totalorder %s45, 7
      %p74 = por %p72, %p73
      %p75 = scmp.ne.s32.totalorder %s67, %s70
      %p76 = scmp.eq.s32.totalorder %s45, 0
      %p77 = por %p75, %p76
      %p78 = scmp.ne.s32.totalorder %s67, %s70
      %p79 = scmp.eq.s32.totalorder %s50, 7
      %p80 = por %p78, %p79
      %p81 = scmp.ne.s32.totalorder %s70, %s71
      %p82 = scmp.eq.s32.totalorder %s50, 0
      %p83 = por %p81, %p82
      %p84 = scmp.ne.s32.totalorder %s70, %s71
      %p85 = scmp.eq.s32.totalorder %s51, 7
      %p86 = por %p84, %p85
      %p88 = scmp.ne.s32.totalorder %s71, %s87
      %p89 = scmp.eq.s32.totalorder %s51, 0
      %p90 = por %p88, %p89
      %s92 = sadd.s32 %s91, 1
      %p95 = scmp.eq.s32.totalorder %s45, 7
      %p96 = scmp.ne.s32.totalorder %s91, %s93
      %p97 = scmp.eq.s32.totalorder %s45, 0
      %p98 = por %p96, %p97
      %p99 = scmp.ne.s32.totalorder %s91, %s93
      %p100 = scmp.eq.s32.totalorder %s50, 7
      %p101 = por %p99, %p100
      %p102 = scmp.ne.s32.totalorder %s93, %s94
      %p103 = scmp.eq.s32.totalorder %s50, 0
      %p104 = por %p102, %p103
      %p105 = scmp.ne.s32.totalorder %s93, %s94
      %p106 = scmp.eq.s32.totalorder %s51, 7
      %p107 = por %p105, %p106
      %p109 = scmp.ne.s32.totalorder %s94, %s108
      %p110 = scmp.eq.s32.totalorder %s51, 0
      %p111 = por %p109, %p110
      %s112 = ssub.s32 %s53, %s60
      %p113 = scmp.eq.s32.totalorder %s112, 0
      %s115 = sadd.s32 %s114, 1
      %s116 = scalar_select %p113, %s114, %s115
      %p119 = pneg %p113
      %p120 = scmp.eq.s32.totalorder %s45, 7
      %p121 = por %p119, %p120
      %p122 = scmp.ne.s32.totalorder %s114, %s117
      %p123 = scmp.eq.s32.totalorder %s45, 0
      %p124 = por %p122, %p123
      %p125 = scmp.ne.s32.totalorder %s114, %s117
      %p126 = scmp.eq.s32.totalorder %s50, 7
      %p127 = por %p125, %p126
      %p128 = scmp.ne.s32.totalorder %s117, %s118
      %p129 = scmp.eq.s32.totalorder %s50, 0
      %p130 = por %p128, %p129
      %p131 = scmp.ne.s32.totalorder %s117, %s118
      %p132 = scmp.eq.s32.totalorder %s51, 7
      %p133 = por %p131, %p132
      %p135 = scmp.ne.s32.totalorder %s118, %s134
      %p136 = scmp.eq.s32.totalorder %s51, 0
      %p137 = por %p135, %p136
      %s138 = ssub.s32 %s53, %s60
      %p139 = scmp.eq.s32.totalorder %s138, 0
      %s141 = sadd.s32 %s140, 1
      %s142 = scalar_select %p139, %s140, %s141
      %p145 = pneg %p139
      %p146 = scmp.eq.s32.totalorder %s45, 7
      %p147 = por %p145, %p146
      %p148 = scmp.ne.s32.totalorder %s140, %s143
      %p149 = scmp.eq.s32.totalorder %s45, 0
      %p150 = por %p148, %p149
      %p151 = scmp.ne.s32.totalorder %s140, %s143
      %p152 = scmp.eq.s32.totalorder %s50, 7
      %p153 = por %p151, %p152
      %p154 = scmp.ne.s32.totalorder %s143, %s144
      %p155 = scmp.eq.s32.totalorder %s50, 0
      %p156 = por %p154, %p155
      %p157 = scmp.ne.s32.totalorder %s143, %s144
      %p158 = scmp.eq.s32.totalorder %s51, 7
      %p159 = por %p157, %p158
      %p161 = scmp.ne.s32.totalorder %s144, %s160
      %p162 = scmp.eq.s32.totalorder %s51, 0
      %p163 = por %p161, %p162
      %s164 = ssub.s32 %s53, %s60
      %p165 = scmp.eq.s32.totalorder %s164, 0
      %s167 = sadd.s32 %s166, 1
      %s168 = scalar_select %p165, %s166, %s167
      %p171 = pneg %p165
      %p172 = scmp.eq.s32.totalorder %s45, 7
      %p173 = por %p171, %p172
      %p174 = scmp.ne.s32.totalorder %s166, %s169
      %p175 = scmp.eq.s32.totalorder %s45, 0
      %p176 = por %p174, %p175
      %p177 = scmp.ne.s32.totalorder %s166, %s169
      %p178 = scmp.eq.s32.totalorder %s50, 7
      %p179 = por %p177, %p178
      %p180 = scmp.ne.s32.totalorder %s169, %s170
      %p181 = scmp.eq.s32.totalorder %s50, 0
      %p182 = por %p180, %p181
      %p183 = scmp.ne.s32.totalorder %s169, %s170
      %p184 = scmp.eq.s32.totalorder %s51, 7
      %p185 = por %p183, %p184
      %p187 = scmp.ne.s32.totalorder %s170, %s186
      %p188 = scmp.eq.s32.totalorder %s51, 0
      %p189 = por %p187, %p188
      %s190 = ssub.s32 %s53, %s60
      %p191 = scmp.eq.s32.totalorder %s190, 0
      %s193 = sadd.s32 %s192, 1
      %s194 = scalar_select %p191, %s192, %s193
      %p197 = pneg %p191
      %p198 = scmp.eq.s32.totalorder %s45, 7
      %p199 = por %p197, %p198
      %p200 = scmp.ne.s32.totalorder %s192, %s195
      %p201 = scmp.eq.s32.totalorder %s45, 0
      %p202 = por %p200, %p201
      %p203 = scmp.ne.s32.totalorder %s192, %s195
      %p204 = scmp.eq.s32.totalorder %s50, 7
      %p205 = por %p203, %p204
      %p206 = scmp.ne.s32.totalorder %s195, %s196
      %p207 = scmp.eq.s32.totalorder %s50, 0
      %p208 = por %p206, %p207
      %p209 = scmp.ne.s32.totalorder %s195, %s196
      %p210 = scmp.eq.s32.totalorder %s51, 7
      %p211 = por %p209, %p210
      %p213 = scmp.ne.s32.totalorder %s196, %s212
      %p214 = scmp.eq.s32.totalorder %s51, 0
      %p215 = por %p213, %p214
      %s216 = ssub.s32 %s53, %s60
      %p217 = scmp.eq.s32.totalorder %s216, 0
      %s219 = sadd.s32 %s218, 1
      %s220 = scalar_select %p217, %s218, %s219
      %p223 = pneg %p217
      %p224 = scmp.eq.s32.totalorder %s45, 7
      %p225 = por %p223, %p224
      %p226 = scmp.ne.s32.totalorder %s218, %s221
      %p227 = scmp.eq.s32.totalorder %s45, 0
      %p228 = por %p226, %p227
      %p229 = scmp.ne.s32.totalorder %s218, %s221
      %p230 = scmp.eq.s32.totalorder %s50, 7
      %p231 = por %p229, %p230
      %p232 = scmp.ne.s32.totalorder %s221, %s222
      %p233 = scmp.eq.s32.totalorder %s50, 0
      %p234 = por %p232, %p233
      %p235 = scmp.ne.s32.totalorder %s221, %s222
      %p236 = scmp.eq.s32.totalorder %s51, 7
      %p237 = por %p235, %p236
      %p239 = scmp.ne.s32.totalorder %s222, %s238
      %p240 = scmp.eq.s32.totalorder %s51, 0
      %p241 = por %p239, %p240
      %s242 = ssub.s32 %s53, %s60
      %p243 = scmp.eq.s32.totalorder %s242, 0
      %s245 = sadd.s32 %s244, 1
      %s246 = scalar_select %p243, %s244, %s245
      %p249 = pneg %p243
      %p250 = scmp.eq.s32.totalorder %s45, 7
      %p251 = por %p249, %p250
      %p252 = scmp.ne.s32.totalorder %s244, %s247
      %p253 = scmp.eq.s32.totalorder %s45, 0
      %p254 = por %p252, %p253
      %p255 = scmp.ne.s32.totalorder %s244, %s247
      %p256 = scmp.eq.s32.totalorder %s50, 7
      %p257 = por %p255, %p256
      %p258 = scmp.ne.s32.totalorder %s247, %s248
      %p259 = scmp.eq.s32.totalorder %s50, 0
      %p260 = por %p258, %p259
      %p261 = scmp.ne.s32.totalorder %s247, %s248
      %p262 = scmp.eq.s32.totalorder %s51, 7
      %p263 = por %p261, %p262
      %p265 = scmp.ne.s32.totalorder %s248, %s264
      %p266 = scmp.eq.s32.totalorder %s51, 0
      %p267 = por %p265, %p266
      %s268 = ssub.s32 %s53, %s60
      %p269 = scmp.eq.s32.totalorder %s268, 0
      %s271 = sadd.s32 %s270, 1
      %s272 = scalar_select %p269, %s270, %s271
      %p275 = pneg %p269
      %p276 = scmp.eq.s32.totalorder %s45, 7
      %p277 = por %p275, %p276
      %p278 = scmp.ne.s32.totalorder %s270, %s273
      %p279 = scmp.eq.s32.totalorder %s45, 0
      %p280 = por %p278, %p279
      %p281 = scmp.ne.s32.totalorder %s270, %s273
      %p282 = scmp.eq.s32.totalorder %s50, 7
      %p283 = por %p281, %p282
      %p284 = scmp.ne.s32.totalorder %s273, %s274
      %p285 = scmp.eq.s32.totalorder %s50, 0
      %p286 = por %p284, %p285
      %p287 = scmp.ne.s32.totalorder %s273, %s274
      %p288 = scmp.eq.s32.totalorder %s51, 7
      %p289 = por %p287, %p288
      %p291 = scmp.ne.s32.totalorder %s274, %s290
      %p292 = scmp.eq.s32.totalorder %s51, 0
      %p293 = por %p291, %p292
      %s294 = ssub.s32 %s53, %s60
      %p295 = scmp.eq.s32.totalorder %s294, 0
      %s297 = sadd.s32 %s296, 1
      %s298 = scalar_select %p295, %s296, %s297
      %p301 = pneg %p295
      %p302 = scmp.eq.s32.totalorder %s45, 7
      %p303 = por %p301, %p302
      %p304 = scmp.ne.s32.totalorder %s296, %s299
      %p305 = scmp.eq.s32.totalorder %s45, 0
      %p306 = por %p304, %p305
      %p307 = scmp.ne.s32.totalorder %s296, %s299
      %p308 = scmp.eq.s32.totalorder %s50, 7
      %p309 = por %p307, %p308
      %p310 = scmp.ne.s32.totalorder %s299, %s300
      %p311 = scmp.eq.s32.totalorder %s50, 0
      %p312 = por %p310, %p311
      %p313 = scmp.ne.s32.totalorder %s299, %s300
      %p314 = scmp.eq.s32.totalorder %s51, 7
      %p315 = por %p313, %p314
      %p317 = scmp.ne.s32.totalorder %s300, %s316
      %p318 = scmp.eq.s32.totalorder %s51, 0
      %p319 = por %p317, %p318
      %s320 = ssub.s32 %s53, %s60
      %p321 = scmp.eq.s32.totalorder %s320, 0
      %s323 = sadd.s32 %s322, 1
      %s324 = scalar_select %p321, %s322, %s323
      %p327 = pneg %p321
      %p328 = scmp.eq.s32.totalorder %s45, 7
      %p329 = por %p327, %p328
      %p330 = scmp.ne.s32.totalorder %s322, %s325
      %p331 = scmp.eq.s32.totalorder %s45, 0
      %p332 = por %p330, %p331
      %p333 = scmp.ne.s32.totalorder %s322, %s325
      %p334 = scmp.eq.s32.totalorder %s50, 7
      %p335 = por %p333, %p334
      %p336 = scmp.ne.s32.totalorder %s325, %s326
      %p337 = scmp.eq.s32.totalorder %s50, 0
      %p338 = por %p336, %p337
      %p339 = scmp.ne.s32.totalorder %s325, %s326
      %p340 = scmp.eq.s32.totalorder %s51, 7
      %p341 = por %p339, %p340
      %p343 = scmp.ne.s32.totalorder %s326, %s342
      %p344 = scmp.eq.s32.totalorder %s51, 0
      %p345 = por %p343, %p344
      %s346 = ssub.s32 %s53, %s60
      %p347 = scmp.eq.s32.totalorder %s346, 0
      %s349 = sadd.s32 %s348, 1
      %s350 = scalar_select %p347, %s348, %s349
      %p353 = pneg %p347
      %p354 = scmp.eq.s32.totalorder %s45, 7
      %p355 = por %p353, %p354
      %p356 = scmp.ne.s32.totalorder %s348, %s351
      %p357 = scmp.eq.s32.totalorder %s45, 0
      %p358 = por %p356, %p357
      %p359 = scmp.ne.s32.totalorder %s348, %s351
      %p360 = scmp.eq.s32.totalorder %s50, 7
      %p361 = por %p359, %p360
      %p362 = scmp.ne.s32.totalorder %s351, %s352
      %p363 = scmp.eq.s32.totalorder %s50, 0
      %p364 = por %p362, %p363
      %p365 = scmp.ne.s32.totalorder %s351, %s352
      %p366 = scmp.eq.s32.totalorder %s51, 7
      %p367 = por %p365, %p366
      %p369 = scmp.ne.s32.totalorder %s352, %s368
      %p370 = scmp.eq.s32.totalorder %s51, 0
      %p371 = por %p369, %p370
      %s372 = ssub.s32 %s53, %s60
      %p373 = scmp.eq.s32.totalorder %s372, 0
      %s375 = sadd.s32 %s374, 1
      %s376 = scalar_select %p373, %s374, %s375
      %p379 = pneg %p373
      %p380 = scmp.eq.s32.totalorder %s45, 7
      %p381 = por %p379, %p380
      %p382 = scmp.ne.s32.totalorder %s374, %s377
      %p383 = scmp.eq.s32.totalorder %s45, 0
      %p384 = por %p382, %p383
      %p385 = scmp.ne.s32.totalorder %s374, %s377
      %p386 = scmp.eq.s32.totalorder %s50, 7
      %p387 = por %p385, %p386
      %p388 = scmp.ne.s32.totalorder %s377, %s378
      %p389 = scmp.eq.s32.totalorder %s50, 0
      %p390 = por %p388, %p389
      %p391 = scmp.ne.s32.totalorder %s377, %s378
      %p392 = scmp.eq.s32.totalorder %s51, 7
      %p393 = por %p391, %p392
      %p395 = scmp.ne.s32.totalorder %s378, %s394
      %p396 = scmp.eq.s32.totalorder %s51, 0
      %p397 = por %p395, %p396
      %s398 = ssub.s32 %s53, %s60
      %p399 = scmp.eq.s32.totalorder %s398, 0
      %s401 = sadd.s32 %s400, 1
      %s402 = scalar_select %p399, %s400, %s401
      %p405 = pneg %p399
      %p406 = scmp.eq.s32.totalorder %s45, 7
      %p407 = por %p405, %p406
      %p408 = scmp.ne.s32.totalorder %s400, %s403
      %p409 = scmp.eq.s32.totalorder %s45, 0
      %p410 = por %p408, %p409
      %p411 = scmp.ne.s32.totalorder %s400, %s403
      %p412 = scmp.eq.s32.totalorder %s50, 7
      %p413 = por %p411, %p412
      %p414 = scmp.ne.s32.totalorder %s403, %s404
      %p415 = scmp.eq.s32.totalorder %s50, 0
      %p416 = por %p414, %p415
      %p417 = scmp.ne.s32.totalorder %s403, %s404
      %p418 = scmp.eq.s32.totalorder %s51, 7
      %p419 = por %p417, %p418
      %p421 = scmp.ne.s32.totalorder %s404, %s420
      %p422 = scmp.eq.s32.totalorder %s51, 0
      %p423 = por %p421, %p422
      %s425 = sadd.s32 %s424, 1
      %p428 = scmp.eq.s32.totalorder %s45, 7
      %p429 = scmp.ne.s32.totalorder %s424, %s426
      %p430 = scmp.eq.s32.totalorder %s45, 0
      %p431 = por %p429, %p430
      %p432 = scmp.ne.s32.totalorder %s424, %s426
      %p433 = scmp.eq.s32.totalorder %s50, 7
      %p434 = por %p432, %p433
      %p435 = scmp.ne.s32.totalorder %s426, %s427
      %p436 = scmp.eq.s32.totalorder %s50, 0
      %p437 = por %p435, %p436
      %p438 = scmp.ne.s32.totalorder %s426, %s427
      %p439 = scmp.eq.s32.totalorder %s51, 7
      %p440 = por %p438, %p439
      %p442 = scmp.ne.s32.totalorder %s427, %s441
      %p443 = scmp.eq.s32.totalorder %s51, 0
      %p444 = por %p442, %p443
      %s446 = sadd.s32 %s445, 1
      %p449 = scmp.eq.s32.totalorder %s45, 7
      %p450 = scmp.ne.s32.totalorder %s445, %s447
      %p451 = scmp.eq.s32.totalorder %s45, 0
      %p452 = por %p450, %p451
      %p453 = scmp.ne.s32.totalorder %s445, %s447
      %p454 = scmp.eq.s32.totalorder %s50, 7
      %p455 = por %p453, %p454
      %p456 = scmp.ne.s32.totalorder %s447, %s448
      %p457 = scmp.eq.s32.totalorder %s50, 0
      %p458 = por %p456, %p457
      %p459 = scmp.ne.s32.totalorder %s447, %s448
      %p460 = scmp.eq.s32.totalorder %s51, 7
      %p461 = por %p459, %p460
      %p463 = scmp.ne.s32.totalorder %s448, %s462
      %p464 = scmp.eq.s32.totalorder %s51, 0
      %p465 = por %p463, %p464
      %s467 = sadd.s32 %s466, 1
      %p470 = scmp.eq.s32.totalorder %s45, 7
      %p471 = scmp.ne.s32.totalorder %s466, %s468
      %p472 = scmp.eq.s32.totalorder %s45, 0
      %p473 = por %p471, %p472
      %p474 = scmp.ne.s32.totalorder %s466, %s468
      %p475 = scmp.eq.s32.totalorder %s50, 7
      %p476 = por %p474, %p475
      %p477 = scmp.ne.s32.totalorder %s468, %s469
      %p478 = scmp.eq.s32.totalorder %s50, 0
      %p479 = por %p477, %p478
      %p480 = scmp.ne.s32.totalorder %s468, %s469
      %p481 = scmp.eq.s32.totalorder %s51, 7
      %p482 = por %p480, %p481
      %p484 = scmp.ne.s32.totalorder %s469, %s483
      %p485 = scmp.eq.s32.totalorder %s51, 0
      %p486 = por %p484, %p485
      %s487 = ssub.s32 %s52, %s64
      %p488 = scmp.eq.s32.totalorder %s487, 0
      %s490 = sadd.s32 %s489, 1
      %s491 = scalar_select %p488, %s489, %s490
      %p494 = pneg %p488
      %p495 = scmp.eq.s32.totalorder %s45, 7
      %p496 = por %p494, %p495
      %p497 = scmp.ne.s32.totalorder %s489, %s492
      %p498 = scmp.eq.s32.totalorder %s45, 0
      %p499 = por %p497, %p498
      %p500 = scmp.ne.s32.totalorder %s489, %s492
      %p501 = scmp.eq.s32.totalorder %s50, 7
      %p502 = por %p500, %p501
      %p503 = scmp.ne.s32.totalorder %s492, %s493
      %p504 = scmp.eq.s32.totalorder %s50, 0
      %p505 = por %p503, %p504
      %p506 = scmp.ne.s32.totalorder %s492, %s493
      %p507 = scmp.eq.s32.totalorder %s51, 7
      %p508 = por %p506, %p507
      %p510 = scmp.ne.s32.totalorder %s493, %s509
      %p511 = scmp.eq.s32.totalorder %s51, 0
      %p512 = por %p510, %p511
      %p513 = scmp.le.s32.totalorder 1, %s45
      %p514 = scmp.lt.s32.totalorder %s45, 9
      %p515 = pnand %p513, %p514
      %p516 = pneg %p515
      // Predicated region
      $region9: #{feature_matcher_forward.1} parent=5 // pred_check
        _
      $region10: #{feature_matcher_forward.1} parent=5 // pred_check_branch
        %518 = sbr.rel (%p515) target = $region12
      $region11: #{feature_matcher_forward.1} parent=5 // pred_region
        %s519 = ssub.s32 %s45, 1
        // Predicated region
        $region13: #{feature_matcher_forward.1} parent=11 // pred_check
          %p520 = pneg %p104
        $region14: #{feature_matcher_forward.1} parent=11 // pred_check_branch
          %522 = sbr.rel (%p520) target = $region16
        $region15: #{feature_matcher_forward.1} parent=11 // pred_region
          _
        $region16: #{feature_matcher_forward.1} parent=11 // pred_fallthru
          _
        // Predicated region
        $region17: #{feature_matcher_forward.1} parent=11 // pred_check
          %p523 = pneg %p437
        $region18: #{feature_matcher_forward.1} parent=11 // pred_check_branch
          %525 = sbr.rel (%p523) target = $region20
        $region19: #{feature_matcher_forward.1} parent=11 // pred_region
          %527 = vsyncadd [#allocation21], 0
          %s528 = sshll.u32 %s14, 4
          %s529 = int_to_ptr.hbm [resolvable:$true] %s528
          %s530 = sshll.u32 [#allocation22], 4
          %s531 = int_to_ptr.vmem [resolvable:$true] %s530
          %536 = dma.hbm_to_vmem [thread:$0]  %s529, 4096, %s531, [#allocation21], 128, 128, 8
        $region20: #{feature_matcher_forward.1} parent=11 // pred_fallthru
          _
        // Predicated region
        $region21: #{feature_matcher_forward.1} parent=11 // pred_check
          %p537 = pneg %p458
        $region22: #{feature_matcher_forward.1} parent=11 // pred_check_branch
          %539 = sbr.rel (%p537) target = $region24
        $region23: #{feature_matcher_forward.1} parent=11 // pred_region
          %541 = vsyncadd [#allocation24], 0
          %s542 = sshll.u32 %s15, 4
          %s543 = int_to_ptr.hbm [resolvable:$true] %s542
          %s544 = sshll.u32 [#allocation23], 4
          %s545 = int_to_ptr.vmem [resolvable:$true] %s544
          %550 = dma.hbm_to_vmem [thread:$0]  %s543, 4096, %s545, [#allocation24], 128, 128, 8
        $region24: #{feature_matcher_forward.1} parent=11 // pred_fallthru
          _
        // Predicated region
        $region25: #{feature_matcher_forward.1} parent=11 // pred_check
          %p551 = pneg %p479
        $region26: #{feature_matcher_forward.1} parent=11 // pred_check_branch
          %553 = sbr.rel (%p551) target = $region28
        $region27: #{feature_matcher_forward.1} parent=11 // pred_region
          %555 = vsyncadd [#allocation24], 0
          %s557 = sshll.u32 %s16, 4
          %s558 = int_to_ptr.hbm [resolvable:$true] %s557
          %s559 = sshll.u32 [#allocation25], 4
          %s560 = int_to_ptr.vmem [resolvable:$true] %s559
          %562 = dma.hbm_to_vmem [thread:$0]  %s558, 32, %s560, [#allocation24]
        $region28: #{feature_matcher_forward.1} parent=11 // pred_fallthru
          _
      $region12: #{feature_matcher_forward.1} parent=5 // pred_fallthru
        _
      %p563 = scmp.lt.s32.totalorder %s45, 8
      // Predicated region
      $region29: #{feature_matcher_forward.1} parent=5 // pred_check
        %p564 = pneg %p563
      $region30: #{feature_matcher_forward.1} parent=5 // pred_check_branch
        %566 = sbr.rel (%p564) target = $region32
      $region31: #{feature_matcher_forward.1} parent=5 // pred_region
        // Predicated region
        $region33: #{feature_matcher_forward.1} parent=31 // pred_check
          %p567 = pneg %p77
        $region34: #{feature_matcher_forward.1} parent=31 // pred_check_branch
          %569 = sbr.rel (%p567) target = $region36
        $region35: #{feature_matcher_forward.1} parent=31 // pred_region
          %p570 = scmp.lt.s32.totalorder %s52, 1
          %s571 = scalar_select %p570, %s52, 1
          %s572 = smul.addr %s571, 8
          %s573 = smul.addr %s572, 8
          %s574 = scalar_lea.vmem %s0, %s573
        $region36: #{feature_matcher_forward.1} parent=31 // pred_fallthru
          _
        // Predicated region
        $region37: #{feature_matcher_forward.1} parent=31 // pred_check
          %p575 = pneg %p124
        $region38: #{feature_matcher_forward.1} parent=31 // pred_check_branch
          %577 = sbr.rel (%p575) target = $region40
        $region39: #{feature_matcher_forward.1} parent=31 // pred_region
          %s578 = sand.u32 %s114, 1
          %s579 = scalar_lea.sflag [#allocation4], %s578
          %s580 = sand.u32 %s114, 1
          %s581 = smul.addr %s580, 768
          %s582 = scalar_lea.vmem [#allocation3], %s581
          %584 = vsyncadd %s579, 0
          %s585 = smul.addr %s53, 192
          %s586 = smul.addr %s585, 4
          %s587 = scalar_lea.hbm %s2, %s586
          %s588 = sshll.u32 %s587, 4
          %s589 = int_to_ptr.hbm [resolvable:$true] %s588
          %s590 = sshll.u32 %s582, 4
          %s591 = int_to_ptr.vmem [resolvable:$true] %s590
          %596 = dma.hbm_to_vmem [thread:$0]  %s589, 12288, %s591, %s579, 384, 384, 24
        $region40: #{feature_matcher_forward.1} parent=31 // pred_fallthru
          _
        // Predicated region
        $region41: #{feature_matcher_forward.1} parent=31 // pred_check
          %p597 = pneg %p150
        $region42: #{feature_matcher_forward.1} parent=31 // pred_check_branch
          %599 = sbr.rel (%p597) target = $region44
        $region43: #{feature_matcher_forward.1} parent=31 // pred_region
          %s600 = sand.u32 %s45, 1
          %s601 = scalar_lea.sflag [#allocation6], %s600
          %s602 = sand.u32 %s140, 1
          %s603 = smul.addr %s602, 6
          %s604 = scalar_lea.vmem [#allocation5], %s603
          %606 = vsyncadd %s601, 0
          %s607 = smul.addr %s53, 6
          %s608 = scalar_lea.hbm %s3, %s607
          %s610 = sshll.u32 %s608, 4
          %s611 = int_to_ptr.hbm [resolvable:$true] %s610
          %s612 = sshll.u32 %s604, 4
          %s613 = int_to_ptr.vmem [resolvable:$true] %s612
          %615 = dma.hbm_to_vmem [thread:$0]  %s611, 96, %s613, %s601
        $region44: #{feature_matcher_forward.1} parent=31 // pred_fallthru
          _
        // Predicated region
        $region45: #{feature_matcher_forward.1} parent=31 // pred_check
          %p616 = pneg %p176
        $region46: #{feature_matcher_forward.1} parent=31 // pred_check_branch
          %618 = sbr.rel (%p616) target = $region48
        $region47: #{feature_matcher_forward.1} parent=31 // pred_region
          %s619 = sand.u32 %s45, 1
          %s620 = scalar_lea.sflag [#allocation6], %s619
          %s621 = sand.u32 %s166, 1
          %s622 = smul.addr %s621, 256
          %s623 = scalar_lea.vmem [#allocation7], %s622
          %625 = vsyncadd %s620, 0
          %s626 = smul.addr %s53, 64
          %s627 = smul.addr %s626, 4
          %s628 = scalar_lea.hbm %s4, %s627
          %s629 = sshll.u32 %s628, 4
          %s630 = int_to_ptr.hbm [resolvable:$true] %s629
          %s631 = sshll.u32 %s623, 4
          %s632 = int_to_ptr.vmem [resolvable:$true] %s631
          %637 = dma.hbm_to_vmem [thread:$0]  %s630, 4096, %s632, %s620, 128, 128, 8
        $region48: #{feature_matcher_forward.1} parent=31 // pred_fallthru
          _
        // Predicated region
        $region49: #{feature_matcher_forward.1} parent=31 // pred_check
          %p638 = pneg %p202
        $region50: #{feature_matcher_forward.1} parent=31 // pred_check_branch
          %640 = sbr.rel (%p638) target = $region52
        $region51: #{feature_matcher_forward.1} parent=31 // pred_region
          %s641 = sand.u32 %s45, 1
          %s642 = scalar_lea.sflag [#allocation9], %s641
          %s643 = sand.u32 %s192, 1
          %s644 = smul.addr %s643, 2
          %s645 = scalar_lea.vmem [#allocation8], %s644
          %647 = vsyncadd %s642, 0
          %s648 = smul.addr %s53, 2
          %s649 = scalar_lea.hbm %s5, %s648
          %s651 = sshll.u32 %s649, 4
          %s652 = int_to_ptr.hbm [resolvable:$true] %s651
          %s653 = sshll.u32 %s645, 4
          %s654 = int_to_ptr.vmem [resolvable:$true] %s653
          %656 = dma.hbm_to_vmem [thread:$0]  %s652, 32, %s654, %s642
        $region52: #{feature_matcher_forward.1} parent=31 // pred_fallthru
          _
        // Predicated region
        $region53: #{feature_matcher_forward.1} parent=31 // pred_check
          %p657 = pneg %p228
        $region54: #{feature_matcher_forward.1} parent=31 // pred_check_branch
          %659 = sbr.rel (%p657) target = $region56
        $region55: #{feature_matcher_forward.1} parent=31 // pred_region
          %s660 = sand.u32 %s45, 1
          %s661 = scalar_lea.sflag [#allocation9], %s660
          %s662 = sand.u32 %s218, 1
          %s663 = smul.addr %s662, 2
          %s664 = scalar_lea.vmem [#allocation10], %s663
          %666 = vsyncadd %s661, 0
          %s667 = smul.addr %s53, 2
          %s668 = scalar_lea.hbm %s6, %s667
          %s670 = sshll.u32 %s668, 4
          %s671 = int_to_ptr.hbm [resolvable:$true] %s670
          %s672 = sshll.u32 %s664, 4
          %s673 = int_to_ptr.vmem [resolvable:$true] %s672
          %675 = dma.hbm_to_vmem [thread:$0]  %s671, 32, %s673, %s661
        $region56: #{feature_matcher_forward.1} parent=31 // pred_fallthru
          _
        // Predicated region
        $region57: #{feature_matcher_forward.1} parent=31 // pred_check
          %p676 = pneg %p254
        $region58: #{feature_matcher_forward.1} parent=31 // pred_check_branch
          %678 = sbr.rel (%p676) target = $region60
        $region59: #{feature_matcher_forward.1} parent=31 // pred_region
          %s679 = sand.u32 %s45, 1
          %s680 = scalar_lea.sflag [#allocation12], %s679
          %s681 = sand.u32 %s244, 1
          %s682 = smul.addr %s681, 2
          %s683 = scalar_lea.vmem [#allocation11], %s682
          %685 = vsyncadd %s680, 0
          %s686 = smul.addr %s53, 2
          %s687 = scalar_lea.hbm %s7, %s686
          %s689 = sshll.u32 %s687, 4
          %s690 = int_to_ptr.hbm [resolvable:$true] %s689
          %s691 = sshll.u32 %s683, 4
          %s692 = int_to_ptr.vmem [resolvable:$true] %s691
          %694 = dma.hbm_to_vmem [thread:$0]  %s690, 32, %s692, %s680
        $region60: #{feature_matcher_forward.1} parent=31 // pred_fallthru
          _
        // Predicated region
        $region61: #{feature_matcher_forward.1} parent=31 // pred_check
          %p695 = pneg %p280
        $region62: #{feature_matcher_forward.1} parent=31 // pred_check_branch
          %697 = sbr.rel (%p695) target = $region64
        $region63: #{feature_matcher_forward.1} parent=31 // pred_region
          %s698 = sand.u32 %s45, 1
          %s699 = scalar_lea.sflag [#allocation12], %s698
          %s700 = sand.u32 %s270, 1
          %s701 = smul.addr %s700, 1024
          %s702 = scalar_lea.vmem [#allocation13], %s701
          %704 = vsyncadd %s699, 0
          %s705 = smul.addr %s53, 256
          %s706 = smul.addr %s705, 4
          %s707 = scalar_lea.hbm %s8, %s706
          %s708 = sshll.u32 %s707, 4
          %s709 = int_to_ptr.hbm [resolvable:$true] %s708
          %s710 = sshll.u32 %s702, 4
          %s711 = int_to_ptr.vmem [resolvable:$true] %s710
          %716 = dma.hbm_to_vmem [thread:$0]  %s709, 16384, %s711, %s699, 512, 512, 32
        $region64: #{feature_matcher_forward.1} parent=31 // pred_fallthru
          _
        // Predicated region
        $region65: #{feature_matcher_forward.1} parent=31 // pred_check
          %p717 = pneg %p306
        $region66: #{feature_matcher_forward.1} parent=31 // pred_check_branch
          %719 = sbr.rel (%p717) target = $region68
        $region67: #{feature_matcher_forward.1} parent=31 // pred_region
          %s720 = sand.u32 %s45, 1
          %s721 = scalar_lea.sflag [#allocation15], %s720
          %s722 = sand.u32 %s296, 1
          %s723 = smul.addr %s722, 8
          %s724 = scalar_lea.vmem [#allocation14], %s723
          %726 = vsyncadd %s721, 0
          %s727 = smul.addr %s53, 8
          %s728 = scalar_lea.hbm %s9, %s727
          %s730 = sshll.u32 %s728, 4
          %s731 = int_to_ptr.hbm [resolvable:$true] %s730
          %s732 = sshll.u32 %s724, 4
          %s733 = int_to_ptr.vmem [resolvable:$true] %s732
          %735 = dma.hbm_to_vmem [thread:$0]  %s731, 128, %s733, %s721
        $region68: #{feature_matcher_forward.1} parent=31 // pred_fallthru
          _
        // Predicated region
        $region69: #{feature_matcher_forward.1} parent=31 // pred_check
          %p736 = pneg %p332
        $region70: #{feature_matcher_forward.1} parent=31 // pred_check_branch
          %738 = sbr.rel (%p736) target = $region72
        $region71: #{feature_matcher_forward.1} parent=31 // pred_region
          %s739 = sand.u32 %s45, 1
          %s740 = scalar_lea.sflag [#allocation15], %s739
          %s741 = sand.u32 %s322, 1
          %s742 = smul.addr %s741, 1024
          %s743 = scalar_lea.vmem [#allocation16], %s742
          %745 = vsyncadd %s740, 0
          %s746 = smul.addr %s53, 256
          %s747 = smul.addr %s746, 4
          %s748 = scalar_lea.hbm %s10, %s747
          %s749 = sshll.u32 %s748, 4
          %s750 = int_to_ptr.hbm [resolvable:$true] %s749
          %s751 = sshll.u32 %s743, 4
          %s752 = int_to_ptr.vmem [resolvable:$true] %s751
          %757 = dma.hbm_to_vmem [thread:$0]  %s750, 16384, %s752, %s740, 128, 128, 8
        $region72: #{feature_matcher_forward.1} parent=31 // pred_fallthru
          _
        // Predicated region
        $region73: #{feature_matcher_forward.1} parent=31 // pred_check
          %p758 = pneg %p358
        $region74: #{feature_matcher_forward.1} parent=31 // pred_check_branch
          %760 = sbr.rel (%p758) target = $region76
        $region75: #{feature_matcher_forward.1} parent=31 // pred_region
          %s761 = sand.u32 %s45, 1
          %s762 = scalar_lea.sflag [#allocation18], %s761
          %s763 = sand.u32 %s348, 1
          %s764 = smul.addr %s763, 2
          %s765 = scalar_lea.vmem [#allocation17], %s764
          %767 = vsyncadd %s762, 0
          %s768 = smul.addr %s53, 2
          %s769 = scalar_lea.hbm %s11, %s768
          %s771 = sshll.u32 %s769, 4
          %s772 = int_to_ptr.hbm [resolvable:$true] %s771
          %s773 = sshll.u32 %s765, 4
          %s774 = int_to_ptr.vmem [resolvable:$true] %s773
          %776 = dma.hbm_to_vmem [thread:$0]  %s772, 32, %s774, %s762
        $region76: #{feature_matcher_forward.1} parent=31 // pred_fallthru
          _
        // Predicated region
        $region77: #{feature_matcher_forward.1} parent=31 // pred_check
          %p777 = pneg %p384
        $region78: #{feature_matcher_forward.1} parent=31 // pred_check_branch
          %779 = sbr.rel (%p777) target = $region80
        $region79: #{feature_matcher_forward.1} parent=31 // pred_region
          %s780 = sand.u32 %s45, 1
          %s781 = scalar_lea.sflag [#allocation18], %s780
          %s782 = sand.u32 %s374, 1
          %s783 = smul.addr %s782, 2
          %s784 = scalar_lea.vmem [#allocation19], %s783
          %786 = vsyncadd %s781, 0
          %s787 = smul.addr %s53, 2
          %s788 = scalar_lea.hbm %s12, %s787
          %s790 = sshll.u32 %s788, 4
          %s791 = int_to_ptr.hbm [resolvable:$true] %s790
          %s792 = sshll.u32 %s784, 4
          %s793 = int_to_ptr.vmem [resolvable:$true] %s792
          %795 = dma.hbm_to_vmem [thread:$0]  %s791, 32, %s793, %s781
        $region80: #{feature_matcher_forward.1} parent=31 // pred_fallthru
          _
        // Predicated region
        $region81: #{feature_matcher_forward.1} parent=31 // pred_check
          %p796 = pneg %p410
        $region82: #{feature_matcher_forward.1} parent=31 // pred_check_branch
          %798 = sbr.rel (%p796) target = $region84
        $region83: #{feature_matcher_forward.1} parent=31 // pred_region
          %s799 = sand.u32 %s45, 1
          %s800 = scalar_lea.sflag [#allocation21], %s799
          %s801 = sand.u32 %s400, 1
          %s802 = smul.addr %s801, 2
          %s803 = scalar_lea.vmem [#allocation20], %s802
          %805 = vsyncadd %s800, 0
          %s806 = smul.addr %s53, 2
          %s807 = scalar_lea.hbm %s13, %s806
          %s809 = sshll.u32 %s807, 4
          %s810 = int_to_ptr.hbm [resolvable:$true] %s809
          %s811 = sshll.u32 %s803, 4
          %s812 = int_to_ptr.vmem [resolvable:$true] %s811
          %814 = dma.hbm_to_vmem [thread:$0]  %s810, 32, %s812, %s800
        $region84: #{feature_matcher_forward.1} parent=31 // pred_fallthru
          _
      $region32: #{feature_matcher_forward.1} parent=5 // pred_fallthru
        _
      %p815 = scmp.le.s32.totalorder 1, %s45
      %p816 = scmp.lt.s32.totalorder %s45, 9
      %p817 = pnand %p815, %p816
      %p818 = pneg %p817
      // Predicated region
      $region85: #{feature_matcher_forward.1} parent=5 // pred_check
        _
      $region86: #{feature_matcher_forward.1} parent=5 // pred_check_branch
        %820 = sbr.rel (%p817) target = $region88
      $region87: #{feature_matcher_forward.1} parent=5 // pred_region
        %s821 = ssub.s32 %s45, 1
        %s822 = sand.u32 %s117, 1
        %s823 = scalar_lea.sflag [#allocation4], %s822
        %s824 = sand.u32 %s117, 1
        %s825 = smul.addr %s824, 768
        %s826 = scalar_lea.vmem [#allocation3], %s825
        // Predicated region
        $region89: #{feature_matcher_forward.1} parent=87 // pred_check
          %p827 = pneg %p130
        $region90: #{feature_matcher_forward.1} parent=87 // pred_check_branch
          %829 = sbr.rel (%p827) target = $region92
        $region91: #{feature_matcher_forward.1} parent=87 // pred_region
          %831 = dma.done %s823, 12288
        $region92: #{feature_matcher_forward.1} parent=87 // pred_fallthru
          _
        %s832 = sand.u32 %s50, 1
        %s833 = scalar_lea.sflag [#allocation6], %s832
        %s834 = sand.u32 %s143, 1
        %s835 = smul.addr %s834, 6
        %s836 = scalar_lea.vmem [#allocation5], %s835
        // Predicated region
        $region93: #{feature_matcher_forward.1} parent=87 // pred_check
          %p837 = pneg %p156
        $region94: #{feature_matcher_forward.1} parent=87 // pred_check_branch
          %839 = sbr.rel (%p837) target = $region96
        $region95: #{feature_matcher_forward.1} parent=87 // pred_region
          %841 = dma.done %s833, 96
        $region96: #{feature_matcher_forward.1} parent=87 // pred_fallthru
          _
        %s842 = sand.u32 %s50, 1
        %s843 = scalar_lea.sflag [#allocation6], %s842
        %s844 = sand.u32 %s169, 1
        %s845 = smul.addr %s844, 256
        %s846 = scalar_lea.vmem [#allocation7], %s845
        // Predicated region
        $region97: #{feature_matcher_forward.1} parent=87 // pred_check
          %p847 = pneg %p182
        $region98: #{feature_matcher_forward.1} parent=87 // pred_check_branch
          %849 = sbr.rel (%p847) target = $region100
        $region99: #{feature_matcher_forward.1} parent=87 // pred_region
          %851 = dma.done %s843, 4096
        $region100: #{feature_matcher_forward.1} parent=87 // pred_fallthru
          _
        %s852 = sand.u32 %s50, 1
        %s853 = scalar_lea.sflag [#allocation9], %s852
        %s854 = sand.u32 %s195, 1
        %s855 = smul.addr %s854, 2
        %s856 = scalar_lea.vmem [#allocation8], %s855
        // Predicated region
        $region101: #{feature_matcher_forward.1} parent=87 // pred_check
          %p857 = pneg %p208
        $region102: #{feature_matcher_forward.1} parent=87 // pred_check_branch
          %859 = sbr.rel (%p857) target = $region104
        $region103: #{feature_matcher_forward.1} parent=87 // pred_region
          %861 = dma.done %s853, 32
        $region104: #{feature_matcher_forward.1} parent=87 // pred_fallthru
          _
        %s862 = sand.u32 %s50, 1
        %s863 = scalar_lea.sflag [#allocation9], %s862
        %s864 = sand.u32 %s221, 1
        %s865 = smul.addr %s864, 2
        %s866 = scalar_lea.vmem [#allocation10], %s865
        // Predicated region
        $region105: #{feature_matcher_forward.1} parent=87 // pred_check
          %p867 = pneg %p234
        $region106: #{feature_matcher_forward.1} parent=87 // pred_check_branch
          %869 = sbr.rel (%p867) target = $region108
        $region107: #{feature_matcher_forward.1} parent=87 // pred_region
          %871 = dma.done %s863, 32
        $region108: #{feature_matcher_forward.1} parent=87 // pred_fallthru
          _
        %s872 = sand.u32 %s50, 1
        %s873 = scalar_lea.sflag [#allocation12], %s872
        %s874 = sand.u32 %s247, 1
        %s875 = smul.addr %s874, 2
        %s876 = scalar_lea.vmem [#allocation11], %s875
        // Predicated region
        $region109: #{feature_matcher_forward.1} parent=87 // pred_check
          %p877 = pneg %p260
        $region110: #{feature_matcher_forward.1} parent=87 // pred_check_branch
          %879 = sbr.rel (%p877) target = $region112
        $region111: #{feature_matcher_forward.1} parent=87 // pred_region
          %881 = dma.done %s873, 32
        $region112: #{feature_matcher_forward.1} parent=87 // pred_fallthru
          _
        %s882 = sand.u32 %s50, 1
        %s883 = scalar_lea.sflag [#allocation12], %s882
        %s884 = sand.u32 %s273, 1
        %s885 = smul.addr %s884, 1024
        %s886 = scalar_lea.vmem [#allocation13], %s885
        // Predicated region
        $region113: #{feature_matcher_forward.1} parent=87 // pred_check
          %p887 = pneg %p286
        $region114: #{feature_matcher_forward.1} parent=87 // pred_check_branch
          %889 = sbr.rel (%p887) target = $region116
        $region115: #{feature_matcher_forward.1} parent=87 // pred_region
          %891 = dma.done %s883, 16384
        $region116: #{feature_matcher_forward.1} parent=87 // pred_fallthru
          _
        %s892 = sand.u32 %s50, 1
        %s893 = scalar_lea.sflag [#allocation15], %s892
        %s894 = sand.u32 %s299, 1
        %s895 = smul.addr %s894, 8
        %s896 = scalar_lea.vmem [#allocation14], %s895
        // Predicated region
        $region117: #{feature_matcher_forward.1} parent=87 // pred_check
          %p897 = pneg %p312
        $region118: #{feature_matcher_forward.1} parent=87 // pred_check_branch
          %899 = sbr.rel (%p897) target = $region120
        $region119: #{feature_matcher_forward.1} parent=87 // pred_region
          %901 = dma.done %s893, 128
        $region120: #{feature_matcher_forward.1} parent=87 // pred_fallthru
          _
        %s902 = sand.u32 %s50, 1
        %s903 = scalar_lea.sflag [#allocation15], %s902
        %s904 = sand.u32 %s325, 1
        %s905 = smul.addr %s904, 1024
        %s906 = scalar_lea.vmem [#allocation16], %s905
        // Predicated region
        $region121: #{feature_matcher_forward.1} parent=87 // pred_check
          %p907 = pneg %p338
        $region122: #{feature_matcher_forward.1} parent=87 // pred_check_branch
          %909 = sbr.rel (%p907) target = $region124
        $region123: #{feature_matcher_forward.1} parent=87 // pred_region
          %911 = dma.done %s903, 16384
        $region124: #{feature_matcher_forward.1} parent=87 // pred_fallthru
          _
        %s912 = sand.u32 %s50, 1
        %s913 = scalar_lea.sflag [#allocation18], %s912
        %s914 = sand.u32 %s351, 1
        %s915 = smul.addr %s914, 2
        %s916 = scalar_lea.vmem [#allocation17], %s915
        // Predicated region
        $region125: #{feature_matcher_forward.1} parent=87 // pred_check
          %p917 = pneg %p364
        $region126: #{feature_matcher_forward.1} parent=87 // pred_check_branch
          %919 = sbr.rel (%p917) target = $region128
        $region127: #{feature_matcher_forward.1} parent=87 // pred_region
          %921 = dma.done %s913, 32
        $region128: #{feature_matcher_forward.1} parent=87 // pred_fallthru
          _
        %s922 = sand.u32 %s50, 1
        %s923 = scalar_lea.sflag [#allocation18], %s922
        %s924 = sand.u32 %s377, 1
        %s925 = smul.addr %s924, 2
        %s926 = scalar_lea.vmem [#allocation19], %s925
        // Predicated region
        $region129: #{feature_matcher_forward.1} parent=87 // pred_check
          %p927 = pneg %p390
        $region130: #{feature_matcher_forward.1} parent=87 // pred_check_branch
          %929 = sbr.rel (%p927) target = $region132
        $region131: #{feature_matcher_forward.1} parent=87 // pred_region
          %931 = dma.done %s923, 32
        $region132: #{feature_matcher_forward.1} parent=87 // pred_fallthru
          _
        %s932 = sand.u32 %s50, 1
        %s933 = scalar_lea.sflag [#allocation21], %s932
        %s934 = sand.u32 %s403, 1
        %s935 = smul.addr %s934, 2
        %s936 = scalar_lea.vmem [#allocation20], %s935
        // Predicated region
        $region133: #{feature_matcher_forward.1} parent=87 // pred_check
          %p937 = pneg %p416
        $region134: #{feature_matcher_forward.1} parent=87 // pred_check_branch
          %939 = sbr.rel (%p937) target = $region136
        $region135: #{feature_matcher_forward.1} parent=87 // pred_region
          %941 = dma.done %s933, 32
        $region136: #{feature_matcher_forward.1} parent=87 // pred_fallthru
          _
        // Predicated region
        $region137: #{feature_matcher_forward.1} parent=87 // pred_check
          %p942 = pneg %p437
        $region138: #{feature_matcher_forward.1} parent=87 // pred_check_branch
          %944 = sbr.rel (%p942) target = $region140
        $region139: #{feature_matcher_forward.1} parent=87 // pred_region
          %946 = dma.done [#allocation21], 4096
        $region140: #{feature_matcher_forward.1} parent=87 // pred_fallthru
          _
        // Predicated region
        $region141: #{feature_matcher_forward.1} parent=87 // pred_check
          %p947 = pneg %p458
        $region142: #{feature_matcher_forward.1} parent=87 // pred_check_branch
          %949 = sbr.rel (%p947) target = $region144
        $region143: #{feature_matcher_forward.1} parent=87 // pred_region
          %951 = dma.done [#allocation24], 4096
        $region144: #{feature_matcher_forward.1} parent=87 // pred_fallthru
          _
        // Predicated region
        $region145: #{feature_matcher_forward.1} parent=87 // pred_check
          %p952 = pneg %p479
        $region146: #{feature_matcher_forward.1} parent=87 // pred_check_branch
          %954 = sbr.rel (%p952) target = $region148
        $region147: #{feature_matcher_forward.1} parent=87 // pred_region
          %956 = dma.done [#allocation24], 32
        $region148: #{feature_matcher_forward.1} parent=87 // pred_fallthru
          _
        %p957 = scmp.lt.s32.totalorder %s54, 1
        %s958 = scalar_select %p957, %s54, 1
        %s959 = smul.addr %s958, 8
        %s960 = smul.addr %s959, 8
        %s961 = scalar_lea.vmem %s0, %s960
        %p962 = pneg %p83
        %p963 = pneg %p80
        %p964 = pneg %p104
        %p965 = pneg %p101
        %s966 = sand.u32 %s117, 1
        %s967 = scalar_lea.sflag [#allocation4], %s966
        %s968 = sand.u32 %s117, 1
        %s969 = smul.addr %s968, 768
        %s970 = scalar_lea.vmem [#allocation3], %s969
        %p971 = pneg %p130
        %p972 = pneg %p127
        %s973 = sand.u32 %s50, 1
        %s974 = scalar_lea.sflag [#allocation6], %s973
        %s975 = sand.u32 %s143, 1
        %s976 = smul.addr %s975, 6
        %s977 = scalar_lea.vmem [#allocation5], %s976
        %p978 = pneg %p156
        %p979 = pneg %p153
        %s980 = sand.u32 %s50, 1
        %s981 = scalar_lea.sflag [#allocation6], %s980
        %s982 = sand.u32 %s169, 1
        %s983 = smul.addr %s982, 256
        %s984 = scalar_lea.vmem [#allocation7], %s983
        %p985 = pneg %p182
        %p986 = pneg %p179
        %s987 = sand.u32 %s50, 1
        %s988 = scalar_lea.sflag [#allocation9], %s987
        %s989 = sand.u32 %s195, 1
        %s990 = smul.addr %s989, 2
        %s991 = scalar_lea.vmem [#allocation8], %s990
        %p992 = pneg %p208
        %p993 = pneg %p205
        %s994 = sand.u32 %s50, 1
        %s995 = scalar_lea.sflag [#allocation9], %s994
        %s996 = sand.u32 %s221, 1
        %s997 = smul.addr %s996, 2
        %s998 = scalar_lea.vmem [#allocation10], %s997
        %p999 = pneg %p234
        %p1000 = pneg %p231
        %s1001 = sand.u32 %s50, 1
        %s1002 = scalar_lea.sflag [#allocation12], %s1001
        %s1003 = sand.u32 %s247, 1
        %s1004 = smul.addr %s1003, 2
        %s1005 = scalar_lea.vmem [#allocation11], %s1004
        %p1006 = pneg %p260
        %p1007 = pneg %p257
        %s1008 = sand.u32 %s50, 1
        %s1009 = scalar_lea.sflag [#allocation12], %s1008
        %s1010 = sand.u32 %s273, 1
        %s1011 = smul.addr %s1010, 1024
        %s1012 = scalar_lea.vmem [#allocation13], %s1011
        %p1013 = pneg %p286
        %p1014 = pneg %p283
        %s1015 = sand.u32 %s50, 1
        %s1016 = scalar_lea.sflag [#allocation15], %s1015
        %s1017 = sand.u32 %s299, 1
        %s1018 = smul.addr %s1017, 8
        %s1019 = scalar_lea.vmem [#allocation14], %s1018
        %p1020 = pneg %p312
        %p1021 = pneg %p309
        %s1022 = sand.u32 %s50, 1
        %s1023 = scalar_lea.sflag [#allocation15], %s1022
        %s1024 = sand.u32 %s325, 1
        %s1025 = smul.addr %s1024, 1024
        %s1026 = scalar_lea.vmem [#allocation16], %s1025
        %p1027 = pneg %p338
        %p1028 = pneg %p335
        %s1029 = sand.u32 %s50, 1
        %s1030 = scalar_lea.sflag [#allocation18], %s1029
        %s1031 = sand.u32 %s351, 1
        %s1032 = smul.addr %s1031, 2
        %s1033 = scalar_lea.vmem [#allocation17], %s1032
        %p1034 = pneg %p364
        %p1035 = pneg %p361
        %s1036 = sand.u32 %s50, 1
        %s1037 = scalar_lea.sflag [#allocation18], %s1036
        %s1038 = sand.u32 %s377, 1
        %s1039 = smul.addr %s1038, 2
        %s1040 = scalar_lea.vmem [#allocation19], %s1039
        %p1041 = pneg %p390
        %p1042 = pneg %p387
        %s1043 = sand.u32 %s50, 1
        %s1044 = scalar_lea.sflag [#allocation21], %s1043
        %s1045 = sand.u32 %s403, 1
        %s1046 = smul.addr %s1045, 2
        %s1047 = scalar_lea.vmem [#allocation20], %s1046
        %p1048 = pneg %p416
        %p1049 = pneg %p413
        %p1050 = pneg %p437
        %p1051 = pneg %p434
        %p1052 = pneg %p458
        %p1053 = pneg %p455
        %p1054 = pneg %p479
        %p1055 = pneg %p476
        %p1056 = pneg %p505
        %p1057 = pneg %p502
        %p1058 = scmp.lt.s32.totalorder %s54, 1
        %s1059 = scalar_select %p1058, %s54, 1
        %s1060 = smul.addr %s1059, 4
        %s1061 = smul.addr %s1060, 8
        %s1062 = scalar_lea.vmem %s17, %s1061
        %p1063 = scmp.lt.s32.totalorder %s54, 1
        %s1064 = scalar_select %p1063, %s54, 1
        %s1065 = smul.addr %s1064, 8
        %s1066 = smul.addr %s1065, 8
        %s1067 = scalar_lea.vmem %s0, %s1066
        %p1068 = scmp.lt.s32.totalorder %s54, 1
        %s1069 = scalar_select %p1068, %s54, 1
        %s1070 = smul.addr %s1069, 4
        %s1071 = smul.addr %s1070, 8
        %s1072 = scalar_lea.vmem %s17, %s1071
        %p1074 = scmp.eq.s32.totalorder %s55, 0
        // Predicated region
        $region149: #{feature_matcher_forward.1} parent=87 // pred_check
          %p1075 = pneg %p1074
        $region150: #{feature_matcher_forward.1} parent=87 // pred_check_branch
          %1077 = sbr.rel (%p1075) target = $region152
        $region151: #{feature_matcher_forward.1} parent=87 // pred_region
          %v1078 = vld [vmem:[%s1067] sm:$0xff]
          %v1079 = vld [vmem:[%s1067 + $0x8] sm:$0xff]
          %v1080 = vld [vmem:[%s1067 + $0x10] sm:$0xff]
          %v1081 = vld [vmem:[%s1067 + $0x18] sm:$0xff]
          %v1082 = vld [vmem:[%s1067 + $0x20] sm:$0xff]
          %v1083 = vld [vmem:[%s1067 + $0x28] sm:$0xff]
          %v1084 = vld [vmem:[%s1067 + $0x30] sm:$0xff]
          %v1085 = vld [vmem:[%s1067 + $0x38] sm:$0xff]
          %1086 = vst [vmem:[#allocation2] sm:$0xff] %v1078
          %1087 = vst [vmem:[#allocation2 + $0x8] sm:$0xff] %v1079
          %1088 = vst [vmem:[#allocation2 + $0x10] sm:$0xff] %v1080
          %1089 = vst [vmem:[#allocation2 + $0x18] sm:$0xff] %v1081
          %1090 = vst [vmem:[#allocation2 + $0x20] sm:$0xff] %v1082
          %1091 = vst [vmem:[#allocation2 + $0x28] sm:$0xff] %v1083
          %1092 = vst [vmem:[#allocation2 + $0x30] sm:$0xff] %v1084
          %1093 = vst [vmem:[#allocation2 + $0x38] sm:$0xff] %v1085
        $region152: #{feature_matcher_forward.1} parent=87 // pred_fallthru
          _
        %v1094 = vld [vmem:[#allocation2] sm:$0xff]
        %v1095 = vld [vmem:[#allocation2 + $0x8] sm:$0xff]
        %v1096 = vld [vmem:[#allocation2 + $0x10] sm:$0xff]
        %v1097 = vld [vmem:[#allocation2 + $0x18] sm:$0xff]
        %v1098 = vld [vmem:[#allocation2 + $0x20] sm:$0xff]
        %v1099 = vld [vmem:[#allocation2 + $0x28] sm:$0xff]
        %v1100 = vld [vmem:[#allocation2 + $0x30] sm:$0xff]
        %v1101 = vld [vmem:[#allocation2 + $0x38] sm:$0xff]
        %v1102 = vpack.c.bf16 %v1096, %v1094
        %v1103 = vpack.c.bf16 %v1097, %v1095
        %v1104 = vpack.c.bf16 %v1100, %v1098
        %v1105 = vpack.c.bf16 %v1101, %v1099
        %v1106 = vld [vmem:[%s826] sm:$0xff]
        %v1107 = vld [vmem:[%s826 + $0x8] sm:$0xff]
        %v1108 = vld [vmem:[%s826 + $0x10] sm:$0xff]
        %v1109 = vld [vmem:[%s826 + $0x18] sm:$0xff]
        %v1110 = vld [vmem:[%s826 + $0x20] sm:$0xff]
        %v1111 = vld [vmem:[%s826 + $0x28] sm:$0xff]
        %v1112 = vld [vmem:[%s826 + $0x30] sm:$0xff]
        %v1113 = vld [vmem:[%s826 + $0x38] sm:$0xff]
        %v1114 = vld [vmem:[%s826 + $0x40] sm:$0xff]
        %v1115 = vld [vmem:[%s826 + $0x48] sm:$0xff]
        %v1116 = vld [vmem:[%s826 + $0x50] sm:$0xff]
        %v1117 = vld [vmem:[%s826 + $0x58] sm:$0xff]
        %v1118 = vld [vmem:[%s826 + $0x60] sm:$0xff]
        %v1119 = vld [vmem:[%s826 + $0x68] sm:$0xff]
        %v1120 = vld [vmem:[%s826 + $0x70] sm:$0xff]
        %v1121 = vld [vmem:[%s826 + $0x78] sm:$0xff]
        %v1122 = vld [vmem:[%s826 + $0x80] sm:$0xff]
        %v1123 = vld [vmem:[%s826 + $0x88] sm:$0xff]
        %v1124 = vld [vmem:[%s826 + $0x90] sm:$0xff]
        %v1125 = vld [vmem:[%s826 + $0x98] sm:$0xff]
        %v1126 = vld [vmem:[%s826 + $0xa0] sm:$0xff]
        %v1127 = vld [vmem:[%s826 + $0xa8] sm:$0xff]
        %v1128 = vld [vmem:[%s826 + $0xb0] sm:$0xff]
        %v1129 = vld [vmem:[%s826 + $0xb8] sm:$0xff]
        %v1130 = vld [vmem:[%s826 + $0xc0] sm:$0xff]
        %v1131 = vld [vmem:[%s826 + $0xc8] sm:$0xff]
        %v1132 = vld [vmem:[%s826 + $0xd0] sm:$0xff]
        %v1133 = vld [vmem:[%s826 + $0xd8] sm:$0xff]
        %v1134 = vld [vmem:[%s826 + $0xe0] sm:$0xff]
        %v1135 = vld [vmem:[%s826 + $0xe8] sm:$0xff]
        %v1136 = vld [vmem:[%s826 + $0xf0] sm:$0xff]
        %v1137 = vld [vmem:[%s826 + $0xf8] sm:$0xff]
        %v1138 = vld [vmem:[%s826 + $0x100] sm:$0xff]
        %v1139 = vld [vmem:[%s826 + $0x108] sm:$0xff]
        %v1140 = vld [vmem:[%s826 + $0x110] sm:$0xff]
        %v1141 = vld [vmem:[%s826 + $0x118] sm:$0xff]
        %v1142 = vld [vmem:[%s826 + $0x120] sm:$0xff]
        %v1143 = vld [vmem:[%s826 + $0x128] sm:$0xff]
        %v1144 = vld [vmem:[%s826 + $0x130] sm:$0xff]
        %v1145 = vld [vmem:[%s826 + $0x138] sm:$0xff]
        %v1146 = vld [vmem:[%s826 + $0x140] sm:$0xff]
        %v1147 = vld [vmem:[%s826 + $0x148] sm:$0xff]
        %v1148 = vld [vmem:[%s826 + $0x150] sm:$0xff]
        %v1149 = vld [vmem:[%s826 + $0x158] sm:$0xff]
        %v1150 = vld [vmem:[%s826 + $0x160] sm:$0xff]
        %v1151 = vld [vmem:[%s826 + $0x168] sm:$0xff]
        %v1152 = vld [vmem:[%s826 + $0x170] sm:$0xff]
        %v1153 = vld [vmem:[%s826 + $0x178] sm:$0xff]
        %v1154 = vld [vmem:[%s826 + $0x180] sm:$0xff]
        %v1155 = vld [vmem:[%s826 + $0x188] sm:$0xff]
        %v1156 = vld [vmem:[%s826 + $0x190] sm:$0xff]
        %v1157 = vld [vmem:[%s826 + $0x198] sm:$0xff]
        %v1158 = vld [vmem:[%s826 + $0x1a0] sm:$0xff]
        %v1159 = vld [vmem:[%s826 + $0x1a8] sm:$0xff]
        %v1160 = vld [vmem:[%s826 + $0x1b0] sm:$0xff]
        %v1161 = vld [vmem:[%s826 + $0x1b8] sm:$0xff]
        %v1162 = vld [vmem:[%s826 + $0x1c0] sm:$0xff]
        %v1163 = vld [vmem:[%s826 + $0x1c8] sm:$0xff]
        %v1164 = vld [vmem:[%s826 + $0x1d0] sm:$0xff]
        %v1165 = vld [vmem:[%s826 + $0x1d8] sm:$0xff]
        %v1166 = vld [vmem:[%s826 + $0x1e0] sm:$0xff]
        %v1167 = vld [vmem:[%s826 + $0x1e8] sm:$0xff]
        %v1168 = vld [vmem:[%s826 + $0x1f0] sm:$0xff]
        %v1169 = vld [vmem:[%s826 + $0x1f8] sm:$0xff]
        %v1170 = vld [vmem:[%s826 + $0x200] sm:$0xff]
        %v1171 = vld [vmem:[%s826 + $0x208] sm:$0xff]
        %v1172 = vld [vmem:[%s826 + $0x210] sm:$0xff]
        %v1173 = vld [vmem:[%s826 + $0x218] sm:$0xff]
        %v1174 = vld [vmem:[%s826 + $0x220] sm:$0xff]
        %v1175 = vld [vmem:[%s826 + $0x228] sm:$0xff]
        %v1176 = vld [vmem:[%s826 + $0x230] sm:$0xff]
        %v1177 = vld [vmem:[%s826 + $0x238] sm:$0xff]
        %v1178 = vld [vmem:[%s826 + $0x240] sm:$0xff]
        %v1179 = vld [vmem:[%s826 + $0x248] sm:$0xff]
        %v1180 = vld [vmem:[%s826 + $0x250] sm:$0xff]
        %v1181 = vld [vmem:[%s826 + $0x258] sm:$0xff]
        %v1182 = vld [vmem:[%s826 + $0x260] sm:$0xff]
        %v1183 = vld [vmem:[%s826 + $0x268] sm:$0xff]
        %v1184 = vld [vmem:[%s826 + $0x270] sm:$0xff]
        %v1185 = vld [vmem:[%s826 + $0x278] sm:$0xff]
        %v1186 = vld [vmem:[%s826 + $0x280] sm:$0xff]
        %v1187 = vld [vmem:[%s826 + $0x288] sm:$0xff]
        %v1188 = vld [vmem:[%s826 + $0x290] sm:$0xff]
        %v1189 = vld [vmem:[%s826 + $0x298] sm:$0xff]
        %v1190 = vld [vmem:[%s826 + $0x2a0] sm:$0xff]
        %v1191 = vld [vmem:[%s826 + $0x2a8] sm:$0xff]
        %v1192 = vld [vmem:[%s826 + $0x2b0] sm:$0xff]
        %v1193 = vld [vmem:[%s826 + $0x2b8] sm:$0xff]
        %v1194 = vld [vmem:[%s826 + $0x2c0] sm:$0xff]
        %v1195 = vld [vmem:[%s826 + $0x2c8] sm:$0xff]
        %v1196 = vld [vmem:[%s826 + $0x2d0] sm:$0xff]
        %v1197 = vld [vmem:[%s826 + $0x2d8] sm:$0xff]
        %v1198 = vld [vmem:[%s826 + $0x2e0] sm:$0xff]
        %v1199 = vld [vmem:[%s826 + $0x2e8] sm:$0xff]
        %v1200 = vld [vmem:[%s826 + $0x2f0] sm:$0xff]
        %v1201 = vld [vmem:[%s826 + $0x2f8] sm:$0xff]
        %v1202 = vld [vmem:[%s836] sm:$0x3f]
        %v1204 = vperm.slane %v1202, 0
        %v1205 = vperm.slane %v1202, 1
        %v1206 = vperm.slane %v1202, 2
        %v1207 = vperm.slane %v1202, 3
        %v1208 = vperm.slane %v1202, 4
        %v1209 = vperm.slane %v1202, 5
        %v1312 = vunpack.c.l.b16 %v1106
        %v1313 = vunpack.c.h.b16 %v1106
        %v1314 = vunpack.c.l.b16 %v1107
        %v1315 = vunpack.c.h.b16 %v1107
        %v1316 = vunpack.c.l.b16 %v1108
        %v1317 = vunpack.c.h.b16 %v1108
        %v1318 = vunpack.c.l.b16 %v1109
        %v1319 = vunpack.c.h.b16 %v1109
        %v1320 = vunpack.c.l.b16 %v1110
        %v1321 = vunpack.c.h.b16 %v1110
        %v1322 = vunpack.c.l.b16 %v1111
        %v1323 = vunpack.c.h.b16 %v1111
        %v1324 = vunpack.c.l.b16 %v1112
        %v1325 = vunpack.c.h.b16 %v1112
        %v1326 = vunpack.c.l.b16 %v1113
        %v1327 = vunpack.c.h.b16 %v1113
        %v1328 = vunpack.c.l.b16 %v1114
        %v1329 = vunpack.c.h.b16 %v1114
        %v1330 = vunpack.c.l.b16 %v1115
        %v1331 = vunpack.c.h.b16 %v1115
        %v1332 = vunpack.c.l.b16 %v1116
        %v1333 = vunpack.c.h.b16 %v1116
        %v1334 = vunpack.c.l.b16 %v1117
        %v1335 = vunpack.c.h.b16 %v1117
        %v1336 = vunpack.c.l.b16 %v1118
        %v1337 = vunpack.c.h.b16 %v1118
        %v1338 = vunpack.c.l.b16 %v1119
        %v1339 = vunpack.c.h.b16 %v1119
        %v1340 = vunpack.c.l.b16 %v1120
        %v1341 = vunpack.c.h.b16 %v1120
        %v1342 = vunpack.c.l.b16 %v1121
        %v1343 = vunpack.c.h.b16 %v1121
        %v1344 = vunpack.c.l.b16 %v1122
        %v1345 = vunpack.c.h.b16 %v1122
        %v1346 = vunpack.c.l.b16 %v1123
        %v1347 = vunpack.c.h.b16 %v1123
        %v1348 = vunpack.c.l.b16 %v1124
        %v1349 = vunpack.c.h.b16 %v1124
        %v1350 = vunpack.c.l.b16 %v1125
        %v1351 = vunpack.c.h.b16 %v1125
        %v1352 = vunpack.c.l.b16 %v1126
        %v1353 = vunpack.c.h.b16 %v1126
        %v1354 = vunpack.c.l.b16 %v1127
        %v1355 = vunpack.c.h.b16 %v1127
        %v1356 = vunpack.c.l.b16 %v1128
        %v1357 = vunpack.c.h.b16 %v1128
        %v1358 = vunpack.c.l.b16 %v1129
        %v1359 = vunpack.c.h.b16 %v1129
        %v1360 = vunpack.c.l.b16 %v1130
        %v1361 = vunpack.c.h.b16 %v1130
        %v1362 = vunpack.c.l.b16 %v1131
        %v1363 = vunpack.c.h.b16 %v1131
        %v1364 = vunpack.c.l.b16 %v1132
        %v1365 = vunpack.c.h.b16 %v1132
        %v1366 = vunpack.c.l.b16 %v1133
        %v1367 = vunpack.c.h.b16 %v1133
        %v1368 = vunpack.c.l.b16 %v1134
        %v1369 = vunpack.c.h.b16 %v1134
        %v1370 = vunpack.c.l.b16 %v1135
        %v1371 = vunpack.c.h.b16 %v1135
        %v1372 = vunpack.c.l.b16 %v1136
        %v1373 = vunpack.c.h.b16 %v1136
        %v1374 = vunpack.c.l.b16 %v1137
        %v1375 = vunpack.c.h.b16 %v1137
        %v1376 = vunpack.c.l.b16 %v1138
        %v1377 = vunpack.c.h.b16 %v1138
        %v1378 = vunpack.c.l.b16 %v1139
        %v1379 = vunpack.c.h.b16 %v1139
        %v1380 = vunpack.c.l.b16 %v1140
        %v1381 = vunpack.c.h.b16 %v1140
        %v1382 = vunpack.c.l.b16 %v1141
        %v1383 = vunpack.c.h.b16 %v1141
        %v1384 = vunpack.c.l.b16 %v1142
        %v1385 = vunpack.c.h.b16 %v1142
        %v1386 = vunpack.c.l.b16 %v1143
        %v1387 = vunpack.c.h.b16 %v1143
        %v1388 = vunpack.c.l.b16 %v1144
        %v1389 = vunpack.c.h.b16 %v1144
        %v1390 = vunpack.c.l.b16 %v1145
        %v1391 = vunpack.c.h.b16 %v1145
        %v1392 = vunpack.c.l.b16 %v1146
        %v1393 = vunpack.c.h.b16 %v1146
        %v1394 = vunpack.c.l.b16 %v1147
        %v1395 = vunpack.c.h.b16 %v1147
        %v1396 = vunpack.c.l.b16 %v1148
        %v1397 = vunpack.c.h.b16 %v1148
        %v1398 = vunpack.c.l.b16 %v1149
        %v1399 = vunpack.c.h.b16 %v1149
        %v1400 = vunpack.c.l.b16 %v1150
        %v1401 = vunpack.c.h.b16 %v1150
        %v1402 = vunpack.c.l.b16 %v1151
        %v1403 = vunpack.c.h.b16 %v1151
        %v1404 = vunpack.c.l.b16 %v1152
        %v1405 = vunpack.c.h.b16 %v1152
        %v1406 = vunpack.c.l.b16 %v1153
        %v1407 = vunpack.c.h.b16 %v1153
        %v1408 = vunpack.c.l.b16 %v1154
        %v1409 = vunpack.c.h.b16 %v1154
        %v1410 = vunpack.c.l.b16 %v1155
        %v1411 = vunpack.c.h.b16 %v1155
        %v1412 = vunpack.c.l.b16 %v1156
        %v1413 = vunpack.c.h.b16 %v1156
        %v1414 = vunpack.c.l.b16 %v1157
        %v1415 = vunpack.c.h.b16 %v1157
        %v1416 = vunpack.c.l.b16 %v1158
        %v1417 = vunpack.c.h.b16 %v1158
        %v1418 = vunpack.c.l.b16 %v1159
        %v1419 = vunpack.c.h.b16 %v1159
        %v1420 = vunpack.c.l.b16 %v1160
        %v1421 = vunpack.c.h.b16 %v1160
        %v1422 = vunpack.c.l.b16 %v1161
        %v1423 = vunpack.c.h.b16 %v1161
        %v1424 = vunpack.c.l.b16 %v1162
        %v1425 = vunpack.c.h.b16 %v1162
        %v1426 = vunpack.c.l.b16 %v1163
        %v1427 = vunpack.c.h.b16 %v1163
        %v1428 = vunpack.c.l.b16 %v1164
        %v1429 = vunpack.c.h.b16 %v1164
        %v1430 = vunpack.c.l.b16 %v1165
        %v1431 = vunpack.c.h.b16 %v1165
        %v1432 = vunpack.c.l.b16 %v1166
        %v1433 = vunpack.c.h.b16 %v1166
        %v1434 = vunpack.c.l.b16 %v1167
        %v1435 = vunpack.c.h.b16 %v1167
        %v1436 = vunpack.c.l.b16 %v1168
        %v1437 = vunpack.c.h.b16 %v1168
        %v1438 = vunpack.c.l.b16 %v1169
        %v1439 = vunpack.c.h.b16 %v1169
        %v1440 = vunpack.c.l.b16 %v1170
        %v1441 = vunpack.c.h.b16 %v1170
        %v1442 = vunpack.c.l.b16 %v1171
        %v1443 = vunpack.c.h.b16 %v1171
        %v1444 = vunpack.c.l.b16 %v1172
        %v1445 = vunpack.c.h.b16 %v1172
        %v1446 = vunpack.c.l.b16 %v1173
        %v1447 = vunpack.c.h.b16 %v1173
        %v1448 = vunpack.c.l.b16 %v1174
        %v1449 = vunpack.c.h.b16 %v1174
        %v1450 = vunpack.c.l.b16 %v1175
        %v1451 = vunpack.c.h.b16 %v1175
        %v1452 = vunpack.c.l.b16 %v1176
        %v1453 = vunpack.c.h.b16 %v1176
        %v1454 = vunpack.c.l.b16 %v1177
        %v1455 = vunpack.c.h.b16 %v1177
        %v1456 = vunpack.c.l.b16 %v1178
        %v1457 = vunpack.c.h.b16 %v1178
        %v1458 = vunpack.c.l.b16 %v1179
        %v1459 = vunpack.c.h.b16 %v1179
        %v1460 = vunpack.c.l.b16 %v1180
        %v1461 = vunpack.c.h.b16 %v1180
        %v1462 = vunpack.c.l.b16 %v1181
        %v1463 = vunpack.c.h.b16 %v1181
        %v1464 = vunpack.c.l.b16 %v1182
        %v1465 = vunpack.c.h.b16 %v1182
        %v1466 = vunpack.c.l.b16 %v1183
        %v1467 = vunpack.c.h.b16 %v1183
        %v1468 = vunpack.c.l.b16 %v1184
        %v1469 = vunpack.c.h.b16 %v1184
        %v1470 = vunpack.c.l.b16 %v1185
        %v1471 = vunpack.c.h.b16 %v1185
        %v1472 = vunpack.c.l.b16 %v1186
        %v1473 = vunpack.c.h.b16 %v1186
        %v1474 = vunpack.c.l.b16 %v1187
        %v1475 = vunpack.c.h.b16 %v1187
        %v1476 = vunpack.c.l.b16 %v1188
        %v1477 = vunpack.c.h.b16 %v1188
        %v1478 = vunpack.c.l.b16 %v1189
        %v1479 = vunpack.c.h.b16 %v1189
        %v1480 = vunpack.c.l.b16 %v1190
        %v1481 = vunpack.c.h.b16 %v1190
        %v1482 = vunpack.c.l.b16 %v1191
        %v1483 = vunpack.c.h.b16 %v1191
        %v1484 = vunpack.c.l.b16 %v1192
        %v1485 = vunpack.c.h.b16 %v1192
        %v1486 = vunpack.c.l.b16 %v1193
        %v1487 = vunpack.c.h.b16 %v1193
        %v1488 = vunpack.c.l.b16 %v1194
        %v1489 = vunpack.c.h.b16 %v1194
        %v1490 = vunpack.c.l.b16 %v1195
        %v1491 = vunpack.c.h.b16 %v1195
        %v1492 = vunpack.c.l.b16 %v1196
        %v1493 = vunpack.c.h.b16 %v1196
        %v1494 = vunpack.c.l.b16 %v1197
        %v1495 = vunpack.c.h.b16 %v1197
        %v1496 = vunpack.c.l.b16 %v1198
        %v1497 = vunpack.c.h.b16 %v1198
        %v1498 = vunpack.c.l.b16 %v1199
        %v1499 = vunpack.c.h.b16 %v1199
        %v1500 = vunpack.c.l.b16 %v1200
        %v1501 = vunpack.c.h.b16 %v1200
        %v1502 = vunpack.c.l.b16 %v1201
        %v1503 = vunpack.c.h.b16 %v1201
        %v1504 = vpack.c.b16 %v1318, %v1312
        %v1505 = vpack.c.b16 %v1319, %v1313
        %v1506 = vpack.c.b16 %v1320, %v1314
        %v1507 = vpack.c.b16 %v1321, %v1315
        %v1508 = vpack.c.b16 %v1322, %v1316
        %v1509 = vpack.c.b16 %v1323, %v1317
        %v1510 = vpack.c.b16 %v1330, %v1324
        %v1511 = vpack.c.b16 %v1331, %v1325
        %v1512 = vpack.c.b16 %v1332, %v1326
        %v1513 = vpack.c.b16 %v1333, %v1327
        %v1514 = vpack.c.b16 %v1334, %v1328
        %v1515 = vpack.c.b16 %v1335, %v1329
        %v1516 = vpack.c.b16 %v1342, %v1336
        %v1517 = vpack.c.b16 %v1343, %v1337
        %v1518 = vpack.c.b16 %v1344, %v1338
        %v1519 = vpack.c.b16 %v1345, %v1339
        %v1520 = vpack.c.b16 %v1346, %v1340
        %v1521 = vpack.c.b16 %v1347, %v1341
        %v1522 = vpack.c.b16 %v1354, %v1348
        %v1523 = vpack.c.b16 %v1355, %v1349
        %v1524 = vpack.c.b16 %v1356, %v1350
        %v1525 = vpack.c.b16 %v1357, %v1351
        %v1526 = vpack.c.b16 %v1358, %v1352
        %v1527 = vpack.c.b16 %v1359, %v1353
        %v1528 = vpack.c.b16 %v1366, %v1360
        %v1529 = vpack.c.b16 %v1367, %v1361
        %v1530 = vpack.c.b16 %v1368, %v1362
        %v1531 = vpack.c.b16 %v1369, %v1363
        %v1532 = vpack.c.b16 %v1370, %v1364
        %v1533 = vpack.c.b16 %v1371, %v1365
        %v1534 = vpack.c.b16 %v1378, %v1372
        %v1535 = vpack.c.b16 %v1379, %v1373
        %v1536 = vpack.c.b16 %v1380, %v1374
        %v1537 = vpack.c.b16 %v1381, %v1375
        %v1538 = vpack.c.b16 %v1382, %v1376
        %v1539 = vpack.c.b16 %v1383, %v1377
        %v1540 = vpack.c.b16 %v1390, %v1384
        %v1541 = vpack.c.b16 %v1391, %v1385
        %v1542 = vpack.c.b16 %v1392, %v1386
        %v1543 = vpack.c.b16 %v1393, %v1387
        %v1544 = vpack.c.b16 %v1394, %v1388
        %v1545 = vpack.c.b16 %v1395, %v1389
        %v1546 = vpack.c.b16 %v1402, %v1396
        %v1547 = vpack.c.b16 %v1403, %v1397
        %v1548 = vpack.c.b16 %v1404, %v1398
        %v1549 = vpack.c.b16 %v1405, %v1399
        %v1550 = vpack.c.b16 %v1406, %v1400
        %v1551 = vpack.c.b16 %v1407, %v1401
        %v1552 = vpack.c.b16 %v1414, %v1408
        %v1553 = vpack.c.b16 %v1415, %v1409
        %v1554 = vpack.c.b16 %v1416, %v1410
        %v1555 = vpack.c.b16 %v1417, %v1411
        %v1556 = vpack.c.b16 %v1418, %v1412
        %v1557 = vpack.c.b16 %v1419, %v1413
        %v1558 = vpack.c.b16 %v1426, %v1420
        %v1559 = vpack.c.b16 %v1427, %v1421
        %v1560 = vpack.c.b16 %v1428, %v1422
        %v1561 = vpack.c.b16 %v1429, %v1423
        %v1562 = vpack.c.b16 %v1430, %v1424
        %v1563 = vpack.c.b16 %v1431, %v1425
        %v1564 = vpack.c.b16 %v1438, %v1432
        %v1565 = vpack.c.b16 %v1439, %v1433
        %v1566 = vpack.c.b16 %v1440, %v1434
        %v1567 = vpack.c.b16 %v1441, %v1435
        %v1568 = vpack.c.b16 %v1442, %v1436
        %v1569 = vpack.c.b16 %v1443, %v1437
        %v1570 = vpack.c.b16 %v1450, %v1444
        %v1571 = vpack.c.b16 %v1451, %v1445
        %v1572 = vpack.c.b16 %v1452, %v1446
        %v1573 = vpack.c.b16 %v1453, %v1447
        %v1574 = vpack.c.b16 %v1454, %v1448
        %v1575 = vpack.c.b16 %v1455, %v1449
        %v1576 = vpack.c.b16 %v1462, %v1456
        %v1577 = vpack.c.b16 %v1463, %v1457
        %v1578 = vpack.c.b16 %v1464, %v1458
        %v1579 = vpack.c.b16 %v1465, %v1459
        %v1580 = vpack.c.b16 %v1466, %v1460
        %v1581 = vpack.c.b16 %v1467, %v1461
        %v1582 = vpack.c.b16 %v1474, %v1468
        %v1583 = vpack.c.b16 %v1475, %v1469
        %v1584 = vpack.c.b16 %v1476, %v1470
        %v1585 = vpack.c.b16 %v1477, %v1471
        %v1586 = vpack.c.b16 %v1478, %v1472
        %v1587 = vpack.c.b16 %v1479, %v1473
        %v1588 = vpack.c.b16 %v1486, %v1480
        %v1589 = vpack.c.b16 %v1487, %v1481
        %v1590 = vpack.c.b16 %v1488, %v1482
        %v1591 = vpack.c.b16 %v1489, %v1483
        %v1592 = vpack.c.b16 %v1490, %v1484
        %v1593 = vpack.c.b16 %v1491, %v1485
        %v1594 = vpack.c.b16 %v1498, %v1492
        %v1595 = vpack.c.b16 %v1499, %v1493
        %v1596 = vpack.c.b16 %v1500, %v1494
        %v1597 = vpack.c.b16 %v1501, %v1495
        %v1598 = vpack.c.b16 %v1502, %v1496
        %v1599 = vpack.c.b16 %v1503, %v1497
        %1696 = vmatpush.bf16.msra.mxu0 %v1546
        %1697 = vmatpush.bf16.msra.mxu0 %v1540
        %1698 = vmatpush.bf16.msra.mxu0 %v1534
        %1699 = vmatpush.bf16.msra.mxu0 %v1528
        %1700 = vmatpush.bf16.msra.mxu0 %v1522
        %1701 = vmatpush.bf16.msra.mxu0 %v1516
        %1702 = vmatpush.bf16.msra.mxu0 %v1510
        %1703 = vmatpush.bf16.msra.mxu0 %v1504
        %1704 = vmatmul.bf16.gmra.mxu0 %v1102
        %v1705 = vpop.f32.mrf.mxu0
        %v1706 = vadd.f32 %v1204, %v1705
        %v1707 = vpop.f32.mrf.mxu0
        %v1708 = vadd.f32 %v1204, %v1707
        %1709 = vmatmul.bf16.gmra.mxu0 %v1104
        %v1710 = vpop.f32.mrf.mxu0
        %v1711 = vadd.f32 %v1204, %v1710
        %v1712 = vpop.f32.mrf.mxu0
        %v1713 = vadd.f32 %v1204, %v1712
        %1714 = vdwg.mxu0
        %1715 = vmatpush.bf16.msra.mxu0 %v1594
        %1716 = vmatpush.bf16.msra.mxu0 %v1588
        %1717 = vmatpush.bf16.msra.mxu0 %v1582
        %1718 = vmatpush.bf16.msra.mxu0 %v1576
        %1719 = vmatpush.bf16.msra.mxu0 %v1570
        %1720 = vmatpush.bf16.msra.mxu0 %v1564
        %1721 = vmatpush.bf16.msra.mxu0 %v1558
        %1722 = vmatpush.bf16.msra.mxu0 %v1552
        %1723 = vmatmul.bf16.gmra.mxu0 %v1103
        %v1724 = vpop.f32.mrf.mxu0
        %v1725 = vadd.f32 %v1706, %v1724
        %v1726 = vpop.f32.mrf.mxu0
        %v1727 = vadd.f32 %v1708, %v1726
        %1728 = vmatmul.bf16.gmra.mxu0 %v1105
        %v1729 = vpop.f32.mrf.mxu0
        %v1730 = vadd.f32 %v1711, %v1729
        %v1731 = vpop.f32.mrf.mxu0
        %v1732 = vadd.f32 %v1713, %v1731
        %1733 = vdwg.mxu0
        %1734 = vmatpush.bf16.msra.mxu0 %v1547
        %1735 = vmatpush.bf16.msra.mxu0 %v1541
        %1736 = vmatpush.bf16.msra.mxu0 %v1535
        %1737 = vmatpush.bf16.msra.mxu0 %v1529
        %1738 = vmatpush.bf16.msra.mxu0 %v1523
        %1739 = vmatpush.bf16.msra.mxu0 %v1517
        %1740 = vmatpush.bf16.msra.mxu0 %v1511
        %1741 = vmatpush.bf16.msra.mxu0 %v1505
        %1742 = vmatmul.bf16.gmra.mxu0 %v1102
        %v1743 = vpop.f32.mrf.mxu0
        %v1744 = vadd.f32 %v1205, %v1743
        %v1745 = vpop.f32.mrf.mxu0
        %v1746 = vadd.f32 %v1205, %v1745
        %1747 = vmatmul.bf16.gmra.mxu0 %v1104
        %v1748 = vpop.f32.mrf.mxu0
        %v1749 = vadd.f32 %v1205, %v1748
        %v1750 = vpop.f32.mrf.mxu0
        %v1751 = vadd.f32 %v1205, %v1750
        %1752 = vdwg.mxu0
        %1753 = vmatpush.bf16.msra.mxu0 %v1595
        %1754 = vmatpush.bf16.msra.mxu0 %v1589
        %1755 = vmatpush.bf16.msra.mxu0 %v1583
        %1756 = vmatpush.bf16.msra.mxu0 %v1577
        %1757 = vmatpush.bf16.msra.mxu0 %v1571
        %1758 = vmatpush.bf16.msra.mxu0 %v1565
        %1759 = vmatpush.bf16.msra.mxu0 %v1559
        %1760 = vmatpush.bf16.msra.mxu0 %v1553
        %1761 = vmatmul.bf16.gmra.mxu0 %v1103
        %v1762 = vpop.f32.mrf.mxu0
        %v1763 = vadd.f32 %v1744, %v1762
        %v1764 = vpop.f32.mrf.mxu0
        %v1765 = vadd.f32 %v1746, %v1764
        %1766 = vmatmul.bf16.gmra.mxu0 %v1105
        %v1767 = vpop.f32.mrf.mxu0
        %v1768 = vadd.f32 %v1749, %v1767
        %v1769 = vpop.f32.mrf.mxu0
        %v1770 = vadd.f32 %v1751, %v1769
        %1771 = vdwg.mxu0
        %1772 = vmatpush.bf16.msra.mxu0 %v1548
        %1773 = vmatpush.bf16.msra.mxu0 %v1542
        %1774 = vmatpush.bf16.msra.mxu0 %v1536
        %1775 = vmatpush.bf16.msra.mxu0 %v1530
        %1776 = vmatpush.bf16.msra.mxu0 %v1524
        %1777 = vmatpush.bf16.msra.mxu0 %v1518
        %1778 = vmatpush.bf16.msra.mxu0 %v1512
        %1779 = vmatpush.bf16.msra.mxu0 %v1506
        %1780 = vmatmul.bf16.gmra.mxu0 %v1102
        %v1781 = vpop.f32.mrf.mxu0
        %v1782 = vadd.f32 %v1206, %v1781
        %v1783 = vpop.f32.mrf.mxu0
        %v1784 = vadd.f32 %v1206, %v1783
        %1785 = vmatmul.bf16.gmra.mxu0 %v1104
        %v1786 = vpop.f32.mrf.mxu0
        %v1787 = vadd.f32 %v1206, %v1786
        %v1788 = vpop.f32.mrf.mxu0
        %v1789 = vadd.f32 %v1206, %v1788
        %1790 = vdwg.mxu0
        %1791 = vmatpush.bf16.msra.mxu0 %v1596
        %1792 = vmatpush.bf16.msra.mxu0 %v1590
        %1793 = vmatpush.bf16.msra.mxu0 %v1584
        %1794 = vmatpush.bf16.msra.mxu0 %v1578
        %1795 = vmatpush.bf16.msra.mxu0 %v1572
        %1796 = vmatpush.bf16.msra.mxu0 %v1566
        %1797 = vmatpush.bf16.msra.mxu0 %v1560
        %1798 = vmatpush.bf16.msra.mxu0 %v1554
        %1799 = vmatmul.bf16.gmra.mxu0 %v1103
        %v1800 = vpop.f32.mrf.mxu0
        %v1801 = vadd.f32 %v1782, %v1800
        %v1802 = vpop.f32.mrf.mxu0
        %v1803 = vadd.f32 %v1784, %v1802
        %1804 = vmatmul.bf16.gmra.mxu0 %v1105
        %v1805 = vpop.f32.mrf.mxu0
        %v1806 = vadd.f32 %v1787, %v1805
        %v1807 = vpop.f32.mrf.mxu0
        %v1808 = vadd.f32 %v1789, %v1807
        %1809 = vdwg.mxu0
        %1810 = vmatpush.bf16.msra.mxu0 %v1549
        %1811 = vmatpush.bf16.msra.mxu0 %v1543
        %1812 = vmatpush.bf16.msra.mxu0 %v1537
        %1813 = vmatpush.bf16.msra.mxu0 %v1531
        %1814 = vmatpush.bf16.msra.mxu0 %v1525
        %1815 = vmatpush.bf16.msra.mxu0 %v1519
        %1816 = vmatpush.bf16.msra.mxu0 %v1513
        %1817 = vmatpush.bf16.msra.mxu0 %v1507
        %1818 = vmatmul.bf16.gmra.mxu0 %v1102
        %v1819 = vpop.f32.mrf.mxu0
        %v1820 = vadd.f32 %v1207, %v1819
        %v1821 = vpop.f32.mrf.mxu0
        %v1822 = vadd.f32 %v1207, %v1821
        %1823 = vmatmul.bf16.gmra.mxu0 %v1104
        %v1824 = vpop.f32.mrf.mxu0
        %v1825 = vadd.f32 %v1207, %v1824
        %v1826 = vpop.f32.mrf.mxu0
        %v1827 = vadd.f32 %v1207, %v1826
        %1828 = vdwg.mxu0
        %1829 = vmatpush.bf16.msra.mxu0 %v1597
        %1830 = vmatpush.bf16.msra.mxu0 %v1591
        %1831 = vmatpush.bf16.msra.mxu0 %v1585
        %1832 = vmatpush.bf16.msra.mxu0 %v1579
        %1833 = vmatpush.bf16.msra.mxu0 %v1573
        %1834 = vmatpush.bf16.msra.mxu0 %v1567
        %1835 = vmatpush.bf16.msra.mxu0 %v1561
        %1836 = vmatpush.bf16.msra.mxu0 %v1555
        %1837 = vmatmul.bf16.gmra.mxu0 %v1103
        %v1838 = vpop.f32.mrf.mxu0
        %v1839 = vadd.f32 %v1820, %v1838
        %v1840 = vpop.f32.mrf.mxu0
        %v1841 = vadd.f32 %v1822, %v1840
        %1842 = vmatmul.bf16.gmra.mxu0 %v1105
        %v1843 = vpop.f32.mrf.mxu0
        %v1844 = vadd.f32 %v1825, %v1843
        %v1845 = vpop.f32.mrf.mxu0
        %v1846 = vadd.f32 %v1827, %v1845
        %1847 = vdwg.mxu0
        %1848 = vmatpush.bf16.msra.mxu0 %v1550
        %1849 = vmatpush.bf16.msra.mxu0 %v1544
        %1850 = vmatpush.bf16.msra.mxu0 %v1538
        %1851 = vmatpush.bf16.msra.mxu0 %v1532
        %1852 = vmatpush.bf16.msra.mxu0 %v1526
        %1853 = vmatpush.bf16.msra.mxu0 %v1520
        %1854 = vmatpush.bf16.msra.mxu0 %v1514
        %1855 = vmatpush.bf16.msra.mxu0 %v1508
        %1856 = vmatmul.bf16.gmra.mxu0 %v1102
        %v1857 = vpop.f32.mrf.mxu0
        %v1858 = vadd.f32 %v1208, %v1857
        %v1859 = vpop.f32.mrf.mxu0
        %v1860 = vadd.f32 %v1208, %v1859
        %1861 = vmatmul.bf16.gmra.mxu0 %v1104
        %v1862 = vpop.f32.mrf.mxu0
        %v1863 = vadd.f32 %v1208, %v1862
        %v1864 = vpop.f32.mrf.mxu0
        %v1865 = vadd.f32 %v1208, %v1864
        %1866 = vdwg.mxu0
        %1867 = vmatpush.bf16.msra.mxu0 %v1598
        %1868 = vmatpush.bf16.msra.mxu0 %v1592
        %1869 = vmatpush.bf16.msra.mxu0 %v1586
        %1870 = vmatpush.bf16.msra.mxu0 %v1580
        %1871 = vmatpush.bf16.msra.mxu0 %v1574
        %1872 = vmatpush.bf16.msra.mxu0 %v1568
        %1873 = vmatpush.bf16.msra.mxu0 %v1562
        %1874 = vmatpush.bf16.msra.mxu0 %v1556
        %1875 = vmatmul.bf16.gmra.mxu0 %v1103
        %v1876 = vpop.f32.mrf.mxu0
        %v1877 = vadd.f32 %v1858, %v1876
        %v1878 = vpop.f32.mrf.mxu0
        %v1879 = vadd.f32 %v1860, %v1878
        %1880 = vmatmul.bf16.gmra.mxu0 %v1105
        %v1881 = vpop.f32.mrf.mxu0
        %v1882 = vadd.f32 %v1863, %v1881
        %v1883 = vpop.f32.mrf.mxu0
        %v1884 = vadd.f32 %v1865, %v1883
        %1885 = vdwg.mxu0
        %1886 = vmatpush.bf16.msra.mxu0 %v1551
        %1887 = vmatpush.bf16.msra.mxu0 %v1545
        %1888 = vmatpush.bf16.msra.mxu0 %v1539
        %1889 = vmatpush.bf16.msra.mxu0 %v1533
        %1890 = vmatpush.bf16.msra.mxu0 %v1527
        %1891 = vmatpush.bf16.msra.mxu0 %v1521
        %1892 = vmatpush.bf16.msra.mxu0 %v1515
        %1893 = vmatpush.bf16.msra.mxu0 %v1509
        %1894 = vmatmul.bf16.gmra.mxu0 %v1102
        %v1895 = vpop.f32.mrf.mxu0
        %v1896 = vadd.f32 %v1209, %v1895
        %v1897 = vpop.f32.mrf.mxu0
        %v1898 = vadd.f32 %v1209, %v1897
        %1899 = vmatmul.bf16.gmra.mxu0 %v1104
        %v1900 = vpop.f32.mrf.mxu0
        %v1901 = vadd.f32 %v1209, %v1900
        %v1902 = vpop.f32.mrf.mxu0
        %v1903 = vadd.f32 %v1209, %v1902
        %1904 = vdwg.mxu0
        %1905 = vmatpush.bf16.msra.mxu0 %v1599
        %1906 = vmatpush.bf16.msra.mxu0 %v1593
        %1907 = vmatpush.bf16.msra.mxu0 %v1587
        %1908 = vmatpush.bf16.msra.mxu0 %v1581
        %1909 = vmatpush.bf16.msra.mxu0 %v1575
        %1910 = vmatpush.bf16.msra.mxu0 %v1569
        %1911 = vmatpush.bf16.msra.mxu0 %v1563
        %1912 = vmatpush.bf16.msra.mxu0 %v1557
        %1913 = vmatmul.bf16.gmra.mxu0 %v1103
        %v1914 = vpop.f32.mrf.mxu0
        %v1915 = vadd.f32 %v1896, %v1914
        %v1916 = vpop.f32.mrf.mxu0
        %v1917 = vadd.f32 %v1898, %v1916
        %1918 = vmatmul.bf16.gmra.mxu0 %v1105
        %v1919 = vpop.f32.mrf.mxu0
        %v1920 = vadd.f32 %v1901, %v1919
        %v1921 = vpop.f32.mrf.mxu0
        %v1922 = vadd.f32 %v1903, %v1921
        %1923 = vdwg.mxu0
        %1924 = vxpose.xlu0.b32.start [1/16] %v1725, 128
        %1925 = vxpose.xlu0.b32.cont [2/16] %v1727, 128
        %1926 = vxpose.xlu0.b32.cont [3/16] %v1730, 128
        %1927 = vxpose.xlu0.b32.cont [4/16] %v1732, 128
        %1928 = vxpose.xlu0.b32.cont [5/16] 0.0, 128
        %1929 = vxpose.xlu0.b32.cont [6/16] 0.0, 128
        %1930 = vxpose.xlu0.b32.cont [7/16] 0.0, 128
        %1931 = vxpose.xlu0.b32.cont [8/16] 0.0, 128
        %1932 = vxpose.xlu0.b32.cont [9/16] 0.0, 128
        %1933 = vxpose.xlu0.b32.cont [10/16] 0.0, 128
        %1934 = vxpose.xlu0.b32.cont [11/16] 0.0, 128
        %1935 = vxpose.xlu0.b32.cont [12/16] 0.0, 128
        %1936 = vxpose.xlu0.b32.cont [13/16] 0.0, 128
        %1937 = vxpose.xlu0.b32.cont [14/16] 0.0, 128
        %1938 = vxpose.xlu0.b32.cont [15/16] 0.0, 128
        %1939 = vxpose.xlu0.b32.end [16/16] 0.0, 128
        %v1940 = vpop.trf.xlu0
        %v1941 = vpop.trf.xlu0
        %v1942 = vpop.trf.xlu0
        %v1943 = vpop.trf.xlu0
        %v1944 = vpop.trf.xlu0
        %v1945 = vpop.trf.xlu0
        %v1946 = vpop.trf.xlu0
        %v1947 = vpop.trf.xlu0
        %v1948 = vpop.trf.xlu0
        %v1949 = vpop.trf.xlu0
        %v1950 = vpop.trf.xlu0
        %v1951 = vpop.trf.xlu0
        %v1952 = vpop.trf.xlu0
        %v1953 = vpop.trf.xlu0
        %v1954 = vpop.trf.xlu0
        %v1955 = vpop.trf.xlu0
        %1956 = vxpose.xlu0.b32.start [1/16] %v1763, 128
        %1957 = vxpose.xlu0.b32.cont [2/16] %v1765, 128
        %1958 = vxpose.xlu0.b32.cont [3/16] %v1768, 128
        %1959 = vxpose.xlu0.b32.cont [4/16] %v1770, 128
        %1960 = vxpose.xlu0.b32.cont [5/16] 0.0, 128
        %1961 = vxpose.xlu0.b32.cont [6/16] 0.0, 128
        %1962 = vxpose.xlu0.b32.cont [7/16] 0.0, 128
        %1963 = vxpose.xlu0.b32.cont [8/16] 0.0, 128
        %1964 = vxpose.xlu0.b32.cont [9/16] 0.0, 128
        %1965 = vxpose.xlu0.b32.cont [10/16] 0.0, 128
        %1966 = vxpose.xlu0.b32.cont [11/16] 0.0, 128
        %1967 = vxpose.xlu0.b32.cont [12/16] 0.0, 128
        %1968 = vxpose.xlu0.b32.cont [13/16] 0.0, 128
        %1969 = vxpose.xlu0.b32.cont [14/16] 0.0, 128
        %1970 = vxpose.xlu0.b32.cont [15/16] 0.0, 128
        %1971 = vxpose.xlu0.b32.end [16/16] 0.0, 128
        %v1972 = vpop.trf.xlu0
        %v1973 = vpop.trf.xlu0
        %v1974 = vpop.trf.xlu0
        %v1975 = vpop.trf.xlu0
        %v1976 = vpop.trf.xlu0
        %v1977 = vpop.trf.xlu0
        %v1978 = vpop.trf.xlu0
        %v1979 = vpop.trf.xlu0
        %v1980 = vpop.trf.xlu0
        %v1981 = vpop.trf.xlu0
        %v1982 = vpop.trf.xlu0
        %v1983 = vpop.trf.xlu0
        %v1984 = vpop.trf.xlu0
        %v1985 = vpop.trf.xlu0
        %v1986 = vpop.trf.xlu0
        %v1987 = vpop.trf.xlu0
        %1988 = vxpose.xlu0.b32.start [1/16] %v1801, 128
        %1989 = vxpose.xlu0.b32.cont [2/16] %v1803, 128
        %1990 = vxpose.xlu0.b32.cont [3/16] %v1806, 128
        %1991 = vxpose.xlu0.b32.cont [4/16] %v1808, 128
        %1992 = vxpose.xlu0.b32.cont [5/16] 0.0, 128
        %1993 = vxpose.xlu0.b32.cont [6/16] 0.0, 128
        %1994 = vxpose.xlu0.b32.cont [7/16] 0.0, 128
        %1995 = vxpose.xlu0.b32.cont [8/16] 0.0, 128
        %1996 = vxpose.xlu0.b32.cont [9/16] 0.0, 128
        %1997 = vxpose.xlu0.b32.cont [10/16] 0.0, 128
        %1998 = vxpose.xlu0.b32.cont [11/16] 0.0, 128
        %1999 = vxpose.xlu0.b32.cont [12/16] 0.0, 128
        %2000 = vxpose.xlu0.b32.cont [13/16] 0.0, 128
        %2001 = vxpose.xlu0.b32.cont [14/16] 0.0, 128
        %2002 = vxpose.xlu0.b32.cont [15/16] 0.0, 128
        %2003 = vxpose.xlu0.b32.end [16/16] 0.0, 128
        %v2004 = vpop.trf.xlu0
        %v2005 = vpop.trf.xlu0
        %v2006 = vpop.trf.xlu0
        %v2007 = vpop.trf.xlu0
        %v2008 = vpop.trf.xlu0
        %v2009 = vpop.trf.xlu0
        %v2010 = vpop.trf.xlu0
        %v2011 = vpop.trf.xlu0
        %v2012 = vpop.trf.xlu0
        %v2013 = vpop.trf.xlu0
        %v2014 = vpop.trf.xlu0
        %v2015 = vpop.trf.xlu0
        %v2016 = vpop.trf.xlu0
        %v2017 = vpop.trf.xlu0
        %v2018 = vpop.trf.xlu0
        %v2019 = vpop.trf.xlu0
        %2020 = vxpose.xlu0.b32.start [1/16] %v1839, 128
        %2021 = vxpose.xlu0.b32.cont [2/16] %v1841, 128
        %2022 = vxpose.xlu0.b32.cont [3/16] %v1844, 128
        %2023 = vxpose.xlu0.b32.cont [4/16] %v1846, 128
        %2024 = vxpose.xlu0.b32.cont [5/16] 0.0, 128
        %2025 = vxpose.xlu0.b32.cont [6/16] 0.0, 128
        %2026 = vxpose.xlu0.b32.cont [7/16] 0.0, 128
        %2027 = vxpose.xlu0.b32.cont [8/16] 0.0, 128
        %2028 = vxpose.xlu0.b32.cont [9/16] 0.0, 128
        %2029 = vxpose.xlu0.b32.cont [10/16] 0.0, 128
        %2030 = vxpose.xlu0.b32.cont [11/16] 0.0, 128
        %2031 = vxpose.xlu0.b32.cont [12/16] 0.0, 128
        %2032 = vxpose.xlu0.b32.cont [13/16] 0.0, 128
        %2033 = vxpose.xlu0.b32.cont [14/16] 0.0, 128
        %2034 = vxpose.xlu0.b32.cont [15/16] 0.0, 128
        %2035 = vxpose.xlu0.b32.end [16/16] 0.0, 128
        %v2036 = vpop.trf.xlu0
        %v2037 = vpop.trf.xlu0
        %v2038 = vpop.trf.xlu0
        %v2039 = vpop.trf.xlu0
        %v2040 = vpop.trf.xlu0
        %v2041 = vpop.trf.xlu0
        %v2042 = vpop.trf.xlu0
        %v2043 = vpop.trf.xlu0
        %v2044 = vpop.trf.xlu0
        %v2045 = vpop.trf.xlu0
        %v2046 = vpop.trf.xlu0
        %v2047 = vpop.trf.xlu0
        %v2048 = vpop.trf.xlu0
        %v2049 = vpop.trf.xlu0
        %v2050 = vpop.trf.xlu0
        %v2051 = vpop.trf.xlu0
        %2052 = vxpose.xlu0.b32.start [1/16] %v1877, 128
        %2053 = vxpose.xlu0.b32.cont [2/16] %v1879, 128
        %2054 = vxpose.xlu0.b32.cont [3/16] %v1882, 128
        %2055 = vxpose.xlu0.b32.cont [4/16] %v1884, 128
        %2056 = vxpose.xlu0.b32.cont [5/16] 0.0, 128
        %2057 = vxpose.xlu0.b32.cont [6/16] 0.0, 128
        %2058 = vxpose.xlu0.b32.cont [7/16] 0.0, 128
        %2059 = vxpose.xlu0.b32.cont [8/16] 0.0, 128
        %2060 = vxpose.xlu0.b32.cont [9/16] 0.0, 128
        %2061 = vxpose.xlu0.b32.cont [10/16] 0.0, 128
        %2062 = vxpose.xlu0.b32.cont [11/16] 0.0, 128
        %2063 = vxpose.xlu0.b32.cont [12/16] 0.0, 128
        %2064 = vxpose.xlu0.b32.cont [13/16] 0.0, 128
        %2065 = vxpose.xlu0.b32.cont [14/16] 0.0, 128
        %2066 = vxpose.xlu0.b32.cont [15/16] 0.0, 128
        %2067 = vxpose.xlu0.b32.end [16/16] 0.0, 128
        %v2068 = vpop.trf.xlu0
        %v2069 = vpop.trf.xlu0
        %v2070 = vpop.trf.xlu0
        %v2071 = vpop.trf.xlu0
        %v2072 = vpop.trf.xlu0
        %v2073 = vpop.trf.xlu0
        %v2074 = vpop.trf.xlu0
        %v2075 = vpop.trf.xlu0
        %v2076 = vpop.trf.xlu0
        %v2077 = vpop.trf.xlu0
        %v2078 = vpop.trf.xlu0
        %v2079 = vpop.trf.xlu0
        %v2080 = vpop.trf.xlu0
        %v2081 = vpop.trf.xlu0
        %v2082 = vpop.trf.xlu0
        %v2083 = vpop.trf.xlu0
        %2084 = vxpose.xlu0.b32.start [1/16] %v1915, 128
        %2085 = vxpose.xlu0.b32.cont [2/16] %v1917, 128
        %2086 = vxpose.xlu0.b32.cont [3/16] %v1920, 128
        %2087 = vxpose.xlu0.b32.cont [4/16] %v1922, 128
        %2088 = vxpose.xlu0.b32.cont [5/16] 0.0, 128
        %2089 = vxpose.xlu0.b32.cont [6/16] 0.0, 128
        %2090 = vxpose.xlu0.b32.cont [7/16] 0.0, 128
        %2091 = vxpose.xlu0.b32.cont [8/16] 0.0, 128
        %2092 = vxpose.xlu0.b32.cont [9/16] 0.0, 128
        %2093 = vxpose.xlu0.b32.cont [10/16] 0.0, 128
        %2094 = vxpose.xlu0.b32.cont [11/16] 0.0, 128
        %2095 = vxpose.xlu0.b32.cont [12/16] 0.0, 128
        %2096 = vxpose.xlu0.b32.cont [13/16] 0.0, 128
        %2097 = vxpose.xlu0.b32.cont [14/16] 0.0, 128
        %2098 = vxpose.xlu0.b32.cont [15/16] 0.0, 128
        %2099 = vxpose.xlu0.b32.end [16/16] 0.0, 128
        %v2100 = vpop.trf.xlu0
        %v2101 = vpop.trf.xlu0
        %v2102 = vpop.trf.xlu0
        %v2103 = vpop.trf.xlu0
        %v2104 = vpop.trf.xlu0
        %v2105 = vpop.trf.xlu0
        %v2106 = vpop.trf.xlu0
        %v2107 = vpop.trf.xlu0
        %v2108 = vpop.trf.xlu0
        %v2109 = vpop.trf.xlu0
        %v2110 = vpop.trf.xlu0
        %v2111 = vpop.trf.xlu0
        %v2112 = vpop.trf.xlu0
        %v2113 = vpop.trf.xlu0
        %v2114 = vpop.trf.xlu0
        %v2115 = vpop.trf.xlu0
        %2116 = vxpose.xlu0.b32.start [1/16] %v1940, 128
        %2117 = vxpose.xlu0.b32.cont [2/16] %v1941, 128
        %2118 = vxpose.xlu0.b32.cont [3/16] %v1942, 128
        %2119 = vxpose.xlu0.b32.cont [4/16] %v1943, 128
        %2120 = vxpose.xlu0.b32.cont [5/16] 0.0, 128
        %2121 = vxpose.xlu0.b32.cont [6/16] 0.0, 128
        %2122 = vxpose.xlu0.b32.cont [7/16] 0.0, 128
        %2123 = vxpose.xlu0.b32.cont [8/16] 0.0, 128
        %2124 = vxpose.xlu0.b32.cont [9/16] 0.0, 128
        %2125 = vxpose.xlu0.b32.cont [10/16] 0.0, 128
        %2126 = vxpose.xlu0.b32.cont [11/16] 0.0, 128
        %2127 = vxpose.xlu0.b32.cont [12/16] 0.0, 128
        %2128 = vxpose.xlu0.b32.cont [13/16] 0.0, 128
        %2129 = vxpose.xlu0.b32.cont [14/16] 0.0, 128
        %2130 = vxpose.xlu0.b32.cont [15/16] 0.0, 128
        %2131 = vxpose.xlu0.b32.end [16/16] 0.0, 128
        %v2132 = vpop.trf.xlu0
        %v2133 = vpop.trf.xlu0
        %v2134 = vpop.trf.xlu0
        %v2135 = vpop.trf.xlu0
        %v2136 = vpop.trf.xlu0
        %v2137 = vpop.trf.xlu0
        %v2138 = vpop.trf.xlu0
        %v2139 = vpop.trf.xlu0
        %v2140 = vpop.trf.xlu0
        %v2141 = vpop.trf.xlu0
        %v2142 = vpop.trf.xlu0
        %v2143 = vpop.trf.xlu0
        %v2144 = vpop.trf.xlu0
        %v2145 = vpop.trf.xlu0
        %v2146 = vpop.trf.xlu0
        %v2147 = vpop.trf.xlu0
        %2148 = vxpose.xlu0.b32.start [1/16] %v1944, 128
        %2149 = vxpose.xlu0.b32.cont [2/16] %v1945, 128
        %2150 = vxpose.xlu0.b32.cont [3/16] %v1946, 128
        %2151 = vxpose.xlu0.b32.cont [4/16] %v1947, 128
        %2152 = vxpose.xlu0.b32.cont [5/16] 0.0, 128
        %2153 = vxpose.xlu0.b32.cont [6/16] 0.0, 128
        %2154 = vxpose.xlu0.b32.cont [7/16] 0.0, 128
        %2155 = vxpose.xlu0.b32.cont [8/16] 0.0, 128
        %2156 = vxpose.xlu0.b32.cont [9/16] 0.0, 128
        %2157 = vxpose.xlu0.b32.cont [10/16] 0.0, 128
        %2158 = vxpose.xlu0.b32.cont [11/16] 0.0, 128
        %2159 = vxpose.xlu0.b32.cont [12/16] 0.0, 128
        %2160 = vxpose.xlu0.b32.cont [13/16] 0.0, 128
        %2161 = vxpose.xlu0.b32.cont [14/16] 0.0, 128
        %2162 = vxpose.xlu0.b32.cont [15/16] 0.0, 128
        %2163 = vxpose.xlu0.b32.end [16/16] 0.0, 128
        %v2164 = vpop.trf.xlu0
        %v2165 = vpop.trf.xlu0
        %v2166 = vpop.trf.xlu0
        %v2167 = vpop.trf.xlu0
        %v2168 = vpop.trf.xlu0
        %v2169 = vpop.trf.xlu0
        %v2170 = vpop.trf.xlu0
        %v2171 = vpop.trf.xlu0
        %v2172 = vpop.trf.xlu0
        %v2173 = vpop.trf.xlu0
        %v2174 = vpop.trf.xlu0
        %v2175 = vpop.trf.xlu0
        %v2176 = vpop.trf.xlu0
        %v2177 = vpop.trf.xlu0
        %v2178 = vpop.trf.xlu0
        %v2179 = vpop.trf.xlu0
        %2180 = vxpose.xlu0.b32.start [1/16] %v1948, 128
        %2181 = vxpose.xlu0.b32.cont [2/16] %v1949, 128
        %2182 = vxpose.xlu0.b32.cont [3/16] %v1950, 128
        %2183 = vxpose.xlu0.b32.cont [4/16] %v1951, 128
        %2184 = vxpose.xlu0.b32.cont [5/16] 0.0, 128
        %2185 = vxpose.xlu0.b32.cont [6/16] 0.0, 128
        %2186 = vxpose.xlu0.b32.cont [7/16] 0.0, 128
        %2187 = vxpose.xlu0.b32.cont [8/16] 0.0, 128
        %2188 = vxpose.xlu0.b32.cont [9/16] 0.0, 128
        %2189 = vxpose.xlu0.b32.cont [10/16] 0.0, 128
        %2190 = vxpose.xlu0.b32.cont [11/16] 0.0, 128
        %2191 = vxpose.xlu0.b32.cont [12/16] 0.0, 128
        %2192 = vxpose.xlu0.b32.cont [13/16] 0.0, 128
        %2193 = vxpose.xlu0.b32.cont [14/16] 0.0, 128
        %2194 = vxpose.xlu0.b32.cont [15/16] 0.0, 128
        %2195 = vxpose.xlu0.b32.end [16/16] 0.0, 128
        %v2196 = vpop.trf.xlu0
        %v2197 = vpop.trf.xlu0
        %v2198 = vpop.trf.xlu0
        %v2199 = vpop.trf.xlu0
        %v2200 = vpop.trf.xlu0
        %v2201 = vpop.trf.xlu0
        %v2202 = vpop.trf.xlu0
        %v2203 = vpop.trf.xlu0
        %v2204 = vpop.trf.xlu0
        %v2205 = vpop.trf.xlu0
        %v2206 = vpop.trf.xlu0
        %v2207 = vpop.trf.xlu0
        %v2208 = vpop.trf.xlu0
        %v2209 = vpop.trf.xlu0
        %v2210 = vpop.trf.xlu0
        %v2211 = vpop.trf.xlu0
        %2212 = vxpose.xlu0.b32.start [1/16] %v1952, 128
        %2213 = vxpose.xlu0.b32.cont [2/16] %v1953, 128
        %2214 = vxpose.xlu0.b32.cont [3/16] %v1954, 128
        %2215 = vxpose.xlu0.b32.cont [4/16] %v1955, 128
        %2216 = vxpose.xlu0.b32.cont [5/16] 0.0, 128
        %2217 = vxpose.xlu0.b32.cont [6/16] 0.0, 128
        %2218 = vxpose.xlu0.b32.cont [7/16] 0.0, 128
        %2219 = vxpose.xlu0.b32.cont [8/16] 0.0, 128
        %2220 = vxpose.xlu0.b32.cont [9/16] 0.0, 128
        %2221 = vxpose.xlu0.b32.cont [10/16] 0.0, 128
        %2222 = vxpose.xlu0.b32.cont [11/16] 0.0, 128
        %2223 = vxpose.xlu0.b32.cont [12/16] 0.0, 128
        %2224 = vxpose.xlu0.b32.cont [13/16] 0.0, 128
        %2225 = vxpose.xlu0.b32.cont [14/16] 0.0, 128
        %2226 = vxpose.xlu0.b32.cont [15/16] 0.0, 128
        %2227 = vxpose.xlu0.b32.end [16/16] 0.0, 128
        %v2228 = vpop.trf.xlu0
        %v2229 = vpop.trf.xlu0
        %v2230 = vpop.trf.xlu0
        %v2231 = vpop.trf.xlu0
        %v2232 = vpop.trf.xlu0
        %v2233 = vpop.trf.xlu0
        %v2234 = vpop.trf.xlu0
        %v2235 = vpop.trf.xlu0
        %v2236 = vpop.trf.xlu0
        %v2237 = vpop.trf.xlu0
        %v2238 = vpop.trf.xlu0
        %v2239 = vpop.trf.xlu0
        %v2240 = vpop.trf.xlu0
        %v2241 = vpop.trf.xlu0
        %v2242 = vpop.trf.xlu0
        %v2243 = vpop.trf.xlu0
        %2244 = vxpose.xlu0.b32.start [1/16] %v1972, 128
        %2245 = vxpose.xlu0.b32.cont [2/16] %v1973, 128
        %2246 = vxpose.xlu0.b32.cont [3/16] %v1974, 128
        %2247 = vxpose.xlu0.b32.cont [4/16] %v1975, 128
        %2248 = vxpose.xlu0.b32.cont [5/16] 0.0, 128
        %2249 = vxpose.xlu0.b32.cont [6/16] 0.0, 128
        %2250 = vxpose.xlu0.b32.cont [7/16] 0.0, 128
        %2251 = vxpose.xlu0.b32.cont [8/16] 0.0, 128
        %2252 = vxpose.xlu0.b32.cont [9/16] 0.0, 128
        %2253 = vxpose.xlu0.b32.cont [10/16] 0.0, 128
        %2254 = vxpose.xlu0.b32.cont [11/16] 0.0, 128
        %2255 = vxpose.xlu0.b32.cont [12/16] 0.0, 128
        %2256 = vxpose.xlu0.b32.cont [13/16] 0.0, 128
        %2257 = vxpose.xlu0.b32.cont [14/16] 0.0, 128
        %2258 = vxpose.xlu0.b32.cont [15/16] 0.0, 128
        %2259 = vxpose.xlu0.b32.end [16/16] 0.0, 128
        %v2260 = vpop.trf.xlu0
        %v2261 = vpop.trf.xlu0
        %v2262 = vpop.trf.xlu0
        %v2263 = vpop.trf.xlu0
        %v2264 = vpop.trf.xlu0
        %v2265 = vpop.trf.xlu0
        %v2266 = vpop.trf.xlu0
        %v2267 = vpop.trf.xlu0
        %v2268 = vpop.trf.xlu0
        %v2269 = vpop.trf.xlu0
        %v2270 = vpop.trf.xlu0
        %v2271 = vpop.trf.xlu0
        %v2272 = vpop.trf.xlu0
        %v2273 = vpop.trf.xlu0
        %v2274 = vpop.trf.xlu0
        %v2275 = vpop.trf.xlu0
        %2276 = vxpose.xlu0.b32.start [1/16] %v1976, 128
        %2277 = vxpose.xlu0.b32.cont [2/16] %v1977, 128
        %2278 = vxpose.xlu0.b32.cont [3/16] %v1978, 128
        %2279 = vxpose.xlu0.b32.cont [4/16] %v1979, 128
        %2280 = vxpose.xlu0.b32.cont [5/16] 0.0, 128
        %2281 = vxpose.xlu0.b32.cont [6/16] 0.0, 128
        %2282 = vxpose.xlu0.b32.cont [7/16] 0.0, 128
        %2283 = vxpose.xlu0.b32.cont [8/16] 0.0, 128
        %2284 = vxpose.xlu0.b32.cont [9/16] 0.0, 128
        %2285 = vxpose.xlu0.b32.cont [10/16] 0.0, 128
        %2286 = vxpose.xlu0.b32.cont [11/16] 0.0, 128
        %2287 = vxpose.xlu0.b32.cont [12/16] 0.0, 128
        %2288 = vxpose.xlu0.b32.cont [13/16] 0.0, 128
        %2289 = vxpose.xlu0.b32.cont [14/16] 0.0, 128
        %2290 = vxpose.xlu0.b32.cont [15/16] 0.0, 128
        %2291 = vxpose.xlu0.b32.end [16/16] 0.0, 128
        %v2292 = vpop.trf.xlu0
        %v2293 = vpop.trf.xlu0
        %v2294 = vpop.trf.xlu0
        %v2295 = vpop.trf.xlu0
        %v2296 = vpop.trf.xlu0
        %v2297 = vpop.trf.xlu0
        %v2298 = vpop.trf.xlu0
        %v2299 = vpop.trf.xlu0
        %v2300 = vpop.trf.xlu0
        %v2301 = vpop.trf.xlu0
        %v2302 = vpop.trf.xlu0
        %v2303 = vpop.trf.xlu0
        %v2304 = vpop.trf.xlu0
        %v2305 = vpop.trf.xlu0
        %v2306 = vpop.trf.xlu0
        %v2307 = vpop.trf.xlu0
        %2308 = vxpose.xlu0.b32.start [1/16] %v1980, 128
        %2309 = vxpose.xlu0.b32.cont [2/16] %v1981, 128
        %2310 = vxpose.xlu0.b32.cont [3/16] %v1982, 128
        %2311 = vxpose.xlu0.b32.cont [4/16] %v1983, 128
        %2312 = vxpose.xlu0.b32.cont [5/16] 0.0, 128
        %2313 = vxpose.xlu0.b32.cont [6/16] 0.0, 128
        %2314 = vxpose.xlu0.b32.cont [7/16] 0.0, 128
        %2315 = vxpose.xlu0.b32.cont [8/16] 0.0, 128
        %2316 = vxpose.xlu0.b32.cont [9/16] 0.0, 128
        %2317 = vxpose.xlu0.b32.cont [10/16] 0.0, 128
        %2318 = vxpose.xlu0.b32.cont [11/16] 0.0, 128
        %2319 = vxpose.xlu0.b32.cont [12/16] 0.0, 128
        %2320 = vxpose.xlu0.b32.cont [13/16] 0.0, 128
        %2321 = vxpose.xlu0.b32.cont [14/16] 0.0, 128
        %2322 = vxpose.xlu0.b32.cont [15/16] 0.0, 128
        %2323 = vxpose.xlu0.b32.end [16/16] 0.0, 128
        %v2324 = vpop.trf.xlu0
        %v2325 = vpop.trf.xlu0
        %v2326 = vpop.trf.xlu0
        %v2327 = vpop.trf.xlu0
        %v2328 = vpop.trf.xlu0
        %v2329 = vpop.trf.xlu0
        %v2330 = vpop.trf.xlu0
        %v2331 = vpop.trf.xlu0
        %v2332 = vpop.trf.xlu0
        %v2333 = vpop.trf.xlu0
        %v2334 = vpop.trf.xlu0
        %v2335 = vpop.trf.xlu0
        %v2336 = vpop.trf.xlu0
        %v2337 = vpop.trf.xlu0
        %v2338 = vpop.trf.xlu0
        %v2339 = vpop.trf.xlu0
        %2340 = vxpose.xlu0.b32.start [1/16] %v1984, 128
        %2341 = vxpose.xlu0.b32.cont [2/16] %v1985, 128
        %2342 = vxpose.xlu0.b32.cont [3/16] %v1986, 128
        %2343 = vxpose.xlu0.b32.cont [4/16] %v1987, 128
        %2344 = vxpose.xlu0.b32.cont [5/16] 0.0, 128
        %2345 = vxpose.xlu0.b32.cont [6/16] 0.0, 128
        %2346 = vxpose.xlu0.b32.cont [7/16] 0.0, 128
        %2347 = vxpose.xlu0.b32.cont [8/16] 0.0, 128
        %2348 = vxpose.xlu0.b32.cont [9/16] 0.0, 128
        %2349 = vxpose.xlu0.b32.cont [10/16] 0.0, 128
        %2350 = vxpose.xlu0.b32.cont [11/16] 0.0, 128
        %2351 = vxpose.xlu0.b32.cont [12/16] 0.0, 128
        %2352 = vxpose.xlu0.b32.cont [13/16] 0.0, 128
        %2353 = vxpose.xlu0.b32.cont [14/16] 0.0, 128
        %2354 = vxpose.xlu0.b32.cont [15/16] 0.0, 128
        %2355 = vxpose.xlu0.b32.end [16/16] 0.0, 128
        %v2356 = vpop.trf.xlu0
        %v2357 = vpop.trf.xlu0
        %v2358 = vpop.trf.xlu0
        %v2359 = vpop.trf.xlu0
        %v2360 = vpop.trf.xlu0
        %v2361 = vpop.trf.xlu0
        %v2362 = vpop.trf.xlu0
        %v2363 = vpop.trf.xlu0
        %v2364 = vpop.trf.xlu0
        %v2365 = vpop.trf.xlu0
        %v2366 = vpop.trf.xlu0
        %v2367 = vpop.trf.xlu0
        %v2368 = vpop.trf.xlu0
        %v2369 = vpop.trf.xlu0
        %v2370 = vpop.trf.xlu0
        %v2371 = vpop.trf.xlu0
        %v2372 = vpack.c.bf16 %v2132, %v2132
        %v2373 = vpack.c.bf16 %v2133, %v2133
        %v2374 = vpack.c.bf16 %v2134, %v2134
        %v2375 = vpack.c.bf16 %v2135, %v2135
        %v2376 = vpack.c.bf16 %v2164, %v2164
        %v2377 = vpack.c.bf16 %v2165, %v2165
        %v2378 = vpack.c.bf16 %v2166, %v2166
        %v2379 = vpack.c.bf16 %v2167, %v2167
        %v2380 = vpack.c.bf16 %v2196, %v2196
        %v2381 = vpack.c.bf16 %v2197, %v2197
        %v2382 = vpack.c.bf16 %v2198, %v2198
        %v2383 = vpack.c.bf16 %v2199, %v2199
        %v2384 = vpack.c.bf16 %v2228, %v2228
        %v2385 = vpack.c.bf16 %v2229, %v2229
        %v2386 = vpack.c.bf16 %v2230, %v2230
        %v2387 = vpack.c.bf16 %v2231, %v2231
        %v2388 = vpack.c.bf16 %v2260, %v2260
        %v2389 = vpack.c.bf16 %v2261, %v2261
        %v2390 = vpack.c.bf16 %v2262, %v2262
        %v2391 = vpack.c.bf16 %v2263, %v2263
        %v2392 = vpack.c.bf16 %v2292, %v2292
        %v2393 = vpack.c.bf16 %v2293, %v2293
        %v2394 = vpack.c.bf16 %v2294, %v2294
        %v2395 = vpack.c.bf16 %v2295, %v2295
        %v2396 = vpack.c.bf16 %v2324, %v2324
        %v2397 = vpack.c.bf16 %v2325, %v2325
        %v2398 = vpack.c.bf16 %v2326, %v2326
        %v2399 = vpack.c.bf16 %v2327, %v2327
        %v2400 = vpack.c.bf16 %v2356, %v2356
        %v2401 = vpack.c.bf16 %v2357, %v2357
        %v2402 = vpack.c.bf16 %v2358, %v2358
        %v2403 = vpack.c.bf16 %v2359, %v2359
        %v2404 = vpack.c.bf16 %v2004, %v2004
        %v2405 = vpack.c.bf16 %v2005, %v2005
        %v2406 = vpack.c.bf16 %v2006, %v2006
        %v2407 = vpack.c.bf16 %v2007, %v2007
        %v2408 = vpack.c.bf16 %v2008, %v2008
        %v2409 = vpack.c.bf16 %v2009, %v2009
        %v2410 = vpack.c.bf16 %v2010, %v2010
        %v2411 = vpack.c.bf16 %v2011, %v2011
        %v2412 = vpack.c.bf16 %v2012, %v2012
        %v2413 = vpack.c.bf16 %v2013, %v2013
        %v2414 = vpack.c.bf16 %v2014, %v2014
        %v2415 = vpack.c.bf16 %v2015, %v2015
        %v2416 = vpack.c.bf16 %v2016, %v2016
        %v2417 = vpack.c.bf16 %v2017, %v2017
        %v2418 = vpack.c.bf16 %v2018, %v2018
        %v2419 = vpack.c.bf16 %v2019, %v2019
        %v2420 = vpack.c.bf16 %v2036, %v2036
        %v2421 = vpack.c.bf16 %v2037, %v2037
        %v2422 = vpack.c.bf16 %v2038, %v2038
        %v2423 = vpack.c.bf16 %v2039, %v2039
        %v2424 = vpack.c.bf16 %v2040, %v2040
        %v2425 = vpack.c.bf16 %v2041, %v2041
        %v2426 = vpack.c.bf16 %v2042, %v2042
        %v2427 = vpack.c.bf16 %v2043, %v2043
        %v2428 = vpack.c.bf16 %v2044, %v2044
        %v2429 = vpack.c.bf16 %v2045, %v2045
        %v2430 = vpack.c.bf16 %v2046, %v2046
        %v2431 = vpack.c.bf16 %v2047, %v2047
        %v2432 = vpack.c.bf16 %v2048, %v2048
        %v2433 = vpack.c.bf16 %v2049, %v2049
        %v2434 = vpack.c.bf16 %v2050, %v2050
        %v2435 = vpack.c.bf16 %v2051, %v2051
        %v2436 = vld [vmem:[%s1] sm:$0xff]
        %v2437 = vld [vmem:[%s1 + $0x8] sm:$0xff]
        %v2438 = vld [vmem:[%s1 + $0x10] sm:$0xff]
        %v2439 = vld [vmem:[%s1 + $0x18] sm:$0xff]
        %v2444 = vunpack.c.l.b16 %v2372
        %v2445 = vunpack.c.l.b16 %v2373
        %v2446 = vunpack.c.l.b16 %v2374
        %v2447 = vunpack.c.l.b16 %v2375
        %v2448 = vpack.c.b16 %v2445, %v2444
        %v2449 = vpack.c.b16 %v2447, %v2446
        %v2454 = vunpack.c.l.b16 %v2404
        %v2455 = vunpack.c.l.b16 %v2405
        %v2456 = vunpack.c.l.b16 %v2406
        %v2457 = vunpack.c.l.b16 %v2407
        %v2458 = vpack.c.b16 %v2455, %v2454
        %v2459 = vpack.c.b16 %v2457, %v2456
        %vm2462 = vcmask 261120
        %v2464 = vsel %vm2462, %v2448, 0
        %v2467 = vsel %vm2462, %v2449, 0
        %2469 = vmatpush.bf16.msra.mxu0 0
        %2470 = vmatpush.bf16.msra.mxu0 0
        %2471 = vmatpush.bf16.msra.mxu0 0
        %2472 = vmatpush.bf16.msra.mxu0 0
        %2473 = vmatpush.bf16.msra.mxu0 0
        %2474 = vmatpush.bf16.msra.mxu0 0
        %2475 = vmatpush.bf16.msra.mxu0 %v2459
        %2476 = vmatpush.bf16.msra.mxu0 %v2458
        %2477 = vmatmul.bf16.gmra.mxu0 %v2464
        %v2478 = vpop.f32.mrf.mxu0
        %v2479 = vadd.f32 %v2436, %v2478
        %v2480 = vpop.f32.mrf.mxu0
        %v2481 = vadd.f32 %v2437, %v2480
        %2482 = vmatmul.bf16.gmra.mxu0 %v2467
        %v2483 = vpop.f32.mrf.mxu0
        %v2484 = vadd.f32 %v2438, %v2483
        %v2485 = vpop.f32.mrf.mxu0
        %v2486 = vadd.f32 %v2439, %v2485
        %2487 = vdwg.mxu0
        %v2492 = vunpack.c.l.b16 %v2376
        %v2493 = vunpack.c.l.b16 %v2377
        %v2494 = vunpack.c.l.b16 %v2378
        %v2495 = vunpack.c.l.b16 %v2379
        %v2496 = vpack.c.b16 %v2493, %v2492
        %v2497 = vpack.c.b16 %v2495, %v2494
        %v2502 = vunpack.c.l.b16 %v2408
        %v2503 = vunpack.c.l.b16 %v2409
        %v2504 = vunpack.c.l.b16 %v2410
        %v2505 = vunpack.c.l.b16 %v2411
        %v2506 = vpack.c.b16 %v2503, %v2502
        %v2507 = vpack.c.b16 %v2505, %v2504
        %v2511 = vsel %vm2462, %v2496, 0
        %v2514 = vsel %vm2462, %v2497, 0
        %2516 = vmatpush.bf16.msra.mxu0 0
        %2517 = vmatpush.bf16.msra.mxu0 0
        %2518 = vmatpush.bf16.msra.mxu0 0
        %2519 = vmatpush.bf16.msra.mxu0 0
        %2520 = vmatpush.bf16.msra.mxu0 0
        %2521 = vmatpush.bf16.msra.mxu0 0
        %2522 = vmatpush.bf16.msra.mxu0 %v2507
        %2523 = vmatpush.bf16.msra.mxu0 %v2506
        %2524 = vmatmul.bf16.gmra.mxu0 %v2511
        %v2525 = vpop.f32.mrf.mxu0
        %v2526 = vadd.f32 %v2436, %v2525
        %v2527 = vpop.f32.mrf.mxu0
        %v2528 = vadd.f32 %v2437, %v2527
        %2529 = vmatmul.bf16.gmra.mxu0 %v2514
        %v2530 = vpop.f32.mrf.mxu0
        %v2531 = vadd.f32 %v2438, %v2530
        %v2532 = vpop.f32.mrf.mxu0
        %v2533 = vadd.f32 %v2439, %v2532
        %2534 = vdwg.mxu0
        %v2539 = vunpack.c.l.b16 %v2380
        %v2540 = vunpack.c.l.b16 %v2381
        %v2541 = vunpack.c.l.b16 %v2382
        %v2542 = vunpack.c.l.b16 %v2383
        %v2543 = vpack.c.b16 %v2540, %v2539
        %v2544 = vpack.c.b16 %v2542, %v2541
        %v2549 = vunpack.c.l.b16 %v2412
        %v2550 = vunpack.c.l.b16 %v2413
        %v2551 = vunpack.c.l.b16 %v2414
        %v2552 = vunpack.c.l.b16 %v2415
        %v2553 = vpack.c.b16 %v2550, %v2549
        %v2554 = vpack.c.b16 %v2552, %v2551
        %v2558 = vsel %vm2462, %v2543, 0
        %v2561 = vsel %vm2462, %v2544, 0
        %2563 = vmatpush.bf16.msra.mxu0 0
        %2564 = vmatpush.bf16.msra.mxu0 0
        %2565 = vmatpush.bf16.msra.mxu0 0
        %2566 = vmatpush.bf16.msra.mxu0 0
        %2567 = vmatpush.bf16.msra.mxu0 0
        %2568 = vmatpush.bf16.msra.mxu0 0
        %2569 = vmatpush.bf16.msra.mxu0 %v2554
        %2570 = vmatpush.bf16.msra.mxu0 %v2553
        %2571 = vmatmul.bf16.gmra.mxu0 %v2558
        %v2572 = vpop.f32.mrf.mxu0
        %v2573 = vadd.f32 %v2436, %v2572
        %v2574 = vpop.f32.mrf.mxu0
        %v2575 = vadd.f32 %v2437, %v2574
        %2576 = vmatmul.bf16.gmra.mxu0 %v2561
        %v2577 = vpop.f32.mrf.mxu0
        %v2578 = vadd.f32 %v2438, %v2577
        %v2579 = vpop.f32.mrf.mxu0
        %v2580 = vadd.f32 %v2439, %v2579
        %2581 = vdwg.mxu0
        %v2586 = vunpack.c.l.b16 %v2384
        %v2587 = vunpack.c.l.b16 %v2385
        %v2588 = vunpack.c.l.b16 %v2386
        %v2589 = vunpack.c.l.b16 %v2387
        %v2590 = vpack.c.b16 %v2587, %v2586
        %v2591 = vpack.c.b16 %v2589, %v2588
        %v2596 = vunpack.c.l.b16 %v2416
        %v2597 = vunpack.c.l.b16 %v2417
        %v2598 = vunpack.c.l.b16 %v2418
        %v2599 = vunpack.c.l.b16 %v2419
        %v2600 = vpack.c.b16 %v2597, %v2596
        %v2601 = vpack.c.b16 %v2599, %v2598
        %v2605 = vsel %vm2462, %v2590, 0
        %v2608 = vsel %vm2462, %v2591, 0
        %2610 = vmatpush.bf16.msra.mxu0 0
        %2611 = vmatpush.bf16.msra.mxu0 0
        %2612 = vmatpush.bf16.msra.mxu0 0
        %2613 = vmatpush.bf16.msra.mxu0 0
        %2614 = vmatpush.bf16.msra.mxu0 0
        %2615 = vmatpush.bf16.msra.mxu0 0
        %2616 = vmatpush.bf16.msra.mxu0 %v2601
        %2617 = vmatpush.bf16.msra.mxu0 %v2600
        %2618 = vmatmul.bf16.gmra.mxu0 %v2605
        %v2619 = vpop.f32.mrf.mxu0
        %v2620 = vadd.f32 %v2436, %v2619
        %v2621 = vpop.f32.mrf.mxu0
        %v2622 = vadd.f32 %v2437, %v2621
        %2623 = vmatmul.bf16.gmra.mxu0 %v2608
        %v2624 = vpop.f32.mrf.mxu0
        %v2625 = vadd.f32 %v2438, %v2624
        %v2626 = vpop.f32.mrf.mxu0
        %v2627 = vadd.f32 %v2439, %v2626
        %2628 = vdwg.mxu0
        %v2633 = vunpack.c.l.b16 %v2388
        %v2634 = vunpack.c.l.b16 %v2389
        %v2635 = vunpack.c.l.b16 %v2390
        %v2636 = vunpack.c.l.b16 %v2391
        %v2637 = vpack.c.b16 %v2634, %v2633
        %v2638 = vpack.c.b16 %v2636, %v2635
        %v2643 = vunpack.c.l.b16 %v2420
        %v2644 = vunpack.c.l.b16 %v2421
        %v2645 = vunpack.c.l.b16 %v2422
        %v2646 = vunpack.c.l.b16 %v2423
        %v2647 = vpack.c.b16 %v2644, %v2643
        %v2648 = vpack.c.b16 %v2646, %v2645
        %v2652 = vsel %vm2462, %v2637, 0
        %v2655 = vsel %vm2462, %v2638, 0
        %2657 = vmatpush.bf16.msra.mxu0 0
        %2658 = vmatpush.bf16.msra.mxu0 0
        %2659 = vmatpush.bf16.msra.mxu0 0
        %2660 = vmatpush.bf16.msra.mxu0 0
        %2661 = vmatpush.bf16.msra.mxu0 0
        %2662 = vmatpush.bf16.msra.mxu0 0
        %2663 = vmatpush.bf16.msra.mxu0 %v2648
        %2664 = vmatpush.bf16.msra.mxu0 %v2647
        %2665 = vmatmul.bf16.gmra.mxu0 %v2652
        %v2666 = vpop.f32.mrf.mxu0
        %v2667 = vadd.f32 %v2436, %v2666
        %v2668 = vpop.f32.mrf.mxu0
        %v2669 = vadd.f32 %v2437, %v2668
        %2670 = vmatmul.bf16.gmra.mxu0 %v2655
        %v2671 = vpop.f32.mrf.mxu0
        %v2672 = vadd.f32 %v2438, %v2671
        %v2673 = vpop.f32.mrf.mxu0
        %v2674 = vadd.f32 %v2439, %v2673
        %2675 = vdwg.mxu0
        %v2680 = vunpack.c.l.b16 %v2392
        %v2681 = vunpack.c.l.b16 %v2393
        %v2682 = vunpack.c.l.b16 %v2394
        %v2683 = vunpack.c.l.b16 %v2395
        %v2684 = vpack.c.b16 %v2681, %v2680
        %v2685 = vpack.c.b16 %v2683, %v2682
        %v2690 = vunpack.c.l.b16 %v2424
        %v2691 = vunpack.c.l.b16 %v2425
        %v2692 = vunpack.c.l.b16 %v2426
        %v2693 = vunpack.c.l.b16 %v2427
        %v2694 = vpack.c.b16 %v2691, %v2690
        %v2695 = vpack.c.b16 %v2693, %v2692
        %v2699 = vsel %vm2462, %v2684, 0
        %v2702 = vsel %vm2462, %v2685, 0
        %2704 = vmatpush.bf16.msra.mxu0 0
        %2705 = vmatpush.bf16.msra.mxu0 0
        %2706 = vmatpush.bf16.msra.mxu0 0
        %2707 = vmatpush.bf16.msra.mxu0 0
        %2708 = vmatpush.bf16.msra.mxu0 0
        %2709 = vmatpush.bf16.msra.mxu0 0
        %2710 = vmatpush.bf16.msra.mxu0 %v2695
        %2711 = vmatpush.bf16.msra.mxu0 %v2694
        %2712 = vmatmul.bf16.gmra.mxu0 %v2699
        %v2713 = vpop.f32.mrf.mxu0
        %v2714 = vadd.f32 %v2436, %v2713
        %v2715 = vpop.f32.mrf.mxu0
        %v2716 = vadd.f32 %v2437, %v2715
        %2717 = vmatmul.bf16.gmra.mxu0 %v2702
        %v2718 = vpop.f32.mrf.mxu0
        %v2719 = vadd.f32 %v2438, %v2718
        %v2720 = vpop.f32.mrf.mxu0
        %v2721 = vadd.f32 %v2439, %v2720
        %2722 = vdwg.mxu0
        %v2727 = vunpack.c.l.b16 %v2396
        %v2728 = vunpack.c.l.b16 %v2397
        %v2729 = vunpack.c.l.b16 %v2398
        %v2730 = vunpack.c.l.b16 %v2399
        %v2731 = vpack.c.b16 %v2728, %v2727
        %v2732 = vpack.c.b16 %v2730, %v2729
        %v2737 = vunpack.c.l.b16 %v2428
        %v2738 = vunpack.c.l.b16 %v2429
        %v2739 = vunpack.c.l.b16 %v2430
        %v2740 = vunpack.c.l.b16 %v2431
        %v2741 = vpack.c.b16 %v2738, %v2737
        %v2742 = vpack.c.b16 %v2740, %v2739
        %v2746 = vsel %vm2462, %v2731, 0
        %v2749 = vsel %vm2462, %v2732, 0
        %2751 = vmatpush.bf16.msra.mxu0 0
        %2752 = vmatpush.bf16.msra.mxu0 0
        %2753 = vmatpush.bf16.msra.mxu0 0
        %2754 = vmatpush.bf16.msra.mxu0 0
        %2755 = vmatpush.bf16.msra.mxu0 0
        %2756 = vmatpush.bf16.msra.mxu0 0
        %2757 = vmatpush.bf16.msra.mxu0 %v2742
        %2758 = vmatpush.bf16.msra.mxu0 %v2741
        %2759 = vmatmul.bf16.gmra.mxu0 %v2746
        %v2760 = vpop.f32.mrf.mxu0
        %v2761 = vadd.f32 %v2436, %v2760
        %v2762 = vpop.f32.mrf.mxu0
        %v2763 = vadd.f32 %v2437, %v2762
        %2764 = vmatmul.bf16.gmra.mxu0 %v2749
        %v2765 = vpop.f32.mrf.mxu0
        %v2766 = vadd.f32 %v2438, %v2765
        %v2767 = vpop.f32.mrf.mxu0
        %v2768 = vadd.f32 %v2439, %v2767
        %2769 = vdwg.mxu0
        %v2774 = vunpack.c.l.b16 %v2400
        %v2775 = vunpack.c.l.b16 %v2401
        %v2776 = vunpack.c.l.b16 %v2402
        %v2777 = vunpack.c.l.b16 %v2403
        %v2778 = vpack.c.b16 %v2775, %v2774
        %v2779 = vpack.c.b16 %v2777, %v2776
        %v2784 = vunpack.c.l.b16 %v2432
        %v2785 = vunpack.c.l.b16 %v2433
        %v2786 = vunpack.c.l.b16 %v2434
        %v2787 = vunpack.c.l.b16 %v2435
        %v2788 = vpack.c.b16 %v2785, %v2784
        %v2789 = vpack.c.b16 %v2787, %v2786
        %v2793 = vsel %vm2462, %v2778, 0
        %v2796 = vsel %vm2462, %v2779, 0
        %2798 = vmatpush.bf16.msra.mxu0 0
        %2799 = vmatpush.bf16.msra.mxu0 0
        %2800 = vmatpush.bf16.msra.mxu0 0
        %2801 = vmatpush.bf16.msra.mxu0 0
        %2802 = vmatpush.bf16.msra.mxu0 0
        %2803 = vmatpush.bf16.msra.mxu0 0
        %2804 = vmatpush.bf16.msra.mxu0 %v2789
        %2805 = vmatpush.bf16.msra.mxu0 %v2788
        %2806 = vmatmul.bf16.gmra.mxu0 %v2793
        %v2807 = vpop.f32.mrf.mxu0
        %v2808 = vadd.f32 %v2436, %v2807
        %v2809 = vpop.f32.mrf.mxu0
        %v2810 = vadd.f32 %v2437, %v2809
        %2811 = vmatmul.bf16.gmra.mxu0 %v2796
        %v2812 = vpop.f32.mrf.mxu0
        %v2813 = vadd.f32 %v2438, %v2812
        %v2814 = vpop.f32.mrf.mxu0
        %v2815 = vadd.f32 %v2439, %v2814
        %2816 = vdwg.mxu0
        %v2817 = vsel %vm2462, %v2479, -inf
        %2818 = vmax.xlane.f32.xlu0 %v2817
        %v2819 = vpop.xlane.xlu0 %2818
        %v2820 = vsel %vm2462, %v2481, -inf
        %2821 = vmax.xlane.f32.xlu0 %v2820
        %v2822 = vpop.xlane.xlu0 %2821
        %v2823 = vsel %vm2462, %v2484, -inf
        %2824 = vmax.xlane.f32.xlu0 %v2823
        %v2825 = vpop.xlane.xlu0 %2824
        %v2826 = vsel %vm2462, %v2486, -inf
        %2827 = vmax.xlane.f32.xlu0 %v2826
        %v2828 = vpop.xlane.xlu0 %2827
        %v2829 = vsel %vm2462, %v2526, -inf
        %2830 = vmax.xlane.f32.xlu0 %v2829
        %v2831 = vpop.xlane.xlu0 %2830
        %v2832 = vsel %vm2462, %v2528, -inf
        %2833 = vmax.xlane.f32.xlu0 %v2832
        %v2834 = vpop.xlane.xlu0 %2833
        %v2835 = vsel %vm2462, %v2531, -inf
        %2836 = vmax.xlane.f32.xlu0 %v2835
        %v2837 = vpop.xlane.xlu0 %2836
        %v2838 = vsel %vm2462, %v2533, -inf
        %2839 = vmax.xlane.f32.xlu0 %v2838
        %v2840 = vpop.xlane.xlu0 %2839
        %v2841 = vsel %vm2462, %v2573, -inf
        %2842 = vmax.xlane.f32.xlu0 %v2841
        %v2843 = vpop.xlane.xlu0 %2842
        %v2844 = vsel %vm2462, %v2575, -inf
        %2845 = vmax.xlane.f32.xlu0 %v2844
        %v2846 = vpop.xlane.xlu0 %2845
        %v2847 = vsel %vm2462, %v2578, -inf
        %2848 = vmax.xlane.f32.xlu0 %v2847
        %v2849 = vpop.xlane.xlu0 %2848
        %v2850 = vsel %vm2462, %v2580, -inf
        %2851 = vmax.xlane.f32.xlu0 %v2850
        %v2852 = vpop.xlane.xlu0 %2851
        %v2853 = vsel %vm2462, %v2620, -inf
        %2854 = vmax.xlane.f32.xlu0 %v2853
        %v2855 = vpop.xlane.xlu0 %2854
        %v2856 = vsel %vm2462, %v2622, -inf
        %2857 = vmax.xlane.f32.xlu0 %v2856
        %v2858 = vpop.xlane.xlu0 %2857
        %v2859 = vsel %vm2462, %v2625, -inf
        %2860 = vmax.xlane.f32.xlu0 %v2859
        %v2861 = vpop.xlane.xlu0 %2860
        %v2862 = vsel %vm2462, %v2627, -inf
        %2863 = vmax.xlane.f32.xlu0 %v2862
        %v2864 = vpop.xlane.xlu0 %2863
        %v2865 = vsel %vm2462, %v2667, -inf
        %2866 = vmax.xlane.f32.xlu0 %v2865
        %v2867 = vpop.xlane.xlu0 %2866
        %v2868 = vsel %vm2462, %v2669, -inf
        %2869 = vmax.xlane.f32.xlu0 %v2868
        %v2870 = vpop.xlane.xlu0 %2869
        %v2871 = vsel %vm2462, %v2672, -inf
        %2872 = vmax.xlane.f32.xlu0 %v2871
        %v2873 = vpop.xlane.xlu0 %2872
        %v2874 = vsel %vm2462, %v2674, -inf
        %2875 = vmax.xlane.f32.xlu0 %v2874
        %v2876 = vpop.xlane.xlu0 %2875
        %v2877 = vsel %vm2462, %v2714, -inf
        %2878 = vmax.xlane.f32.xlu0 %v2877
        %v2879 = vpop.xlane.xlu0 %2878
        %v2880 = vsel %vm2462, %v2716, -inf
        %2881 = vmax.xlane.f32.xlu0 %v2880
        %v2882 = vpop.xlane.xlu0 %2881
        %v2883 = vsel %vm2462, %v2719, -inf
        %2884 = vmax.xlane.f32.xlu0 %v2883
        %v2885 = vpop.xlane.xlu0 %2884
        %v2886 = vsel %vm2462, %v2721, -inf
        %2887 = vmax.xlane.f32.xlu0 %v2886
        %v2888 = vpop.xlane.xlu0 %2887
        %v2889 = vsel %vm2462, %v2761, -inf
        %2890 = vmax.xlane.f32.xlu0 %v2889
        %v2891 = vpop.xlane.xlu0 %2890
        %v2892 = vsel %vm2462, %v2763, -inf
        %2893 = vmax.xlane.f32.xlu0 %v2892
        %v2894 = vpop.xlane.xlu0 %2893
        %v2895 = vsel %vm2462, %v2766, -inf
        %2896 = vmax.xlane.f32.xlu0 %v2895
        %v2897 = vpop.xlane.xlu0 %2896
        %v2898 = vsel %vm2462, %v2768, -inf
        %2899 = vmax.xlane.f32.xlu0 %v2898
        %v2900 = vpop.xlane.xlu0 %2899
        %v2901 = vsel %vm2462, %v2808, -inf
        %2902 = vmax.xlane.f32.xlu0 %v2901
        %v2903 = vpop.xlane.xlu0 %2902
        %v2904 = vsel %vm2462, %v2810, -inf
        %2905 = vmax.xlane.f32.xlu0 %v2904
        %v2906 = vpop.xlane.xlu0 %2905
        %v2907 = vsel %vm2462, %v2813, -inf
        %2908 = vmax.xlane.f32.xlu0 %v2907
        %v2909 = vpop.xlane.xlu0 %2908
        %v2910 = vsel %vm2462, %v2815, -inf
        %2911 = vmax.xlane.f32.xlu0 %v2910
        %v2912 = vpop.xlane.xlu0 %2911
        %v2913 = vsub.f32 %v2479, %v2819
        %v2914 = vsub.f32 %v2481, %v2822
        %v2915 = vsub.f32 %v2484, %v2825
        %v2916 = vsub.f32 %v2486, %v2828
        %v2917 = vsub.f32 %v2526, %v2831
        %v2918 = vsub.f32 %v2528, %v2834
        %v2919 = vsub.f32 %v2531, %v2837
        %v2920 = vsub.f32 %v2533, %v2840
        %v2921 = vsub.f32 %v2573, %v2843
        %v2922 = vsub.f32 %v2575, %v2846
        %v2923 = vsub.f32 %v2578, %v2849
        %v2924 = vsub.f32 %v2580, %v2852
        %v2925 = vsub.f32 %v2620, %v2855
        %v2926 = vsub.f32 %v2622, %v2858
        %v2927 = vsub.f32 %v2625, %v2861
        %v2928 = vsub.f32 %v2627, %v2864
        %v2929 = vsub.f32 %v2667, %v2867
        %v2930 = vsub.f32 %v2669, %v2870
        %v2931 = vsub.f32 %v2672, %v2873
        %v2932 = vsub.f32 %v2674, %v2876
        %v2933 = vsub.f32 %v2714, %v2879
        %v2934 = vsub.f32 %v2716, %v2882
        %v2935 = vsub.f32 %v2719, %v2885
        %v2936 = vsub.f32 %v2721, %v2888
        %v2937 = vsub.f32 %v2761, %v2891
        %v2938 = vsub.f32 %v2763, %v2894
        %v2939 = vsub.f32 %v2766, %v2897
        %v2940 = vsub.f32 %v2768, %v2900
        %v2941 = vsub.f32 %v2808, %v2903
        %v2942 = vsub.f32 %v2810, %v2906
        %v2943 = vsub.f32 %v2813, %v2909
        %v2944 = vsub.f32 %v2815, %v2912
        %v2945 = vmul.f32 %v2913, 1.442695
        %v2946 = vpow.pop %v2945
        %v2947 = vmul.f32 %v2914, 1.442695
        %v2948 = vpow.pop %v2947
        %v2949 = vmul.f32 %v2915, 1.442695
        %v2950 = vpow.pop %v2949
        %v2951 = vmul.f32 %v2916, 1.442695
        %v2952 = vpow.pop %v2951
        %v2953 = vmul.f32 %v2917, 1.442695
        %v2954 = vpow.pop %v2953
        %v2955 = vmul.f32 %v2918, 1.442695
        %v2956 = vpow.pop %v2955
        %v2957 = vmul.f32 %v2919, 1.442695
        %v2958 = vpow.pop %v2957
        %v2959 = vmul.f32 %v2920, 1.442695
        %v2960 = vpow.pop %v2959
        %v2961 = vmul.f32 %v2921, 1.442695
        %v2962 = vpow.pop %v2961
        %v2963 = vmul.f32 %v2922, 1.442695
        %v2964 = vpow.pop %v2963
        %v2965 = vmul.f32 %v2923, 1.442695
        %v2966 = vpow.pop %v2965
        %v2967 = vmul.f32 %v2924, 1.442695
        %v2968 = vpow.pop %v2967
        %v2969 = vmul.f32 %v2925, 1.442695
        %v2970 = vpow.pop %v2969
        %v2971 = vmul.f32 %v2926, 1.442695
        %v2972 = vpow.pop %v2971
        %v2973 = vmul.f32 %v2927, 1.442695
        %v2974 = vpow.pop %v2973
        %v2975 = vmul.f32 %v2928, 1.442695
        %v2976 = vpow.pop %v2975
        %v2977 = vmul.f32 %v2929, 1.442695
        %v2978 = vpow.pop %v2977
        %v2979 = vmul.f32 %v2930, 1.442695
        %v2980 = vpow.pop %v2979
        %v2981 = vmul.f32 %v2931, 1.442695
        %v2982 = vpow.pop %v2981
        %v2983 = vmul.f32 %v2932, 1.442695
        %v2984 = vpow.pop %v2983
        %v2985 = vmul.f32 %v2933, 1.442695
        %v2986 = vpow.pop %v2985
        %v2987 = vmul.f32 %v2934, 1.442695
        %v2988 = vpow.pop %v2987
        %v2989 = vmul.f32 %v2935, 1.442695
        %v2990 = vpow.pop %v2989
        %v2991 = vmul.f32 %v2936, 1.442695
        %v2992 = vpow.pop %v2991
        %v2993 = vmul.f32 %v2937, 1.442695
        %v2994 = vpow.pop %v2993
        %v2995 = vmul.f32 %v2938, 1.442695
        %v2996 = vpow.pop %v2995
        %v2997 = vmul.f32 %v2939, 1.442695
        %v2998 = vpow.pop %v2997
        %v2999 = vmul.f32 %v2940, 1.442695
        %v3000 = vpow.pop %v2999
        %v3001 = vmul.f32 %v2941, 1.442695
        %v3002 = vpow.pop %v3001
        %v3003 = vmul.f32 %v2942, 1.442695
        %v3004 = vpow.pop %v3003
        %v3005 = vmul.f32 %v2943, 1.442695
        %v3006 = vpow.pop %v3005
        %v3007 = vmul.f32 %v2944, 1.442695
        %v3008 = vpow.pop %v3007
        %v3009 = vpack.c.bf16 %v2946, %v2946
        %v3010 = vpack.c.bf16 %v2948, %v2948
        %v3011 = vpack.c.bf16 %v2950, %v2950
        %v3012 = vpack.c.bf16 %v2952, %v2952
        %v3013 = vpack.c.bf16 %v2954, %v2954
        %v3014 = vpack.c.bf16 %v2956, %v2956
        %v3015 = vpack.c.bf16 %v2958, %v2958
        %v3016 = vpack.c.bf16 %v2960, %v2960
        %v3017 = vpack.c.bf16 %v2962, %v2962
        %v3018 = vpack.c.bf16 %v2964, %v2964
        %v3019 = vpack.c.bf16 %v2966, %v2966
        %v3020 = vpack.c.bf16 %v2968, %v2968
        %v3021 = vpack.c.bf16 %v2970, %v2970
        %v3022 = vpack.c.bf16 %v2972, %v2972
        %v3023 = vpack.c.bf16 %v2974, %v2974
        %v3024 = vpack.c.bf16 %v2976, %v2976
        %v3025 = vpack.c.bf16 %v2978, %v2978
        %v3026 = vpack.c.bf16 %v2980, %v2980
        %v3027 = vpack.c.bf16 %v2982, %v2982
        %v3028 = vpack.c.bf16 %v2984, %v2984
        %v3029 = vpack.c.bf16 %v2986, %v2986
        %v3030 = vpack.c.bf16 %v2988, %v2988
        %v3031 = vpack.c.bf16 %v2990, %v2990
        %v3032 = vpack.c.bf16 %v2992, %v2992
        %v3033 = vpack.c.bf16 %v2994, %v2994
        %v3034 = vpack.c.bf16 %v2996, %v2996
        %v3035 = vpack.c.bf16 %v2998, %v2998
        %v3036 = vpack.c.bf16 %v3000, %v3000
        %v3037 = vpack.c.bf16 %v3002, %v3002
        %v3038 = vpack.c.bf16 %v3004, %v3004
        %v3039 = vpack.c.bf16 %v3006, %v3006
        %v3040 = vpack.c.bf16 %v3008, %v3008
        %v3041 = vpack.c.bf16 %v2068, %v2068
        %v3042 = vpack.c.bf16 %v2069, %v2069
        %v3043 = vpack.c.bf16 %v2070, %v2070
        %v3044 = vpack.c.bf16 %v2071, %v2071
        %v3045 = vpack.c.bf16 %v2072, %v2072
        %v3046 = vpack.c.bf16 %v2073, %v2073
        %v3047 = vpack.c.bf16 %v2074, %v2074
        %v3048 = vpack.c.bf16 %v2075, %v2075
        %v3049 = vpack.c.bf16 %v2076, %v2076
        %v3050 = vpack.c.bf16 %v2077, %v2077
        %v3051 = vpack.c.bf16 %v2078, %v2078
        %v3052 = vpack.c.bf16 %v2079, %v2079
        %v3053 = vpack.c.bf16 %v2080, %v2080
        %v3054 = vpack.c.bf16 %v2081, %v2081
        %v3055 = vpack.c.bf16 %v2082, %v2082
        %v3056 = vpack.c.bf16 %v2083, %v2083
        %v3057 = vpack.c.bf16 %v2100, %v2100
        %v3058 = vpack.c.bf16 %v2101, %v2101
        %v3059 = vpack.c.bf16 %v2102, %v2102
        %v3060 = vpack.c.bf16 %v2103, %v2103
        %v3061 = vpack.c.bf16 %v2104, %v2104
        %v3062 = vpack.c.bf16 %v2105, %v2105
        %v3063 = vpack.c.bf16 %v2106, %v2106
        %v3064 = vpack.c.bf16 %v2107, %v2107
        %v3065 = vpack.c.bf16 %v2108, %v2108
        %v3066 = vpack.c.bf16 %v2109, %v2109
        %v3067 = vpack.c.bf16 %v2110, %v2110
        %v3068 = vpack.c.bf16 %v2111, %v2111
        %v3069 = vpack.c.bf16 %v2112, %v2112
        %v3070 = vpack.c.bf16 %v2113, %v2113
        %v3071 = vpack.c.bf16 %v2114, %v2114
        %v3072 = vpack.c.bf16 %v2115, %v2115
        %v3077 = vunpack.c.l.b16 %v3009
        %v3078 = vunpack.c.l.b16 %v3010
        %v3079 = vunpack.c.l.b16 %v3011
        %v3080 = vunpack.c.l.b16 %v3012
        %v3081 = vpack.c.b16 %v3078, %v3077
        %v3082 = vpack.c.b16 %v3080, %v3079
        %v3087 = vunpack.c.l.b16 %v3041
        %v3088 = vunpack.c.l.b16 %v3042
        %v3089 = vunpack.c.l.b16 %v3043
        %v3090 = vunpack.c.l.b16 %v3044
        %v3091 = vpack.c.b16 %v3088, %v3087
        %v3092 = vpack.c.b16 %v3090, %v3089
        %v3094 = vsel %vm2462, %v3081, 0
        %v3097 = vsel %vm2462, %v3082, 0
        %v3100 = vsel %vm2462, %v3091, 0
        %v3103 = vsel %vm2462, %v3092, 0
        %3105 = vmatpush.bf16.xpose.msra.mxu0 0
        %3106 = vmatpush.bf16.xpose.msra.mxu0 0
        %3107 = vmatpush.bf16.xpose.msra.mxu0 0
        %3108 = vmatpush.bf16.xpose.msra.mxu0 0
        %3109 = vmatpush.bf16.xpose.msra.mxu0 0
        %3110 = vmatpush.bf16.xpose.msra.mxu0 0
        %3111 = vmatpush.bf16.xpose.msra.mxu0 %v3103
        %3112 = vmatpush.bf16.xpose.msra.mxu0 %v3100
        %3113 = vmatmul.bf16.gmra.mxu0 %v3094
        %v3114 = vpop.f32.mrf.mxu0
        %v3115 = vadd.f32 0.0, %v3114
        %v3116 = vpop.f32.mrf.mxu0
        %v3117 = vadd.f32 0.0, %v3116
        %3118 = vmatmul.bf16.gmra.mxu0 %v3097
        %v3119 = vpop.f32.mrf.mxu0
        %v3120 = vadd.f32 0.0, %v3119
        %v3121 = vpop.f32.mrf.mxu0
        %v3122 = vadd.f32 0.0, %v3121
        %3123 = vdwg.mxu0
        %v3128 = vunpack.c.l.b16 %v3013
        %v3129 = vunpack.c.l.b16 %v3014
        %v3130 = vunpack.c.l.b16 %v3015
        %v3131 = vunpack.c.l.b16 %v3016
        %v3132 = vpack.c.b16 %v3129, %v3128
        %v3133 = vpack.c.b16 %v3131, %v3130
        %v3138 = vunpack.c.l.b16 %v3045
        %v3139 = vunpack.c.l.b16 %v3046
        %v3140 = vunpack.c.l.b16 %v3047
        %v3141 = vunpack.c.l.b16 %v3048
        %v3142 = vpack.c.b16 %v3139, %v3138
        %v3143 = vpack.c.b16 %v3141, %v3140
        %v3145 = vsel %vm2462, %v3132, 0
        %v3148 = vsel %vm2462, %v3133, 0
        %v3151 = vsel %vm2462, %v3142, 0
        %v3154 = vsel %vm2462, %v3143, 0
        %3156 = vmatpush.bf16.xpose.msra.mxu0 0
        %3157 = vmatpush.bf16.xpose.msra.mxu0 0
        %3158 = vmatpush.bf16.xpose.msra.mxu0 0
        %3159 = vmatpush.bf16.xpose.msra.mxu0 0
        %3160 = vmatpush.bf16.xpose.msra.mxu0 0
        %3161 = vmatpush.bf16.xpose.msra.mxu0 0
        %3162 = vmatpush.bf16.xpose.msra.mxu0 %v3154
        %3163 = vmatpush.bf16.xpose.msra.mxu0 %v3151
        %3164 = vmatmul.bf16.gmra.mxu0 %v3145
        %v3165 = vpop.f32.mrf.mxu0
        %v3166 = vadd.f32 0.0, %v3165
        %v3167 = vpop.f32.mrf.mxu0
        %v3168 = vadd.f32 0.0, %v3167
        %3169 = vmatmul.bf16.gmra.mxu0 %v3148
        %v3170 = vpop.f32.mrf.mxu0
        %v3171 = vadd.f32 0.0, %v3170
        %v3172 = vpop.f32.mrf.mxu0
        %v3173 = vadd.f32 0.0, %v3172
        %3174 = vdwg.mxu0
        %v3179 = vunpack.c.l.b16 %v3017
        %v3180 = vunpack.c.l.b16 %v3018
        %v3181 = vunpack.c.l.b16 %v3019
        %v3182 = vunpack.c.l.b16 %v3020
        %v3183 = vpack.c.b16 %v3180, %v3179
        %v3184 = vpack.c.b16 %v3182, %v3181
        %v3189 = vunpack.c.l.b16 %v3049
        %v3190 = vunpack.c.l.b16 %v3050
        %v3191 = vunpack.c.l.b16 %v3051
        %v3192 = vunpack.c.l.b16 %v3052
        %v3193 = vpack.c.b16 %v3190, %v3189
        %v3194 = vpack.c.b16 %v3192, %v3191
        %v3196 = vsel %vm2462, %v3183, 0
        %v3199 = vsel %vm2462, %v3184, 0
        %v3202 = vsel %vm2462, %v3193, 0
        %v3205 = vsel %vm2462, %v3194, 0
        %3207 = vmatpush.bf16.xpose.msra.mxu0 0
        %3208 = vmatpush.bf16.xpose.msra.mxu0 0
        %3209 = vmatpush.bf16.xpose.msra.mxu0 0
        %3210 = vmatpush.bf16.xpose.msra.mxu0 0
        %3211 = vmatpush.bf16.xpose.msra.mxu0 0
        %3212 = vmatpush.bf16.xpose.msra.mxu0 0
        %3213 = vmatpush.bf16.xpose.msra.mxu0 %v3205
        %3214 = vmatpush.bf16.xpose.msra.mxu0 %v3202
        %3215 = vmatmul.bf16.gmra.mxu0 %v3196
        %v3216 = vpop.f32.mrf.mxu0
        %v3217 = vadd.f32 0.0, %v3216
        %v3218 = vpop.f32.mrf.mxu0
        %v3219 = vadd.f32 0.0, %v3218
        %3220 = vmatmul.bf16.gmra.mxu0 %v3199
        %v3221 = vpop.f32.mrf.mxu0
        %v3222 = vadd.f32 0.0, %v3221
        %v3223 = vpop.f32.mrf.mxu0
        %v3224 = vadd.f32 0.0, %v3223
        %3225 = vdwg.mxu0
        %v3230 = vunpack.c.l.b16 %v3021
        %v3231 = vunpack.c.l.b16 %v3022
        %v3232 = vunpack.c.l.b16 %v3023
        %v3233 = vunpack.c.l.b16 %v3024
        %v3234 = vpack.c.b16 %v3231, %v3230
        %v3235 = vpack.c.b16 %v3233, %v3232
        %v3240 = vunpack.c.l.b16 %v3053
        %v3241 = vunpack.c.l.b16 %v3054
        %v3242 = vunpack.c.l.b16 %v3055
        %v3243 = vunpack.c.l.b16 %v3056
        %v3244 = vpack.c.b16 %v3241, %v3240
        %v3245 = vpack.c.b16 %v3243, %v3242
        %v3247 = vsel %vm2462, %v3234, 0
        %v3250 = vsel %vm2462, %v3235, 0
        %v3253 = vsel %vm2462, %v3244, 0
        %v3256 = vsel %vm2462, %v3245, 0
        %3258 = vmatpush.bf16.xpose.msra.mxu0 0
        %3259 = vmatpush.bf16.xpose.msra.mxu0 0
        %3260 = vmatpush.bf16.xpose.msra.mxu0 0
        %3261 = vmatpush.bf16.xpose.msra.mxu0 0
        %3262 = vmatpush.bf16.xpose.msra.mxu0 0
        %3263 = vmatpush.bf16.xpose.msra.mxu0 0
        %3264 = vmatpush.bf16.xpose.msra.mxu0 %v3256
        %3265 = vmatpush.bf16.xpose.msra.mxu0 %v3253
        %3266 = vmatmul.bf16.gmra.mxu0 %v3247
        %v3267 = vpop.f32.mrf.mxu0
        %v3268 = vadd.f32 0.0, %v3267
        %v3269 = vpop.f32.mrf.mxu0
        %v3270 = vadd.f32 0.0, %v3269
        %3271 = vmatmul.bf16.gmra.mxu0 %v3250
        %v3272 = vpop.f32.mrf.mxu0
        %v3273 = vadd.f32 0.0, %v3272
        %v3274 = vpop.f32.mrf.mxu0
        %v3275 = vadd.f32 0.0, %v3274
        %3276 = vdwg.mxu0
        %v3281 = vunpack.c.l.b16 %v3025
        %v3282 = vunpack.c.l.b16 %v3026
        %v3283 = vunpack.c.l.b16 %v3027
        %v3284 = vunpack.c.l.b16 %v3028
        %v3285 = vpack.c.b16 %v3282, %v3281
        %v3286 = vpack.c.b16 %v3284, %v3283
        %v3291 = vunpack.c.l.b16 %v3057
        %v3292 = vunpack.c.l.b16 %v3058
        %v3293 = vunpack.c.l.b16 %v3059
        %v3294 = vunpack.c.l.b16 %v3060
        %v3295 = vpack.c.b16 %v3292, %v3291
        %v3296 = vpack.c.b16 %v3294, %v3293
        %v3298 = vsel %vm2462, %v3285, 0
        %v3301 = vsel %vm2462, %v3286, 0
        %v3304 = vsel %vm2462, %v3295, 0
        %v3307 = vsel %vm2462, %v3296, 0
        %3309 = vmatpush.bf16.xpose.msra.mxu0 0
        %3310 = vmatpush.bf16.xpose.msra.mxu0 0
        %3311 = vmatpush.bf16.xpose.msra.mxu0 0
        %3312 = vmatpush.bf16.xpose.msra.mxu0 0
        %3313 = vmatpush.bf16.xpose.msra.mxu0 0
        %3314 = vmatpush.bf16.xpose.msra.mxu0 0
        %3315 = vmatpush.bf16.xpose.msra.mxu0 %v3307
        %3316 = vmatpush.bf16.xpose.msra.mxu0 %v3304
        %3317 = vmatmul.bf16.gmra.mxu0 %v3298
        %v3318 = vpop.f32.mrf.mxu0
        %v3319 = vadd.f32 0.0, %v3318
        %v3320 = vpop.f32.mrf.mxu0
        %v3321 = vadd.f32 0.0, %v3320
        %3322 = vmatmul.bf16.gmra.mxu0 %v3301
        %v3323 = vpop.f32.mrf.mxu0
        %v3324 = vadd.f32 0.0, %v3323
        %v3325 = vpop.f32.mrf.mxu0
        %v3326 = vadd.f32 0.0, %v3325
        %3327 = vdwg.mxu0
        %v3332 = vunpack.c.l.b16 %v3029
        %v3333 = vunpack.c.l.b16 %v3030
        %v3334 = vunpack.c.l.b16 %v3031
        %v3335 = vunpack.c.l.b16 %v3032
        %v3336 = vpack.c.b16 %v3333, %v3332
        %v3337 = vpack.c.b16 %v3335, %v3334
        %v3342 = vunpack.c.l.b16 %v3061
        %v3343 = vunpack.c.l.b16 %v3062
        %v3344 = vunpack.c.l.b16 %v3063
        %v3345 = vunpack.c.l.b16 %v3064
        %v3346 = vpack.c.b16 %v3343, %v3342
        %v3347 = vpack.c.b16 %v3345, %v3344
        %v3349 = vsel %vm2462, %v3336, 0
        %v3352 = vsel %vm2462, %v3337, 0
        %v3355 = vsel %vm2462, %v3346, 0
        %v3358 = vsel %vm2462, %v3347, 0
        %3360 = vmatpush.bf16.xpose.msra.mxu0 0
        %3361 = vmatpush.bf16.xpose.msra.mxu0 0
        %3362 = vmatpush.bf16.xpose.msra.mxu0 0
        %3363 = vmatpush.bf16.xpose.msra.mxu0 0
        %3364 = vmatpush.bf16.xpose.msra.mxu0 0
        %3365 = vmatpush.bf16.xpose.msra.mxu0 0
        %3366 = vmatpush.bf16.xpose.msra.mxu0 %v3358
        %3367 = vmatpush.bf16.xpose.msra.mxu0 %v3355
        %3368 = vmatmul.bf16.gmra.mxu0 %v3349
        %v3369 = vpop.f32.mrf.mxu0
        %v3370 = vadd.f32 0.0, %v3369
        %v3371 = vpop.f32.mrf.mxu0
        %v3372 = vadd.f32 0.0, %v3371
        %3373 = vmatmul.bf16.gmra.mxu0 %v3352
        %v3374 = vpop.f32.mrf.mxu0
        %v3375 = vadd.f32 0.0, %v3374
        %v3376 = vpop.f32.mrf.mxu0
        %v3377 = vadd.f32 0.0, %v3376
        %3378 = vdwg.mxu0
        %v3383 = vunpack.c.l.b16 %v3033
        %v3384 = vunpack.c.l.b16 %v3034
        %v3385 = vunpack.c.l.b16 %v3035
        %v3386 = vunpack.c.l.b16 %v3036
        %v3387 = vpack.c.b16 %v3384, %v3383
        %v3388 = vpack.c.b16 %v3386, %v3385
        %v3393 = vunpack.c.l.b16 %v3065
        %v3394 = vunpack.c.l.b16 %v3066
        %v3395 = vunpack.c.l.b16 %v3067
        %v3396 = vunpack.c.l.b16 %v3068
        %v3397 = vpack.c.b16 %v3394, %v3393
        %v3398 = vpack.c.b16 %v3396, %v3395
        %v3400 = vsel %vm2462, %v3387, 0
        %v3403 = vsel %vm2462, %v3388, 0
        %v3406 = vsel %vm2462, %v3397, 0
        %v3409 = vsel %vm2462, %v3398, 0
        %3411 = vmatpush.bf16.xpose.msra.mxu0 0
        %3412 = vmatpush.bf16.xpose.msra.mxu0 0
        %3413 = vmatpush.bf16.xpose.msra.mxu0 0
        %3414 = vmatpush.bf16.xpose.msra.mxu0 0
        %3415 = vmatpush.bf16.xpose.msra.mxu0 0
        %3416 = vmatpush.bf16.xpose.msra.mxu0 0
        %3417 = vmatpush.bf16.xpose.msra.mxu0 %v3409
        %3418 = vmatpush.bf16.xpose.msra.mxu0 %v3406
        %3419 = vmatmul.bf16.gmra.mxu0 %v3400
        %v3420 = vpop.f32.mrf.mxu0
        %v3421 = vadd.f32 0.0, %v3420
        %v3422 = vpop.f32.mrf.mxu0
        %v3423 = vadd.f32 0.0, %v3422
        %3424 = vmatmul.bf16.gmra.mxu0 %v3403
        %v3425 = vpop.f32.mrf.mxu0
        %v3426 = vadd.f32 0.0, %v3425
        %v3427 = vpop.f32.mrf.mxu0
        %v3428 = vadd.f32 0.0, %v3427
        %3429 = vdwg.mxu0
        %v3434 = vunpack.c.l.b16 %v3037
        %v3435 = vunpack.c.l.b16 %v3038
        %v3436 = vunpack.c.l.b16 %v3039
        %v3437 = vunpack.c.l.b16 %v3040
        %v3438 = vpack.c.b16 %v3435, %v3434
        %v3439 = vpack.c.b16 %v3437, %v3436
        %v3444 = vunpack.c.l.b16 %v3069
        %v3445 = vunpack.c.l.b16 %v3070
        %v3446 = vunpack.c.l.b16 %v3071
        %v3447 = vunpack.c.l.b16 %v3072
        %v3448 = vpack.c.b16 %v3445, %v3444
        %v3449 = vpack.c.b16 %v3447, %v3446
        %v3451 = vsel %vm2462, %v3438, 0
        %v3454 = vsel %vm2462, %v3439, 0
        %v3457 = vsel %vm2462, %v3448, 0
        %v3460 = vsel %vm2462, %v3449, 0
        %3462 = vmatpush.bf16.xpose.msra.mxu0 0
        %3463 = vmatpush.bf16.xpose.msra.mxu0 0
        %3464 = vmatpush.bf16.xpose.msra.mxu0 0
        %3465 = vmatpush.bf16.xpose.msra.mxu0 0
        %3466 = vmatpush.bf16.xpose.msra.mxu0 0
        %3467 = vmatpush.bf16.xpose.msra.mxu0 0
        %3468 = vmatpush.bf16.xpose.msra.mxu0 %v3460
        %3469 = vmatpush.bf16.xpose.msra.mxu0 %v3457
        %3470 = vmatmul.bf16.gmra.mxu0 %v3451
        %v3471 = vpop.f32.mrf.mxu0
        %v3472 = vadd.f32 0.0, %v3471
        %v3473 = vpop.f32.mrf.mxu0
        %v3474 = vadd.f32 0.0, %v3473
        %3475 = vmatmul.bf16.gmra.mxu0 %v3454
        %v3476 = vpop.f32.mrf.mxu0
        %v3477 = vadd.f32 0.0, %v3476
        %v3478 = vpop.f32.mrf.mxu0
        %v3479 = vadd.f32 0.0, %v3478
        %3480 = vdwg.mxu0
        %v3481 = vsel %vm2462, %v2946, 0.0
        %3482 = vadd.xlane.f32.xlu0 %v3481
        %v3483 = vpop.xlane.xlu0 %3482
        %v3484 = vsel %vm2462, %v2948, 0.0
        %3485 = vadd.xlane.f32.xlu0 %v3484
        %v3486 = vpop.xlane.xlu0 %3485
        %v3487 = vsel %vm2462, %v2950, 0.0
        %3488 = vadd.xlane.f32.xlu0 %v3487
        %v3489 = vpop.xlane.xlu0 %3488
        %v3490 = vsel %vm2462, %v2952, 0.0
        %3491 = vadd.xlane.f32.xlu0 %v3490
        %v3492 = vpop.xlane.xlu0 %3491
        %v3493 = vsel %vm2462, %v2954, 0.0
        %3494 = vadd.xlane.f32.xlu0 %v3493
        %v3495 = vpop.xlane.xlu0 %3494
        %v3496 = vsel %vm2462, %v2956, 0.0
        %3497 = vadd.xlane.f32.xlu0 %v3496
        %v3498 = vpop.xlane.xlu0 %3497
        %v3499 = vsel %vm2462, %v2958, 0.0
        %3500 = vadd.xlane.f32.xlu0 %v3499
        %v3501 = vpop.xlane.xlu0 %3500
        %v3502 = vsel %vm2462, %v2960, 0.0
        %3503 = vadd.xlane.f32.xlu0 %v3502
        %v3504 = vpop.xlane.xlu0 %3503
        %v3505 = vsel %vm2462, %v2962, 0.0
        %3506 = vadd.xlane.f32.xlu0 %v3505
        %v3507 = vpop.xlane.xlu0 %3506
        %v3508 = vsel %vm2462, %v2964, 0.0
        %3509 = vadd.xlane.f32.xlu0 %v3508
        %v3510 = vpop.xlane.xlu0 %3509
        %v3511 = vsel %vm2462, %v2966, 0.0
        %3512 = vadd.xlane.f32.xlu0 %v3511
        %v3513 = vpop.xlane.xlu0 %3512
        %v3514 = vsel %vm2462, %v2968, 0.0
        %3515 = vadd.xlane.f32.xlu0 %v3514
        %v3516 = vpop.xlane.xlu0 %3515
        %v3517 = vsel %vm2462, %v2970, 0.0
        %3518 = vadd.xlane.f32.xlu0 %v3517
        %v3519 = vpop.xlane.xlu0 %3518
        %v3520 = vsel %vm2462, %v2972, 0.0
        %3521 = vadd.xlane.f32.xlu0 %v3520
        %v3522 = vpop.xlane.xlu0 %3521
        %v3523 = vsel %vm2462, %v2974, 0.0
        %3524 = vadd.xlane.f32.xlu0 %v3523
        %v3525 = vpop.xlane.xlu0 %3524
        %v3526 = vsel %vm2462, %v2976, 0.0
        %3527 = vadd.xlane.f32.xlu0 %v3526
        %v3528 = vpop.xlane.xlu0 %3527
        %v3529 = vsel %vm2462, %v2978, 0.0
        %3530 = vadd.xlane.f32.xlu0 %v3529
        %v3531 = vpop.xlane.xlu0 %3530
        %v3532 = vsel %vm2462, %v2980, 0.0
        %3533 = vadd.xlane.f32.xlu0 %v3532
        %v3534 = vpop.xlane.xlu0 %3533
        %v3535 = vsel %vm2462, %v2982, 0.0
        %3536 = vadd.xlane.f32.xlu0 %v3535
        %v3537 = vpop.xlane.xlu0 %3536
        %v3538 = vsel %vm2462, %v2984, 0.0
        %3539 = vadd.xlane.f32.xlu0 %v3538
        %v3540 = vpop.xlane.xlu0 %3539
        %v3541 = vsel %vm2462, %v2986, 0.0
        %3542 = vadd.xlane.f32.xlu0 %v3541
        %v3543 = vpop.xlane.xlu0 %3542
        %v3544 = vsel %vm2462, %v2988, 0.0
        %3545 = vadd.xlane.f32.xlu0 %v3544
        %v3546 = vpop.xlane.xlu0 %3545
        %v3547 = vsel %vm2462, %v2990, 0.0
        %3548 = vadd.xlane.f32.xlu0 %v3547
        %v3549 = vpop.xlane.xlu0 %3548
        %v3550 = vsel %vm2462, %v2992, 0.0
        %3551 = vadd.xlane.f32.xlu0 %v3550
        %v3552 = vpop.xlane.xlu0 %3551
        %v3553 = vsel %vm2462, %v2994, 0.0
        %3554 = vadd.xlane.f32.xlu0 %v3553
        %v3555 = vpop.xlane.xlu0 %3554
        %v3556 = vsel %vm2462, %v2996, 0.0
        %3557 = vadd.xlane.f32.xlu0 %v3556
        %v3558 = vpop.xlane.xlu0 %3557
        %v3559 = vsel %vm2462, %v2998, 0.0
        %3560 = vadd.xlane.f32.xlu0 %v3559
        %v3561 = vpop.xlane.xlu0 %3560
        %v3562 = vsel %vm2462, %v3000, 0.0
        %3563 = vadd.xlane.f32.xlu0 %v3562
        %v3564 = vpop.xlane.xlu0 %3563
        %v3565 = vsel %vm2462, %v3002, 0.0
        %3566 = vadd.xlane.f32.xlu0 %v3565
        %v3567 = vpop.xlane.xlu0 %3566
        %v3568 = vsel %vm2462, %v3004, 0.0
        %3569 = vadd.xlane.f32.xlu0 %v3568
        %v3570 = vpop.xlane.xlu0 %3569
        %v3571 = vsel %vm2462, %v3006, 0.0
        %3572 = vadd.xlane.f32.xlu0 %v3571
        %v3573 = vpop.xlane.xlu0 %3572
        %v3574 = vsel %vm2462, %v3008, 0.0
        %3575 = vadd.xlane.f32.xlu0 %v3574
        %v3576 = vpop.xlane.xlu0 %3575
        %v3577 = vrcp.pop %v3483
        %v3578 = vrcp.pop %v3486
        %v3579 = vrcp.pop %v3489
        %v3580 = vrcp.pop %v3492
        %v3581 = vrcp.pop %v3495
        %v3582 = vrcp.pop %v3498
        %v3583 = vrcp.pop %v3501
        %v3584 = vrcp.pop %v3504
        %v3585 = vrcp.pop %v3507
        %v3586 = vrcp.pop %v3510
        %v3587 = vrcp.pop %v3513
        %v3588 = vrcp.pop %v3516
        %v3589 = vrcp.pop %v3519
        %v3590 = vrcp.pop %v3522
        %v3591 = vrcp.pop %v3525
        %v3592 = vrcp.pop %v3528
        %v3593 = vrcp.pop %v3531
        %v3594 = vrcp.pop %v3534
        %v3595 = vrcp.pop %v3537
        %v3596 = vrcp.pop %v3540
        %v3597 = vrcp.pop %v3543
        %v3598 = vrcp.pop %v3546
        %v3599 = vrcp.pop %v3549
        %v3600 = vrcp.pop %v3552
        %v3601 = vrcp.pop %v3555
        %v3602 = vrcp.pop %v3558
        %v3603 = vrcp.pop %v3561
        %v3604 = vrcp.pop %v3564
        %v3605 = vrcp.pop %v3567
        %v3606 = vrcp.pop %v3570
        %v3607 = vrcp.pop %v3573
        %v3608 = vrcp.pop %v3576
        %v3609 = vmul.f32 %v3115, %v3577
        %v3610 = vmul.f32 %v3117, %v3578
        %v3611 = vmul.f32 %v3120, %v3579
        %v3612 = vmul.f32 %v3122, %v3580
        %v3613 = vmul.f32 %v3166, %v3581
        %v3614 = vmul.f32 %v3168, %v3582
        %v3615 = vmul.f32 %v3171, %v3583
        %v3616 = vmul.f32 %v3173, %v3584
        %v3617 = vmul.f32 %v3217, %v3585
        %v3618 = vmul.f32 %v3219, %v3586
        %v3619 = vmul.f32 %v3222, %v3587
        %v3620 = vmul.f32 %v3224, %v3588
        %v3621 = vmul.f32 %v3268, %v3589
        %v3622 = vmul.f32 %v3270, %v3590
        %v3623 = vmul.f32 %v3273, %v3591
        %v3624 = vmul.f32 %v3275, %v3592
        %v3625 = vmul.f32 %v3319, %v3593
        %v3626 = vmul.f32 %v3321, %v3594
        %v3627 = vmul.f32 %v3324, %v3595
        %v3628 = vmul.f32 %v3326, %v3596
        %v3629 = vmul.f32 %v3370, %v3597
        %v3630 = vmul.f32 %v3372, %v3598
        %v3631 = vmul.f32 %v3375, %v3599
        %v3632 = vmul.f32 %v3377, %v3600
        %v3633 = vmul.f32 %v3421, %v3601
        %v3634 = vmul.f32 %v3423, %v3602
        %v3635 = vmul.f32 %v3426, %v3603
        %v3636 = vmul.f32 %v3428, %v3604
        %v3637 = vmul.f32 %v3472, %v3605
        %v3638 = vmul.f32 %v3474, %v3606
        %v3639 = vmul.f32 %v3477, %v3607
        %v3640 = vmul.f32 %v3479, %v3608
        %v3641 = vpack.c.bf16 %v3609, %v3609
        %v3642 = vpack.c.bf16 %v3610, %v3610
        %v3643 = vpack.c.bf16 %v3611, %v3611
        %v3644 = vpack.c.bf16 %v3612, %v3612
        %v3645 = vpack.c.bf16 %v3613, %v3613
        %v3646 = vpack.c.bf16 %v3614, %v3614
        %v3647 = vpack.c.bf16 %v3615, %v3615
        %v3648 = vpack.c.bf16 %v3616, %v3616
        %v3649 = vpack.c.bf16 %v3617, %v3617
        %v3650 = vpack.c.bf16 %v3618, %v3618
        %v3651 = vpack.c.bf16 %v3619, %v3619
        %v3652 = vpack.c.bf16 %v3620, %v3620
        %v3653 = vpack.c.bf16 %v3621, %v3621
        %v3654 = vpack.c.bf16 %v3622, %v3622
        %v3655 = vpack.c.bf16 %v3623, %v3623
        %v3656 = vpack.c.bf16 %v3624, %v3624
        %v3657 = vpack.c.bf16 %v3625, %v3625
        %v3658 = vpack.c.bf16 %v3626, %v3626
        %v3659 = vpack.c.bf16 %v3627, %v3627
        %v3660 = vpack.c.bf16 %v3628, %v3628
        %v3661 = vpack.c.bf16 %v3629, %v3629
        %v3662 = vpack.c.bf16 %v3630, %v3630
        %v3663 = vpack.c.bf16 %v3631, %v3631
        %v3664 = vpack.c.bf16 %v3632, %v3632
        %v3665 = vpack.c.bf16 %v3633, %v3633
        %v3666 = vpack.c.bf16 %v3634, %v3634
        %v3667 = vpack.c.bf16 %v3635, %v3635
        %v3668 = vpack.c.bf16 %v3636, %v3636
        %v3669 = vpack.c.bf16 %v3637, %v3637
        %v3670 = vpack.c.bf16 %v3638, %v3638
        %v3671 = vpack.c.bf16 %v3639, %v3639
        %v3672 = vpack.c.bf16 %v3640, %v3640
        %v3673 = vld [vmem:[%s846] sm:$0xff]
        %v3674 = vld [vmem:[%s846 + $0x8] sm:$0xff]
        %v3675 = vld [vmem:[%s846 + $0x10] sm:$0xff]
        %v3676 = vld [vmem:[%s846 + $0x18] sm:$0xff]
        %v3677 = vld [vmem:[%s846 + $0x20] sm:$0xff]
        %v3678 = vld [vmem:[%s846 + $0x28] sm:$0xff]
        %v3679 = vld [vmem:[%s846 + $0x30] sm:$0xff]
        %v3680 = vld [vmem:[%s846 + $0x38] sm:$0xff]
        %v3681 = vld [vmem:[%s846 + $0x40] sm:$0xff]
        %v3682 = vld [vmem:[%s846 + $0x48] sm:$0xff]
        %v3683 = vld [vmem:[%s846 + $0x50] sm:$0xff]
        %v3684 = vld [vmem:[%s846 + $0x58] sm:$0xff]
        %v3685 = vld [vmem:[%s846 + $0x60] sm:$0xff]
        %v3686 = vld [vmem:[%s846 + $0x68] sm:$0xff]
        %v3687 = vld [vmem:[%s846 + $0x70] sm:$0xff]
        %v3688 = vld [vmem:[%s846 + $0x78] sm:$0xff]
        %v3689 = vld [vmem:[%s846 + $0x80] sm:$0xff]
        %v3690 = vld [vmem:[%s846 + $0x88] sm:$0xff]
        %v3691 = vld [vmem:[%s846 + $0x90] sm:$0xff]
        %v3692 = vld [vmem:[%s846 + $0x98] sm:$0xff]
        %v3693 = vld [vmem:[%s846 + $0xa0] sm:$0xff]
        %v3694 = vld [vmem:[%s846 + $0xa8] sm:$0xff]
        %v3695 = vld [vmem:[%s846 + $0xb0] sm:$0xff]
        %v3696 = vld [vmem:[%s846 + $0xb8] sm:$0xff]
        %v3697 = vld [vmem:[%s846 + $0xc0] sm:$0xff]
        %v3698 = vld [vmem:[%s846 + $0xc8] sm:$0xff]
        %v3699 = vld [vmem:[%s846 + $0xd0] sm:$0xff]
        %v3700 = vld [vmem:[%s846 + $0xd8] sm:$0xff]
        %v3701 = vld [vmem:[%s846 + $0xe0] sm:$0xff]
        %v3702 = vld [vmem:[%s846 + $0xe8] sm:$0xff]
        %v3703 = vld [vmem:[%s846 + $0xf0] sm:$0xff]
        %v3704 = vld [vmem:[%s846 + $0xf8] sm:$0xff]
        %v3709 = vunpack.c.l.b16 %v3641
        %v3710 = vunpack.c.l.b16 %v3642
        %v3711 = vunpack.c.l.b16 %v3643
        %v3712 = vunpack.c.l.b16 %v3644
        %v3713 = vpack.c.b16 %v3710, %v3709
        %v3714 = vpack.c.b16 %v3712, %v3711
        %v3719 = vunpack.c.l.b16 %v3673
        %v3720 = vunpack.c.h.b16 %v3673
        %v3721 = vunpack.c.l.b16 %v3674
        %v3722 = vunpack.c.h.b16 %v3674
        %v3723 = vunpack.c.l.b16 %v3675
        %v3724 = vunpack.c.h.b16 %v3675
        %v3725 = vunpack.c.l.b16 %v3676
        %v3726 = vunpack.c.h.b16 %v3676
        %v3727 = vpack.c.b16 %v3721, %v3719
        %v3728 = vpack.c.b16 %v3722, %v3720
        %v3729 = vpack.c.b16 %v3725, %v3723
        %v3730 = vpack.c.b16 %v3726, %v3724
        %v3736 = vsel %vm2462, %v3713, 0
        %v3739 = vsel %vm2462, %v3714, 0
        %3741 = vmatpush.bf16.msra.mxu0 0
        %3742 = vmatpush.bf16.msra.mxu0 0
        %3743 = vmatpush.bf16.msra.mxu0 0
        %3744 = vmatpush.bf16.msra.mxu0 0
        %3745 = vmatpush.bf16.msra.mxu0 0
        %3746 = vmatpush.bf16.msra.mxu0 0
        %3747 = vmatpush.bf16.msra.mxu0 %v3729
        %3748 = vmatpush.bf16.msra.mxu0 %v3727
        %3749 = vmatmul.bf16.gmra.mxu0 %v3736
        %v3750 = vpop.f32.mrf.mxu0
        %v3751 = vadd.f32 0.0, %v3750
        %v3752 = vpop.f32.mrf.mxu0
        %v3753 = vadd.f32 0.0, %v3752
        %3754 = vmatmul.bf16.gmra.mxu0 %v3739
        %v3755 = vpop.f32.mrf.mxu0
        %v3756 = vadd.f32 0.0, %v3755
        %v3757 = vpop.f32.mrf.mxu0
        %v3758 = vadd.f32 0.0, %v3757
        %3759 = vdwg.mxu0
        %3760 = vmatpush.bf16.msra.mxu0 0
        %3761 = vmatpush.bf16.msra.mxu0 0
        %3762 = vmatpush.bf16.msra.mxu0 0
        %3763 = vmatpush.bf16.msra.mxu0 0
        %3764 = vmatpush.bf16.msra.mxu0 0
        %3765 = vmatpush.bf16.msra.mxu0 0
        %3766 = vmatpush.bf16.msra.mxu0 %v3730
        %3767 = vmatpush.bf16.msra.mxu0 %v3728
        %3768 = vmatmul.bf16.gmra.mxu0 %v3736
        %v3769 = vpop.f32.mrf.mxu0
        %v3770 = vadd.f32 0.0, %v3769
        %v3771 = vpop.f32.mrf.mxu0
        %v3772 = vadd.f32 0.0, %v3771
        %3773 = vmatmul.bf16.gmra.mxu0 %v3739
        %v3774 = vpop.f32.mrf.mxu0
        %v3775 = vadd.f32 0.0, %v3774
        %v3776 = vpop.f32.mrf.mxu0
        %v3777 = vadd.f32 0.0, %v3776
        %3778 = vdwg.mxu0
        %v3783 = vunpack.c.l.b16 %v3645
        %v3784 = vunpack.c.l.b16 %v3646
        %v3785 = vunpack.c.l.b16 %v3647
        %v3786 = vunpack.c.l.b16 %v3648
        %v3787 = vpack.c.b16 %v3784, %v3783
        %v3788 = vpack.c.b16 %v3786, %v3785
        %v3793 = vunpack.c.l.b16 %v3677
        %v3794 = vunpack.c.h.b16 %v3677
        %v3795 = vunpack.c.l.b16 %v3678
        %v3796 = vunpack.c.h.b16 %v3678
        %v3797 = vunpack.c.l.b16 %v3679
        %v3798 = vunpack.c.h.b16 %v3679
        %v3799 = vunpack.c.l.b16 %v3680
        %v3800 = vunpack.c.h.b16 %v3680
        %v3801 = vpack.c.b16 %v3795, %v3793
        %v3802 = vpack.c.b16 %v3796, %v3794
        %v3803 = vpack.c.b16 %v3799, %v3797
        %v3804 = vpack.c.b16 %v3800, %v3798
        %v3810 = vsel %vm2462, %v3787, 0
        %v3813 = vsel %vm2462, %v3788, 0
        %3815 = vmatpush.bf16.msra.mxu0 0
        %3816 = vmatpush.bf16.msra.mxu0 0
        %3817 = vmatpush.bf16.msra.mxu0 0
        %3818 = vmatpush.bf16.msra.mxu0 0
        %3819 = vmatpush.bf16.msra.mxu0 0
        %3820 = vmatpush.bf16.msra.mxu0 0
        %3821 = vmatpush.bf16.msra.mxu0 %v3803
        %3822 = vmatpush.bf16.msra.mxu0 %v3801
        %3823 = vmatmul.bf16.gmra.mxu0 %v3810
        %v3824 = vpop.f32.mrf.mxu0
        %v3825 = vadd.f32 0.0, %v3824
        %v3826 = vpop.f32.mrf.mxu0
        %v3827 = vadd.f32 0.0, %v3826
        %3828 = vmatmul.bf16.gmra.mxu0 %v3813
        %v3829 = vpop.f32.mrf.mxu0
        %v3830 = vadd.f32 0.0, %v3829
        %v3831 = vpop.f32.mrf.mxu0
        %v3832 = vadd.f32 0.0, %v3831
        %3833 = vdwg.mxu0
        %3834 = vmatpush.bf16.msra.mxu0 0
        %3835 = vmatpush.bf16.msra.mxu0 0
        %3836 = vmatpush.bf16.msra.mxu0 0
        %3837 = vmatpush.bf16.msra.mxu0 0
        %3838 = vmatpush.bf16.msra.mxu0 0
        %3839 = vmatpush.bf16.msra.mxu0 0
        %3840 = vmatpush.bf16.msra.mxu0 %v3804
        %3841 = vmatpush.bf16.msra.mxu0 %v3802
        %3842 = vmatmul.bf16.gmra.mxu0 %v3810
        %v3843 = vpop.f32.mrf.mxu0
        %v3844 = vadd.f32 0.0, %v3843
        %v3845 = vpop.f32.mrf.mxu0
        %v3846 = vadd.f32 0.0, %v3845
        %3847 = vmatmul.bf16.gmra.mxu0 %v3813
        %v3848 = vpop.f32.mrf.mxu0
        %v3849 = vadd.f32 0.0, %v3848
        %v3850 = vpop.f32.mrf.mxu0
        %v3851 = vadd.f32 0.0, %v3850
        %3852 = vdwg.mxu0
        %v3857 = vunpack.c.l.b16 %v3649
        %v3858 = vunpack.c.l.b16 %v3650
        %v3859 = vunpack.c.l.b16 %v3651
        %v3860 = vunpack.c.l.b16 %v3652
        %v3861 = vpack.c.b16 %v3858, %v3857
        %v3862 = vpack.c.b16 %v3860, %v3859
        %v3867 = vunpack.c.l.b16 %v3681
        %v3868 = vunpack.c.h.b16 %v3681
        %v3869 = vunpack.c.l.b16 %v3682
        %v3870 = vunpack.c.h.b16 %v3682
        %v3871 = vunpack.c.l.b16 %v3683
        %v3872 = vunpack.c.h.b16 %v3683
        %v3873 = vunpack.c.l.b16 %v3684
        %v3874 = vunpack.c.h.b16 %v3684
        %v3875 = vpack.c.b16 %v3869, %v3867
        %v3876 = vpack.c.b16 %v3870, %v3868
        %v3877 = vpack.c.b16 %v3873, %v3871
        %v3878 = vpack.c.b16 %v3874, %v3872
        %v3884 = vsel %vm2462, %v3861, 0
        %v3887 = vsel %vm2462, %v3862, 0
        %3889 = vmatpush.bf16.msra.mxu0 0
        %3890 = vmatpush.bf16.msra.mxu0 0
        %3891 = vmatpush.bf16.msra.mxu0 0
        %3892 = vmatpush.bf16.msra.mxu0 0
        %3893 = vmatpush.bf16.msra.mxu0 0
        %3894 = vmatpush.bf16.msra.mxu0 0
        %3895 = vmatpush.bf16.msra.mxu0 %v3877
        %3896 = vmatpush.bf16.msra.mxu0 %v3875
        %3897 = vmatmul.bf16.gmra.mxu0 %v3884
        %v3898 = vpop.f32.mrf.mxu0
        %v3899 = vadd.f32 0.0, %v3898
        %v3900 = vpop.f32.mrf.mxu0
        %v3901 = vadd.f32 0.0, %v3900
        %3902 = vmatmul.bf16.gmra.mxu0 %v3887
        %v3903 = vpop.f32.mrf.mxu0
        %v3904 = vadd.f32 0.0, %v3903
        %v3905 = vpop.f32.mrf.mxu0
        %v3906 = vadd.f32 0.0, %v3905
        %3907 = vdwg.mxu0
        %3908 = vmatpush.bf16.msra.mxu0 0
        %3909 = vmatpush.bf16.msra.mxu0 0
        %3910 = vmatpush.bf16.msra.mxu0 0
        %3911 = vmatpush.bf16.msra.mxu0 0
        %3912 = vmatpush.bf16.msra.mxu0 0
        %3913 = vmatpush.bf16.msra.mxu0 0
        %3914 = vmatpush.bf16.msra.mxu0 %v3878
        %3915 = vmatpush.bf16.msra.mxu0 %v3876
        %3916 = vmatmul.bf16.gmra.mxu0 %v3884
        %v3917 = vpop.f32.mrf.mxu0
        %v3918 = vadd.f32 0.0, %v3917
        %v3919 = vpop.f32.mrf.mxu0
        %v3920 = vadd.f32 0.0, %v3919
        %3921 = vmatmul.bf16.gmra.mxu0 %v3887
        %v3922 = vpop.f32.mrf.mxu0
        %v3923 = vadd.f32 0.0, %v3922
        %v3924 = vpop.f32.mrf.mxu0
        %v3925 = vadd.f32 0.0, %v3924
        %3926 = vdwg.mxu0
        %v3931 = vunpack.c.l.b16 %v3653
        %v3932 = vunpack.c.l.b16 %v3654
        %v3933 = vunpack.c.l.b16 %v3655
        %v3934 = vunpack.c.l.b16 %v3656
        %v3935 = vpack.c.b16 %v3932, %v3931
        %v3936 = vpack.c.b16 %v3934, %v3933
        %v3941 = vunpack.c.l.b16 %v3685
        %v3942 = vunpack.c.h.b16 %v3685
        %v3943 = vunpack.c.l.b16 %v3686
        %v3944 = vunpack.c.h.b16 %v3686
        %v3945 = vunpack.c.l.b16 %v3687
        %v3946 = vunpack.c.h.b16 %v3687
        %v3947 = vunpack.c.l.b16 %v3688
        %v3948 = vunpack.c.h.b16 %v3688
        %v3949 = vpack.c.b16 %v3943, %v3941
        %v3950 = vpack.c.b16 %v3944, %v3942
        %v3951 = vpack.c.b16 %v3947, %v3945
        %v3952 = vpack.c.b16 %v3948, %v3946
        %v3958 = vsel %vm2462, %v3935, 0
        %v3961 = vsel %vm2462, %v3936, 0
        %3963 = vmatpush.bf16.msra.mxu0 0
        %3964 = vmatpush.bf16.msra.mxu0 0
        %3965 = vmatpush.bf16.msra.mxu0 0
        %3966 = vmatpush.bf16.msra.mxu0 0
        %3967 = vmatpush.bf16.msra.mxu0 0
        %3968 = vmatpush.bf16.msra.mxu0 0
        %3969 = vmatpush.bf16.msra.mxu0 %v3951
        %3970 = vmatpush.bf16.msra.mxu0 %v3949
        %3971 = vmatmul.bf16.gmra.mxu0 %v3958
        %v3972 = vpop.f32.mrf.mxu0
        %v3973 = vadd.f32 0.0, %v3972
        %v3974 = vpop.f32.mrf.mxu0
        %v3975 = vadd.f32 0.0, %v3974
        %3976 = vmatmul.bf16.gmra.mxu0 %v3961
        %v3977 = vpop.f32.mrf.mxu0
        %v3978 = vadd.f32 0.0, %v3977
        %v3979 = vpop.f32.mrf.mxu0
        %v3980 = vadd.f32 0.0, %v3979
        %3981 = vdwg.mxu0
        %3982 = vmatpush.bf16.msra.mxu0 0
        %3983 = vmatpush.bf16.msra.mxu0 0
        %3984 = vmatpush.bf16.msra.mxu0 0
        %3985 = vmatpush.bf16.msra.mxu0 0
        %3986 = vmatpush.bf16.msra.mxu0 0
        %3987 = vmatpush.bf16.msra.mxu0 0
        %3988 = vmatpush.bf16.msra.mxu0 %v3952
        %3989 = vmatpush.bf16.msra.mxu0 %v3950
        %3990 = vmatmul.bf16.gmra.mxu0 %v3958
        %v3991 = vpop.f32.mrf.mxu0
        %v3992 = vadd.f32 0.0, %v3991
        %v3993 = vpop.f32.mrf.mxu0
        %v3994 = vadd.f32 0.0, %v3993
        %3995 = vmatmul.bf16.gmra.mxu0 %v3961
        %v3996 = vpop.f32.mrf.mxu0
        %v3997 = vadd.f32 0.0, %v3996
        %v3998 = vpop.f32.mrf.mxu0
        %v3999 = vadd.f32 0.0, %v3998
        %4000 = vdwg.mxu0
        %v4005 = vunpack.c.l.b16 %v3657
        %v4006 = vunpack.c.l.b16 %v3658
        %v4007 = vunpack.c.l.b16 %v3659
        %v4008 = vunpack.c.l.b16 %v3660
        %v4009 = vpack.c.b16 %v4006, %v4005
        %v4010 = vpack.c.b16 %v4008, %v4007
        %v4015 = vunpack.c.l.b16 %v3689
        %v4016 = vunpack.c.h.b16 %v3689
        %v4017 = vunpack.c.l.b16 %v3690
        %v4018 = vunpack.c.h.b16 %v3690
        %v4019 = vunpack.c.l.b16 %v3691
        %v4020 = vunpack.c.h.b16 %v3691
        %v4021 = vunpack.c.l.b16 %v3692
        %v4022 = vunpack.c.h.b16 %v3692
        %v4023 = vpack.c.b16 %v4017, %v4015
        %v4024 = vpack.c.b16 %v4018, %v4016
        %v4025 = vpack.c.b16 %v4021, %v4019
        %v4026 = vpack.c.b16 %v4022, %v4020
        %v4032 = vsel %vm2462, %v4009, 0
        %v4035 = vsel %vm2462, %v4010, 0
        %4037 = vmatpush.bf16.msra.mxu0 0
        %4038 = vmatpush.bf16.msra.mxu0 0
        %4039 = vmatpush.bf16.msra.mxu0 0
        %4040 = vmatpush.bf16.msra.mxu0 0
        %4041 = vmatpush.bf16.msra.mxu0 0
        %4042 = vmatpush.bf16.msra.mxu0 0
        %4043 = vmatpush.bf16.msra.mxu0 %v4025
        %4044 = vmatpush.bf16.msra.mxu0 %v4023
        %4045 = vmatmul.bf16.gmra.mxu0 %v4032
        %v4046 = vpop.f32.mrf.mxu0
        %v4047 = vadd.f32 0.0, %v4046
        %v4048 = vpop.f32.mrf.mxu0
        %v4049 = vadd.f32 0.0, %v4048
        %4050 = vmatmul.bf16.gmra.mxu0 %v4035
        %v4051 = vpop.f32.mrf.mxu0
        %v4052 = vadd.f32 0.0, %v4051
        %v4053 = vpop.f32.mrf.mxu0
        %v4054 = vadd.f32 0.0, %v4053
        %4055 = vdwg.mxu0
        %4056 = vmatpush.bf16.msra.mxu0 0
        %4057 = vmatpush.bf16.msra.mxu0 0
        %4058 = vmatpush.bf16.msra.mxu0 0
        %4059 = vmatpush.bf16.msra.mxu0 0
        %4060 = vmatpush.bf16.msra.mxu0 0
        %4061 = vmatpush.bf16.msra.mxu0 0
        %4062 = vmatpush.bf16.msra.mxu0 %v4026
        %4063 = vmatpush.bf16.msra.mxu0 %v4024
        %4064 = vmatmul.bf16.gmra.mxu0 %v4032
        %v4065 = vpop.f32.mrf.mxu0
        %v4066 = vadd.f32 0.0, %v4065
        %v4067 = vpop.f32.mrf.mxu0
        %v4068 = vadd.f32 0.0, %v4067
        %4069 = vmatmul.bf16.gmra.mxu0 %v4035
        %v4070 = vpop.f32.mrf.mxu0
        %v4071 = vadd.f32 0.0, %v4070
        %v4072 = vpop.f32.mrf.mxu0
        %v4073 = vadd.f32 0.0, %v4072
        %4074 = vdwg.mxu0
        %v4079 = vunpack.c.l.b16 %v3661
        %v4080 = vunpack.c.l.b16 %v3662
        %v4081 = vunpack.c.l.b16 %v3663
        %v4082 = vunpack.c.l.b16 %v3664
        %v4083 = vpack.c.b16 %v4080, %v4079
        %v4084 = vpack.c.b16 %v4082, %v4081
        %v4089 = vunpack.c.l.b16 %v3693
        %v4090 = vunpack.c.h.b16 %v3693
        %v4091 = vunpack.c.l.b16 %v3694
        %v4092 = vunpack.c.h.b16 %v3694
        %v4093 = vunpack.c.l.b16 %v3695
        %v4094 = vunpack.c.h.b16 %v3695
        %v4095 = vunpack.c.l.b16 %v3696
        %v4096 = vunpack.c.h.b16 %v3696
        %v4097 = vpack.c.b16 %v4091, %v4089
        %v4098 = vpack.c.b16 %v4092, %v4090
        %v4099 = vpack.c.b16 %v4095, %v4093
        %v4100 = vpack.c.b16 %v4096, %v4094
        %v4106 = vsel %vm2462, %v4083, 0
        %v4109 = vsel %vm2462, %v4084, 0
        %4111 = vmatpush.bf16.msra.mxu0 0
        %4112 = vmatpush.bf16.msra.mxu0 0
        %4113 = vmatpush.bf16.msra.mxu0 0
        %4114 = vmatpush.bf16.msra.mxu0 0
        %4115 = vmatpush.bf16.msra.mxu0 0
        %4116 = vmatpush.bf16.msra.mxu0 0
        %4117 = vmatpush.bf16.msra.mxu0 %v4099
        %4118 = vmatpush.bf16.msra.mxu0 %v4097
        %4119 = vmatmul.bf16.gmra.mxu0 %v4106
        %v4120 = vpop.f32.mrf.mxu0
        %v4121 = vadd.f32 0.0, %v4120
        %v4122 = vpop.f32.mrf.mxu0
        %v4123 = vadd.f32 0.0, %v4122
        %4124 = vmatmul.bf16.gmra.mxu0 %v4109
        %v4125 = vpop.f32.mrf.mxu0
        %v4126 = vadd.f32 0.0, %v4125
        %v4127 = vpop.f32.mrf.mxu0
        %v4128 = vadd.f32 0.0, %v4127
        %4129 = vdwg.mxu0
        %4130 = vmatpush.bf16.msra.mxu0 0
        %4131 = vmatpush.bf16.msra.mxu0 0
        %4132 = vmatpush.bf16.msra.mxu0 0
        %4133 = vmatpush.bf16.msra.mxu0 0
        %4134 = vmatpush.bf16.msra.mxu0 0
        %4135 = vmatpush.bf16.msra.mxu0 0
        %4136 = vmatpush.bf16.msra.mxu0 %v4100
        %4137 = vmatpush.bf16.msra.mxu0 %v4098
        %4138 = vmatmul.bf16.gmra.mxu0 %v4106
        %v4139 = vpop.f32.mrf.mxu0
        %v4140 = vadd.f32 0.0, %v4139
        %v4141 = vpop.f32.mrf.mxu0
        %v4142 = vadd.f32 0.0, %v4141
        %4143 = vmatmul.bf16.gmra.mxu0 %v4109
        %v4144 = vpop.f32.mrf.mxu0
        %v4145 = vadd.f32 0.0, %v4144
        %v4146 = vpop.f32.mrf.mxu0
        %v4147 = vadd.f32 0.0, %v4146
        %4148 = vdwg.mxu0
        %v4153 = vunpack.c.l.b16 %v3665
        %v4154 = vunpack.c.l.b16 %v3666
        %v4155 = vunpack.c.l.b16 %v3667
        %v4156 = vunpack.c.l.b16 %v3668
        %v4157 = vpack.c.b16 %v4154, %v4153
        %v4158 = vpack.c.b16 %v4156, %v4155
        %v4163 = vunpack.c.l.b16 %v3697
        %v4164 = vunpack.c.h.b16 %v3697
        %v4165 = vunpack.c.l.b16 %v3698
        %v4166 = vunpack.c.h.b16 %v3698
        %v4167 = vunpack.c.l.b16 %v3699
        %v4168 = vunpack.c.h.b16 %v3699
        %v4169 = vunpack.c.l.b16 %v3700
        %v4170 = vunpack.c.h.b16 %v3700
        %v4171 = vpack.c.b16 %v4165, %v4163
        %v4172 = vpack.c.b16 %v4166, %v4164
        %v4173 = vpack.c.b16 %v4169, %v4167
        %v4174 = vpack.c.b16 %v4170, %v4168
        %v4180 = vsel %vm2462, %v4157, 0
        %v4183 = vsel %vm2462, %v4158, 0
        %4185 = vmatpush.bf16.msra.mxu0 0
        %4186 = vmatpush.bf16.msra.mxu0 0
        %4187 = vmatpush.bf16.msra.mxu0 0
        %4188 = vmatpush.bf16.msra.mxu0 0
        %4189 = vmatpush.bf16.msra.mxu0 0
        %4190 = vmatpush.bf16.msra.mxu0 0
        %4191 = vmatpush.bf16.msra.mxu0 %v4173
        %4192 = vmatpush.bf16.msra.mxu0 %v4171
        %4193 = vmatmul.bf16.gmra.mxu0 %v4180
        %v4194 = vpop.f32.mrf.mxu0
        %v4195 = vadd.f32 0.0, %v4194
        %v4196 = vpop.f32.mrf.mxu0
        %v4197 = vadd.f32 0.0, %v4196
        %4198 = vmatmul.bf16.gmra.mxu0 %v4183
        %v4199 = vpop.f32.mrf.mxu0
        %v4200 = vadd.f32 0.0, %v4199
        %v4201 = vpop.f32.mrf.mxu0
        %v4202 = vadd.f32 0.0, %v4201
        %4203 = vdwg.mxu0
        %4204 = vmatpush.bf16.msra.mxu0 0
        %4205 = vmatpush.bf16.msra.mxu0 0
        %4206 = vmatpush.bf16.msra.mxu0 0
        %4207 = vmatpush.bf16.msra.mxu0 0
        %4208 = vmatpush.bf16.msra.mxu0 0
        %4209 = vmatpush.bf16.msra.mxu0 0
        %4210 = vmatpush.bf16.msra.mxu0 %v4174
        %4211 = vmatpush.bf16.msra.mxu0 %v4172
        %4212 = vmatmul.bf16.gmra.mxu0 %v4180
        %v4213 = vpop.f32.mrf.mxu0
        %v4214 = vadd.f32 0.0, %v4213
        %v4215 = vpop.f32.mrf.mxu0
        %v4216 = vadd.f32 0.0, %v4215
        %4217 = vmatmul.bf16.gmra.mxu0 %v4183
        %v4218 = vpop.f32.mrf.mxu0
        %v4219 = vadd.f32 0.0, %v4218
        %v4220 = vpop.f32.mrf.mxu0
        %v4221 = vadd.f32 0.0, %v4220
        %4222 = vdwg.mxu0
        %v4227 = vunpack.c.l.b16 %v3669
        %v4228 = vunpack.c.l.b16 %v3670
        %v4229 = vunpack.c.l.b16 %v3671
        %v4230 = vunpack.c.l.b16 %v3672
        %v4231 = vpack.c.b16 %v4228, %v4227
        %v4232 = vpack.c.b16 %v4230, %v4229
        %v4237 = vunpack.c.l.b16 %v3701
        %v4238 = vunpack.c.h.b16 %v3701
        %v4239 = vunpack.c.l.b16 %v3702
        %v4240 = vunpack.c.h.b16 %v3702
        %v4241 = vunpack.c.l.b16 %v3703
        %v4242 = vunpack.c.h.b16 %v3703
        %v4243 = vunpack.c.l.b16 %v3704
        %v4244 = vunpack.c.h.b16 %v3704
        %v4245 = vpack.c.b16 %v4239, %v4237
        %v4246 = vpack.c.b16 %v4240, %v4238
        %v4247 = vpack.c.b16 %v4243, %v4241
        %v4248 = vpack.c.b16 %v4244, %v4242
        %v4254 = vsel %vm2462, %v4231, 0
        %v4257 = vsel %vm2462, %v4232, 0
        %4259 = vmatpush.bf16.msra.mxu0 0
        %4260 = vmatpush.bf16.msra.mxu0 0
        %4261 = vmatpush.bf16.msra.mxu0 0
        %4262 = vmatpush.bf16.msra.mxu0 0
        %4263 = vmatpush.bf16.msra.mxu0 0
        %4264 = vmatpush.bf16.msra.mxu0 0
        %4265 = vmatpush.bf16.msra.mxu0 %v4247
        %4266 = vmatpush.bf16.msra.mxu0 %v4245
        %4267 = vmatmul.bf16.gmra.mxu0 %v4254
        %v4268 = vpop.f32.mrf.mxu0
        %v4269 = vadd.f32 0.0, %v4268
        %v4270 = vpop.f32.mrf.mxu0
        %v4271 = vadd.f32 0.0, %v4270
        %4272 = vmatmul.bf16.gmra.mxu0 %v4257
        %v4273 = vpop.f32.mrf.mxu0
        %v4274 = vadd.f32 0.0, %v4273
        %v4275 = vpop.f32.mrf.mxu0
        %v4276 = vadd.f32 0.0, %v4275
        %4277 = vdwg.mxu0
        %4278 = vmatpush.bf16.msra.mxu0 0
        %4279 = vmatpush.bf16.msra.mxu0 0
        %4280 = vmatpush.bf16.msra.mxu0 0
        %4281 = vmatpush.bf16.msra.mxu0 0
        %4282 = vmatpush.bf16.msra.mxu0 0
        %4283 = vmatpush.bf16.msra.mxu0 0
        %4284 = vmatpush.bf16.msra.mxu0 %v4248
        %4285 = vmatpush.bf16.msra.mxu0 %v4246
        %4286 = vmatmul.bf16.gmra.mxu0 %v4254
        %v4287 = vpop.f32.mrf.mxu0
        %v4288 = vadd.f32 0.0, %v4287
        %v4289 = vpop.f32.mrf.mxu0
        %v4290 = vadd.f32 0.0, %v4289
        %4291 = vmatmul.bf16.gmra.mxu0 %v4257
        %v4292 = vpop.f32.mrf.mxu0
        %v4293 = vadd.f32 0.0, %v4292
        %v4294 = vpop.f32.mrf.mxu0
        %v4295 = vadd.f32 0.0, %v4294
        %4296 = vdwg.mxu0
        %v4297 = vadd.f32 %v3751, %v3825
        %v4298 = vadd.f32 %v4297, %v3899
        %v4299 = vadd.f32 %v4298, %v3973
        %v4300 = vadd.f32 %v4299, %v4047
        %v4301 = vadd.f32 %v4300, %v4121
        %v4302 = vadd.f32 %v4301, %v4195
        %v4303 = vadd.f32 %v4302, %v4269
        %v4304 = vadd.f32 %v3770, %v3844
        %v4305 = vadd.f32 %v4304, %v3918
        %v4306 = vadd.f32 %v4305, %v3992
        %v4307 = vadd.f32 %v4306, %v4066
        %v4308 = vadd.f32 %v4307, %v4140
        %v4309 = vadd.f32 %v4308, %v4214
        %v4310 = vadd.f32 %v4309, %v4288
        %v4311 = vadd.f32 %v3753, %v3827
        %v4312 = vadd.f32 %v4311, %v3901
        %v4313 = vadd.f32 %v4312, %v3975
        %v4314 = vadd.f32 %v4313, %v4049
        %v4315 = vadd.f32 %v4314, %v4123
        %v4316 = vadd.f32 %v4315, %v4197
        %v4317 = vadd.f32 %v4316, %v4271
        %v4318 = vadd.f32 %v3772, %v3846
        %v4319 = vadd.f32 %v4318, %v3920
        %v4320 = vadd.f32 %v4319, %v3994
        %v4321 = vadd.f32 %v4320, %v4068
        %v4322 = vadd.f32 %v4321, %v4142
        %v4323 = vadd.f32 %v4322, %v4216
        %v4324 = vadd.f32 %v4323, %v4290
        %v4325 = vadd.f32 %v3756, %v3830
        %v4326 = vadd.f32 %v4325, %v3904
        %v4327 = vadd.f32 %v4326, %v3978
        %v4328 = vadd.f32 %v4327, %v4052
        %v4329 = vadd.f32 %v4328, %v4126
        %v4330 = vadd.f32 %v4329, %v4200
        %v4331 = vadd.f32 %v4330, %v4274
        %v4332 = vadd.f32 %v3775, %v3849
        %v4333 = vadd.f32 %v4332, %v3923
        %v4334 = vadd.f32 %v4333, %v3997
        %v4335 = vadd.f32 %v4334, %v4071
        %v4336 = vadd.f32 %v4335, %v4145
        %v4337 = vadd.f32 %v4336, %v4219
        %v4338 = vadd.f32 %v4337, %v4293
        %v4339 = vadd.f32 %v3758, %v3832
        %v4340 = vadd.f32 %v4339, %v3906
        %v4341 = vadd.f32 %v4340, %v3980
        %v4342 = vadd.f32 %v4341, %v4054
        %v4343 = vadd.f32 %v4342, %v4128
        %v4344 = vadd.f32 %v4343, %v4202
        %v4345 = vadd.f32 %v4344, %v4276
        %v4346 = vadd.f32 %v3777, %v3851
        %v4347 = vadd.f32 %v4346, %v3925
        %v4348 = vadd.f32 %v4347, %v3999
        %v4349 = vadd.f32 %v4348, %v4073
        %v4350 = vadd.f32 %v4349, %v4147
        %v4351 = vadd.f32 %v4350, %v4221
        %v4352 = vadd.f32 %v4351, %v4295
        %v4353 = vld [vmem:[%s856] sm:$0x3]
        %v4355 = vperm.slane %v4353, 0
        %v4356 = vperm.slane %v4353, 1
        %v4359 = vadd.f32 %v4303, %v4355
        %v4360 = vadd.f32 %v4310, %v4356
        %v4361 = vadd.f32 %v4317, %v4355
        %v4362 = vadd.f32 %v4324, %v4356
        %v4363 = vadd.f32 %v4331, %v4355
        %v4364 = vadd.f32 %v4338, %v4356
        %v4365 = vadd.f32 %v4345, %v4355
        %v4366 = vadd.f32 %v4352, %v4356
        %v4367 = vadd.f32 %v1094, %v4359
        %v4368 = vadd.f32 %v1095, %v4360
        %v4369 = vadd.f32 %v1096, %v4361
        %v4370 = vadd.f32 %v1097, %v4362
        %v4371 = vadd.f32 %v1098, %v4363
        %v4372 = vadd.f32 %v1099, %v4364
        %v4373 = vadd.f32 %v1100, %v4365
        %v4374 = vadd.f32 %v1101, %v4366
        %v4375 = vadd.f32 %v4367, %v4368
        %4376 = vadd.xlane.f32.xlu0 %v4375
        %v4377 = vpop.xlane.xlu0 %4376
        %v4378 = vadd.f32 %v4369, %v4370
        %4379 = vadd.xlane.f32.xlu0 %v4378
        %v4380 = vpop.xlane.xlu0 %4379
        %v4381 = vadd.f32 %v4371, %v4372
        %4382 = vadd.xlane.f32.xlu0 %v4381
        %v4383 = vpop.xlane.xlu0 %4382
        %v4384 = vadd.f32 %v4373, %v4374
        %4385 = vadd.xlane.f32.xlu0 %v4384
        %v4386 = vpop.xlane.xlu0 %4385
        %v4387 = vrcp.pop 256.0
        %v4388 = vmul.f32 256.0, %v4387
        %v4389 = vsub.f32 1.0, %v4388
        %v4390 = vmul.f32 %v4387, %v4389
        %v4391 = vadd.f32 %v4387, %v4390
        %vm4392 = vweird.f32 %v4387
        %v4393 = vsel %vm4392, %v4387, %v4391
        %v4394 = vmul.f32 %v4377, %v4393
        %v4395 = vmul.f32 %v4380, %v4393
        %v4396 = vmul.f32 %v4383, %v4393
        %v4397 = vmul.f32 %v4386, %v4393
        %v4398 = vsub.f32 %v4367, %v4394
        %v4399 = vsub.f32 %v4368, %v4394
        %v4400 = vsub.f32 %v4369, %v4395
        %v4401 = vsub.f32 %v4370, %v4395
        %v4402 = vsub.f32 %v4371, %v4396
        %v4403 = vsub.f32 %v4372, %v4396
        %v4404 = vsub.f32 %v4373, %v4397
        %v4405 = vsub.f32 %v4374, %v4397
        %v4406 = vmul.f32 %v4398, %v4398
        %v4407 = vmul.f32 %v4399, %v4399
        %v4408 = vmul.f32 %v4400, %v4400
        %v4409 = vmul.f32 %v4401, %v4401
        %v4410 = vmul.f32 %v4402, %v4402
        %v4411 = vmul.f32 %v4403, %v4403
        %v4412 = vmul.f32 %v4404, %v4404
        %v4413 = vmul.f32 %v4405, %v4405
        %v4414 = vadd.f32 %v4406, %v4407
        %4415 = vadd.xlane.f32.xlu0 %v4414
        %v4416 = vpop.xlane.xlu0 %4415
        %v4417 = vadd.f32 %v4408, %v4409
        %4418 = vadd.xlane.f32.xlu0 %v4417
        %v4419 = vpop.xlane.xlu0 %4418
        %v4420 = vadd.f32 %v4410, %v4411
        %4421 = vadd.xlane.f32.xlu0 %v4420
        %v4422 = vpop.xlane.xlu0 %4421
        %v4423 = vadd.f32 %v4412, %v4413
        %4424 = vadd.xlane.f32.xlu0 %v4423
        %v4425 = vpop.xlane.xlu0 %4424
        %v4426 = vmul.f32 %v4416, %v4393
        %v4427 = vmul.f32 %v4419, %v4393
        %v4428 = vmul.f32 %v4422, %v4393
        %v4429 = vmul.f32 %v4425, %v4393
        %v4430 = vadd.f32 %v4426, 1e-05
        %v4431 = vadd.f32 %v4427, 1e-05
        %v4432 = vadd.f32 %v4428, 1e-05
        %v4433 = vadd.f32 %v4429, 1e-05
        %v4434 = vrsqrt.pop %v4430
        %v4435 = vmul.f32 %v4434, %v4430
        %v4436 = vmul.f32 %v4435, %v4434
        %v4437 = vmul.f32 0.5, %v4436
        %v4438 = vsub.f32 1.5, %v4437
        %v4439 = vmul.f32 %v4434, %v4438
        %vm4440 = vweird.f32 %v4430
        %vm4441 = vweird.f32 %v4434
        %vm4442 = vmor %vm4440, %vm4441
        %v4443 = vsel %vm4442, %v4434, %v4439
        %v4444 = vrsqrt.pop %v4431
        %v4445 = vmul.f32 %v4444, %v4431
        %v4446 = vmul.f32 %v4445, %v4444
        %v4447 = vmul.f32 0.5, %v4446
        %v4448 = vsub.f32 1.5, %v4447
        %v4449 = vmul.f32 %v4444, %v4448
        %vm4450 = vweird.f32 %v4431
        %vm4451 = vweird.f32 %v4444
        %vm4452 = vmor %vm4450, %vm4451
        %v4453 = vsel %vm4452, %v4444, %v4449
        %v4454 = vrsqrt.pop %v4432
        %v4455 = vmul.f32 %v4454, %v4432
        %v4456 = vmul.f32 %v4455, %v4454
        %v4457 = vmul.f32 0.5, %v4456
        %v4458 = vsub.f32 1.5, %v4457
        %v4459 = vmul.f32 %v4454, %v4458
        %vm4460 = vweird.f32 %v4432
        %vm4461 = vweird.f32 %v4454
        %vm4462 = vmor %vm4460, %vm4461
        %v4463 = vsel %vm4462, %v4454, %v4459
        %v4464 = vrsqrt.pop %v4433
        %v4465 = vmul.f32 %v4464, %v4433
        %v4466 = vmul.f32 %v4465, %v4464
        %v4467 = vmul.f32 0.5, %v4466
        %v4468 = vsub.f32 1.5, %v4467
        %v4469 = vmul.f32 %v4464, %v4468
        %vm4470 = vweird.f32 %v4433
        %vm4471 = vweird.f32 %v4464
        %vm4472 = vmor %vm4470, %vm4471
        %v4473 = vsel %vm4472, %v4464, %v4469
        %v4474 = vmul.f32 %v4398, %v4443
        %v4475 = vmul.f32 %v4399, %v4443
        %v4476 = vmul.f32 %v4400, %v4453
        %v4477 = vmul.f32 %v4401, %v4453
        %v4478 = vmul.f32 %v4402, %v4463
        %v4479 = vmul.f32 %v4403, %v4463
        %v4480 = vmul.f32 %v4404, %v4473
        %v4481 = vmul.f32 %v4405, %v4473
        %v4482 = vld [vmem:[%s866] sm:$0x3]
        %v4484 = vperm.slane %v4482, 0
        %v4485 = vperm.slane %v4482, 1
        %v4488 = vmul.f32 %v4474, %v4484
        %v4489 = vmul.f32 %v4475, %v4485
        %v4490 = vmul.f32 %v4476, %v4484
        %v4491 = vmul.f32 %v4477, %v4485
        %v4492 = vmul.f32 %v4478, %v4484
        %v4493 = vmul.f32 %v4479, %v4485
        %v4494 = vmul.f32 %v4480, %v4484
        %v4495 = vmul.f32 %v4481, %v4485
        %v4496 = vld [vmem:[%s876] sm:$0x3]
        %v4498 = vperm.slane %v4496, 0
        %v4499 = vperm.slane %v4496, 1
        %v4502 = vadd.f32 %v4488, %v4498
        %v4503 = vadd.f32 %v4489, %v4499
        %v4504 = vadd.f32 %v4490, %v4498
        %v4505 = vadd.f32 %v4491, %v4499
        %v4506 = vadd.f32 %v4492, %v4498
        %v4507 = vadd.f32 %v4493, %v4499
        %v4508 = vadd.f32 %v4494, %v4498
        %v4509 = vadd.f32 %v4495, %v4499
        %v4510 = vpack.c.bf16 %v4504, %v4502
        %v4511 = vpack.c.bf16 %v4505, %v4503
        %v4512 = vpack.c.bf16 %v4508, %v4506
        %v4513 = vpack.c.bf16 %v4509, %v4507
        %v4514 = vld [vmem:[%s886] sm:$0xff]
        %v4515 = vld [vmem:[%s886 + $0x8] sm:$0xff]
        %v4516 = vld [vmem:[%s886 + $0x10] sm:$0xff]
        %v4517 = vld [vmem:[%s886 + $0x18] sm:$0xff]
        %v4518 = vld [vmem:[%s886 + $0x20] sm:$0xff]
        %v4519 = vld [vmem:[%s886 + $0x28] sm:$0xff]
        %v4520 = vld [vmem:[%s886 + $0x30] sm:$0xff]
        %v4521 = vld [vmem:[%s886 + $0x38] sm:$0xff]
        %v4522 = vld [vmem:[%s886 + $0x40] sm:$0xff]
        %v4523 = vld [vmem:[%s886 + $0x48] sm:$0xff]
        %v4524 = vld [vmem:[%s886 + $0x50] sm:$0xff]
        %v4525 = vld [vmem:[%s886 + $0x58] sm:$0xff]
        %v4526 = vld [vmem:[%s886 + $0x60] sm:$0xff]
        %v4527 = vld [vmem:[%s886 + $0x68] sm:$0xff]
        %v4528 = vld [vmem:[%s886 + $0x70] sm:$0xff]
        %v4529 = vld [vmem:[%s886 + $0x78] sm:$0xff]
        %v4530 = vld [vmem:[%s886 + $0x80] sm:$0xff]
        %v4531 = vld [vmem:[%s886 + $0x88] sm:$0xff]
        %v4532 = vld [vmem:[%s886 + $0x90] sm:$0xff]
        %v4533 = vld [vmem:[%s886 + $0x98] sm:$0xff]
        %v4534 = vld [vmem:[%s886 + $0xa0] sm:$0xff]
        %v4535 = vld [vmem:[%s886 + $0xa8] sm:$0xff]
        %v4536 = vld [vmem:[%s886 + $0xb0] sm:$0xff]
        %v4537 = vld [vmem:[%s886 + $0xb8] sm:$0xff]
        %v4538 = vld [vmem:[%s886 + $0xc0] sm:$0xff]
        %v4539 = vld [vmem:[%s886 + $0xc8] sm:$0xff]
        %v4540 = vld [vmem:[%s886 + $0xd0] sm:$0xff]
        %v4541 = vld [vmem:[%s886 + $0xd8] sm:$0xff]
        %v4542 = vld [vmem:[%s886 + $0xe0] sm:$0xff]
        %v4543 = vld [vmem:[%s886 + $0xe8] sm:$0xff]
        %v4544 = vld [vmem:[%s886 + $0xf0] sm:$0xff]
        %v4545 = vld [vmem:[%s886 + $0xf8] sm:$0xff]
        %v4546 = vld [vmem:[%s886 + $0x100] sm:$0xff]
        %v4547 = vld [vmem:[%s886 + $0x108] sm:$0xff]
        %v4548 = vld [vmem:[%s886 + $0x110] sm:$0xff]
        %v4549 = vld [vmem:[%s886 + $0x118] sm:$0xff]
        %v4550 = vld [vmem:[%s886 + $0x120] sm:$0xff]
        %v4551 = vld [vmem:[%s886 + $0x128] sm:$0xff]
        %v4552 = vld [vmem:[%s886 + $0x130] sm:$0xff]
        %v4553 = vld [vmem:[%s886 + $0x138] sm:$0xff]
        %v4554 = vld [vmem:[%s886 + $0x140] sm:$0xff]
        %v4555 = vld [vmem:[%s886 + $0x148] sm:$0xff]
        %v4556 = vld [vmem:[%s886 + $0x150] sm:$0xff]
        %v4557 = vld [vmem:[%s886 + $0x158] sm:$0xff]
        %v4558 = vld [vmem:[%s886 + $0x160] sm:$0xff]
        %v4559 = vld [vmem:[%s886 + $0x168] sm:$0xff]
        %v4560 = vld [vmem:[%s886 + $0x170] sm:$0xff]
        %v4561 = vld [vmem:[%s886 + $0x178] sm:$0xff]
        %v4562 = vld [vmem:[%s886 + $0x180] sm:$0xff]
        %v4563 = vld [vmem:[%s886 + $0x188] sm:$0xff]
        %v4564 = vld [vmem:[%s886 + $0x190] sm:$0xff]
        %v4565 = vld [vmem:[%s886 + $0x198] sm:$0xff]
        %v4566 = vld [vmem:[%s886 + $0x1a0] sm:$0xff]
        %v4567 = vld [vmem:[%s886 + $0x1a8] sm:$0xff]
        %v4568 = vld [vmem:[%s886 + $0x1b0] sm:$0xff]
        %v4569 = vld [vmem:[%s886 + $0x1b8] sm:$0xff]
        %v4570 = vld [vmem:[%s886 + $0x1c0] sm:$0xff]
        %v4571 = vld [vmem:[%s886 + $0x1c8] sm:$0xff]
        %v4572 = vld [vmem:[%s886 + $0x1d0] sm:$0xff]
        %v4573 = vld [vmem:[%s886 + $0x1d8] sm:$0xff]
        %v4574 = vld [vmem:[%s886 + $0x1e0] sm:$0xff]
        %v4575 = vld [vmem:[%s886 + $0x1e8] sm:$0xff]
        %v4576 = vld [vmem:[%s886 + $0x1f0] sm:$0xff]
        %v4577 = vld [vmem:[%s886 + $0x1f8] sm:$0xff]
        %v4578 = vld [vmem:[%s886 + $0x200] sm:$0xff]
        %v4579 = vld [vmem:[%s886 + $0x208] sm:$0xff]
        %v4580 = vld [vmem:[%s886 + $0x210] sm:$0xff]
        %v4581 = vld [vmem:[%s886 + $0x218] sm:$0xff]
        %v4582 = vld [vmem:[%s886 + $0x220] sm:$0xff]
        %v4583 = vld [vmem:[%s886 + $0x228] sm:$0xff]
        %v4584 = vld [vmem:[%s886 + $0x230] sm:$0xff]
        %v4585 = vld [vmem:[%s886 + $0x238] sm:$0xff]
        %v4586 = vld [vmem:[%s886 + $0x240] sm:$0xff]
        %v4587 = vld [vmem:[%s886 + $0x248] sm:$0xff]
        %v4588 = vld [vmem:[%s886 + $0x250] sm:$0xff]
        %v4589 = vld [vmem:[%s886 + $0x258] sm:$0xff]
        %v4590 = vld [vmem:[%s886 + $0x260] sm:$0xff]
        %v4591 = vld [vmem:[%s886 + $0x268] sm:$0xff]
        %v4592 = vld [vmem:[%s886 + $0x270] sm:$0xff]
        %v4593 = vld [vmem:[%s886 + $0x278] sm:$0xff]
        %v4594 = vld [vmem:[%s886 + $0x280] sm:$0xff]
        %v4595 = vld [vmem:[%s886 + $0x288] sm:$0xff]
        %v4596 = vld [vmem:[%s886 + $0x290] sm:$0xff]
        %v4597 = vld [vmem:[%s886 + $0x298] sm:$0xff]
        %v4598 = vld [vmem:[%s886 + $0x2a0] sm:$0xff]
        %v4599 = vld [vmem:[%s886 + $0x2a8] sm:$0xff]
        %v4600 = vld [vmem:[%s886 + $0x2b0] sm:$0xff]
        %v4601 = vld [vmem:[%s886 + $0x2b8] sm:$0xff]
        %v4602 = vld [vmem:[%s886 + $0x2c0] sm:$0xff]
        %v4603 = vld [vmem:[%s886 + $0x2c8] sm:$0xff]
        %v4604 = vld [vmem:[%s886 + $0x2d0] sm:$0xff]
        %v4605 = vld [vmem:[%s886 + $0x2d8] sm:$0xff]
        %v4606 = vld [vmem:[%s886 + $0x2e0] sm:$0xff]
        %v4607 = vld [vmem:[%s886 + $0x2e8] sm:$0xff]
        %v4608 = vld [vmem:[%s886 + $0x2f0] sm:$0xff]
        %v4609 = vld [vmem:[%s886 + $0x2f8] sm:$0xff]
        %v4610 = vld [vmem:[%s886 + $0x300] sm:$0xff]
        %v4611 = vld [vmem:[%s886 + $0x308] sm:$0xff]
        %v4612 = vld [vmem:[%s886 + $0x310] sm:$0xff]
        %v4613 = vld [vmem:[%s886 + $0x318] sm:$0xff]
        %v4614 = vld [vmem:[%s886 + $0x320] sm:$0xff]
        %v4615 = vld [vmem:[%s886 + $0x328] sm:$0xff]
        %v4616 = vld [vmem:[%s886 + $0x330] sm:$0xff]
        %v4617 = vld [vmem:[%s886 + $0x338] sm:$0xff]
        %v4618 = vld [vmem:[%s886 + $0x340] sm:$0xff]
        %v4619 = vld [vmem:[%s886 + $0x348] sm:$0xff]
        %v4620 = vld [vmem:[%s886 + $0x350] sm:$0xff]
        %v4621 = vld [vmem:[%s886 + $0x358] sm:$0xff]
        %v4622 = vld [vmem:[%s886 + $0x360] sm:$0xff]
        %v4623 = vld [vmem:[%s886 + $0x368] sm:$0xff]
        %v4624 = vld [vmem:[%s886 + $0x370] sm:$0xff]
        %v4625 = vld [vmem:[%s886 + $0x378] sm:$0xff]
        %v4626 = vld [vmem:[%s886 + $0x380] sm:$0xff]
        %v4627 = vld [vmem:[%s886 + $0x388] sm:$0xff]
        %v4628 = vld [vmem:[%s886 + $0x390] sm:$0xff]
        %v4629 = vld [vmem:[%s886 + $0x398] sm:$0xff]
        %v4630 = vld [vmem:[%s886 + $0x3a0] sm:$0xff]
        %v4631 = vld [vmem:[%s886 + $0x3a8] sm:$0xff]
        %v4632 = vld [vmem:[%s886 + $0x3b0] sm:$0xff]
        %v4633 = vld [vmem:[%s886 + $0x3b8] sm:$0xff]
        %v4634 = vld [vmem:[%s886 + $0x3c0] sm:$0xff]
        %v4635 = vld [vmem:[%s886 + $0x3c8] sm:$0xff]
        %v4636 = vld [vmem:[%s886 + $0x3d0] sm:$0xff]
        %v4637 = vld [vmem:[%s886 + $0x3d8] sm:$0xff]
        %v4638 = vld [vmem:[%s886 + $0x3e0] sm:$0xff]
        %v4639 = vld [vmem:[%s886 + $0x3e8] sm:$0xff]
        %v4640 = vld [vmem:[%s886 + $0x3f0] sm:$0xff]
        %v4641 = vld [vmem:[%s886 + $0x3f8] sm:$0xff]
        %v4642 = vld [vmem:[%s896] sm:$0xff]
        %v4644 = vperm.slane %v4642, 0
        %v4645 = vperm.slane %v4642, 1
        %v4646 = vperm.slane %v4642, 2
        %v4647 = vperm.slane %v4642, 3
        %v4648 = vperm.slane %v4642, 4
        %v4649 = vperm.slane %v4642, 5
        %v4650 = vperm.slane %v4642, 6
        %v4651 = vperm.slane %v4642, 7
        %v4788 = vunpack.c.l.b16 %v4514
        %v4789 = vunpack.c.h.b16 %v4514
        %v4790 = vunpack.c.l.b16 %v4515
        %v4791 = vunpack.c.h.b16 %v4515
        %v4792 = vunpack.c.l.b16 %v4516
        %v4793 = vunpack.c.h.b16 %v4516
        %v4794 = vunpack.c.l.b16 %v4517
        %v4795 = vunpack.c.h.b16 %v4517
        %v4796 = vunpack.c.l.b16 %v4518
        %v4797 = vunpack.c.h.b16 %v4518
        %v4798 = vunpack.c.l.b16 %v4519
        %v4799 = vunpack.c.h.b16 %v4519
        %v4800 = vunpack.c.l.b16 %v4520
        %v4801 = vunpack.c.h.b16 %v4520
        %v4802 = vunpack.c.l.b16 %v4521
        %v4803 = vunpack.c.h.b16 %v4521
        %v4804 = vunpack.c.l.b16 %v4522
        %v4805 = vunpack.c.h.b16 %v4522
        %v4806 = vunpack.c.l.b16 %v4523
        %v4807 = vunpack.c.h.b16 %v4523
        %v4808 = vunpack.c.l.b16 %v4524
        %v4809 = vunpack.c.h.b16 %v4524
        %v4810 = vunpack.c.l.b16 %v4525
        %v4811 = vunpack.c.h.b16 %v4525
        %v4812 = vunpack.c.l.b16 %v4526
        %v4813 = vunpack.c.h.b16 %v4526
        %v4814 = vunpack.c.l.b16 %v4527
        %v4815 = vunpack.c.h.b16 %v4527
        %v4816 = vunpack.c.l.b16 %v4528
        %v4817 = vunpack.c.h.b16 %v4528
        %v4818 = vunpack.c.l.b16 %v4529
        %v4819 = vunpack.c.h.b16 %v4529
        %v4820 = vunpack.c.l.b16 %v4530
        %v4821 = vunpack.c.h.b16 %v4530
        %v4822 = vunpack.c.l.b16 %v4531
        %v4823 = vunpack.c.h.b16 %v4531
        %v4824 = vunpack.c.l.b16 %v4532
        %v4825 = vunpack.c.h.b16 %v4532
        %v4826 = vunpack.c.l.b16 %v4533
        %v4827 = vunpack.c.h.b16 %v4533
        %v4828 = vunpack.c.l.b16 %v4534
        %v4829 = vunpack.c.h.b16 %v4534
        %v4830 = vunpack.c.l.b16 %v4535
        %v4831 = vunpack.c.h.b16 %v4535
        %v4832 = vunpack.c.l.b16 %v4536
        %v4833 = vunpack.c.h.b16 %v4536
        %v4834 = vunpack.c.l.b16 %v4537
        %v4835 = vunpack.c.h.b16 %v4537
        %v4836 = vunpack.c.l.b16 %v4538
        %v4837 = vunpack.c.h.b16 %v4538
        %v4838 = vunpack.c.l.b16 %v4539
        %v4839 = vunpack.c.h.b16 %v4539
        %v4840 = vunpack.c.l.b16 %v4540
        %v4841 = vunpack.c.h.b16 %v4540
        %v4842 = vunpack.c.l.b16 %v4541
        %v4843 = vunpack.c.h.b16 %v4541
        %v4844 = vunpack.c.l.b16 %v4542
        %v4845 = vunpack.c.h.b16 %v4542
        %v4846 = vunpack.c.l.b16 %v4543
        %v4847 = vunpack.c.h.b16 %v4543
        %v4848 = vunpack.c.l.b16 %v4544
        %v4849 = vunpack.c.h.b16 %v4544
        %v4850 = vunpack.c.l.b16 %v4545
        %v4851 = vunpack.c.h.b16 %v4545
        %v4852 = vunpack.c.l.b16 %v4546
        %v4853 = vunpack.c.h.b16 %v4546
        %v4854 = vunpack.c.l.b16 %v4547
        %v4855 = vunpack.c.h.b16 %v4547
        %v4856 = vunpack.c.l.b16 %v4548
        %v4857 = vunpack.c.h.b16 %v4548
        %v4858 = vunpack.c.l.b16 %v4549
        %v4859 = vunpack.c.h.b16 %v4549
        %v4860 = vunpack.c.l.b16 %v4550
        %v4861 = vunpack.c.h.b16 %v4550
        %v4862 = vunpack.c.l.b16 %v4551
        %v4863 = vunpack.c.h.b16 %v4551
        %v4864 = vunpack.c.l.b16 %v4552
        %v4865 = vunpack.c.h.b16 %v4552
        %v4866 = vunpack.c.l.b16 %v4553
        %v4867 = vunpack.c.h.b16 %v4553
        %v4868 = vunpack.c.l.b16 %v4554
        %v4869 = vunpack.c.h.b16 %v4554
        %v4870 = vunpack.c.l.b16 %v4555
        %v4871 = vunpack.c.h.b16 %v4555
        %v4872 = vunpack.c.l.b16 %v4556
        %v4873 = vunpack.c.h.b16 %v4556
        %v4874 = vunpack.c.l.b16 %v4557
        %v4875 = vunpack.c.h.b16 %v4557
        %v4876 = vunpack.c.l.b16 %v4558
        %v4877 = vunpack.c.h.b16 %v4558
        %v4878 = vunpack.c.l.b16 %v4559
        %v4879 = vunpack.c.h.b16 %v4559
        %v4880 = vunpack.c.l.b16 %v4560
        %v4881 = vunpack.c.h.b16 %v4560
        %v4882 = vunpack.c.l.b16 %v4561
        %v4883 = vunpack.c.h.b16 %v4561
        %v4884 = vunpack.c.l.b16 %v4562
        %v4885 = vunpack.c.h.b16 %v4562
        %v4886 = vunpack.c.l.b16 %v4563
        %v4887 = vunpack.c.h.b16 %v4563
        %v4888 = vunpack.c.l.b16 %v4564
        %v4889 = vunpack.c.h.b16 %v4564
        %v4890 = vunpack.c.l.b16 %v4565
        %v4891 = vunpack.c.h.b16 %v4565
        %v4892 = vunpack.c.l.b16 %v4566
        %v4893 = vunpack.c.h.b16 %v4566
        %v4894 = vunpack.c.l.b16 %v4567
        %v4895 = vunpack.c.h.b16 %v4567
        %v4896 = vunpack.c.l.b16 %v4568
        %v4897 = vunpack.c.h.b16 %v4568
        %v4898 = vunpack.c.l.b16 %v4569
        %v4899 = vunpack.c.h.b16 %v4569
        %v4900 = vunpack.c.l.b16 %v4570
        %v4901 = vunpack.c.h.b16 %v4570
        %v4902 = vunpack.c.l.b16 %v4571
        %v4903 = vunpack.c.h.b16 %v4571
        %v4904 = vunpack.c.l.b16 %v4572
        %v4905 = vunpack.c.h.b16 %v4572
        %v4906 = vunpack.c.l.b16 %v4573
        %v4907 = vunpack.c.h.b16 %v4573
        %v4908 = vunpack.c.l.b16 %v4574
        %v4909 = vunpack.c.h.b16 %v4574
        %v4910 = vunpack.c.l.b16 %v4575
        %v4911 = vunpack.c.h.b16 %v4575
        %v4912 = vunpack.c.l.b16 %v4576
        %v4913 = vunpack.c.h.b16 %v4576
        %v4914 = vunpack.c.l.b16 %v4577
        %v4915 = vunpack.c.h.b16 %v4577
        %v4916 = vunpack.c.l.b16 %v4578
        %v4917 = vunpack.c.h.b16 %v4578
        %v4918 = vunpack.c.l.b16 %v4579
        %v4919 = vunpack.c.h.b16 %v4579
        %v4920 = vunpack.c.l.b16 %v4580
        %v4921 = vunpack.c.h.b16 %v4580
        %v4922 = vunpack.c.l.b16 %v4581
        %v4923 = vunpack.c.h.b16 %v4581
        %v4924 = vunpack.c.l.b16 %v4582
        %v4925 = vunpack.c.h.b16 %v4582
        %v4926 = vunpack.c.l.b16 %v4583
        %v4927 = vunpack.c.h.b16 %v4583
        %v4928 = vunpack.c.l.b16 %v4584
        %v4929 = vunpack.c.h.b16 %v4584
        %v4930 = vunpack.c.l.b16 %v4585
        %v4931 = vunpack.c.h.b16 %v4585
        %v4932 = vunpack.c.l.b16 %v4586
        %v4933 = vunpack.c.h.b16 %v4586
        %v4934 = vunpack.c.l.b16 %v4587
        %v4935 = vunpack.c.h.b16 %v4587
        %v4936 = vunpack.c.l.b16 %v4588
        %v4937 = vunpack.c.h.b16 %v4588
        %v4938 = vunpack.c.l.b16 %v4589
        %v4939 = vunpack.c.h.b16 %v4589
        %v4940 = vunpack.c.l.b16 %v4590
        %v4941 = vunpack.c.h.b16 %v4590
        %v4942 = vunpack.c.l.b16 %v4591
        %v4943 = vunpack.c.h.b16 %v4591
        %v4944 = vunpack.c.l.b16 %v4592
        %v4945 = vunpack.c.h.b16 %v4592
        %v4946 = vunpack.c.l.b16 %v4593
        %v4947 = vunpack.c.h.b16 %v4593
        %v4948 = vunpack.c.l.b16 %v4594
        %v4949 = vunpack.c.h.b16 %v4594
        %v4950 = vunpack.c.l.b16 %v4595
        %v4951 = vunpack.c.h.b16 %v4595
        %v4952 = vunpack.c.l.b16 %v4596
        %v4953 = vunpack.c.h.b16 %v4596
        %v4954 = vunpack.c.l.b16 %v4597
        %v4955 = vunpack.c.h.b16 %v4597
        %v4956 = vunpack.c.l.b16 %v4598
        %v4957 = vunpack.c.h.b16 %v4598
        %v4958 = vunpack.c.l.b16 %v4599
        %v4959 = vunpack.c.h.b16 %v4599
        %v4960 = vunpack.c.l.b16 %v4600
        %v4961 = vunpack.c.h.b16 %v4600
        %v4962 = vunpack.c.l.b16 %v4601
        %v4963 = vunpack.c.h.b16 %v4601
        %v4964 = vunpack.c.l.b16 %v4602
        %v4965 = vunpack.c.h.b16 %v4602
        %v4966 = vunpack.c.l.b16 %v4603
        %v4967 = vunpack.c.h.b16 %v4603
        %v4968 = vunpack.c.l.b16 %v4604
        %v4969 = vunpack.c.h.b16 %v4604
        %v4970 = vunpack.c.l.b16 %v4605
        %v4971 = vunpack.c.h.b16 %v4605
        %v4972 = vunpack.c.l.b16 %v4606
        %v4973 = vunpack.c.h.b16 %v4606
        %v4974 = vunpack.c.l.b16 %v4607
        %v4975 = vunpack.c.h.b16 %v4607
        %v4976 = vunpack.c.l.b16 %v4608
        %v4977 = vunpack.c.h.b16 %v4608
        %v4978 = vunpack.c.l.b16 %v4609
        %v4979 = vunpack.c.h.b16 %v4609
        %v4980 = vunpack.c.l.b16 %v4610
        %v4981 = vunpack.c.h.b16 %v4610
        %v4982 = vunpack.c.l.b16 %v4611
        %v4983 = vunpack.c.h.b16 %v4611
        %v4984 = vunpack.c.l.b16 %v4612
        %v4985 = vunpack.c.h.b16 %v4612
        %v4986 = vunpack.c.l.b16 %v4613
        %v4987 = vunpack.c.h.b16 %v4613
        %v4988 = vunpack.c.l.b16 %v4614
        %v4989 = vunpack.c.h.b16 %v4614
        %v4990 = vunpack.c.l.b16 %v4615
        %v4991 = vunpack.c.h.b16 %v4615
        %v4992 = vunpack.c.l.b16 %v4616
        %v4993 = vunpack.c.h.b16 %v4616
        %v4994 = vunpack.c.l.b16 %v4617
        %v4995 = vunpack.c.h.b16 %v4617
        %v4996 = vunpack.c.l.b16 %v4618
        %v4997 = vunpack.c.h.b16 %v4618
        %v4998 = vunpack.c.l.b16 %v4619
        %v4999 = vunpack.c.h.b16 %v4619
        %v5000 = vunpack.c.l.b16 %v4620
        %v5001 = vunpack.c.h.b16 %v4620
        %v5002 = vunpack.c.l.b16 %v4621
        %v5003 = vunpack.c.h.b16 %v4621
        %v5004 = vunpack.c.l.b16 %v4622
        %v5005 = vunpack.c.h.b16 %v4622
        %v5006 = vunpack.c.l.b16 %v4623
        %v5007 = vunpack.c.h.b16 %v4623
        %v5008 = vunpack.c.l.b16 %v4624
        %v5009 = vunpack.c.h.b16 %v4624
        %v5010 = vunpack.c.l.b16 %v4625
        %v5011 = vunpack.c.h.b16 %v4625
        %v5012 = vunpack.c.l.b16 %v4626
        %v5013 = vunpack.c.h.b16 %v4626
        %v5014 = vunpack.c.l.b16 %v4627
        %v5015 = vunpack.c.h.b16 %v4627
        %v5016 = vunpack.c.l.b16 %v4628
        %v5017 = vunpack.c.h.b16 %v4628
        %v5018 = vunpack.c.l.b16 %v4629
        %v5019 = vunpack.c.h.b16 %v4629
        %v5020 = vunpack.c.l.b16 %v4630
        %v5021 = vunpack.c.h.b16 %v4630
        %v5022 = vunpack.c.l.b16 %v4631
        %v5023 = vunpack.c.h.b16 %v4631
        %v5024 = vunpack.c.l.b16 %v4632
        %v5025 = vunpack.c.h.b16 %v4632
        %v5026 = vunpack.c.l.b16 %v4633
        %v5027 = vunpack.c.h.b16 %v4633
        %v5028 = vunpack.c.l.b16 %v4634
        %v5029 = vunpack.c.h.b16 %v4634
        %v5030 = vunpack.c.l.b16 %v4635
        %v5031 = vunpack.c.h.b16 %v4635
        %v5032 = vunpack.c.l.b16 %v4636
        %v5033 = vunpack.c.h.b16 %v4636
        %v5034 = vunpack.c.l.b16 %v4637
        %v5035 = vunpack.c.h.b16 %v4637
        %v5036 = vunpack.c.l.b16 %v4638
        %v5037 = vunpack.c.h.b16 %v4638
        %v5038 = vunpack.c.l.b16 %v4639
        %v5039 = vunpack.c.h.b16 %v4639
        %v5040 = vunpack.c.l.b16 %v4640
        %v5041 = vunpack.c.h.b16 %v4640
        %v5042 = vunpack.c.l.b16 %v4641
        %v5043 = vunpack.c.h.b16 %v4641
        %v5044 = vpack.c.b16 %v4796, %v4788
        %v5045 = vpack.c.b16 %v4797, %v4789
        %v5046 = vpack.c.b16 %v4798, %v4790
        %v5047 = vpack.c.b16 %v4799, %v4791
        %v5048 = vpack.c.b16 %v4800, %v4792
        %v5049 = vpack.c.b16 %v4801, %v4793
        %v5050 = vpack.c.b16 %v4802, %v4794
        %v5051 = vpack.c.b16 %v4803, %v4795
        %v5052 = vpack.c.b16 %v4812, %v4804
        %v5053 = vpack.c.b16 %v4813, %v4805
        %v5054 = vpack.c.b16 %v4814, %v4806
        %v5055 = vpack.c.b16 %v4815, %v4807
        %v5056 = vpack.c.b16 %v4816, %v4808
        %v5057 = vpack.c.b16 %v4817, %v4809
        %v5058 = vpack.c.b16 %v4818, %v4810
        %v5059 = vpack.c.b16 %v4819, %v4811
        %v5060 = vpack.c.b16 %v4828, %v4820
        %v5061 = vpack.c.b16 %v4829, %v4821
        %v5062 = vpack.c.b16 %v4830, %v4822
        %v5063 = vpack.c.b16 %v4831, %v4823
        %v5064 = vpack.c.b16 %v4832, %v4824
        %v5065 = vpack.c.b16 %v4833, %v4825
        %v5066 = vpack.c.b16 %v4834, %v4826
        %v5067 = vpack.c.b16 %v4835, %v4827
        %v5068 = vpack.c.b16 %v4844, %v4836
        %v5069 = vpack.c.b16 %v4845, %v4837
        %v5070 = vpack.c.b16 %v4846, %v4838
        %v5071 = vpack.c.b16 %v4847, %v4839
        %v5072 = vpack.c.b16 %v4848, %v4840
        %v5073 = vpack.c.b16 %v4849, %v4841
        %v5074 = vpack.c.b16 %v4850, %v4842
        %v5075 = vpack.c.b16 %v4851, %v4843
        %v5076 = vpack.c.b16 %v4860, %v4852
        %v5077 = vpack.c.b16 %v4861, %v4853
        %v5078 = vpack.c.b16 %v4862, %v4854
        %v5079 = vpack.c.b16 %v4863, %v4855
        %v5080 = vpack.c.b16 %v4864, %v4856
        %v5081 = vpack.c.b16 %v4865, %v4857
        %v5082 = vpack.c.b16 %v4866, %v4858
        %v5083 = vpack.c.b16 %v4867, %v4859
        %v5084 = vpack.c.b16 %v4876, %v4868
        %v5085 = vpack.c.b16 %v4877, %v4869
        %v5086 = vpack.c.b16 %v4878, %v4870
        %v5087 = vpack.c.b16 %v4879, %v4871
        %v5088 = vpack.c.b16 %v4880, %v4872
        %v5089 = vpack.c.b16 %v4881, %v4873
        %v5090 = vpack.c.b16 %v4882, %v4874
        %v5091 = vpack.c.b16 %v4883, %v4875
        %v5092 = vpack.c.b16 %v4892, %v4884
        %v5093 = vpack.c.b16 %v4893, %v4885
        %v5094 = vpack.c.b16 %v4894, %v4886
        %v5095 = vpack.c.b16 %v4895, %v4887
        %v5096 = vpack.c.b16 %v4896, %v4888
        %v5097 = vpack.c.b16 %v4897, %v4889
        %v5098 = vpack.c.b16 %v4898, %v4890
        %v5099 = vpack.c.b16 %v4899, %v4891
        %v5100 = vpack.c.b16 %v4908, %v4900
        %v5101 = vpack.c.b16 %v4909, %v4901
        %v5102 = vpack.c.b16 %v4910, %v4902
        %v5103 = vpack.c.b16 %v4911, %v4903
        %v5104 = vpack.c.b16 %v4912, %v4904
        %v5105 = vpack.c.b16 %v4913, %v4905
        %v5106 = vpack.c.b16 %v4914, %v4906
        %v5107 = vpack.c.b16 %v4915, %v4907
        %v5108 = vpack.c.b16 %v4924, %v4916
        %v5109 = vpack.c.b16 %v4925, %v4917
        %v5110 = vpack.c.b16 %v4926, %v4918
        %v5111 = vpack.c.b16 %v4927, %v4919
        %v5112 = vpack.c.b16 %v4928, %v4920
        %v5113 = vpack.c.b16 %v4929, %v4921
        %v5114 = vpack.c.b16 %v4930, %v4922
        %v5115 = vpack.c.b16 %v4931, %v4923
        %v5116 = vpack.c.b16 %v4940, %v4932
        %v5117 = vpack.c.b16 %v4941, %v4933
        %v5118 = vpack.c.b16 %v4942, %v4934
        %v5119 = vpack.c.b16 %v4943, %v4935
        %v5120 = vpack.c.b16 %v4944, %v4936
        %v5121 = vpack.c.b16 %v4945, %v4937
        %v5122 = vpack.c.b16 %v4946, %v4938
        %v5123 = vpack.c.b16 %v4947, %v4939
        %v5124 = vpack.c.b16 %v4956, %v4948
        %v5125 = vpack.c.b16 %v4957, %v4949
        %v5126 = vpack.c.b16 %v4958, %v4950
        %v5127 = vpack.c.b16 %v4959, %v4951
        %v5128 = vpack.c.b16 %v4960, %v4952
        %v5129 = vpack.c.b16 %v4961, %v4953
        %v5130 = vpack.c.b16 %v4962, %v4954
        %v5131 = vpack.c.b16 %v4963, %v4955
        %v5132 = vpack.c.b16 %v4972, %v4964
        %v5133 = vpack.c.b16 %v4973, %v4965
        %v5134 = vpack.c.b16 %v4974, %v4966
        %v5135 = vpack.c.b16 %v4975, %v4967
        %v5136 = vpack.c.b16 %v4976, %v4968
        %v5137 = vpack.c.b16 %v4977, %v4969
        %v5138 = vpack.c.b16 %v4978, %v4970
        %v5139 = vpack.c.b16 %v4979, %v4971
        %v5140 = vpack.c.b16 %v4988, %v4980
        %v5141 = vpack.c.b16 %v4989, %v4981
        %v5142 = vpack.c.b16 %v4990, %v4982
        %v5143 = vpack.c.b16 %v4991, %v4983
        %v5144 = vpack.c.b16 %v4992, %v4984
        %v5145 = vpack.c.b16 %v4993, %v4985
        %v5146 = vpack.c.b16 %v4994, %v4986
        %v5147 = vpack.c.b16 %v4995, %v4987
        %v5148 = vpack.c.b16 %v5004, %v4996
        %v5149 = vpack.c.b16 %v5005, %v4997
        %v5150 = vpack.c.b16 %v5006, %v4998
        %v5151 = vpack.c.b16 %v5007, %v4999
        %v5152 = vpack.c.b16 %v5008, %v5000
        %v5153 = vpack.c.b16 %v5009, %v5001
        %v5154 = vpack.c.b16 %v5010, %v5002
        %v5155 = vpack.c.b16 %v5011, %v5003
        %v5156 = vpack.c.b16 %v5020, %v5012
        %v5157 = vpack.c.b16 %v5021, %v5013
        %v5158 = vpack.c.b16 %v5022, %v5014
        %v5159 = vpack.c.b16 %v5023, %v5015
        %v5160 = vpack.c.b16 %v5024, %v5016
        %v5161 = vpack.c.b16 %v5025, %v5017
        %v5162 = vpack.c.b16 %v5026, %v5018
        %v5163 = vpack.c.b16 %v5027, %v5019
        %v5164 = vpack.c.b16 %v5036, %v5028
        %v5165 = vpack.c.b16 %v5037, %v5029
        %v5166 = vpack.c.b16 %v5038, %v5030
        %v5167 = vpack.c.b16 %v5039, %v5031
        %v5168 = vpack.c.b16 %v5040, %v5032
        %v5169 = vpack.c.b16 %v5041, %v5033
        %v5170 = vpack.c.b16 %v5042, %v5034
        %v5171 = vpack.c.b16 %v5043, %v5035
        %5300 = vmatpush.bf16.msra.mxu0 %v5100
        %5301 = vmatpush.bf16.msra.mxu0 %v5092
        %5302 = vmatpush.bf16.msra.mxu0 %v5084
        %5303 = vmatpush.bf16.msra.mxu0 %v5076
        %5304 = vmatpush.bf16.msra.mxu0 %v5068
        %5305 = vmatpush.bf16.msra.mxu0 %v5060
        %5306 = vmatpush.bf16.msra.mxu0 %v5052
        %5307 = vmatpush.bf16.msra.mxu0 %v5044
        %5308 = vmatmul.bf16.gmra.mxu0 %v4510
        %v5309 = vpop.f32.mrf.mxu0
        %v5310 = vadd.f32 %v4644, %v5309
        %v5311 = vpop.f32.mrf.mxu0
        %v5312 = vadd.f32 %v4644, %v5311
        %5313 = vmatmul.bf16.gmra.mxu0 %v4512
        %v5314 = vpop.f32.mrf.mxu0
        %v5315 = vadd.f32 %v4644, %v5314
        %v5316 = vpop.f32.mrf.mxu0
        %v5317 = vadd.f32 %v4644, %v5316
        %5318 = vdwg.mxu0
        %5319 = vmatpush.bf16.msra.mxu0 %v5164
        %5320 = vmatpush.bf16.msra.mxu0 %v5156
        %5321 = vmatpush.bf16.msra.mxu0 %v5148
        %5322 = vmatpush.bf16.msra.mxu0 %v5140
        %5323 = vmatpush.bf16.msra.mxu0 %v5132
        %5324 = vmatpush.bf16.msra.mxu0 %v5124
        %5325 = vmatpush.bf16.msra.mxu0 %v5116
        %5326 = vmatpush.bf16.msra.mxu0 %v5108
        %5327 = vmatmul.bf16.gmra.mxu0 %v4511
        %v5328 = vpop.f32.mrf.mxu0
        %v5329 = vadd.f32 %v5310, %v5328
        %v5330 = vpop.f32.mrf.mxu0
        %v5331 = vadd.f32 %v5312, %v5330
        %5332 = vmatmul.bf16.gmra.mxu0 %v4513
        %v5333 = vpop.f32.mrf.mxu0
        %v5334 = vadd.f32 %v5315, %v5333
        %v5335 = vpop.f32.mrf.mxu0
        %v5336 = vadd.f32 %v5317, %v5335
        %5337 = vdwg.mxu0
        %5338 = vmatpush.bf16.msra.mxu0 %v5101
        %5339 = vmatpush.bf16.msra.mxu0 %v5093
        %5340 = vmatpush.bf16.msra.mxu0 %v5085
        %5341 = vmatpush.bf16.msra.mxu0 %v5077
        %5342 = vmatpush.bf16.msra.mxu0 %v5069
        %5343 = vmatpush.bf16.msra.mxu0 %v5061
        %5344 = vmatpush.bf16.msra.mxu0 %v5053
        %5345 = vmatpush.bf16.msra.mxu0 %v5045
        %5346 = vmatmul.bf16.gmra.mxu0 %v4510
        %v5347 = vpop.f32.mrf.mxu0
        %v5348 = vadd.f32 %v4645, %v5347
        %v5349 = vpop.f32.mrf.mxu0
        %v5350 = vadd.f32 %v4645, %v5349
        %5351 = vmatmul.bf16.gmra.mxu0 %v4512
        %v5352 = vpop.f32.mrf.mxu0
        %v5353 = vadd.f32 %v4645, %v5352
        %v5354 = vpop.f32.mrf.mxu0
        %v5355 = vadd.f32 %v4645, %v5354
        %5356 = vdwg.mxu0
        %5357 = vmatpush.bf16.msra.mxu0 %v5165
        %5358 = vmatpush.bf16.msra.mxu0 %v5157
        %5359 = vmatpush.bf16.msra.mxu0 %v5149
        %5360 = vmatpush.bf16.msra.mxu0 %v5141
        %5361 = vmatpush.bf16.msra.mxu0 %v5133
        %5362 = vmatpush.bf16.msra.mxu0 %v5125
        %5363 = vmatpush.bf16.msra.mxu0 %v5117
        %5364 = vmatpush.bf16.msra.mxu0 %v5109
        %5365 = vmatmul.bf16.gmra.mxu0 %v4511
        %v5366 = vpop.f32.mrf.mxu0
        %v5367 = vadd.f32 %v5348, %v5366
        %v5368 = vpop.f32.mrf.mxu0
        %v5369 = vadd.f32 %v5350, %v5368
        %5370 = vmatmul.bf16.gmra.mxu0 %v4513
        %v5371 = vpop.f32.mrf.mxu0
        %v5372 = vadd.f32 %v5353, %v5371
        %v5373 = vpop.f32.mrf.mxu0
        %v5374 = vadd.f32 %v5355, %v5373
        %5375 = vdwg.mxu0
        %5376 = vmatpush.bf16.msra.mxu0 %v5102
        %5377 = vmatpush.bf16.msra.mxu0 %v5094
        %5378 = vmatpush.bf16.msra.mxu0 %v5086
        %5379 = vmatpush.bf16.msra.mxu0 %v5078
        %5380 = vmatpush.bf16.msra.mxu0 %v5070
        %5381 = vmatpush.bf16.msra.mxu0 %v5062
        %5382 = vmatpush.bf16.msra.mxu0 %v5054
        %5383 = vmatpush.bf16.msra.mxu0 %v5046
        %5384 = vmatmul.bf16.gmra.mxu0 %v4510
        %v5385 = vpop.f32.mrf.mxu0
        %v5386 = vadd.f32 %v4646, %v5385
        %v5387 = vpop.f32.mrf.mxu0
        %v5388 = vadd.f32 %v4646, %v5387
        %5389 = vmatmul.bf16.gmra.mxu0 %v4512
        %v5390 = vpop.f32.mrf.mxu0
        %v5391 = vadd.f32 %v4646, %v5390
        %v5392 = vpop.f32.mrf.mxu0
        %v5393 = vadd.f32 %v4646, %v5392
        %5394 = vdwg.mxu0
        %5395 = vmatpush.bf16.msra.mxu0 %v5166
        %5396 = vmatpush.bf16.msra.mxu0 %v5158
        %5397 = vmatpush.bf16.msra.mxu0 %v5150
        %5398 = vmatpush.bf16.msra.mxu0 %v5142
        %5399 = vmatpush.bf16.msra.mxu0 %v5134
        %5400 = vmatpush.bf16.msra.mxu0 %v5126
        %5401 = vmatpush.bf16.msra.mxu0 %v5118
        %5402 = vmatpush.bf16.msra.mxu0 %v5110
        %5403 = vmatmul.bf16.gmra.mxu0 %v4511
        %v5404 = vpop.f32.mrf.mxu0
        %v5405 = vadd.f32 %v5386, %v5404
        %v5406 = vpop.f32.mrf.mxu0
        %v5407 = vadd.f32 %v5388, %v5406
        %5408 = vmatmul.bf16.gmra.mxu0 %v4513
        %v5409 = vpop.f32.mrf.mxu0
        %v5410 = vadd.f32 %v5391, %v5409
        %v5411 = vpop.f32.mrf.mxu0
        %v5412 = vadd.f32 %v5393, %v5411
        %5413 = vdwg.mxu0
        %5414 = vmatpush.bf16.msra.mxu0 %v5103
        %5415 = vmatpush.bf16.msra.mxu0 %v5095
        %5416 = vmatpush.bf16.msra.mxu0 %v5087
        %5417 = vmatpush.bf16.msra.mxu0 %v5079
        %5418 = vmatpush.bf16.msra.mxu0 %v5071
        %5419 = vmatpush.bf16.msra.mxu0 %v5063
        %5420 = vmatpush.bf16.msra.mxu0 %v5055
        %5421 = vmatpush.bf16.msra.mxu0 %v5047
        %5422 = vmatmul.bf16.gmra.mxu0 %v4510
        %v5423 = vpop.f32.mrf.mxu0
        %v5424 = vadd.f32 %v4647, %v5423
        %v5425 = vpop.f32.mrf.mxu0
        %v5426 = vadd.f32 %v4647, %v5425
        %5427 = vmatmul.bf16.gmra.mxu0 %v4512
        %v5428 = vpop.f32.mrf.mxu0
        %v5429 = vadd.f32 %v4647, %v5428
        %v5430 = vpop.f32.mrf.mxu0
        %v5431 = vadd.f32 %v4647, %v5430
        %5432 = vdwg.mxu0
        %5433 = vmatpush.bf16.msra.mxu0 %v5167
        %5434 = vmatpush.bf16.msra.mxu0 %v5159
        %5435 = vmatpush.bf16.msra.mxu0 %v5151
        %5436 = vmatpush.bf16.msra.mxu0 %v5143
        %5437 = vmatpush.bf16.msra.mxu0 %v5135
        %5438 = vmatpush.bf16.msra.mxu0 %v5127
        %5439 = vmatpush.bf16.msra.mxu0 %v5119
        %5440 = vmatpush.bf16.msra.mxu0 %v5111
        %5441 = vmatmul.bf16.gmra.mxu0 %v4511
        %v5442 = vpop.f32.mrf.mxu0
        %v5443 = vadd.f32 %v5424, %v5442
        %v5444 = vpop.f32.mrf.mxu0
        %v5445 = vadd.f32 %v5426, %v5444
        %5446 = vmatmul.bf16.gmra.mxu0 %v4513
        %v5447 = vpop.f32.mrf.mxu0
        %v5448 = vadd.f32 %v5429, %v5447
        %v5449 = vpop.f32.mrf.mxu0
        %v5450 = vadd.f32 %v5431, %v5449
        %5451 = vdwg.mxu0
        %5452 = vmatpush.bf16.msra.mxu0 %v5104
        %5453 = vmatpush.bf16.msra.mxu0 %v5096
        %5454 = vmatpush.bf16.msra.mxu0 %v5088
        %5455 = vmatpush.bf16.msra.mxu0 %v5080
        %5456 = vmatpush.bf16.msra.mxu0 %v5072
        %5457 = vmatpush.bf16.msra.mxu0 %v5064
        %5458 = vmatpush.bf16.msra.mxu0 %v5056
        %5459 = vmatpush.bf16.msra.mxu0 %v5048
        %5460 = vmatmul.bf16.gmra.mxu0 %v4510
        %v5461 = vpop.f32.mrf.mxu0
        %v5462 = vadd.f32 %v4648, %v5461
        %v5463 = vpop.f32.mrf.mxu0
        %v5464 = vadd.f32 %v4648, %v5463
        %5465 = vmatmul.bf16.gmra.mxu0 %v4512
        %v5466 = vpop.f32.mrf.mxu0
        %v5467 = vadd.f32 %v4648, %v5466
        %v5468 = vpop.f32.mrf.mxu0
        %v5469 = vadd.f32 %v4648, %v5468
        %5470 = vdwg.mxu0
        %5471 = vmatpush.bf16.msra.mxu0 %v5168
        %5472 = vmatpush.bf16.msra.mxu0 %v5160
        %5473 = vmatpush.bf16.msra.mxu0 %v5152
        %5474 = vmatpush.bf16.msra.mxu0 %v5144
        %5475 = vmatpush.bf16.msra.mxu0 %v5136
        %5476 = vmatpush.bf16.msra.mxu0 %v5128
        %5477 = vmatpush.bf16.msra.mxu0 %v5120
        %5478 = vmatpush.bf16.msra.mxu0 %v5112
        %5479 = vmatmul.bf16.gmra.mxu0 %v4511
        %v5480 = vpop.f32.mrf.mxu0
        %v5481 = vadd.f32 %v5462, %v5480
        %v5482 = vpop.f32.mrf.mxu0
        %v5483 = vadd.f32 %v5464, %v5482
        %5484 = vmatmul.bf16.gmra.mxu0 %v4513
        %v5485 = vpop.f32.mrf.mxu0
        %v5486 = vadd.f32 %v5467, %v5485
        %v5487 = vpop.f32.mrf.mxu0
        %v5488 = vadd.f32 %v5469, %v5487
        %5489 = vdwg.mxu0
        %5490 = vmatpush.bf16.msra.mxu0 %v5105
        %5491 = vmatpush.bf16.msra.mxu0 %v5097
        %5492 = vmatpush.bf16.msra.mxu0 %v5089
        %5493 = vmatpush.bf16.msra.mxu0 %v5081
        %5494 = vmatpush.bf16.msra.mxu0 %v5073
        %5495 = vmatpush.bf16.msra.mxu0 %v5065
        %5496 = vmatpush.bf16.msra.mxu0 %v5057
        %5497 = vmatpush.bf16.msra.mxu0 %v5049
        %5498 = vmatmul.bf16.gmra.mxu0 %v4510
        %v5499 = vpop.f32.mrf.mxu0
        %v5500 = vadd.f32 %v4649, %v5499
        %v5501 = vpop.f32.mrf.mxu0
        %v5502 = vadd.f32 %v4649, %v5501
        %5503 = vmatmul.bf16.gmra.mxu0 %v4512
        %v5504 = vpop.f32.mrf.mxu0
        %v5505 = vadd.f32 %v4649, %v5504
        %v5506 = vpop.f32.mrf.mxu0
        %v5507 = vadd.f32 %v4649, %v5506
        %5508 = vdwg.mxu0
        %5509 = vmatpush.bf16.msra.mxu0 %v5169
        %5510 = vmatpush.bf16.msra.mxu0 %v5161
        %5511 = vmatpush.bf16.msra.mxu0 %v5153
        %5512 = vmatpush.bf16.msra.mxu0 %v5145
        %5513 = vmatpush.bf16.msra.mxu0 %v5137
        %5514 = vmatpush.bf16.msra.mxu0 %v5129
        %5515 = vmatpush.bf16.msra.mxu0 %v5121
        %5516 = vmatpush.bf16.msra.mxu0 %v5113
        %5517 = vmatmul.bf16.gmra.mxu0 %v4511
        %v5518 = vpop.f32.mrf.mxu0
        %v5519 = vadd.f32 %v5500, %v5518
        %v5520 = vpop.f32.mrf.mxu0
        %v5521 = vadd.f32 %v5502, %v5520
        %5522 = vmatmul.bf16.gmra.mxu0 %v4513
        %v5523 = vpop.f32.mrf.mxu0
        %v5524 = vadd.f32 %v5505, %v5523
        %v5525 = vpop.f32.mrf.mxu0
        %v5526 = vadd.f32 %v5507, %v5525
        %5527 = vdwg.mxu0
        %5528 = vmatpush.bf16.msra.mxu0 %v5106
        %5529 = vmatpush.bf16.msra.mxu0 %v5098
        %5530 = vmatpush.bf16.msra.mxu0 %v5090
        %5531 = vmatpush.bf16.msra.mxu0 %v5082
        %5532 = vmatpush.bf16.msra.mxu0 %v5074
        %5533 = vmatpush.bf16.msra.mxu0 %v5066
        %5534 = vmatpush.bf16.msra.mxu0 %v5058
        %5535 = vmatpush.bf16.msra.mxu0 %v5050
        %5536 = vmatmul.bf16.gmra.mxu0 %v4510
        %v5537 = vpop.f32.mrf.mxu0
        %v5538 = vadd.f32 %v4650, %v5537
        %v5539 = vpop.f32.mrf.mxu0
        %v5540 = vadd.f32 %v4650, %v5539
        %5541 = vmatmul.bf16.gmra.mxu0 %v4512
        %v5542 = vpop.f32.mrf.mxu0
        %v5543 = vadd.f32 %v4650, %v5542
        %v5544 = vpop.f32.mrf.mxu0
        %v5545 = vadd.f32 %v4650, %v5544
        %5546 = vdwg.mxu0
        %5547 = vmatpush.bf16.msra.mxu0 %v5170
        %5548 = vmatpush.bf16.msra.mxu0 %v5162
        %5549 = vmatpush.bf16.msra.mxu0 %v5154
        %5550 = vmatpush.bf16.msra.mxu0 %v5146
        %5551 = vmatpush.bf16.msra.mxu0 %v5138
        %5552 = vmatpush.bf16.msra.mxu0 %v5130
        %5553 = vmatpush.bf16.msra.mxu0 %v5122
        %5554 = vmatpush.bf16.msra.mxu0 %v5114
        %5555 = vmatmul.bf16.gmra.mxu0 %v4511
        %v5556 = vpop.f32.mrf.mxu0
        %v5557 = vadd.f32 %v5538, %v5556
        %v5558 = vpop.f32.mrf.mxu0
        %v5559 = vadd.f32 %v5540, %v5558
        %5560 = vmatmul.bf16.gmra.mxu0 %v4513
        %v5561 = vpop.f32.mrf.mxu0
        %v5562 = vadd.f32 %v5543, %v5561
        %v5563 = vpop.f32.mrf.mxu0
        %v5564 = vadd.f32 %v5545, %v5563
        %5565 = vdwg.mxu0
        %5566 = vmatpush.bf16.msra.mxu0 %v5107
        %5567 = vmatpush.bf16.msra.mxu0 %v5099
        %5568 = vmatpush.bf16.msra.mxu0 %v5091
        %5569 = vmatpush.bf16.msra.mxu0 %v5083
        %5570 = vmatpush.bf16.msra.mxu0 %v5075
        %5571 = vmatpush.bf16.msra.mxu0 %v5067
        %5572 = vmatpush.bf16.msra.mxu0 %v5059
        %5573 = vmatpush.bf16.msra.mxu0 %v5051
        %5574 = vmatmul.bf16.gmra.mxu0 %v4510
        %v5575 = vpop.f32.mrf.mxu0
        %v5576 = vadd.f32 %v4651, %v5575
        %v5577 = vpop.f32.mrf.mxu0
        %v5578 = vadd.f32 %v4651, %v5577
        %5579 = vmatmul.bf16.gmra.mxu0 %v4512
        %v5580 = vpop.f32.mrf.mxu0
        %v5581 = vadd.f32 %v4651, %v5580
        %v5582 = vpop.f32.mrf.mxu0
        %v5583 = vadd.f32 %v4651, %v5582
        %5584 = vdwg.mxu0
        %5585 = vmatpush.bf16.msra.mxu0 %v5171
        %5586 = vmatpush.bf16.msra.mxu0 %v5163
        %5587 = vmatpush.bf16.msra.mxu0 %v5155
        %5588 = vmatpush.bf16.msra.mxu0 %v5147
        %5589 = vmatpush.bf16.msra.mxu0 %v5139
        %5590 = vmatpush.bf16.msra.mxu0 %v5131
        %5591 = vmatpush.bf16.msra.mxu0 %v5123
        %5592 = vmatpush.bf16.msra.mxu0 %v5115
        %5593 = vmatmul.bf16.gmra.mxu0 %v4511
        %v5594 = vpop.f32.mrf.mxu0
        %v5595 = vadd.f32 %v5576, %v5594
        %v5596 = vpop.f32.mrf.mxu0
        %v5597 = vadd.f32 %v5578, %v5596
        %5598 = vmatmul.bf16.gmra.mxu0 %v4513
        %v5599 = vpop.f32.mrf.mxu0
        %v5600 = vadd.f32 %v5581, %v5599
        %v5601 = vpop.f32.mrf.mxu0
        %v5602 = vadd.f32 %v5583, %v5601
        %5603 = vdwg.mxu0
        %v5604 = vmax.f32 %v5329, 0.0
        %v5605 = vmax.f32 %v5367, 0.0
        %v5606 = vmax.f32 %v5405, 0.0
        %v5607 = vmax.f32 %v5443, 0.0
        %v5608 = vmax.f32 %v5481, 0.0
        %v5609 = vmax.f32 %v5519, 0.0
        %v5610 = vmax.f32 %v5557, 0.0
        %v5611 = vmax.f32 %v5595, 0.0
        %v5612 = vmax.f32 %v5331, 0.0
        %v5613 = vmax.f32 %v5369, 0.0
        %v5614 = vmax.f32 %v5407, 0.0
        %v5615 = vmax.f32 %v5445, 0.0
        %v5616 = vmax.f32 %v5483, 0.0
        %v5617 = vmax.f32 %v5521, 0.0
        %v5618 = vmax.f32 %v5559, 0.0
        %v5619 = vmax.f32 %v5597, 0.0
        %v5620 = vmax.f32 %v5334, 0.0
        %v5621 = vmax.f32 %v5372, 0.0
        %v5622 = vmax.f32 %v5410, 0.0
        %v5623 = vmax.f32 %v5448, 0.0
        %v5624 = vmax.f32 %v5486, 0.0
        %v5625 = vmax.f32 %v5524, 0.0
        %v5626 = vmax.f32 %v5562, 0.0
        %v5627 = vmax.f32 %v5600, 0.0
        %v5628 = vmax.f32 %v5336, 0.0
        %v5629 = vmax.f32 %v5374, 0.0
        %v5630 = vmax.f32 %v5412, 0.0
        %v5631 = vmax.f32 %v5450, 0.0
        %v5632 = vmax.f32 %v5488, 0.0
        %v5633 = vmax.f32 %v5526, 0.0
        %v5634 = vmax.f32 %v5564, 0.0
        %v5635 = vmax.f32 %v5602, 0.0
        %v5636 = vpack.c.bf16 %v5612, %v5604
        %v5637 = vpack.c.bf16 %v5613, %v5605
        %v5638 = vpack.c.bf16 %v5614, %v5606
        %v5639 = vpack.c.bf16 %v5615, %v5607
        %v5640 = vpack.c.bf16 %v5616, %v5608
        %v5641 = vpack.c.bf16 %v5617, %v5609
        %v5642 = vpack.c.bf16 %v5618, %v5610
        %v5643 = vpack.c.bf16 %v5619, %v5611
        %v5644 = vpack.c.bf16 %v5628, %v5620
        %v5645 = vpack.c.bf16 %v5629, %v5621
        %v5646 = vpack.c.bf16 %v5630, %v5622
        %v5647 = vpack.c.bf16 %v5631, %v5623
        %v5648 = vpack.c.bf16 %v5632, %v5624
        %v5649 = vpack.c.bf16 %v5633, %v5625
        %v5650 = vpack.c.bf16 %v5634, %v5626
        %v5651 = vpack.c.bf16 %v5635, %v5627
        %v5652 = vld [vmem:[%s906] sm:$0xff]
        %v5653 = vld [vmem:[%s906 + $0x8] sm:$0xff]
        %v5654 = vld [vmem:[%s906 + $0x10] sm:$0xff]
        %v5655 = vld [vmem:[%s906 + $0x18] sm:$0xff]
        %v5656 = vld [vmem:[%s906 + $0x20] sm:$0xff]
        %v5657 = vld [vmem:[%s906 + $0x28] sm:$0xff]
        %v5658 = vld [vmem:[%s906 + $0x30] sm:$0xff]
        %v5659 = vld [vmem:[%s906 + $0x38] sm:$0xff]
        %v5660 = vld [vmem:[%s906 + $0x40] sm:$0xff]
        %v5661 = vld [vmem:[%s906 + $0x48] sm:$0xff]
        %v5662 = vld [vmem:[%s906 + $0x50] sm:$0xff]
        %v5663 = vld [vmem:[%s906 + $0x58] sm:$0xff]
        %v5664 = vld [vmem:[%s906 + $0x60] sm:$0xff]
        %v5665 = vld [vmem:[%s906 + $0x68] sm:$0xff]
        %v5666 = vld [vmem:[%s906 + $0x70] sm:$0xff]
        %v5667 = vld [vmem:[%s906 + $0x78] sm:$0xff]
        %v5668 = vld [vmem:[%s906 + $0x80] sm:$0xff]
        %v5669 = vld [vmem:[%s906 + $0x88] sm:$0xff]
        %v5670 = vld [vmem:[%s906 + $0x90] sm:$0xff]
        %v5671 = vld [vmem:[%s906 + $0x98] sm:$0xff]
        %v5672 = vld [vmem:[%s906 + $0xa0] sm:$0xff]
        %v5673 = vld [vmem:[%s906 + $0xa8] sm:$0xff]
        %v5674 = vld [vmem:[%s906 + $0xb0] sm:$0xff]
        %v5675 = vld [vmem:[%s906 + $0xb8] sm:$0xff]
        %v5676 = vld [vmem:[%s906 + $0xc0] sm:$0xff]
        %v5677 = vld [vmem:[%s906 + $0xc8] sm:$0xff]
        %v5678 = vld [vmem:[%s906 + $0xd0] sm:$0xff]
        %v5679 = vld [vmem:[%s906 + $0xd8] sm:$0xff]
        %v5680 = vld [vmem:[%s906 + $0xe0] sm:$0xff]
        %v5681 = vld [vmem:[%s906 + $0xe8] sm:$0xff]
        %v5682 = vld [vmem:[%s906 + $0xf0] sm:$0xff]
        %v5683 = vld [vmem:[%s906 + $0xf8] sm:$0xff]
        %v5684 = vld [vmem:[%s906 + $0x100] sm:$0xff]
        %v5685 = vld [vmem:[%s906 + $0x108] sm:$0xff]
        %v5686 = vld [vmem:[%s906 + $0x110] sm:$0xff]
        %v5687 = vld [vmem:[%s906 + $0x118] sm:$0xff]
        %v5688 = vld [vmem:[%s906 + $0x120] sm:$0xff]
        %v5689 = vld [vmem:[%s906 + $0x128] sm:$0xff]
        %v5690 = vld [vmem:[%s906 + $0x130] sm:$0xff]
        %v5691 = vld [vmem:[%s906 + $0x138] sm:$0xff]
        %v5692 = vld [vmem:[%s906 + $0x140] sm:$0xff]
        %v5693 = vld [vmem:[%s906 + $0x148] sm:$0xff]
        %v5694 = vld [vmem:[%s906 + $0x150] sm:$0xff]
        %v5695 = vld [vmem:[%s906 + $0x158] sm:$0xff]
        %v5696 = vld [vmem:[%s906 + $0x160] sm:$0xff]
        %v5697 = vld [vmem:[%s906 + $0x168] sm:$0xff]
        %v5698 = vld [vmem:[%s906 + $0x170] sm:$0xff]
        %v5699 = vld [vmem:[%s906 + $0x178] sm:$0xff]
        %v5700 = vld [vmem:[%s906 + $0x180] sm:$0xff]
        %v5701 = vld [vmem:[%s906 + $0x188] sm:$0xff]
        %v5702 = vld [vmem:[%s906 + $0x190] sm:$0xff]
        %v5703 = vld [vmem:[%s906 + $0x198] sm:$0xff]
        %v5704 = vld [vmem:[%s906 + $0x1a0] sm:$0xff]
        %v5705 = vld [vmem:[%s906 + $0x1a8] sm:$0xff]
        %v5706 = vld [vmem:[%s906 + $0x1b0] sm:$0xff]
        %v5707 = vld [vmem:[%s906 + $0x1b8] sm:$0xff]
        %v5708 = vld [vmem:[%s906 + $0x1c0] sm:$0xff]
        %v5709 = vld [vmem:[%s906 + $0x1c8] sm:$0xff]
        %v5710 = vld [vmem:[%s906 + $0x1d0] sm:$0xff]
        %v5711 = vld [vmem:[%s906 + $0x1d8] sm:$0xff]
        %v5712 = vld [vmem:[%s906 + $0x1e0] sm:$0xff]
        %v5713 = vld [vmem:[%s906 + $0x1e8] sm:$0xff]
        %v5714 = vld [vmem:[%s906 + $0x1f0] sm:$0xff]
        %v5715 = vld [vmem:[%s906 + $0x1f8] sm:$0xff]
        %v5716 = vld [vmem:[%s906 + $0x200] sm:$0xff]
        %v5717 = vld [vmem:[%s906 + $0x208] sm:$0xff]
        %v5718 = vld [vmem:[%s906 + $0x210] sm:$0xff]
        %v5719 = vld [vmem:[%s906 + $0x218] sm:$0xff]
        %v5720 = vld [vmem:[%s906 + $0x220] sm:$0xff]
        %v5721 = vld [vmem:[%s906 + $0x228] sm:$0xff]
        %v5722 = vld [vmem:[%s906 + $0x230] sm:$0xff]
        %v5723 = vld [vmem:[%s906 + $0x238] sm:$0xff]
        %v5724 = vld [vmem:[%s906 + $0x240] sm:$0xff]
        %v5725 = vld [vmem:[%s906 + $0x248] sm:$0xff]
        %v5726 = vld [vmem:[%s906 + $0x250] sm:$0xff]
        %v5727 = vld [vmem:[%s906 + $0x258] sm:$0xff]
        %v5728 = vld [vmem:[%s906 + $0x260] sm:$0xff]
        %v5729 = vld [vmem:[%s906 + $0x268] sm:$0xff]
        %v5730 = vld [vmem:[%s906 + $0x270] sm:$0xff]
        %v5731 = vld [vmem:[%s906 + $0x278] sm:$0xff]
        %v5732 = vld [vmem:[%s906 + $0x280] sm:$0xff]
        %v5733 = vld [vmem:[%s906 + $0x288] sm:$0xff]
        %v5734 = vld [vmem:[%s906 + $0x290] sm:$0xff]
        %v5735 = vld [vmem:[%s906 + $0x298] sm:$0xff]
        %v5736 = vld [vmem:[%s906 + $0x2a0] sm:$0xff]
        %v5737 = vld [vmem:[%s906 + $0x2a8] sm:$0xff]
        %v5738 = vld [vmem:[%s906 + $0x2b0] sm:$0xff]
        %v5739 = vld [vmem:[%s906 + $0x2b8] sm:$0xff]
        %v5740 = vld [vmem:[%s906 + $0x2c0] sm:$0xff]
        %v5741 = vld [vmem:[%s906 + $0x2c8] sm:$0xff]
        %v5742 = vld [vmem:[%s906 + $0x2d0] sm:$0xff]
        %v5743 = vld [vmem:[%s906 + $0x2d8] sm:$0xff]
        %v5744 = vld [vmem:[%s906 + $0x2e0] sm:$0xff]
        %v5745 = vld [vmem:[%s906 + $0x2e8] sm:$0xff]
        %v5746 = vld [vmem:[%s906 + $0x2f0] sm:$0xff]
        %v5747 = vld [vmem:[%s906 + $0x2f8] sm:$0xff]
        %v5748 = vld [vmem:[%s906 + $0x300] sm:$0xff]
        %v5749 = vld [vmem:[%s906 + $0x308] sm:$0xff]
        %v5750 = vld [vmem:[%s906 + $0x310] sm:$0xff]
        %v5751 = vld [vmem:[%s906 + $0x318] sm:$0xff]
        %v5752 = vld [vmem:[%s906 + $0x320] sm:$0xff]
        %v5753 = vld [vmem:[%s906 + $0x328] sm:$0xff]
        %v5754 = vld [vmem:[%s906 + $0x330] sm:$0xff]
        %v5755 = vld [vmem:[%s906 + $0x338] sm:$0xff]
        %v5756 = vld [vmem:[%s906 + $0x340] sm:$0xff]
        %v5757 = vld [vmem:[%s906 + $0x348] sm:$0xff]
        %v5758 = vld [vmem:[%s906 + $0x350] sm:$0xff]
        %v5759 = vld [vmem:[%s906 + $0x358] sm:$0xff]
        %v5760 = vld [vmem:[%s906 + $0x360] sm:$0xff]
        %v5761 = vld [vmem:[%s906 + $0x368] sm:$0xff]
        %v5762 = vld [vmem:[%s906 + $0x370] sm:$0xff]
        %v5763 = vld [vmem:[%s906 + $0x378] sm:$0xff]
        %v5764 = vld [vmem:[%s906 + $0x380] sm:$0xff]
        %v5765 = vld [vmem:[%s906 + $0x388] sm:$0xff]
        %v5766 = vld [vmem:[%s906 + $0x390] sm:$0xff]
        %v5767 = vld [vmem:[%s906 + $0x398] sm:$0xff]
        %v5768 = vld [vmem:[%s906 + $0x3a0] sm:$0xff]
        %v5769 = vld [vmem:[%s906 + $0x3a8] sm:$0xff]
        %v5770 = vld [vmem:[%s906 + $0x3b0] sm:$0xff]
        %v5771 = vld [vmem:[%s906 + $0x3b8] sm:$0xff]
        %v5772 = vld [vmem:[%s906 + $0x3c0] sm:$0xff]
        %v5773 = vld [vmem:[%s906 + $0x3c8] sm:$0xff]
        %v5774 = vld [vmem:[%s906 + $0x3d0] sm:$0xff]
        %v5775 = vld [vmem:[%s906 + $0x3d8] sm:$0xff]
        %v5776 = vld [vmem:[%s906 + $0x3e0] sm:$0xff]
        %v5777 = vld [vmem:[%s906 + $0x3e8] sm:$0xff]
        %v5778 = vld [vmem:[%s906 + $0x3f0] sm:$0xff]
        %v5779 = vld [vmem:[%s906 + $0x3f8] sm:$0xff]
        %v5780 = vld [vmem:[%s916] sm:$0x3]
        %v5782 = vperm.slane %v5780, 0
        %v5783 = vperm.slane %v5780, 1
        %v5914 = vunpack.c.l.b16 %v5652
        %v5915 = vunpack.c.h.b16 %v5652
        %v5916 = vunpack.c.l.b16 %v5653
        %v5917 = vunpack.c.h.b16 %v5653
        %v5918 = vunpack.c.l.b16 %v5654
        %v5919 = vunpack.c.h.b16 %v5654
        %v5920 = vunpack.c.l.b16 %v5655
        %v5921 = vunpack.c.h.b16 %v5655
        %v5922 = vunpack.c.l.b16 %v5656
        %v5923 = vunpack.c.h.b16 %v5656
        %v5924 = vunpack.c.l.b16 %v5657
        %v5925 = vunpack.c.h.b16 %v5657
        %v5926 = vunpack.c.l.b16 %v5658
        %v5927 = vunpack.c.h.b16 %v5658
        %v5928 = vunpack.c.l.b16 %v5659
        %v5929 = vunpack.c.h.b16 %v5659
        %v5930 = vunpack.c.l.b16 %v5660
        %v5931 = vunpack.c.h.b16 %v5660
        %v5932 = vunpack.c.l.b16 %v5661
        %v5933 = vunpack.c.h.b16 %v5661
        %v5934 = vunpack.c.l.b16 %v5662
        %v5935 = vunpack.c.h.b16 %v5662
        %v5936 = vunpack.c.l.b16 %v5663
        %v5937 = vunpack.c.h.b16 %v5663
        %v5938 = vunpack.c.l.b16 %v5664
        %v5939 = vunpack.c.h.b16 %v5664
        %v5940 = vunpack.c.l.b16 %v5665
        %v5941 = vunpack.c.h.b16 %v5665
        %v5942 = vunpack.c.l.b16 %v5666
        %v5943 = vunpack.c.h.b16 %v5666
        %v5944 = vunpack.c.l.b16 %v5667
        %v5945 = vunpack.c.h.b16 %v5667
        %v5946 = vunpack.c.l.b16 %v5668
        %v5947 = vunpack.c.h.b16 %v5668
        %v5948 = vunpack.c.l.b16 %v5669
        %v5949 = vunpack.c.h.b16 %v5669
        %v5950 = vunpack.c.l.b16 %v5670
        %v5951 = vunpack.c.h.b16 %v5670
        %v5952 = vunpack.c.l.b16 %v5671
        %v5953 = vunpack.c.h.b16 %v5671
        %v5954 = vunpack.c.l.b16 %v5672
        %v5955 = vunpack.c.h.b16 %v5672
        %v5956 = vunpack.c.l.b16 %v5673
        %v5957 = vunpack.c.h.b16 %v5673
        %v5958 = vunpack.c.l.b16 %v5674
        %v5959 = vunpack.c.h.b16 %v5674
        %v5960 = vunpack.c.l.b16 %v5675
        %v5961 = vunpack.c.h.b16 %v5675
        %v5962 = vunpack.c.l.b16 %v5676
        %v5963 = vunpack.c.h.b16 %v5676
        %v5964 = vunpack.c.l.b16 %v5677
        %v5965 = vunpack.c.h.b16 %v5677
        %v5966 = vunpack.c.l.b16 %v5678
        %v5967 = vunpack.c.h.b16 %v5678
        %v5968 = vunpack.c.l.b16 %v5679
        %v5969 = vunpack.c.h.b16 %v5679
        %v5970 = vunpack.c.l.b16 %v5680
        %v5971 = vunpack.c.h.b16 %v5680
        %v5972 = vunpack.c.l.b16 %v5681
        %v5973 = vunpack.c.h.b16 %v5681
        %v5974 = vunpack.c.l.b16 %v5682
        %v5975 = vunpack.c.h.b16 %v5682
        %v5976 = vunpack.c.l.b16 %v5683
        %v5977 = vunpack.c.h.b16 %v5683
        %v5978 = vunpack.c.l.b16 %v5684
        %v5979 = vunpack.c.h.b16 %v5684
        %v5980 = vunpack.c.l.b16 %v5685
        %v5981 = vunpack.c.h.b16 %v5685
        %v5982 = vunpack.c.l.b16 %v5686
        %v5983 = vunpack.c.h.b16 %v5686
        %v5984 = vunpack.c.l.b16 %v5687
        %v5985 = vunpack.c.h.b16 %v5687
        %v5986 = vunpack.c.l.b16 %v5688
        %v5987 = vunpack.c.h.b16 %v5688
        %v5988 = vunpack.c.l.b16 %v5689
        %v5989 = vunpack.c.h.b16 %v5689
        %v5990 = vunpack.c.l.b16 %v5690
        %v5991 = vunpack.c.h.b16 %v5690
        %v5992 = vunpack.c.l.b16 %v5691
        %v5993 = vunpack.c.h.b16 %v5691
        %v5994 = vunpack.c.l.b16 %v5692
        %v5995 = vunpack.c.h.b16 %v5692
        %v5996 = vunpack.c.l.b16 %v5693
        %v5997 = vunpack.c.h.b16 %v5693
        %v5998 = vunpack.c.l.b16 %v5694
        %v5999 = vunpack.c.h.b16 %v5694
        %v6000 = vunpack.c.l.b16 %v5695
        %v6001 = vunpack.c.h.b16 %v5695
        %v6002 = vunpack.c.l.b16 %v5696
        %v6003 = vunpack.c.h.b16 %v5696
        %v6004 = vunpack.c.l.b16 %v5697
        %v6005 = vunpack.c.h.b16 %v5697
        %v6006 = vunpack.c.l.b16 %v5698
        %v6007 = vunpack.c.h.b16 %v5698
        %v6008 = vunpack.c.l.b16 %v5699
        %v6009 = vunpack.c.h.b16 %v5699
        %v6010 = vunpack.c.l.b16 %v5700
        %v6011 = vunpack.c.h.b16 %v5700
        %v6012 = vunpack.c.l.b16 %v5701
        %v6013 = vunpack.c.h.b16 %v5701
        %v6014 = vunpack.c.l.b16 %v5702
        %v6015 = vunpack.c.h.b16 %v5702
        %v6016 = vunpack.c.l.b16 %v5703
        %v6017 = vunpack.c.h.b16 %v5703
        %v6018 = vunpack.c.l.b16 %v5704
        %v6019 = vunpack.c.h.b16 %v5704
        %v6020 = vunpack.c.l.b16 %v5705
        %v6021 = vunpack.c.h.b16 %v5705
        %v6022 = vunpack.c.l.b16 %v5706
        %v6023 = vunpack.c.h.b16 %v5706
        %v6024 = vunpack.c.l.b16 %v5707
        %v6025 = vunpack.c.h.b16 %v5707
        %v6026 = vunpack.c.l.b16 %v5708
        %v6027 = vunpack.c.h.b16 %v5708
        %v6028 = vunpack.c.l.b16 %v5709
        %v6029 = vunpack.c.h.b16 %v5709
        %v6030 = vunpack.c.l.b16 %v5710
        %v6031 = vunpack.c.h.b16 %v5710
        %v6032 = vunpack.c.l.b16 %v5711
        %v6033 = vunpack.c.h.b16 %v5711
        %v6034 = vunpack.c.l.b16 %v5712
        %v6035 = vunpack.c.h.b16 %v5712
        %v6036 = vunpack.c.l.b16 %v5713
        %v6037 = vunpack.c.h.b16 %v5713
        %v6038 = vunpack.c.l.b16 %v5714
        %v6039 = vunpack.c.h.b16 %v5714
        %v6040 = vunpack.c.l.b16 %v5715
        %v6041 = vunpack.c.h.b16 %v5715
        %v6042 = vunpack.c.l.b16 %v5716
        %v6043 = vunpack.c.h.b16 %v5716
        %v6044 = vunpack.c.l.b16 %v5717
        %v6045 = vunpack.c.h.b16 %v5717
        %v6046 = vunpack.c.l.b16 %v5718
        %v6047 = vunpack.c.h.b16 %v5718
        %v6048 = vunpack.c.l.b16 %v5719
        %v6049 = vunpack.c.h.b16 %v5719
        %v6050 = vunpack.c.l.b16 %v5720
        %v6051 = vunpack.c.h.b16 %v5720
        %v6052 = vunpack.c.l.b16 %v5721
        %v6053 = vunpack.c.h.b16 %v5721
        %v6054 = vunpack.c.l.b16 %v5722
        %v6055 = vunpack.c.h.b16 %v5722
        %v6056 = vunpack.c.l.b16 %v5723
        %v6057 = vunpack.c.h.b16 %v5723
        %v6058 = vunpack.c.l.b16 %v5724
        %v6059 = vunpack.c.h.b16 %v5724
        %v6060 = vunpack.c.l.b16 %v5725
        %v6061 = vunpack.c.h.b16 %v5725
        %v6062 = vunpack.c.l.b16 %v5726
        %v6063 = vunpack.c.h.b16 %v5726
        %v6064 = vunpack.c.l.b16 %v5727
        %v6065 = vunpack.c.h.b16 %v5727
        %v6066 = vunpack.c.l.b16 %v5728
        %v6067 = vunpack.c.h.b16 %v5728
        %v6068 = vunpack.c.l.b16 %v5729
        %v6069 = vunpack.c.h.b16 %v5729
        %v6070 = vunpack.c.l.b16 %v5730
        %v6071 = vunpack.c.h.b16 %v5730
        %v6072 = vunpack.c.l.b16 %v5731
        %v6073 = vunpack.c.h.b16 %v5731
        %v6074 = vunpack.c.l.b16 %v5732
        %v6075 = vunpack.c.h.b16 %v5732
        %v6076 = vunpack.c.l.b16 %v5733
        %v6077 = vunpack.c.h.b16 %v5733
        %v6078 = vunpack.c.l.b16 %v5734
        %v6079 = vunpack.c.h.b16 %v5734
        %v6080 = vunpack.c.l.b16 %v5735
        %v6081 = vunpack.c.h.b16 %v5735
        %v6082 = vunpack.c.l.b16 %v5736
        %v6083 = vunpack.c.h.b16 %v5736
        %v6084 = vunpack.c.l.b16 %v5737
        %v6085 = vunpack.c.h.b16 %v5737
        %v6086 = vunpack.c.l.b16 %v5738
        %v6087 = vunpack.c.h.b16 %v5738
        %v6088 = vunpack.c.l.b16 %v5739
        %v6089 = vunpack.c.h.b16 %v5739
        %v6090 = vunpack.c.l.b16 %v5740
        %v6091 = vunpack.c.h.b16 %v5740
        %v6092 = vunpack.c.l.b16 %v5741
        %v6093 = vunpack.c.h.b16 %v5741
        %v6094 = vunpack.c.l.b16 %v5742
        %v6095 = vunpack.c.h.b16 %v5742
        %v6096 = vunpack.c.l.b16 %v5743
        %v6097 = vunpack.c.h.b16 %v5743
        %v6098 = vunpack.c.l.b16 %v5744
        %v6099 = vunpack.c.h.b16 %v5744
        %v6100 = vunpack.c.l.b16 %v5745
        %v6101 = vunpack.c.h.b16 %v5745
        %v6102 = vunpack.c.l.b16 %v5746
        %v6103 = vunpack.c.h.b16 %v5746
        %v6104 = vunpack.c.l.b16 %v5747
        %v6105 = vunpack.c.h.b16 %v5747
        %v6106 = vunpack.c.l.b16 %v5748
        %v6107 = vunpack.c.h.b16 %v5748
        %v6108 = vunpack.c.l.b16 %v5749
        %v6109 = vunpack.c.h.b16 %v5749
        %v6110 = vunpack.c.l.b16 %v5750
        %v6111 = vunpack.c.h.b16 %v5750
        %v6112 = vunpack.c.l.b16 %v5751
        %v6113 = vunpack.c.h.b16 %v5751
        %v6114 = vunpack.c.l.b16 %v5752
        %v6115 = vunpack.c.h.b16 %v5752
        %v6116 = vunpack.c.l.b16 %v5753
        %v6117 = vunpack.c.h.b16 %v5753
        %v6118 = vunpack.c.l.b16 %v5754
        %v6119 = vunpack.c.h.b16 %v5754
        %v6120 = vunpack.c.l.b16 %v5755
        %v6121 = vunpack.c.h.b16 %v5755
        %v6122 = vunpack.c.l.b16 %v5756
        %v6123 = vunpack.c.h.b16 %v5756
        %v6124 = vunpack.c.l.b16 %v5757
        %v6125 = vunpack.c.h.b16 %v5757
        %v6126 = vunpack.c.l.b16 %v5758
        %v6127 = vunpack.c.h.b16 %v5758
        %v6128 = vunpack.c.l.b16 %v5759
        %v6129 = vunpack.c.h.b16 %v5759
        %v6130 = vunpack.c.l.b16 %v5760
        %v6131 = vunpack.c.h.b16 %v5760
        %v6132 = vunpack.c.l.b16 %v5761
        %v6133 = vunpack.c.h.b16 %v5761
        %v6134 = vunpack.c.l.b16 %v5762
        %v6135 = vunpack.c.h.b16 %v5762
        %v6136 = vunpack.c.l.b16 %v5763
        %v6137 = vunpack.c.h.b16 %v5763
        %v6138 = vunpack.c.l.b16 %v5764
        %v6139 = vunpack.c.h.b16 %v5764
        %v6140 = vunpack.c.l.b16 %v5765
        %v6141 = vunpack.c.h.b16 %v5765
        %v6142 = vunpack.c.l.b16 %v5766
        %v6143 = vunpack.c.h.b16 %v5766
        %v6144 = vunpack.c.l.b16 %v5767
        %v6145 = vunpack.c.h.b16 %v5767
        %v6146 = vunpack.c.l.b16 %v5768
        %v6147 = vunpack.c.h.b16 %v5768
        %v6148 = vunpack.c.l.b16 %v5769
        %v6149 = vunpack.c.h.b16 %v5769
        %v6150 = vunpack.c.l.b16 %v5770
        %v6151 = vunpack.c.h.b16 %v5770
        %v6152 = vunpack.c.l.b16 %v5771
        %v6153 = vunpack.c.h.b16 %v5771
        %v6154 = vunpack.c.l.b16 %v5772
        %v6155 = vunpack.c.h.b16 %v5772
        %v6156 = vunpack.c.l.b16 %v5773
        %v6157 = vunpack.c.h.b16 %v5773
        %v6158 = vunpack.c.l.b16 %v5774
        %v6159 = vunpack.c.h.b16 %v5774
        %v6160 = vunpack.c.l.b16 %v5775
        %v6161 = vunpack.c.h.b16 %v5775
        %v6162 = vunpack.c.l.b16 %v5776
        %v6163 = vunpack.c.h.b16 %v5776
        %v6164 = vunpack.c.l.b16 %v5777
        %v6165 = vunpack.c.h.b16 %v5777
        %v6166 = vunpack.c.l.b16 %v5778
        %v6167 = vunpack.c.h.b16 %v5778
        %v6168 = vunpack.c.l.b16 %v5779
        %v6169 = vunpack.c.h.b16 %v5779
        %v6170 = vpack.c.b16 %v5916, %v5914
        %v6171 = vpack.c.b16 %v5917, %v5915
        %v6172 = vpack.c.b16 %v5920, %v5918
        %v6173 = vpack.c.b16 %v5921, %v5919
        %v6174 = vpack.c.b16 %v5924, %v5922
        %v6175 = vpack.c.b16 %v5925, %v5923
        %v6176 = vpack.c.b16 %v5928, %v5926
        %v6177 = vpack.c.b16 %v5929, %v5927
        %v6178 = vpack.c.b16 %v5932, %v5930
        %v6179 = vpack.c.b16 %v5933, %v5931
        %v6180 = vpack.c.b16 %v5936, %v5934
        %v6181 = vpack.c.b16 %v5937, %v5935
        %v6182 = vpack.c.b16 %v5940, %v5938
        %v6183 = vpack.c.b16 %v5941, %v5939
        %v6184 = vpack.c.b16 %v5944, %v5942
        %v6185 = vpack.c.b16 %v5945, %v5943
        %v6186 = vpack.c.b16 %v5948, %v5946
        %v6187 = vpack.c.b16 %v5949, %v5947
        %v6188 = vpack.c.b16 %v5952, %v5950
        %v6189 = vpack.c.b16 %v5953, %v5951
        %v6190 = vpack.c.b16 %v5956, %v5954
        %v6191 = vpack.c.b16 %v5957, %v5955
        %v6192 = vpack.c.b16 %v5960, %v5958
        %v6193 = vpack.c.b16 %v5961, %v5959
        %v6194 = vpack.c.b16 %v5964, %v5962
        %v6195 = vpack.c.b16 %v5965, %v5963
        %v6196 = vpack.c.b16 %v5968, %v5966
        %v6197 = vpack.c.b16 %v5969, %v5967
        %v6198 = vpack.c.b16 %v5972, %v5970
        %v6199 = vpack.c.b16 %v5973, %v5971
        %v6200 = vpack.c.b16 %v5976, %v5974
        %v6201 = vpack.c.b16 %v5977, %v5975
        %v6202 = vpack.c.b16 %v5980, %v5978
        %v6203 = vpack.c.b16 %v5981, %v5979
        %v6204 = vpack.c.b16 %v5984, %v5982
        %v6205 = vpack.c.b16 %v5985, %v5983
        %v6206 = vpack.c.b16 %v5988, %v5986
        %v6207 = vpack.c.b16 %v5989, %v5987
        %v6208 = vpack.c.b16 %v5992, %v5990
        %v6209 = vpack.c.b16 %v5993, %v5991
        %v6210 = vpack.c.b16 %v5996, %v5994
        %v6211 = vpack.c.b16 %v5997, %v5995
        %v6212 = vpack.c.b16 %v6000, %v5998
        %v6213 = vpack.c.b16 %v6001, %v5999
        %v6214 = vpack.c.b16 %v6004, %v6002
        %v6215 = vpack.c.b16 %v6005, %v6003
        %v6216 = vpack.c.b16 %v6008, %v6006
        %v6217 = vpack.c.b16 %v6009, %v6007
        %v6218 = vpack.c.b16 %v6012, %v6010
        %v6219 = vpack.c.b16 %v6013, %v6011
        %v6220 = vpack.c.b16 %v6016, %v6014
        %v6221 = vpack.c.b16 %v6017, %v6015
        %v6222 = vpack.c.b16 %v6020, %v6018
        %v6223 = vpack.c.b16 %v6021, %v6019
        %v6224 = vpack.c.b16 %v6024, %v6022
        %v6225 = vpack.c.b16 %v6025, %v6023
        %v6226 = vpack.c.b16 %v6028, %v6026
        %v6227 = vpack.c.b16 %v6029, %v6027
        %v6228 = vpack.c.b16 %v6032, %v6030
        %v6229 = vpack.c.b16 %v6033, %v6031
        %v6230 = vpack.c.b16 %v6036, %v6034
        %v6231 = vpack.c.b16 %v6037, %v6035
        %v6232 = vpack.c.b16 %v6040, %v6038
        %v6233 = vpack.c.b16 %v6041, %v6039
        %v6234 = vpack.c.b16 %v6044, %v6042
        %v6235 = vpack.c.b16 %v6045, %v6043
        %v6236 = vpack.c.b16 %v6048, %v6046
        %v6237 = vpack.c.b16 %v6049, %v6047
        %v6238 = vpack.c.b16 %v6052, %v6050
        %v6239 = vpack.c.b16 %v6053, %v6051
        %v6240 = vpack.c.b16 %v6056, %v6054
        %v6241 = vpack.c.b16 %v6057, %v6055
        %v6242 = vpack.c.b16 %v6060, %v6058
        %v6243 = vpack.c.b16 %v6061, %v6059
        %v6244 = vpack.c.b16 %v6064, %v6062
        %v6245 = vpack.c.b16 %v6065, %v6063
        %v6246 = vpack.c.b16 %v6068, %v6066
        %v6247 = vpack.c.b16 %v6069, %v6067
        %v6248 = vpack.c.b16 %v6072, %v6070
        %v6249 = vpack.c.b16 %v6073, %v6071
        %v6250 = vpack.c.b16 %v6076, %v6074
        %v6251 = vpack.c.b16 %v6077, %v6075
        %v6252 = vpack.c.b16 %v6080, %v6078
        %v6253 = vpack.c.b16 %v6081, %v6079
        %v6254 = vpack.c.b16 %v6084, %v6082
        %v6255 = vpack.c.b16 %v6085, %v6083
        %v6256 = vpack.c.b16 %v6088, %v6086
        %v6257 = vpack.c.b16 %v6089, %v6087
        %v6258 = vpack.c.b16 %v6092, %v6090
        %v6259 = vpack.c.b16 %v6093, %v6091
        %v6260 = vpack.c.b16 %v6096, %v6094
        %v6261 = vpack.c.b16 %v6097, %v6095
        %v6262 = vpack.c.b16 %v6100, %v6098
        %v6263 = vpack.c.b16 %v6101, %v6099
        %v6264 = vpack.c.b16 %v6104, %v6102
        %v6265 = vpack.c.b16 %v6105, %v6103
        %v6266 = vpack.c.b16 %v6108, %v6106
        %v6267 = vpack.c.b16 %v6109, %v6107
        %v6268 = vpack.c.b16 %v6112, %v6110
        %v6269 = vpack.c.b16 %v6113, %v6111
        %v6270 = vpack.c.b16 %v6116, %v6114
        %v6271 = vpack.c.b16 %v6117, %v6115
        %v6272 = vpack.c.b16 %v6120, %v6118
        %v6273 = vpack.c.b16 %v6121, %v6119
        %v6274 = vpack.c.b16 %v6124, %v6122
        %v6275 = vpack.c.b16 %v6125, %v6123
        %v6276 = vpack.c.b16 %v6128, %v6126
        %v6277 = vpack.c.b16 %v6129, %v6127
        %v6278 = vpack.c.b16 %v6132, %v6130
        %v6279 = vpack.c.b16 %v6133, %v6131
        %v6280 = vpack.c.b16 %v6136, %v6134
        %v6281 = vpack.c.b16 %v6137, %v6135
        %v6282 = vpack.c.b16 %v6140, %v6138
        %v6283 = vpack.c.b16 %v6141, %v6139
        %v6284 = vpack.c.b16 %v6144, %v6142
        %v6285 = vpack.c.b16 %v6145, %v6143
        %v6286 = vpack.c.b16 %v6148, %v6146
        %v6287 = vpack.c.b16 %v6149, %v6147
        %v6288 = vpack.c.b16 %v6152, %v6150
        %v6289 = vpack.c.b16 %v6153, %v6151
        %v6290 = vpack.c.b16 %v6156, %v6154
        %v6291 = vpack.c.b16 %v6157, %v6155
        %v6292 = vpack.c.b16 %v6160, %v6158
        %v6293 = vpack.c.b16 %v6161, %v6159
        %v6294 = vpack.c.b16 %v6164, %v6162
        %v6295 = vpack.c.b16 %v6165, %v6163
        %v6296 = vpack.c.b16 %v6168, %v6166
        %v6297 = vpack.c.b16 %v6169, %v6167
        %6426 = vmatpush.bf16.msra.mxu0 %v6184
        %6427 = vmatpush.bf16.msra.mxu0 %v6182
        %6428 = vmatpush.bf16.msra.mxu0 %v6180
        %6429 = vmatpush.bf16.msra.mxu0 %v6178
        %6430 = vmatpush.bf16.msra.mxu0 %v6176
        %6431 = vmatpush.bf16.msra.mxu0 %v6174
        %6432 = vmatpush.bf16.msra.mxu0 %v6172
        %6433 = vmatpush.bf16.msra.mxu0 %v6170
        %6434 = vmatmul.bf16.gmra.mxu0 %v5636
        %v6435 = vpop.f32.mrf.mxu0
        %v6436 = vadd.f32 %v5782, %v6435
        %v6437 = vpop.f32.mrf.mxu0
        %v6438 = vadd.f32 %v5782, %v6437
        %6439 = vmatmul.bf16.gmra.mxu0 %v5644
        %v6440 = vpop.f32.mrf.mxu0
        %v6441 = vadd.f32 %v5782, %v6440
        %v6442 = vpop.f32.mrf.mxu0
        %v6443 = vadd.f32 %v5782, %v6442
        %6444 = vdwg.mxu0
        %6445 = vmatpush.bf16.msra.mxu0 %v6200
        %6446 = vmatpush.bf16.msra.mxu0 %v6198
        %6447 = vmatpush.bf16.msra.mxu0 %v6196
        %6448 = vmatpush.bf16.msra.mxu0 %v6194
        %6449 = vmatpush.bf16.msra.mxu0 %v6192
        %6450 = vmatpush.bf16.msra.mxu0 %v6190
        %6451 = vmatpush.bf16.msra.mxu0 %v6188
        %6452 = vmatpush.bf16.msra.mxu0 %v6186
        %6453 = vmatmul.bf16.gmra.mxu0 %v5637
        %v6454 = vpop.f32.mrf.mxu0
        %v6455 = vadd.f32 %v6436, %v6454
        %v6456 = vpop.f32.mrf.mxu0
        %v6457 = vadd.f32 %v6438, %v6456
        %6458 = vmatmul.bf16.gmra.mxu0 %v5645
        %v6459 = vpop.f32.mrf.mxu0
        %v6460 = vadd.f32 %v6441, %v6459
        %v6461 = vpop.f32.mrf.mxu0
        %v6462 = vadd.f32 %v6443, %v6461
        %6463 = vdwg.mxu0
        %6464 = vmatpush.bf16.msra.mxu0 %v6216
        %6465 = vmatpush.bf16.msra.mxu0 %v6214
        %6466 = vmatpush.bf16.msra.mxu0 %v6212
        %6467 = vmatpush.bf16.msra.mxu0 %v6210
        %6468 = vmatpush.bf16.msra.mxu0 %v6208
        %6469 = vmatpush.bf16.msra.mxu0 %v6206
        %6470 = vmatpush.bf16.msra.mxu0 %v6204
        %6471 = vmatpush.bf16.msra.mxu0 %v6202
        %6472 = vmatmul.bf16.gmra.mxu0 %v5638
        %v6473 = vpop.f32.mrf.mxu0
        %v6474 = vadd.f32 %v6455, %v6473
        %v6475 = vpop.f32.mrf.mxu0
        %v6476 = vadd.f32 %v6457, %v6475
        %6477 = vmatmul.bf16.gmra.mxu0 %v5646
        %v6478 = vpop.f32.mrf.mxu0
        %v6479 = vadd.f32 %v6460, %v6478
        %v6480 = vpop.f32.mrf.mxu0
        %v6481 = vadd.f32 %v6462, %v6480
        %6482 = vdwg.mxu0
        %6483 = vmatpush.bf16.msra.mxu0 %v6232
        %6484 = vmatpush.bf16.msra.mxu0 %v6230
        %6485 = vmatpush.bf16.msra.mxu0 %v6228
        %6486 = vmatpush.bf16.msra.mxu0 %v6226
        %6487 = vmatpush.bf16.msra.mxu0 %v6224
        %6488 = vmatpush.bf16.msra.mxu0 %v6222
        %6489 = vmatpush.bf16.msra.mxu0 %v6220
        %6490 = vmatpush.bf16.msra.mxu0 %v6218
        %6491 = vmatmul.bf16.gmra.mxu0 %v5639
        %v6492 = vpop.f32.mrf.mxu0
        %v6493 = vadd.f32 %v6474, %v6492
        %v6494 = vpop.f32.mrf.mxu0
        %v6495 = vadd.f32 %v6476, %v6494
        %6496 = vmatmul.bf16.gmra.mxu0 %v5647
        %v6497 = vpop.f32.mrf.mxu0
        %v6498 = vadd.f32 %v6479, %v6497
        %v6499 = vpop.f32.mrf.mxu0
        %v6500 = vadd.f32 %v6481, %v6499
        %6501 = vdwg.mxu0
        %6502 = vmatpush.bf16.msra.mxu0 %v6248
        %6503 = vmatpush.bf16.msra.mxu0 %v6246
        %6504 = vmatpush.bf16.msra.mxu0 %v6244
        %6505 = vmatpush.bf16.msra.mxu0 %v6242
        %6506 = vmatpush.bf16.msra.mxu0 %v6240
        %6507 = vmatpush.bf16.msra.mxu0 %v6238
        %6508 = vmatpush.bf16.msra.mxu0 %v6236
        %6509 = vmatpush.bf16.msra.mxu0 %v6234
        %6510 = vmatmul.bf16.gmra.mxu0 %v5640
        %v6511 = vpop.f32.mrf.mxu0
        %v6512 = vadd.f32 %v6493, %v6511
        %v6513 = vpop.f32.mrf.mxu0
        %v6514 = vadd.f32 %v6495, %v6513
        %6515 = vmatmul.bf16.gmra.mxu0 %v5648
        %v6516 = vpop.f32.mrf.mxu0
        %v6517 = vadd.f32 %v6498, %v6516
        %v6518 = vpop.f32.mrf.mxu0
        %v6519 = vadd.f32 %v6500, %v6518
        %6520 = vdwg.mxu0
        %6521 = vmatpush.bf16.msra.mxu0 %v6264
        %6522 = vmatpush.bf16.msra.mxu0 %v6262
        %6523 = vmatpush.bf16.msra.mxu0 %v6260
        %6524 = vmatpush.bf16.msra.mxu0 %v6258
        %6525 = vmatpush.bf16.msra.mxu0 %v6256
        %6526 = vmatpush.bf16.msra.mxu0 %v6254
        %6527 = vmatpush.bf16.msra.mxu0 %v6252
        %6528 = vmatpush.bf16.msra.mxu0 %v6250
        %6529 = vmatmul.bf16.gmra.mxu0 %v5641
        %v6530 = vpop.f32.mrf.mxu0
        %v6531 = vadd.f32 %v6512, %v6530
        %v6532 = vpop.f32.mrf.mxu0
        %v6533 = vadd.f32 %v6514, %v6532
        %6534 = vmatmul.bf16.gmra.mxu0 %v5649
        %v6535 = vpop.f32.mrf.mxu0
        %v6536 = vadd.f32 %v6517, %v6535
        %v6537 = vpop.f32.mrf.mxu0
        %v6538 = vadd.f32 %v6519, %v6537
        %6539 = vdwg.mxu0
        %6540 = vmatpush.bf16.msra.mxu0 %v6280
        %6541 = vmatpush.bf16.msra.mxu0 %v6278
        %6542 = vmatpush.bf16.msra.mxu0 %v6276
        %6543 = vmatpush.bf16.msra.mxu0 %v6274
        %6544 = vmatpush.bf16.msra.mxu0 %v6272
        %6545 = vmatpush.bf16.msra.mxu0 %v6270
        %6546 = vmatpush.bf16.msra.mxu0 %v6268
        %6547 = vmatpush.bf16.msra.mxu0 %v6266
        %6548 = vmatmul.bf16.gmra.mxu0 %v5642
        %v6549 = vpop.f32.mrf.mxu0
        %v6550 = vadd.f32 %v6531, %v6549
        %v6551 = vpop.f32.mrf.mxu0
        %v6552 = vadd.f32 %v6533, %v6551
        %6553 = vmatmul.bf16.gmra.mxu0 %v5650
        %v6554 = vpop.f32.mrf.mxu0
        %v6555 = vadd.f32 %v6536, %v6554
        %v6556 = vpop.f32.mrf.mxu0
        %v6557 = vadd.f32 %v6538, %v6556
        %6558 = vdwg.mxu0
        %6559 = vmatpush.bf16.msra.mxu0 %v6296
        %6560 = vmatpush.bf16.msra.mxu0 %v6294
        %6561 = vmatpush.bf16.msra.mxu0 %v6292
        %6562 = vmatpush.bf16.msra.mxu0 %v6290
        %6563 = vmatpush.bf16.msra.mxu0 %v6288
        %6564 = vmatpush.bf16.msra.mxu0 %v6286
        %6565 = vmatpush.bf16.msra.mxu0 %v6284
        %6566 = vmatpush.bf16.msra.mxu0 %v6282
        %6567 = vmatmul.bf16.gmra.mxu0 %v5643
        %v6568 = vpop.f32.mrf.mxu0
        %v6569 = vadd.f32 %v6550, %v6568
        %v6570 = vpop.f32.mrf.mxu0
        %v6571 = vadd.f32 %v6552, %v6570
        %6572 = vmatmul.bf16.gmra.mxu0 %v5651
        %v6573 = vpop.f32.mrf.mxu0
        %v6574 = vadd.f32 %v6555, %v6573
        %v6575 = vpop.f32.mrf.mxu0
        %v6576 = vadd.f32 %v6557, %v6575
        %6577 = vdwg.mxu0
        %6578 = vmatpush.bf16.msra.mxu0 %v6185
        %6579 = vmatpush.bf16.msra.mxu0 %v6183
        %6580 = vmatpush.bf16.msra.mxu0 %v6181
        %6581 = vmatpush.bf16.msra.mxu0 %v6179
        %6582 = vmatpush.bf16.msra.mxu0 %v6177
        %6583 = vmatpush.bf16.msra.mxu0 %v6175
        %6584 = vmatpush.bf16.msra.mxu0 %v6173
        %6585 = vmatpush.bf16.msra.mxu0 %v6171
        %6586 = vmatmul.bf16.gmra.mxu0 %v5636
        %v6587 = vpop.f32.mrf.mxu0
        %v6588 = vadd.f32 %v5783, %v6587
        %v6589 = vpop.f32.mrf.mxu0
        %v6590 = vadd.f32 %v5783, %v6589
        %6591 = vmatmul.bf16.gmra.mxu0 %v5644
        %v6592 = vpop.f32.mrf.mxu0
        %v6593 = vadd.f32 %v5783, %v6592
        %v6594 = vpop.f32.mrf.mxu0
        %v6595 = vadd.f32 %v5783, %v6594
        %6596 = vdwg.mxu0
        %6597 = vmatpush.bf16.msra.mxu0 %v6201
        %6598 = vmatpush.bf16.msra.mxu0 %v6199
        %6599 = vmatpush.bf16.msra.mxu0 %v6197
        %6600 = vmatpush.bf16.msra.mxu0 %v6195
        %6601 = vmatpush.bf16.msra.mxu0 %v6193
        %6602 = vmatpush.bf16.msra.mxu0 %v6191
        %6603 = vmatpush.bf16.msra.mxu0 %v6189
        %6604 = vmatpush.bf16.msra.mxu0 %v6187
        %6605 = vmatmul.bf16.gmra.mxu0 %v5637
        %v6606 = vpop.f32.mrf.mxu0
        %v6607 = vadd.f32 %v6588, %v6606
        %v6608 = vpop.f32.mrf.mxu0
        %v6609 = vadd.f32 %v6590, %v6608
        %6610 = vmatmul.bf16.gmra.mxu0 %v5645
        %v6611 = vpop.f32.mrf.mxu0
        %v6612 = vadd.f32 %v6593, %v6611
        %v6613 = vpop.f32.mrf.mxu0
        %v6614 = vadd.f32 %v6595, %v6613
        %6615 = vdwg.mxu0
        %6616 = vmatpush.bf16.msra.mxu0 %v6217
        %6617 = vmatpush.bf16.msra.mxu0 %v6215
        %6618 = vmatpush.bf16.msra.mxu0 %v6213
        %6619 = vmatpush.bf16.msra.mxu0 %v6211
        %6620 = vmatpush.bf16.msra.mxu0 %v6209
        %6621 = vmatpush.bf16.msra.mxu0 %v6207
        %6622 = vmatpush.bf16.msra.mxu0 %v6205
        %6623 = vmatpush.bf16.msra.mxu0 %v6203
        %6624 = vmatmul.bf16.gmra.mxu0 %v5638
        %v6625 = vpop.f32.mrf.mxu0
        %v6626 = vadd.f32 %v6607, %v6625
        %v6627 = vpop.f32.mrf.mxu0
        %v6628 = vadd.f32 %v6609, %v6627
        %6629 = vmatmul.bf16.gmra.mxu0 %v5646
        %v6630 = vpop.f32.mrf.mxu0
        %v6631 = vadd.f32 %v6612, %v6630
        %v6632 = vpop.f32.mrf.mxu0
        %v6633 = vadd.f32 %v6614, %v6632
        %6634 = vdwg.mxu0
        %6635 = vmatpush.bf16.msra.mxu0 %v6233
        %6636 = vmatpush.bf16.msra.mxu0 %v6231
        %6637 = vmatpush.bf16.msra.mxu0 %v6229
        %6638 = vmatpush.bf16.msra.mxu0 %v6227
        %6639 = vmatpush.bf16.msra.mxu0 %v6225
        %6640 = vmatpush.bf16.msra.mxu0 %v6223
        %6641 = vmatpush.bf16.msra.mxu0 %v6221
        %6642 = vmatpush.bf16.msra.mxu0 %v6219
        %6643 = vmatmul.bf16.gmra.mxu0 %v5639
        %v6644 = vpop.f32.mrf.mxu0
        %v6645 = vadd.f32 %v6626, %v6644
        %v6646 = vpop.f32.mrf.mxu0
        %v6647 = vadd.f32 %v6628, %v6646
        %6648 = vmatmul.bf16.gmra.mxu0 %v5647
        %v6649 = vpop.f32.mrf.mxu0
        %v6650 = vadd.f32 %v6631, %v6649
        %v6651 = vpop.f32.mrf.mxu0
        %v6652 = vadd.f32 %v6633, %v6651
        %6653 = vdwg.mxu0
        %6654 = vmatpush.bf16.msra.mxu0 %v6249
        %6655 = vmatpush.bf16.msra.mxu0 %v6247
        %6656 = vmatpush.bf16.msra.mxu0 %v6245
        %6657 = vmatpush.bf16.msra.mxu0 %v6243
        %6658 = vmatpush.bf16.msra.mxu0 %v6241
        %6659 = vmatpush.bf16.msra.mxu0 %v6239
        %6660 = vmatpush.bf16.msra.mxu0 %v6237
        %6661 = vmatpush.bf16.msra.mxu0 %v6235
        %6662 = vmatmul.bf16.gmra.mxu0 %v5640
        %v6663 = vpop.f32.mrf.mxu0
        %v6664 = vadd.f32 %v6645, %v6663
        %v6665 = vpop.f32.mrf.mxu0
        %v6666 = vadd.f32 %v6647, %v6665
        %6667 = vmatmul.bf16.gmra.mxu0 %v5648
        %v6668 = vpop.f32.mrf.mxu0
        %v6669 = vadd.f32 %v6650, %v6668
        %v6670 = vpop.f32.mrf.mxu0
        %v6671 = vadd.f32 %v6652, %v6670
        %6672 = vdwg.mxu0
        %6673 = vmatpush.bf16.msra.mxu0 %v6265
        %6674 = vmatpush.bf16.msra.mxu0 %v6263
        %6675 = vmatpush.bf16.msra.mxu0 %v6261
        %6676 = vmatpush.bf16.msra.mxu0 %v6259
        %6677 = vmatpush.bf16.msra.mxu0 %v6257
        %6678 = vmatpush.bf16.msra.mxu0 %v6255
        %6679 = vmatpush.bf16.msra.mxu0 %v6253
        %6680 = vmatpush.bf16.msra.mxu0 %v6251
        %6681 = vmatmul.bf16.gmra.mxu0 %v5641
        %v6682 = vpop.f32.mrf.mxu0
        %v6683 = vadd.f32 %v6664, %v6682
        %v6684 = vpop.f32.mrf.mxu0
        %v6685 = vadd.f32 %v6666, %v6684
        %6686 = vmatmul.bf16.gmra.mxu0 %v5649
        %v6687 = vpop.f32.mrf.mxu0
        %v6688 = vadd.f32 %v6669, %v6687
        %v6689 = vpop.f32.mrf.mxu0
        %v6690 = vadd.f32 %v6671, %v6689
        %6691 = vdwg.mxu0
        %6692 = vmatpush.bf16.msra.mxu0 %v6281
        %6693 = vmatpush.bf16.msra.mxu0 %v6279
        %6694 = vmatpush.bf16.msra.mxu0 %v6277
        %6695 = vmatpush.bf16.msra.mxu0 %v6275
        %6696 = vmatpush.bf16.msra.mxu0 %v6273
        %6697 = vmatpush.bf16.msra.mxu0 %v6271
        %6698 = vmatpush.bf16.msra.mxu0 %v6269
        %6699 = vmatpush.bf16.msra.mxu0 %v6267
        %6700 = vmatmul.bf16.gmra.mxu0 %v5642
        %v6701 = vpop.f32.mrf.mxu0
        %v6702 = vadd.f32 %v6683, %v6701
        %v6703 = vpop.f32.mrf.mxu0
        %v6704 = vadd.f32 %v6685, %v6703
        %6705 = vmatmul.bf16.gmra.mxu0 %v5650
        %v6706 = vpop.f32.mrf.mxu0
        %v6707 = vadd.f32 %v6688, %v6706
        %v6708 = vpop.f32.mrf.mxu0
        %v6709 = vadd.f32 %v6690, %v6708
        %6710 = vdwg.mxu0
        %6711 = vmatpush.bf16.msra.mxu0 %v6297
        %6712 = vmatpush.bf16.msra.mxu0 %v6295
        %6713 = vmatpush.bf16.msra.mxu0 %v6293
        %6714 = vmatpush.bf16.msra.mxu0 %v6291
        %6715 = vmatpush.bf16.msra.mxu0 %v6289
        %6716 = vmatpush.bf16.msra.mxu0 %v6287
        %6717 = vmatpush.bf16.msra.mxu0 %v6285
        %6718 = vmatpush.bf16.msra.mxu0 %v6283
        %6719 = vmatmul.bf16.gmra.mxu0 %v5643
        %v6720 = vpop.f32.mrf.mxu0
        %v6721 = vadd.f32 %v6702, %v6720
        %v6722 = vpop.f32.mrf.mxu0
        %v6723 = vadd.f32 %v6704, %v6722
        %6724 = vmatmul.bf16.gmra.mxu0 %v5651
        %v6725 = vpop.f32.mrf.mxu0
        %v6726 = vadd.f32 %v6707, %v6725
        %v6727 = vpop.f32.mrf.mxu0
        %v6728 = vadd.f32 %v6709, %v6727
        %6729 = vdwg.mxu0
        %v6730 = vadd.f32 %v4502, %v6569
        %v6731 = vadd.f32 %v4503, %v6721
        %v6732 = vadd.f32 %v4504, %v6571
        %v6733 = vadd.f32 %v4505, %v6723
        %v6734 = vadd.f32 %v4506, %v6574
        %v6735 = vadd.f32 %v4507, %v6726
        %v6736 = vadd.f32 %v4508, %v6576
        %v6737 = vadd.f32 %v4509, %v6728
        %v6738 = vadd.f32 %v6730, %v6731
        %6739 = vadd.xlane.f32.xlu0 %v6738
        %v6740 = vpop.xlane.xlu0 %6739
        %v6741 = vadd.f32 %v6732, %v6733
        %6742 = vadd.xlane.f32.xlu0 %v6741
        %v6743 = vpop.xlane.xlu0 %6742
        %v6744 = vadd.f32 %v6734, %v6735
        %6745 = vadd.xlane.f32.xlu0 %v6744
        %v6746 = vpop.xlane.xlu0 %6745
        %v6747 = vadd.f32 %v6736, %v6737
        %6748 = vadd.xlane.f32.xlu0 %v6747
        %v6749 = vpop.xlane.xlu0 %6748
        %v6750 = vmul.f32 %v6740, %v4393
        %v6751 = vmul.f32 %v6743, %v4393
        %v6752 = vmul.f32 %v6746, %v4393
        %v6753 = vmul.f32 %v6749, %v4393
        %v6754 = vsub.f32 %v6730, %v6750
        %v6755 = vsub.f32 %v6731, %v6750
        %v6756 = vsub.f32 %v6732, %v6751
        %v6757 = vsub.f32 %v6733, %v6751
        %v6758 = vsub.f32 %v6734, %v6752
        %v6759 = vsub.f32 %v6735, %v6752
        %v6760 = vsub.f32 %v6736, %v6753
        %v6761 = vsub.f32 %v6737, %v6753
        %v6762 = vmul.f32 %v6754, %v6754
        %v6763 = vmul.f32 %v6755, %v6755
        %v6764 = vmul.f32 %v6756, %v6756
        %v6765 = vmul.f32 %v6757, %v6757
        %v6766 = vmul.f32 %v6758, %v6758
        %v6767 = vmul.f32 %v6759, %v6759
        %v6768 = vmul.f32 %v6760, %v6760
        %v6769 = vmul.f32 %v6761, %v6761
        %v6770 = vadd.f32 %v6762, %v6763
        %6771 = vadd.xlane.f32.xlu0 %v6770
        %v6772 = vpop.xlane.xlu0 %6771
        %v6773 = vadd.f32 %v6764, %v6765
        %6774 = vadd.xlane.f32.xlu0 %v6773
        %v6775 = vpop.xlane.xlu0 %6774
        %v6776 = vadd.f32 %v6766, %v6767
        %6777 = vadd.xlane.f32.xlu0 %v6776
        %v6778 = vpop.xlane.xlu0 %6777
        %v6779 = vadd.f32 %v6768, %v6769
        %6780 = vadd.xlane.f32.xlu0 %v6779
        %v6781 = vpop.xlane.xlu0 %6780
        %v6782 = vmul.f32 %v6772, %v4393
        %v6783 = vmul.f32 %v6775, %v4393
        %v6784 = vmul.f32 %v6778, %v4393
        %v6785 = vmul.f32 %v6781, %v4393
        %v6786 = vadd.f32 %v6782, 1e-05
        %v6787 = vadd.f32 %v6783, 1e-05
        %v6788 = vadd.f32 %v6784, 1e-05
        %v6789 = vadd.f32 %v6785, 1e-05
        %v6790 = vrsqrt.pop %v6786
        %v6791 = vmul.f32 %v6790, %v6786
        %v6792 = vmul.f32 %v6791, %v6790
        %v6793 = vmul.f32 0.5, %v6792
        %v6794 = vsub.f32 1.5, %v6793
        %v6795 = vmul.f32 %v6790, %v6794
        %vm6796 = vweird.f32 %v6786
        %vm6797 = vweird.f32 %v6790
        %vm6798 = vmor %vm6796, %vm6797
        %v6799 = vsel %vm6798, %v6790, %v6795
        %v6800 = vrsqrt.pop %v6787
        %v6801 = vmul.f32 %v6800, %v6787
        %v6802 = vmul.f32 %v6801, %v6800
        %v6803 = vmul.f32 0.5, %v6802
        %v6804 = vsub.f32 1.5, %v6803
        %v6805 = vmul.f32 %v6800, %v6804
        %vm6806 = vweird.f32 %v6787
        %vm6807 = vweird.f32 %v6800
        %vm6808 = vmor %vm6806, %vm6807
        %v6809 = vsel %vm6808, %v6800, %v6805
        %v6810 = vrsqrt.pop %v6788
        %v6811 = vmul.f32 %v6810, %v6788
        %v6812 = vmul.f32 %v6811, %v6810
        %v6813 = vmul.f32 0.5, %v6812
        %v6814 = vsub.f32 1.5, %v6813
        %v6815 = vmul.f32 %v6810, %v6814
        %vm6816 = vweird.f32 %v6788
        %vm6817 = vweird.f32 %v6810
        %vm6818 = vmor %vm6816, %vm6817
        %v6819 = vsel %vm6818, %v6810, %v6815
        %v6820 = vrsqrt.pop %v6789
        %v6821 = vmul.f32 %v6820, %v6789
        %v6822 = vmul.f32 %v6821, %v6820
        %v6823 = vmul.f32 0.5, %v6822
        %v6824 = vsub.f32 1.5, %v6823
        %v6825 = vmul.f32 %v6820, %v6824
        %vm6826 = vweird.f32 %v6789
        %vm6827 = vweird.f32 %v6820
        %vm6828 = vmor %vm6826, %vm6827
        %v6829 = vsel %vm6828, %v6820, %v6825
        %v6830 = vmul.f32 %v6754, %v6799
        %v6831 = vmul.f32 %v6755, %v6799
        %v6832 = vmul.f32 %v6756, %v6809
        %v6833 = vmul.f32 %v6757, %v6809
        %v6834 = vmul.f32 %v6758, %v6819
        %v6835 = vmul.f32 %v6759, %v6819
        %v6836 = vmul.f32 %v6760, %v6829
        %v6837 = vmul.f32 %v6761, %v6829
        %v6838 = vld [vmem:[%s926] sm:$0x3]
        %v6840 = vperm.slane %v6838, 0
        %v6841 = vperm.slane %v6838, 1
        %v6844 = vmul.f32 %v6830, %v6840
        %v6845 = vmul.f32 %v6831, %v6841
        %v6846 = vmul.f32 %v6832, %v6840
        %v6847 = vmul.f32 %v6833, %v6841
        %v6848 = vmul.f32 %v6834, %v6840
        %v6849 = vmul.f32 %v6835, %v6841
        %v6850 = vmul.f32 %v6836, %v6840
        %v6851 = vmul.f32 %v6837, %v6841
        %v6852 = vld [vmem:[%s936] sm:$0x3]
        %v6854 = vperm.slane %v6852, 0
        %v6855 = vperm.slane %v6852, 1
        %v6858 = vadd.f32 %v6844, %v6854
        %v6859 = vadd.f32 %v6845, %v6855
        %v6860 = vadd.f32 %v6846, %v6854
        %v6861 = vadd.f32 %v6847, %v6855
        %v6862 = vadd.f32 %v6848, %v6854
        %v6863 = vadd.f32 %v6849, %v6855
        %v6864 = vadd.f32 %v6850, %v6854
        %v6865 = vadd.f32 %v6851, %v6855
        %6866 = vst [vmem:[#allocation2] sm:$0xff] %v6858
        %6867 = vst [vmem:[#allocation2 + $0x8] sm:$0xff] %v6859
        %6868 = vst [vmem:[#allocation2 + $0x10] sm:$0xff] %v6860
        %6869 = vst [vmem:[#allocation2 + $0x18] sm:$0xff] %v6861
        %6870 = vst [vmem:[#allocation2 + $0x20] sm:$0xff] %v6862
        %6871 = vst [vmem:[#allocation2 + $0x28] sm:$0xff] %v6863
        %6872 = vst [vmem:[#allocation2 + $0x30] sm:$0xff] %v6864
        %6873 = vst [vmem:[#allocation2 + $0x38] sm:$0xff] %v6865
        %p6874 = scmp.eq.s32.totalorder %s55, 3
        // Predicated region
        $region153: #{feature_matcher_forward.1} parent=87 // pred_check
          %p6875 = pneg %p6874
        $region154: #{feature_matcher_forward.1} parent=87 // pred_check_branch
          %6877 = sbr.rel (%p6875) target = $region156
        $region155: #{feature_matcher_forward.1} parent=87 // pred_region
          %v6878 = vpack.c.bf16 %v6860, %v6858
          %v6879 = vpack.c.bf16 %v6861, %v6859
          %v6880 = vpack.c.bf16 %v6864, %v6862
          %v6881 = vpack.c.bf16 %v6865, %v6863
          %v6882 = vld [vmem:[#allocation22] sm:$0xff]
          %v6883 = vld [vmem:[#allocation22 + $0x8] sm:$0xff]
          %v6884 = vld [vmem:[#allocation22 + $0x10] sm:$0xff]
          %v6885 = vld [vmem:[#allocation22 + $0x18] sm:$0xff]
          %v6886 = vld [vmem:[#allocation22 + $0x20] sm:$0xff]
          %v6887 = vld [vmem:[#allocation22 + $0x28] sm:$0xff]
          %v6888 = vld [vmem:[#allocation22 + $0x30] sm:$0xff]
          %v6889 = vld [vmem:[#allocation22 + $0x38] sm:$0xff]
          %v6890 = vld [vmem:[#allocation22 + $0x40] sm:$0xff]
          %v6891 = vld [vmem:[#allocation22 + $0x48] sm:$0xff]
          %v6892 = vld [vmem:[#allocation22 + $0x50] sm:$0xff]
          %v6893 = vld [vmem:[#allocation22 + $0x58] sm:$0xff]
          %v6894 = vld [vmem:[#allocation22 + $0x60] sm:$0xff]
          %v6895 = vld [vmem:[#allocation22 + $0x68] sm:$0xff]
          %v6896 = vld [vmem:[#allocation22 + $0x70] sm:$0xff]
          %v6897 = vld [vmem:[#allocation22 + $0x78] sm:$0xff]
          %v6898 = vld [vmem:[#allocation22 + $0x80] sm:$0xff]
          %v6899 = vld [vmem:[#allocation22 + $0x88] sm:$0xff]
          %v6900 = vld [vmem:[#allocation22 + $0x90] sm:$0xff]
          %v6901 = vld [vmem:[#allocation22 + $0x98] sm:$0xff]
          %v6902 = vld [vmem:[#allocation22 + $0xa0] sm:$0xff]
          %v6903 = vld [vmem:[#allocation22 + $0xa8] sm:$0xff]
          %v6904 = vld [vmem:[#allocation22 + $0xb0] sm:$0xff]
          %v6905 = vld [vmem:[#allocation22 + $0xb8] sm:$0xff]
          %v6906 = vld [vmem:[#allocation22 + $0xc0] sm:$0xff]
          %v6907 = vld [vmem:[#allocation22 + $0xc8] sm:$0xff]
          %v6908 = vld [vmem:[#allocation22 + $0xd0] sm:$0xff]
          %v6909 = vld [vmem:[#allocation22 + $0xd8] sm:$0xff]
          %v6910 = vld [vmem:[#allocation22 + $0xe0] sm:$0xff]
          %v6911 = vld [vmem:[#allocation22 + $0xe8] sm:$0xff]
          %v6912 = vld [vmem:[#allocation22 + $0xf0] sm:$0xff]
          %v6913 = vld [vmem:[#allocation22 + $0xf8] sm:$0xff]
          %v6914 = vld [vmem:[#allocation23] sm:$0xff]
          %v6915 = vld [vmem:[#allocation23 + $0x8] sm:$0xff]
          %v6916 = vld [vmem:[#allocation23 + $0x10] sm:$0xff]
          %v6917 = vld [vmem:[#allocation23 + $0x18] sm:$0xff]
          %v6918 = vld [vmem:[#allocation23 + $0x20] sm:$0xff]
          %v6919 = vld [vmem:[#allocation23 + $0x28] sm:$0xff]
          %v6920 = vld [vmem:[#allocation23 + $0x30] sm:$0xff]
          %v6921 = vld [vmem:[#allocation23 + $0x38] sm:$0xff]
          %v6922 = vld [vmem:[#allocation23 + $0x40] sm:$0xff]
          %v6923 = vld [vmem:[#allocation23 + $0x48] sm:$0xff]
          %v6924 = vld [vmem:[#allocation23 + $0x50] sm:$0xff]
          %v6925 = vld [vmem:[#allocation23 + $0x58] sm:$0xff]
          %v6926 = vld [vmem:[#allocation23 + $0x60] sm:$0xff]
          %v6927 = vld [vmem:[#allocation23 + $0x68] sm:$0xff]
          %v6928 = vld [vmem:[#allocation23 + $0x70] sm:$0xff]
          %v6929 = vld [vmem:[#allocation23 + $0x78] sm:$0xff]
          %v6930 = vld [vmem:[#allocation23 + $0x80] sm:$0xff]
          %v6931 = vld [vmem:[#allocation23 + $0x88] sm:$0xff]
          %v6932 = vld [vmem:[#allocation23 + $0x90] sm:$0xff]
          %v6933 = vld [vmem:[#allocation23 + $0x98] sm:$0xff]
          %v6934 = vld [vmem:[#allocation23 + $0xa0] sm:$0xff]
          %v6935 = vld [vmem:[#allocation23 + $0xa8] sm:$0xff]
          %v6936 = vld [vmem:[#allocation23 + $0xb0] sm:$0xff]
          %v6937 = vld [vmem:[#allocation23 + $0xb8] sm:$0xff]
          %v6938 = vld [vmem:[#allocation23 + $0xc0] sm:$0xff]
          %v6939 = vld [vmem:[#allocation23 + $0xc8] sm:$0xff]
          %v6940 = vld [vmem:[#allocation23 + $0xd0] sm:$0xff]
          %v6941 = vld [vmem:[#allocation23 + $0xd8] sm:$0xff]
          %v6942 = vld [vmem:[#allocation23 + $0xe0] sm:$0xff]
          %v6943 = vld [vmem:[#allocation23 + $0xe8] sm:$0xff]
          %v6944 = vld [vmem:[#allocation23 + $0xf0] sm:$0xff]
          %v6945 = vld [vmem:[#allocation23 + $0xf8] sm:$0xff]
          %v6978 = vunpack.c.l.b16 %v6914
          %v6979 = vunpack.c.h.b16 %v6914
          %v6980 = vunpack.c.l.b16 %v6915
          %v6981 = vunpack.c.h.b16 %v6915
          %v6982 = vunpack.c.l.b16 %v6916
          %v6983 = vunpack.c.h.b16 %v6916
          %v6984 = vunpack.c.l.b16 %v6917
          %v6985 = vunpack.c.h.b16 %v6917
          %v6986 = vunpack.c.l.b16 %v6918
          %v6987 = vunpack.c.h.b16 %v6918
          %v6988 = vunpack.c.l.b16 %v6919
          %v6989 = vunpack.c.h.b16 %v6919
          %v6990 = vunpack.c.l.b16 %v6920
          %v6991 = vunpack.c.h.b16 %v6920
          %v6992 = vunpack.c.l.b16 %v6921
          %v6993 = vunpack.c.h.b16 %v6921
          %v6994 = vunpack.c.l.b16 %v6922
          %v6995 = vunpack.c.h.b16 %v6922
          %v6996 = vunpack.c.l.b16 %v6923
          %v6997 = vunpack.c.h.b16 %v6923
          %v6998 = vunpack.c.l.b16 %v6924
          %v6999 = vunpack.c.h.b16 %v6924
          %v7000 = vunpack.c.l.b16 %v6925
          %v7001 = vunpack.c.h.b16 %v6925
          %v7002 = vunpack.c.l.b16 %v6926
          %v7003 = vunpack.c.h.b16 %v6926
          %v7004 = vunpack.c.l.b16 %v6927
          %v7005 = vunpack.c.h.b16 %v6927
          %v7006 = vunpack.c.l.b16 %v6928
          %v7007 = vunpack.c.h.b16 %v6928
          %v7008 = vunpack.c.l.b16 %v6929
          %v7009 = vunpack.c.h.b16 %v6929
          %v7010 = vunpack.c.l.b16 %v6930
          %v7011 = vunpack.c.h.b16 %v6930
          %v7012 = vunpack.c.l.b16 %v6931
          %v7013 = vunpack.c.h.b16 %v6931
          %v7014 = vunpack.c.l.b16 %v6932
          %v7015 = vunpack.c.h.b16 %v6932
          %v7016 = vunpack.c.l.b16 %v6933
          %v7017 = vunpack.c.h.b16 %v6933
          %v7018 = vunpack.c.l.b16 %v6934
          %v7019 = vunpack.c.h.b16 %v6934
          %v7020 = vunpack.c.l.b16 %v6935
          %v7021 = vunpack.c.h.b16 %v6935
          %v7022 = vunpack.c.l.b16 %v6936
          %v7023 = vunpack.c.h.b16 %v6936
          %v7024 = vunpack.c.l.b16 %v6937
          %v7025 = vunpack.c.h.b16 %v6937
          %v7026 = vunpack.c.l.b16 %v6938
          %v7027 = vunpack.c.h.b16 %v6938
          %v7028 = vunpack.c.l.b16 %v6939
          %v7029 = vunpack.c.h.b16 %v6939
          %v7030 = vunpack.c.l.b16 %v6940
          %v7031 = vunpack.c.h.b16 %v6940
          %v7032 = vunpack.c.l.b16 %v6941
          %v7033 = vunpack.c.h.b16 %v6941
          %v7034 = vunpack.c.l.b16 %v6942
          %v7035 = vunpack.c.h.b16 %v6942
          %v7036 = vunpack.c.l.b16 %v6943
          %v7037 = vunpack.c.h.b16 %v6943
          %v7038 = vunpack.c.l.b16 %v6944
          %v7039 = vunpack.c.h.b16 %v6944
          %v7040 = vunpack.c.l.b16 %v6945
          %v7041 = vunpack.c.h.b16 %v6945
          %v7042 = vpack.c.b16 %v6980, %v6978
          %v7043 = vpack.c.b16 %v6981, %v6979
          %v7044 = vpack.c.b16 %v6984, %v6982
          %v7045 = vpack.c.b16 %v6985, %v6983
          %v7046 = vpack.c.b16 %v6988, %v6986
          %v7047 = vpack.c.b16 %v6989, %v6987
          %v7048 = vpack.c.b16 %v6992, %v6990
          %v7049 = vpack.c.b16 %v6993, %v6991
          %v7050 = vpack.c.b16 %v6996, %v6994
          %v7051 = vpack.c.b16 %v6997, %v6995
          %v7052 = vpack.c.b16 %v7000, %v6998
          %v7053 = vpack.c.b16 %v7001, %v6999
          %v7054 = vpack.c.b16 %v7004, %v7002
          %v7055 = vpack.c.b16 %v7005, %v7003
          %v7056 = vpack.c.b16 %v7008, %v7006
          %v7057 = vpack.c.b16 %v7009, %v7007
          %v7058 = vpack.c.b16 %v7012, %v7010
          %v7059 = vpack.c.b16 %v7013, %v7011
          %v7060 = vpack.c.b16 %v7016, %v7014
          %v7061 = vpack.c.b16 %v7017, %v7015
          %v7062 = vpack.c.b16 %v7020, %v7018
          %v7063 = vpack.c.b16 %v7021, %v7019
          %v7064 = vpack.c.b16 %v7024, %v7022
          %v7065 = vpack.c.b16 %v7025, %v7023
          %v7066 = vpack.c.b16 %v7028, %v7026
          %v7067 = vpack.c.b16 %v7029, %v7027
          %v7068 = vpack.c.b16 %v7032, %v7030
          %v7069 = vpack.c.b16 %v7033, %v7031
          %v7070 = vpack.c.b16 %v7036, %v7034
          %v7071 = vpack.c.b16 %v7037, %v7035
          %v7072 = vpack.c.b16 %v7040, %v7038
          %v7073 = vpack.c.b16 %v7041, %v7039
          %7106 = vmatpush.bf16.msra.mxu0 %v7056
          %7107 = vmatpush.bf16.msra.mxu0 %v7054
          %7108 = vmatpush.bf16.msra.mxu0 %v7052
          %7109 = vmatpush.bf16.msra.mxu0 %v7050
          %7110 = vmatpush.bf16.msra.mxu0 %v7048
          %7111 = vmatpush.bf16.msra.mxu0 %v7046
          %7112 = vmatpush.bf16.msra.mxu0 %v7044
          %7113 = vmatpush.bf16.msra.mxu0 %v7042
          %7114 = vmatmul.bf16.gmra.mxu0 %v6880
          %v7115 = vpop.f32.mrf.mxu0
          %v7116 = vadd.f32 0.0, %v7115
          %v7117 = vpop.f32.mrf.mxu0
          %v7118 = vadd.f32 0.0, %v7117
          %7119 = vdwg.mxu0
          %7120 = vmatpush.bf16.msra.mxu0 %v7072
          %7121 = vmatpush.bf16.msra.mxu0 %v7070
          %7122 = vmatpush.bf16.msra.mxu0 %v7068
          %7123 = vmatpush.bf16.msra.mxu0 %v7066
          %7124 = vmatpush.bf16.msra.mxu0 %v7064
          %7125 = vmatpush.bf16.msra.mxu0 %v7062
          %7126 = vmatpush.bf16.msra.mxu0 %v7060
          %7127 = vmatpush.bf16.msra.mxu0 %v7058
          %7128 = vmatmul.bf16.gmra.mxu0 %v6881
          %v7129 = vpop.f32.mrf.mxu0
          %v7130 = vadd.f32 %v7116, %v7129
          %v7131 = vpop.f32.mrf.mxu0
          %v7132 = vadd.f32 %v7118, %v7131
          %7133 = vdwg.mxu0
          %7134 = vmatpush.bf16.msra.mxu0 %v7057
          %7135 = vmatpush.bf16.msra.mxu0 %v7055
          %7136 = vmatpush.bf16.msra.mxu0 %v7053
          %7137 = vmatpush.bf16.msra.mxu0 %v7051
          %7138 = vmatpush.bf16.msra.mxu0 %v7049
          %7139 = vmatpush.bf16.msra.mxu0 %v7047
          %7140 = vmatpush.bf16.msra.mxu0 %v7045
          %7141 = vmatpush.bf16.msra.mxu0 %v7043
          %7142 = vmatmul.bf16.gmra.mxu0 %v6880
          %v7143 = vpop.f32.mrf.mxu0
          %v7144 = vadd.f32 0.0, %v7143
          %v7145 = vpop.f32.mrf.mxu0
          %v7146 = vadd.f32 0.0, %v7145
          %7147 = vdwg.mxu0
          %7148 = vmatpush.bf16.msra.mxu0 %v7073
          %7149 = vmatpush.bf16.msra.mxu0 %v7071
          %7150 = vmatpush.bf16.msra.mxu0 %v7069
          %7151 = vmatpush.bf16.msra.mxu0 %v7067
          %7152 = vmatpush.bf16.msra.mxu0 %v7065
          %7153 = vmatpush.bf16.msra.mxu0 %v7063
          %7154 = vmatpush.bf16.msra.mxu0 %v7061
          %7155 = vmatpush.bf16.msra.mxu0 %v7059
          %7156 = vmatmul.bf16.gmra.mxu0 %v6881
          %v7157 = vpop.f32.mrf.mxu0
          %v7158 = vadd.f32 %v7144, %v7157
          %v7159 = vpop.f32.mrf.mxu0
          %v7160 = vadd.f32 %v7146, %v7159
          %7161 = vdwg.mxu0
          %v7194 = vunpack.c.l.b16 %v6882
          %v7195 = vunpack.c.h.b16 %v6882
          %v7196 = vunpack.c.l.b16 %v6883
          %v7197 = vunpack.c.h.b16 %v6883
          %v7198 = vunpack.c.l.b16 %v6884
          %v7199 = vunpack.c.h.b16 %v6884
          %v7200 = vunpack.c.l.b16 %v6885
          %v7201 = vunpack.c.h.b16 %v6885
          %v7202 = vunpack.c.l.b16 %v6886
          %v7203 = vunpack.c.h.b16 %v6886
          %v7204 = vunpack.c.l.b16 %v6887
          %v7205 = vunpack.c.h.b16 %v6887
          %v7206 = vunpack.c.l.b16 %v6888
          %v7207 = vunpack.c.h.b16 %v6888
          %v7208 = vunpack.c.l.b16 %v6889
          %v7209 = vunpack.c.h.b16 %v6889
          %v7210 = vunpack.c.l.b16 %v6890
          %v7211 = vunpack.c.h.b16 %v6890
          %v7212 = vunpack.c.l.b16 %v6891
          %v7213 = vunpack.c.h.b16 %v6891
          %v7214 = vunpack.c.l.b16 %v6892
          %v7215 = vunpack.c.h.b16 %v6892
          %v7216 = vunpack.c.l.b16 %v6893
          %v7217 = vunpack.c.h.b16 %v6893
          %v7218 = vunpack.c.l.b16 %v6894
          %v7219 = vunpack.c.h.b16 %v6894
          %v7220 = vunpack.c.l.b16 %v6895
          %v7221 = vunpack.c.h.b16 %v6895
          %v7222 = vunpack.c.l.b16 %v6896
          %v7223 = vunpack.c.h.b16 %v6896
          %v7224 = vunpack.c.l.b16 %v6897
          %v7225 = vunpack.c.h.b16 %v6897
          %v7226 = vunpack.c.l.b16 %v6898
          %v7227 = vunpack.c.h.b16 %v6898
          %v7228 = vunpack.c.l.b16 %v6899
          %v7229 = vunpack.c.h.b16 %v6899
          %v7230 = vunpack.c.l.b16 %v6900
          %v7231 = vunpack.c.h.b16 %v6900
          %v7232 = vunpack.c.l.b16 %v6901
          %v7233 = vunpack.c.h.b16 %v6901
          %v7234 = vunpack.c.l.b16 %v6902
          %v7235 = vunpack.c.h.b16 %v6902
          %v7236 = vunpack.c.l.b16 %v6903
          %v7237 = vunpack.c.h.b16 %v6903
          %v7238 = vunpack.c.l.b16 %v6904
          %v7239 = vunpack.c.h.b16 %v6904
          %v7240 = vunpack.c.l.b16 %v6905
          %v7241 = vunpack.c.h.b16 %v6905
          %v7242 = vunpack.c.l.b16 %v6906
          %v7243 = vunpack.c.h.b16 %v6906
          %v7244 = vunpack.c.l.b16 %v6907
          %v7245 = vunpack.c.h.b16 %v6907
          %v7246 = vunpack.c.l.b16 %v6908
          %v7247 = vunpack.c.h.b16 %v6908
          %v7248 = vunpack.c.l.b16 %v6909
          %v7249 = vunpack.c.h.b16 %v6909
          %v7250 = vunpack.c.l.b16 %v6910
          %v7251 = vunpack.c.h.b16 %v6910
          %v7252 = vunpack.c.l.b16 %v6911
          %v7253 = vunpack.c.h.b16 %v6911
          %v7254 = vunpack.c.l.b16 %v6912
          %v7255 = vunpack.c.h.b16 %v6912
          %v7256 = vunpack.c.l.b16 %v6913
          %v7257 = vunpack.c.h.b16 %v6913
          %v7258 = vpack.c.b16 %v7196, %v7194
          %v7259 = vpack.c.b16 %v7197, %v7195
          %v7260 = vpack.c.b16 %v7200, %v7198
          %v7261 = vpack.c.b16 %v7201, %v7199
          %v7262 = vpack.c.b16 %v7204, %v7202
          %v7263 = vpack.c.b16 %v7205, %v7203
          %v7264 = vpack.c.b16 %v7208, %v7206
          %v7265 = vpack.c.b16 %v7209, %v7207
          %v7266 = vpack.c.b16 %v7212, %v7210
          %v7267 = vpack.c.b16 %v7213, %v7211
          %v7268 = vpack.c.b16 %v7216, %v7214
          %v7269 = vpack.c.b16 %v7217, %v7215
          %v7270 = vpack.c.b16 %v7220, %v7218
          %v7271 = vpack.c.b16 %v7221, %v7219
          %v7272 = vpack.c.b16 %v7224, %v7222
          %v7273 = vpack.c.b16 %v7225, %v7223
          %v7274 = vpack.c.b16 %v7228, %v7226
          %v7275 = vpack.c.b16 %v7229, %v7227
          %v7276 = vpack.c.b16 %v7232, %v7230
          %v7277 = vpack.c.b16 %v7233, %v7231
          %v7278 = vpack.c.b16 %v7236, %v7234
          %v7279 = vpack.c.b16 %v7237, %v7235
          %v7280 = vpack.c.b16 %v7240, %v7238
          %v7281 = vpack.c.b16 %v7241, %v7239
          %v7282 = vpack.c.b16 %v7244, %v7242
          %v7283 = vpack.c.b16 %v7245, %v7243
          %v7284 = vpack.c.b16 %v7248, %v7246
          %v7285 = vpack.c.b16 %v7249, %v7247
          %v7286 = vpack.c.b16 %v7252, %v7250
          %v7287 = vpack.c.b16 %v7253, %v7251
          %v7288 = vpack.c.b16 %v7256, %v7254
          %v7289 = vpack.c.b16 %v7257, %v7255
          %7322 = vmatpush.bf16.msra.mxu0 %v7272
          %7323 = vmatpush.bf16.msra.mxu0 %v7270
          %7324 = vmatpush.bf16.msra.mxu0 %v7268
          %7325 = vmatpush.bf16.msra.mxu0 %v7266
          %7326 = vmatpush.bf16.msra.mxu0 %v7264
          %7327 = vmatpush.bf16.msra.mxu0 %v7262
          %7328 = vmatpush.bf16.msra.mxu0 %v7260
          %7329 = vmatpush.bf16.msra.mxu0 %v7258
          %7330 = vmatmul.bf16.gmra.mxu0 %v6878
          %v7331 = vpop.f32.mrf.mxu0
          %v7332 = vadd.f32 %v7130, %v7331
          %v7333 = vpop.f32.mrf.mxu0
          %v7334 = vadd.f32 %v7132, %v7333
          %7335 = vdwg.mxu0
          %7336 = vmatpush.bf16.msra.mxu0 %v7288
          %7337 = vmatpush.bf16.msra.mxu0 %v7286
          %7338 = vmatpush.bf16.msra.mxu0 %v7284
          %7339 = vmatpush.bf16.msra.mxu0 %v7282
          %7340 = vmatpush.bf16.msra.mxu0 %v7280
          %7341 = vmatpush.bf16.msra.mxu0 %v7278
          %7342 = vmatpush.bf16.msra.mxu0 %v7276
          %7343 = vmatpush.bf16.msra.mxu0 %v7274
          %7344 = vmatmul.bf16.gmra.mxu0 %v6879
          %v7345 = vpop.f32.mrf.mxu0
          %v7346 = vadd.f32 %v7332, %v7345
          %v7347 = vpop.f32.mrf.mxu0
          %v7348 = vadd.f32 %v7334, %v7347
          %7349 = vdwg.mxu0
          %7350 = vmatpush.bf16.msra.mxu0 %v7273
          %7351 = vmatpush.bf16.msra.mxu0 %v7271
          %7352 = vmatpush.bf16.msra.mxu0 %v7269
          %7353 = vmatpush.bf16.msra.mxu0 %v7267
          %7354 = vmatpush.bf16.msra.mxu0 %v7265
          %7355 = vmatpush.bf16.msra.mxu0 %v7263
          %7356 = vmatpush.bf16.msra.mxu0 %v7261
          %7357 = vmatpush.bf16.msra.mxu0 %v7259
          %7358 = vmatmul.bf16.gmra.mxu0 %v6878
          %v7359 = vpop.f32.mrf.mxu0
          %v7360 = vadd.f32 %v7158, %v7359
          %v7361 = vpop.f32.mrf.mxu0
          %v7362 = vadd.f32 %v7160, %v7361
          %7363 = vdwg.mxu0
          %7364 = vmatpush.bf16.msra.mxu0 %v7289
          %7365 = vmatpush.bf16.msra.mxu0 %v7287
          %7366 = vmatpush.bf16.msra.mxu0 %v7285
          %7367 = vmatpush.bf16.msra.mxu0 %v7283
          %7368 = vmatpush.bf16.msra.mxu0 %v7281
          %7369 = vmatpush.bf16.msra.mxu0 %v7279
          %7370 = vmatpush.bf16.msra.mxu0 %v7277
          %7371 = vmatpush.bf16.msra.mxu0 %v7275
          %7372 = vmatmul.bf16.gmra.mxu0 %v6879
          %v7373 = vpop.f32.mrf.mxu0
          %v7374 = vadd.f32 %v7360, %v7373
          %v7375 = vpop.f32.mrf.mxu0
          %v7376 = vadd.f32 %v7362, %v7375
          %7377 = vdwg.mxu0
          %v7378 = vld [vmem:[#allocation25] sm:$0x3]
          %v7380 = vperm.slane %v7378, 0
          %v7381 = vperm.slane %v7378, 1
          %v7384 = vadd.f32 %v7346, %v7380
          %v7385 = vadd.f32 %v7374, %v7381
          %v7386 = vadd.f32 %v7348, %v7380
          %v7387 = vadd.f32 %v7376, %v7381
          %v7388 = vmax.f32 %v7384, 0.0
          %v7389 = vmax.f32 %v7385, 0.0
          %v7390 = vmax.f32 %v7386, 0.0
          %v7391 = vmax.f32 %v7387, 0.0
          %7392 = vst [vmem:[%s1072] sm:$0xff] %v7388
          %7393 = vst [vmem:[%s1072 + $0x8] sm:$0xff] %v7389
          %7394 = vst [vmem:[%s1072 + $0x10] sm:$0xff] %v7390
          %7395 = vst [vmem:[%s1072 + $0x18] sm:$0xff] %v7391
        $region156: #{feature_matcher_forward.1} parent=87 // pred_fallthru
          _
        %p7396 = scmp.lt.s32.totalorder %s54, 1
        %s7397 = scalar_select %p7396, %s54, 1
        %s7398 = smul.addr %s7397, 4
        %s7399 = smul.addr %s7398, 8
        %s7400 = scalar_lea.vmem %s17, %s7399
        // Predicated region
        $region157: #{feature_matcher_forward.1} parent=87 // pred_check
          %p7401 = pneg %p502
        $region158: #{feature_matcher_forward.1} parent=87 // pred_check_branch
          %7403 = sbr.rel (%p7401) target = $region160
        $region159: #{feature_matcher_forward.1} parent=87 // pred_region
          _
        $region160: #{feature_matcher_forward.1} parent=87 // pred_fallthru
          _
      $region88: #{feature_matcher_forward.1} parent=5 // pred_fallthru
        _
      %p7404 = scmp.le.s32.totalorder 2, %s45
      // Predicated region
      $region161: #{feature_matcher_forward.1} parent=5 // pred_check
        %p7405 = pneg %p7404
      $region162: #{feature_matcher_forward.1} parent=5 // pred_check_branch
        %7407 = sbr.rel (%p7405) target = $region164
      $region163: #{feature_matcher_forward.1} parent=5 // pred_region
        %s7408 = ssub.s32 %s45, 2
        // Predicated region
        $region165: #{feature_matcher_forward.1} parent=163 // pred_check
          %p7409 = pneg %p508
        $region166: #{feature_matcher_forward.1} parent=163 // pred_check_branch
          %7411 = sbr.rel (%p7409) target = $region168
        $region167: #{feature_matcher_forward.1} parent=163 // pred_region
          %p7412 = scmp.lt.s32.totalorder %s56, 1
          %s7413 = scalar_select %p7412, %s56, 1
          %s7414 = smul.addr %s7413, 4
          %s7415 = smul.addr %s7414, 8
          %s7416 = scalar_lea.vmem %s17, %s7415
        $region168: #{feature_matcher_forward.1} parent=163 // pred_fallthru
          _
      $region164: #{feature_matcher_forward.1} parent=5 // pred_fallthru
        _
    $region6: #{feature_matcher_forward.1} parent=1 // loop_footer
      %s49 = sadd.s32 1, %s45
    $region7: #{feature_matcher_forward.1} parent=1 // loop_footer_branch
      %44 = sbr.rel target = $region3
    $region8: #{feature_matcher_forward.1} parent=1 // loop_exit
      _
    %7417 = vsyncpa [#allocation4], 1
    %s7418 = scalar_lea.sflag [#allocation4], 1
    %7419 = vsyncpa %s7418, 1
    %7420 = vsyncpa [#allocation6], 1
    %s7421 = scalar_lea.sflag [#allocation6], 1
    %7422 = vsyncpa %s7421, 1
    %7423 = vsyncpa [#allocation9], 1
    %s7424 = scalar_lea.sflag [#allocation9], 1
    %7425 = vsyncpa %s7424, 1
    %7426 = vsyncpa [#allocation12], 1
    %s7427 = scalar_lea.sflag [#allocation12], 1
    %7428 = vsyncpa %s7427, 1
    %7429 = vsyncpa [#allocation15], 1
    %s7430 = scalar_lea.sflag [#allocation15], 1
    %7431 = vsyncpa %s7430, 1
    %7432 = vsyncpa [#allocation18], 1
    %s7433 = scalar_lea.sflag [#allocation18], 1
    %7434 = vsyncpa %s7433, 1
    %7435 = vsyncpa [#allocation21], 1
    %s7436 = scalar_lea.sflag [#allocation21], 1
    %7437 = vsyncpa %s7436, 1
    %7438 = vsyncpa [#allocation24], 1

</llo_original>
